<compile_context>
chip_gen: v7x
topology: tpu7x:2x2x1
jax: 0.10.0
libtpu: 0.0.40
codegen_flags: <defaults>
</compile_context>

<pallas_src>
import math

import jax
import jax.numpy as jnp
from jax.experimental import pallas as pl
from jax.experimental.pallas import tpu as pltpu

# ---- model config (small, TPU-friendly shapes consistent with the module) ----
FEATURE_DIM = 32
EMBED_DIM = 128
NHEAD = 4
HEAD_DIM = EMBED_DIM // NHEAD
MAX_LEN = 60
EPS = 1e-5            # nn.LayerNorm default eps

BATCH = 16
TIME = 16


def _layernorm(x, gamma, beta):
    mean = jnp.mean(x, axis=-1, keepdims=True)
    var = jnp.mean(jnp.square(x - mean), axis=-1, keepdims=True)
    return (x - mean) * jax.lax.rsqrt(var + EPS) * gamma + beta


# ------------------------------ Pallas kernel --------------------------------
def encoder_kernel(x_ref, pos_ref,
                   w_in_ref, b_in_ref, g_enc_ref, be_enc_ref,
                   w_qkv_ref, b_qkv_ref, g1_ref, bt1_ref,
                   w_f1_ref, bf1_ref, w_f2_ref, bf2_ref,
                   g2_ref, bt2_ref, out_ref, attn_ref):
    bb, t, f = x_ref.shape                 # (BLOCK_B, T, F), x already bf16
    m = bb * t
    bf16 = jnp.bfloat16
    E = EMBED_DIM

    # input projection (bf16 operands, f32 accumulate) + positional encoding
    x2d = x_ref[...].reshape(m, f)
    h = jnp.dot(x2d, w_in_ref[...], preferred_element_type=jnp.float32) + b_in_ref[...]
    h3 = h.reshape(bb, t, E) + pos_ref[...][None]               # (bb,T,E) + (1,T,E)
    h3 = _layernorm(h3, g_enc_ref[...], be_enc_ref[...])        # f32
    h2 = h3.reshape(m, E)

    # fused QKV projection with M = bb*T rows through the MXU
    qkv = jnp.dot(h2.astype(bf16), w_qkv_ref[...],
                  preferred_element_type=jnp.float32) + b_qkv_ref[...]

    # split Q/K/V slabs once; scale Q in f32 on the full 128-lane slab, then a
    # single bf16 cast each; reshape to per-sequence (bb, T, E) views
    scale = 1.0 / math.sqrt(HEAD_DIM)
    q_all = (qkv[:, :E] * scale).astype(bf16).reshape(bb, t, E)
    k_all = qkv[:, E:2 * E].astype(bf16).reshape(bb, t, E)
    v_all = qkv[:, 2 * E:].astype(bf16).reshape(bb, t, E)

    # multi-head attention: per-sequence batched matmuls (no mask needed), each
    # head's PV result written into its fixed lane slice of the VMEM scratch
    for hh in range(NHEAD):
        lo = hh * HEAD_DIM
        qh = q_all[:, :, lo:lo + HEAD_DIM]                      # (bb,T,Dh) bf16
        kh = k_all[:, :, lo:lo + HEAD_DIM]
        vh = v_all[:, :, lo:lo + HEAD_DIM]
        s = jnp.einsum('bqd,bkd->bqk', qh, kh,
                       preferred_element_type=jnp.float32)      # (bb,T,T) f32
        s = s - jnp.max(s, axis=-1, keepdims=True)
        p = jnp.exp(s)
        p = p * pl.reciprocal(jnp.sum(p, axis=-1, keepdims=True), approx=True)
        o = jnp.einsum('bqk,bkd->bqd', p.astype(bf16), vh,
                       preferred_element_type=jnp.float32)      # (bb,T,Dh) f32
        attn_ref[:, :, lo:lo + HEAD_DIM] = o

    # residual + norm1
    x1 = _layernorm(attn_ref[...] + h3, g1_ref[...], bt1_ref[...])   # (bb,T,E)
    x1_2d = x1.reshape(m, E)

    # FFN: Linear -> ReLU -> Linear (ReLU output cast to bf16 immediately)
    f1 = jnp.dot(x1_2d.astype(bf16), w_f1_ref[...],
                 preferred_element_type=jnp.float32) + bf1_ref[...]
    f1 = jnp.maximum(f1, 0.0).astype(bf16)
    f2 = jnp.dot(f1, w_f2_ref[...],
                 preferred_element_type=jnp.float32) + bf2_ref[...]

    # residual + norm2
    out = _layernorm(f2 + x1_2d, g2_ref[...], bt2_ref[...])
    out_ref[...] = out.reshape(bb, t, E)


# ------------------------------ wrapper ---------------------------------------
def _two_tensorcores():
    """Best-effort detection of dual-TensorCore chips (v7x / v4 / v5p)."""
    try:
        kind = jax.devices()[0].device_kind.lower()
    except Exception:
        return False
    return any(tag in kind for tag in ("v7", "7x", "v4", "v5p"))


def intra_stock_encoder(x, p, *, block_b=None):
    B, T, F = x.shape
    E = EMBED_DIM
    bf16 = jnp.bfloat16

    # generation-aware block size: single-TC chips take the whole batch in one
    # grid step; dual-TC chips split it in two so both cores get a block
    if block_b is None:
        block_b = max(1, B // 2) if _two_tensorcores() else B
    block_b = max(1, min(block_b, B))
    while B % block_b:
        block_b -= 1

    # constant operands prepared once (weights pre-cast to bf16 to halve DMA);
    # positional table is passed untiled as (T, E) f32
    operands = [
        p["pos"][:T].astype(jnp.float32),
        p["w_in"].astype(bf16), p["b_in"], p["g_enc"], p["be_enc"],
        p["w_qkv"].astype(bf16), p["b_qkv"], p["g1"], p["bt1"],
        p["w_f1"].astype(bf16), p["bf1"], p["w_f2"].astype(bf16), p["bf2"],
        p["g2"], p["bt2"],
    ]

    def const_spec(a):
        n = a.ndim
        return pl.BlockSpec(tuple(a.shape), lambda b, _n=n: (0,) * _n)

    in_specs = [pl.BlockSpec((block_b, T, F), lambda b: (b, 0, 0))]
    in_specs += [const_spec(a) for a in operands]
    out_spec = pl.BlockSpec((block_b, T, E), lambda b: (b, 0, 0))
    grid = (B // block_b,)

    # advisory cost estimate so XLA can schedule around this short custom call
    mm_flops = 2 * B * T * (F * E + E * 3 * E + E * 4 * E + 4 * E * E)
    attn_flops = 4 * B * NHEAD * T * T * HEAD_DIM
    transcendentals = B * NHEAD * T * T
    bytes_accessed = (x.size * 2 + B * T * E * 4
                      + sum(int(a.size) * a.dtype.itemsize for a in operands))
    cost = pl.CostEstimate(flops=int(mm_flops + attn_flops),
                           transcendentals=int(transcendentals),
                           bytes_accessed=int(bytes_accessed))

    return pl.pallas_call(
        encoder_kernel,
        out_shape=jax.ShapeDtypeStruct((B, T, E), jnp.float32),
        grid=grid,
        in_specs=in_specs,
        out_specs=out_spec,
        scratch_shapes=[pltpu.VMEM((block_b, T, E), jnp.float32)],
        compiler_params=pltpu.CompilerParams(dimension_semantics=("parallel",)),
        cost_estimate=cost,
    )(x.astype(bf16), *operands)


# ------------------------- parameters / reference -----------------------------
def sinusoid_table(seq_len, d_model):
    position = jnp.arange(seq_len, dtype=jnp.float32)[:, None]
    div_term = jnp.exp(jnp.arange(0, d_model, 2, dtype=jnp.float32)
                       * (-math.log(10000.0) / d_model))
    pe = jnp.zeros((seq_len, d_model), jnp.float32)
    pe = pe.at[:, 0::2].set(jnp.sin(position * div_term))
    pe = pe.at[:, 1::2].set(jnp.cos(position * div_term))
    return pe


def init_params(key):
    ks = jax.random.split(key, 4)

    def linear(k, fan_in, fan_out):
        bound = 1.0 / math.sqrt(fan_in)
        kw, kb = jax.random.split(k)
        w = jax.random.uniform(kw, (fan_in, fan_out), jnp.float32, -bound, bound)
        b = jax.random.uniform(kb, (1, fan_out), jnp.float32, -bound, bound)
        return w, b

    w_in, b_in = linear(ks[0], FEATURE_DIM, EMBED_DIM)
    w_qkv, b_qkv = linear(ks[1], EMBED_DIM, 3 * EMBED_DIM)
    w_f1, bf1 = linear(ks[2], EMBED_DIM, 4 * EMBED_DIM)
    w_f2, bf2 = linear(ks[3], 4 * EMBED_DIM, EMBED_DIM)
    ones = jnp.ones((1, EMBED_DIM), jnp.float32)
    zeros = jnp.zeros((1, EMBED_DIM), jnp.float32)
    return dict(
        pos=sinusoid_table(MAX_LEN, EMBED_DIM),
        w_in=w_in, b_in=b_in,
        g_enc=ones, be_enc=zeros,
        w_qkv=w_qkv, b_qkv=b_qkv,
        g1=ones, bt1=zeros,
        w_f1=w_f1, bf1=bf1,
        w_f2=w_f2, bf2=bf2,
        g2=ones, bt2=zeros,
    )


def reference(x, p):
    """Plain-JAX forward of the module with the same bf16-operand / f32-accumulate
    matmul policy as the kernel (LayerNorm / softmax in f32, exact reciprocal)."""
    B, T, _ = x.shape
    bf = jnp.bfloat16

    def mm(a, w):
        return jnp.dot(a.astype(bf), w.astype(bf), preferred_element_type=jnp.float32)

    h = mm(x, p["w_in"]) + p["b_in"]
    h = h + p["pos"][:T][None]
    h = _layernorm(h, p["g_enc"], p["be_enc"])
    qkv = mm(h, p["w_qkv"]) + p["b_qkv"]
    qkv = qkv.reshape(B, T, 3, NHEAD, HEAD_DIM)
    q, k, v = qkv[:, :, 0], qkv[:, :, 1], qkv[:, :, 2]
    q = q * (1.0 / math.sqrt(HEAD_DIM))
    s = jnp.einsum("bthd,bshd->bhts", q.astype(bf), k.astype(bf),
                   preferred_element_type=jnp.float32)
    s = s - jnp.max(s, axis=-1, keepdims=True)
    pr = jnp.exp(s)
    pr = pr / jnp.sum(pr, axis=-1, keepdims=True)
    o = jnp.einsum("bhts,bshd->bthd", pr.astype(bf), v.astype(bf),
                   preferred_element_type=jnp.float32).reshape(B, T, EMBED_DIM)
    x1 = _layernorm(o + h, p["g1"], p["bt1"])
    f = jnp.maximum(mm(x1, p["w_f1"]) + p["bf1"], 0.0)
    f = mm(f, p["w_f2"]) + p["bf2"]
    return _layernorm(f + x1, p["g2"], p["bt2"])


if __name__ == "__main__":
    key = jax.random.PRNGKey(0)
    kx, kp = jax.random.split(key)
    x = jax.random.normal(kx, (BATCH, TIME, FEATURE_DIM), jnp.float32)
    params = init_params(kp)

    out = jax.block_until_ready(intra_stock_encoder(x, params))
    ref = jax.block_until_ready(reference(x, params))

    assert out.shape == (BATCH, TIME, EMBED_DIM)
    max_err = float(jnp.max(jnp.abs(out - ref)))
    assert jnp.allclose(out, ref, atol=5e-3, rtol=5e-3), max_err
    print("KERNEL_OK")
</pallas_src>

<mosaic_0001>
module attributes {stable_mosaic.version = 11 : i64} {
  func.func @encoder_kernel(%arg0: i32, %arg1: memref<16x16x32xbf16, #tpu.memory_space<vmem>>, %arg2: memref<16x128xf32, #tpu.memory_space<vmem>>, %arg3: memref<32x128xbf16, #tpu.memory_space<vmem>>, %arg4: memref<1x128xf32, #tpu.memory_space<vmem>>, %arg5: memref<1x128xf32, #tpu.memory_space<vmem>>, %arg6: memref<1x128xf32, #tpu.memory_space<vmem>>, %arg7: memref<128x384xbf16, #tpu.memory_space<vmem>>, %arg8: memref<1x384xf32, #tpu.memory_space<vmem>>, %arg9: memref<1x128xf32, #tpu.memory_space<vmem>>, %arg10: memref<1x128xf32, #tpu.memory_space<vmem>>, %arg11: memref<128x512xbf16, #tpu.memory_space<vmem>>, %arg12: memref<1x512xf32, #tpu.memory_space<vmem>>, %arg13: memref<512x128xbf16, #tpu.memory_space<vmem>>, %arg14: memref<1x128xf32, #tpu.memory_space<vmem>>, %arg15: memref<1x128xf32, #tpu.memory_space<vmem>>, %arg16: memref<1x128xf32, #tpu.memory_space<vmem>>, %arg17: memref<16x16x128xf32, #tpu.memory_space<vmem>>, %arg18: memref<16x16x128xf32, #tpu.memory_space<vmem>>) attributes {dimension_semantics = [#tpu.dimension_semantics<parallel>], iteration_bounds = array<i64: 1>, scalar_prefetch = 0 : i64, scratch_operands = 1 : i64, tpu.core_type = #tpu.core_type<tc>, window_params = [{transform_indices = @transform_0, window_bounds = array<i64: 16, 16, 32>}, {pipeline_mode = #tpu.pipeline_mode<synchronous>, transform_indices = @transform_1, window_bounds = array<i64: 16, 128>}, {pipeline_mode = #tpu.pipeline_mode<synchronous>, transform_indices = @transform_2, window_bounds = array<i64: 32, 128>}, {pipeline_mode = #tpu.pipeline_mode<synchronous>, transform_indices = @transform_3, window_bounds = array<i64: 1, 128>}, {pipeline_mode = #tpu.pipeline_mode<synchronous>, transform_indices = @transform_4, window_bounds = array<i64: 1, 128>}, {pipeline_mode = #tpu.pipeline_mode<synchronous>, transform_indices = @transform_5, window_bounds = array<i64: 1, 128>}, {pipeline_mode = #tpu.pipeline_mode<synchronous>, transform_indices = @transform_6, window_bounds = array<i64: 128, 384>}, {pipeline_mode = #tpu.pipeline_mode<synchronous>, transform_indices = @transform_7, window_bounds = array<i64: 1, 384>}, {pipeline_mode = #tpu.pipeline_mode<synchronous>, transform_indices = @transform_8, window_bounds = array<i64: 1, 128>}, {pipeline_mode = #tpu.pipeline_mode<synchronous>, transform_indices = @transform_9, window_bounds = array<i64: 1, 128>}, {pipeline_mode = #tpu.pipeline_mode<synchronous>, transform_indices = @transform_10, window_bounds = array<i64: 128, 512>}, {pipeline_mode = #tpu.pipeline_mode<synchronous>, transform_indices = @transform_11, window_bounds = array<i64: 1, 512>}, {pipeline_mode = #tpu.pipeline_mode<synchronous>, transform_indices = @transform_12, window_bounds = array<i64: 512, 128>}, {pipeline_mode = #tpu.pipeline_mode<synchronous>, transform_indices = @transform_13, window_bounds = array<i64: 1, 128>}, {pipeline_mode = #tpu.pipeline_mode<synchronous>, transform_indices = @transform_14, window_bounds = array<i64: 1, 128>}, {pipeline_mode = #tpu.pipeline_mode<synchronous>, transform_indices = @transform_15, window_bounds = array<i64: 1, 128>}, {transform_indices = @transform_16, window_bounds = array<i64: 16, 16, 128>}]} {
    %c0 = arith.constant 0 : index
    %c0_0 = arith.constant 0 : index
    %c0_1 = arith.constant 0 : index
    %0 = vector.load %arg1[%c0, %c0_0, %c0_1] : memref<16x16x32xbf16, #tpu.memory_space<vmem>>, vector<16x16x32xbf16>
    %1 = vector.shape_cast %0 : vector<16x16x32xbf16> to vector<256x32xbf16>
    %c0_2 = arith.constant 0 : index
    %c0_3 = arith.constant 0 : index
    %2 = vector.load %arg3[%c0_2, %c0_3] : memref<32x128xbf16, #tpu.memory_space<vmem>>, vector<32x128xbf16>
    %cst = arith.constant dense<0.000000e+00> : vector<256x128xf32>
    %3 = tpu.matmul %1, %2, %cst {dimension_numbers = #tpu.dot_dimension_numbers<[1], [0], [0], [1], [0, 0, 1, 1], [], []>} : vector<256x32xbf16>, vector<32x128xbf16>, vector<256x128xf32> -> vector<256x128xf32>
    %c0_4 = arith.constant 0 : index
    %c0_5 = arith.constant 0 : index
    %4 = vector.load %arg4[%c0_4, %c0_5] : memref<1x128xf32, #tpu.memory_space<vmem>>, vector<1x128xf32>
    %5 = vector.broadcast %4 : vector<1x128xf32> to vector<256x128xf32>
    %6 = arith.addf %3, %5 : vector<256x128xf32>
    %7 = vector.shape_cast %6 : vector<256x128xf32> to vector<16x16x128xf32>
    %c0_6 = arith.constant 0 : index
    %c0_7 = arith.constant 0 : index
    %8 = vector.load %arg2[%c0_6, %c0_7] : memref<16x128xf32, #tpu.memory_space<vmem>>, vector<16x128xf32>
    %9 = vector.shape_cast %8 : vector<16x128xf32> to vector<1x16x128xf32>
    %10 = vector.broadcast %9 : vector<1x16x128xf32> to vector<16x16x128xf32>
    %11 = arith.addf %7, %10 : vector<16x16x128xf32>
    %c0_8 = arith.constant 0 : index
    %c0_9 = arith.constant 0 : index
    %12 = vector.load %arg5[%c0_8, %c0_9] : memref<1x128xf32, #tpu.memory_space<vmem>>, vector<1x128xf32>
    %c0_10 = arith.constant 0 : index
    %c0_11 = arith.constant 0 : index
    %13 = vector.load %arg6[%c0_10, %c0_11] : memref<1x128xf32, #tpu.memory_space<vmem>>, vector<1x128xf32>
    %cst_12 = arith.constant dense<0.000000e+00> : vector<16x16xf32>
    %14 = vector.multi_reduction <add>, %11, %cst_12 [2] : vector<16x16x128xf32> to vector<16x16xf32>
    %15 = vector.shape_cast %14 : vector<16x16xf32> to vector<16x16x1xf32>
    %cst_13 = arith.constant 1.280000e+02 : f32
    %16 = vector.broadcast %cst_13 : f32 to vector<16x16x1xf32>
    %17 = arith.divf %15, %16 : vector<16x16x1xf32>
    %18 = vector.broadcast %17 : vector<16x16x1xf32> to vector<16x16x128xf32>
    %19 = arith.subf %11, %18 : vector<16x16x128xf32>
    %20 = arith.mulf %19, %19 : vector<16x16x128xf32>
    %cst_14 = arith.constant dense<0.000000e+00> : vector<16x16xf32>
    %21 = vector.multi_reduction <add>, %20, %cst_14 [2] : vector<16x16x128xf32> to vector<16x16xf32>
    %22 = vector.shape_cast %21 : vector<16x16xf32> to vector<16x16x1xf32>
    %cst_15 = arith.constant 1.280000e+02 : f32
    %23 = vector.broadcast %cst_15 : f32 to vector<16x16x1xf32>
    %24 = arith.divf %22, %23 : vector<16x16x1xf32>
    %25 = vector.broadcast %17 : vector<16x16x1xf32> to vector<16x16x128xf32>
    %26 = arith.subf %11, %25 : vector<16x16x128xf32>
    %cst_16 = arith.constant 9.99999974E-6 : f32
    %27 = vector.broadcast %cst_16 : f32 to vector<16x16x1xf32>
    %28 = arith.addf %24, %27 : vector<16x16x1xf32>
    %29 = math.rsqrt %28 : vector<16x16x1xf32>
    %30 = vector.broadcast %29 : vector<16x16x1xf32> to vector<16x16x128xf32>
    %31 = arith.mulf %26, %30 : vector<16x16x128xf32>
    %32 = vector.shape_cast %12 : vector<1x128xf32> to vector<1x1x128xf32>
    %33 = vector.broadcast %32 : vector<1x1x128xf32> to vector<16x16x128xf32>
    %34 = arith.mulf %31, %33 : vector<16x16x128xf32>
    %35 = vector.shape_cast %13 : vector<1x128xf32> to vector<1x1x128xf32>
    %36 = vector.broadcast %35 : vector<1x1x128xf32> to vector<16x16x128xf32>
    %37 = arith.addf %34, %36 : vector<16x16x128xf32>
    %38 = vector.shape_cast %37 : vector<16x16x128xf32> to vector<256x128xf32>
    %39 = arith.truncf %38 : vector<256x128xf32> to vector<256x128xbf16>
    %c0_17 = arith.constant 0 : index
    %c0_18 = arith.constant 0 : index
    %40 = vector.load %arg7[%c0_17, %c0_18] : memref<128x384xbf16, #tpu.memory_space<vmem>>, vector<128x384xbf16>
    %cst_19 = arith.constant dense<0.000000e+00> : vector<256x384xf32>
    %41 = tpu.matmul %39, %40, %cst_19 {dimension_numbers = #tpu.dot_dimension_numbers<[1], [0], [0], [1], [0, 0, 1, 1], [], []>} : vector<256x128xbf16>, vector<128x384xbf16>, vector<256x384xf32> -> vector<256x384xf32>
    %c0_20 = arith.constant 0 : index
    %c0_21 = arith.constant 0 : index
    %42 = vector.load %arg8[%c0_20, %c0_21] : memref<1x384xf32, #tpu.memory_space<vmem>>, vector<1x384xf32>
    %43 = vector.broadcast %42 : vector<1x384xf32> to vector<256x384xf32>
    %44 = arith.addf %41, %43 : vector<256x384xf32>
    %45 = vector.extract_strided_slice %44 {offsets = [0, 0], sizes = [256, 128], strides = [1, 1]} : vector<256x384xf32> to vector<256x128xf32>
    %cst_22 = arith.constant 0.176776692 : f32
    %46 = vector.broadcast %cst_22 : f32 to vector<256x128xf32>
    %47 = arith.mulf %45, %46 : vector<256x128xf32>
    %48 = arith.truncf %47 : vector<256x128xf32> to vector<256x128xbf16>
    %49 = vector.shape_cast %48 : vector<256x128xbf16> to vector<16x16x128xbf16>
    %50 = vector.extract_strided_slice %44 {offsets = [0, 128], sizes = [256, 128], strides = [1, 1]} : vector<256x384xf32> to vector<256x128xf32>
    %51 = arith.truncf %50 : vector<256x128xf32> to vector<256x128xbf16>
    %52 = vector.shape_cast %51 : vector<256x128xbf16> to vector<16x16x128xbf16>
    %53 = vector.extract_strided_slice %44 {offsets = [0, 256], sizes = [256, 128], strides = [1, 1]} : vector<256x384xf32> to vector<256x128xf32>
    %54 = arith.truncf %53 : vector<256x128xf32> to vector<256x128xbf16>
    %55 = vector.shape_cast %54 : vector<256x128xbf16> to vector<16x16x128xbf16>
    %56 = vector.extract_strided_slice %49 {offsets = [0, 0, 0], sizes = [16, 16, 32], strides = [1, 1, 1]} : vector<16x16x128xbf16> to vector<16x16x32xbf16>
    %57 = vector.extract_strided_slice %52 {offsets = [0, 0, 0], sizes = [16, 16, 32], strides = [1, 1, 1]} : vector<16x16x128xbf16> to vector<16x16x32xbf16>
    %58 = vector.extract_strided_slice %55 {offsets = [0, 0, 0], sizes = [16, 16, 32], strides = [1, 1, 1]} : vector<16x16x128xbf16> to vector<16x16x32xbf16>
    "tpu.trace_start"() <{level = 10 : i32, message = "bqd,bkd->bqk"}> : () -> ()
    %cst_23 = arith.constant dense<0.000000e+00> : vector<16x16x16xf32>
    %59 = tpu.matmul %56, %57, %cst_23 {dimension_numbers = #tpu.dot_dimension_numbers<[2], [2], [1], [1], [0, 0, 0, 1, 1, 1], [0], [0]>} : vector<16x16x32xbf16>, vector<16x16x32xbf16>, vector<16x16x16xf32> -> vector<16x16x16xf32>
    "tpu.trace_stop"() : () -> ()
    %cst_24 = arith.constant dense<0xFF800000> : vector<16x16xf32>
    %60 = vector.multi_reduction <maximumf>, %59, %cst_24 [2] : vector<16x16x16xf32> to vector<16x16xf32>
    %61 = vector.shape_cast %60 : vector<16x16xf32> to vector<16x16x1xf32>
    %62 = vector.broadcast %61 : vector<16x16x1xf32> to vector<16x16x16xf32>
    %63 = arith.subf %59, %62 : vector<16x16x16xf32>
    %64 = math.exp %63 : vector<16x16x16xf32>
    %cst_25 = arith.constant dense<0.000000e+00> : vector<16x16xf32>
    %65 = vector.multi_reduction <add>, %64, %cst_25 [2] : vector<16x16x16xf32> to vector<16x16xf32>
    %66 = vector.shape_cast %65 : vector<16x16xf32> to vector<16x16x1xf32>
    %67 = tpu.reciprocal %66 {approx = true} : vector<16x16x1xf32> -> vector<16x16x1xf32>
    %68 = vector.broadcast %67 : vector<16x16x1xf32> to vector<16x16x16xf32>
    %69 = arith.mulf %64, %68 : vector<16x16x16xf32>
    %70 = arith.truncf %69 : vector<16x16x16xf32> to vector<16x16x16xbf16>
    "tpu.trace_start"() <{level = 10 : i32, message = "bqk,bkd->bqd"}> : () -> ()
    %cst_26 = arith.constant dense<0.000000e+00> : vector<16x16x32xf32>
    %71 = tpu.matmul %70, %58, %cst_26 {dimension_numbers = #tpu.dot_dimension_numbers<[2], [1], [1], [2], [0, 0, 0, 1, 1, 2], [0], [0]>} : vector<16x16x16xbf16>, vector<16x16x32xbf16>, vector<16x16x32xf32> -> vector<16x16x32xf32>
    "tpu.trace_stop"() : () -> ()
    %c0_27 = arith.constant 0 : index
    %c0_28 = arith.constant 0 : index
    %c0_29 = arith.constant 0 : index
    %72 = vector.load %arg18[%c0_27, %c0_28, %c0_29] : memref<16x16x128xf32, #tpu.memory_space<vmem>>, vector<16x16x32xf32>
    tpu.vector_store %arg18[%c0_27, %c0_28, %c0_29], %71 {strides = array<i32>} : memref<16x16x128xf32, #tpu.memory_space<vmem>>, vector<16x16x32xf32>,
    %73 = vector.extract_strided_slice %49 {offsets = [0, 0, 32], sizes = [16, 16, 32], strides = [1, 1, 1]} : vector<16x16x128xbf16> to vector<16x16x32xbf16>
    %74 = vector.extract_strided_slice %52 {offsets = [0, 0, 32], sizes = [16, 16, 32], strides = [1, 1, 1]} : vector<16x16x128xbf16> to vector<16x16x32xbf16>
    %75 = vector.extract_strided_slice %55 {offsets = [0, 0, 32], sizes = [16, 16, 32], strides = [1, 1, 1]} : vector<16x16x128xbf16> to vector<16x16x32xbf16>
    "tpu.trace_start"() <{level = 10 : i32, message = "bqd,bkd->bqk"}> : () -> ()
    %cst_30 = arith.constant dense<0.000000e+00> : vector<16x16x16xf32>
    %76 = tpu.matmul %73, %74, %cst_30 {dimension_numbers = #tpu.dot_dimension_numbers<[2], [2], [1], [1], [0, 0, 0, 1, 1, 1], [0], [0]>} : vector<16x16x32xbf16>, vector<16x16x32xbf16>, vector<16x16x16xf32> -> vector<16x16x16xf32>
    "tpu.trace_stop"() : () -> ()
    %cst_31 = arith.constant dense<0xFF800000> : vector<16x16xf32>
    %77 = vector.multi_reduction <maximumf>, %76, %cst_31 [2] : vector<16x16x16xf32> to vector<16x16xf32>
    %78 = vector.shape_cast %77 : vector<16x16xf32> to vector<16x16x1xf32>
    %79 = vector.broadcast %78 : vector<16x16x1xf32> to vector<16x16x16xf32>
    %80 = arith.subf %76, %79 : vector<16x16x16xf32>
    %81 = math.exp %80 : vector<16x16x16xf32>
    %cst_32 = arith.constant dense<0.000000e+00> : vector<16x16xf32>
    %82 = vector.multi_reduction <add>, %81, %cst_32 [2] : vector<16x16x16xf32> to vector<16x16xf32>
    %83 = vector.shape_cast %82 : vector<16x16xf32> to vector<16x16x1xf32>
    %84 = tpu.reciprocal %83 {approx = true} : vector<16x16x1xf32> -> vector<16x16x1xf32>
    %85 = vector.broadcast %84 : vector<16x16x1xf32> to vector<16x16x16xf32>
    %86 = arith.mulf %81, %85 : vector<16x16x16xf32>
    %87 = arith.truncf %86 : vector<16x16x16xf32> to vector<16x16x16xbf16>
    "tpu.trace_start"() <{level = 10 : i32, message = "bqk,bkd->bqd"}> : () -> ()
    %cst_33 = arith.constant dense<0.000000e+00> : vector<16x16x32xf32>
    %88 = tpu.matmul %87, %75, %cst_33 {dimension_numbers = #tpu.dot_dimension_numbers<[2], [1], [1], [2], [0, 0, 0, 1, 1, 2], [0], [0]>} : vector<16x16x16xbf16>, vector<16x16x32xbf16>, vector<16x16x32xf32> -> vector<16x16x32xf32>
    "tpu.trace_stop"() : () -> ()
    %c0_34 = arith.constant 0 : index
    %c0_35 = arith.constant 0 : index
    %c32 = arith.constant 32 : index
    %89 = vector.load %arg18[%c0_34, %c0_35, %c32] : memref<16x16x128xf32, #tpu.memory_space<vmem>>, vector<16x16x32xf32>
    tpu.vector_store %arg18[%c0_34, %c0_35, %c32], %88 {strides = array<i32>} : memref<16x16x128xf32, #tpu.memory_space<vmem>>, vector<16x16x32xf32>,
    %90 = vector.extract_strided_slice %49 {offsets = [0, 0, 64], sizes = [16, 16, 32], strides = [1, 1, 1]} : vector<16x16x128xbf16> to vector<16x16x32xbf16>
    %91 = vector.extract_strided_slice %52 {offsets = [0, 0, 64], sizes = [16, 16, 32], strides = [1, 1, 1]} : vector<16x16x128xbf16> to vector<16x16x32xbf16>
    %92 = vector.extract_strided_slice %55 {offsets = [0, 0, 64], sizes = [16, 16, 32], strides = [1, 1, 1]} : vector<16x16x128xbf16> to vector<16x16x32xbf16>
    "tpu.trace_start"() <{level = 10 : i32, message = "bqd,bkd->bqk"}> : () -> ()
    %cst_36 = arith.constant dense<0.000000e+00> : vector<16x16x16xf32>
    %93 = tpu.matmul %90, %91, %cst_36 {dimension_numbers = #tpu.dot_dimension_numbers<[2], [2], [1], [1], [0, 0, 0, 1, 1, 1], [0], [0]>} : vector<16x16x32xbf16>, vector<16x16x32xbf16>, vector<16x16x16xf32> -> vector<16x16x16xf32>
    "tpu.trace_stop"() : () -> ()
    %cst_37 = arith.constant dense<0xFF800000> : vector<16x16xf32>
    %94 = vector.multi_reduction <maximumf>, %93, %cst_37 [2] : vector<16x16x16xf32> to vector<16x16xf32>
    %95 = vector.shape_cast %94 : vector<16x16xf32> to vector<16x16x1xf32>
    %96 = vector.broadcast %95 : vector<16x16x1xf32> to vector<16x16x16xf32>
    %97 = arith.subf %93, %96 : vector<16x16x16xf32>
    %98 = math.exp %97 : vector<16x16x16xf32>
    %cst_38 = arith.constant dense<0.000000e+00> : vector<16x16xf32>
    %99 = vector.multi_reduction <add>, %98, %cst_38 [2] : vector<16x16x16xf32> to vector<16x16xf32>
    %100 = vector.shape_cast %99 : vector<16x16xf32> to vector<16x16x1xf32>
    %101 = tpu.reciprocal %100 {approx = true} : vector<16x16x1xf32> -> vector<16x16x1xf32>
    %102 = vector.broadcast %101 : vector<16x16x1xf32> to vector<16x16x16xf32>
    %103 = arith.mulf %98, %102 : vector<16x16x16xf32>
    %104 = arith.truncf %103 : vector<16x16x16xf32> to vector<16x16x16xbf16>
    "tpu.trace_start"() <{level = 10 : i32, message = "bqk,bkd->bqd"}> : () -> ()
    %cst_39 = arith.constant dense<0.000000e+00> : vector<16x16x32xf32>
    %105 = tpu.matmul %104, %92, %cst_39 {dimension_numbers = #tpu.dot_dimension_numbers<[2], [1], [1], [2], [0, 0, 0, 1, 1, 2], [0], [0]>} : vector<16x16x16xbf16>, vector<16x16x32xbf16>, vector<16x16x32xf32> -> vector<16x16x32xf32>
    "tpu.trace_stop"() : () -> ()
    %c0_40 = arith.constant 0 : index
    %c0_41 = arith.constant 0 : index
    %c64 = arith.constant 64 : index
    %106 = vector.load %arg18[%c0_40, %c0_41, %c64] : memref<16x16x128xf32, #tpu.memory_space<vmem>>, vector<16x16x32xf32>
    tpu.vector_store %arg18[%c0_40, %c0_41, %c64], %105 {strides = array<i32>} : memref<16x16x128xf32, #tpu.memory_space<vmem>>, vector<16x16x32xf32>,
    %107 = vector.extract_strided_slice %49 {offsets = [0, 0, 96], sizes = [16, 16, 32], strides = [1, 1, 1]} : vector<16x16x128xbf16> to vector<16x16x32xbf16>
    %108 = vector.extract_strided_slice %52 {offsets = [0, 0, 96], sizes = [16, 16, 32], strides = [1, 1, 1]} : vector<16x16x128xbf16> to vector<16x16x32xbf16>
    %109 = vector.extract_strided_slice %55 {offsets = [0, 0, 96], sizes = [16, 16, 32], strides = [1, 1, 1]} : vector<16x16x128xbf16> to vector<16x16x32xbf16>
    "tpu.trace_start"() <{level = 10 : i32, message = "bqd,bkd->bqk"}> : () -> ()
    %cst_42 = arith.constant dense<0.000000e+00> : vector<16x16x16xf32>
    %110 = tpu.matmul %107, %108, %cst_42 {dimension_numbers = #tpu.dot_dimension_numbers<[2], [2], [1], [1], [0, 0, 0, 1, 1, 1], [0], [0]>} : vector<16x16x32xbf16>, vector<16x16x32xbf16>, vector<16x16x16xf32> -> vector<16x16x16xf32>
    "tpu.trace_stop"() : () -> ()
    %cst_43 = arith.constant dense<0xFF800000> : vector<16x16xf32>
    %111 = vector.multi_reduction <maximumf>, %110, %cst_43 [2] : vector<16x16x16xf32> to vector<16x16xf32>
    %112 = vector.shape_cast %111 : vector<16x16xf32> to vector<16x16x1xf32>
    %113 = vector.broadcast %112 : vector<16x16x1xf32> to vector<16x16x16xf32>
    %114 = arith.subf %110, %113 : vector<16x16x16xf32>
    %115 = math.exp %114 : vector<16x16x16xf32>
    %cst_44 = arith.constant dense<0.000000e+00> : vector<16x16xf32>
    %116 = vector.multi_reduction <add>, %115, %cst_44 [2] : vector<16x16x16xf32> to vector<16x16xf32>
    %117 = vector.shape_cast %116 : vector<16x16xf32> to vector<16x16x1xf32>
    %118 = tpu.reciprocal %117 {approx = true} : vector<16x16x1xf32> -> vector<16x16x1xf32>
    %119 = vector.broadcast %118 : vector<16x16x1xf32> to vector<16x16x16xf32>
    %120 = arith.mulf %115, %119 : vector<16x16x16xf32>
    %121 = arith.truncf %120 : vector<16x16x16xf32> to vector<16x16x16xbf16>
    "tpu.trace_start"() <{level = 10 : i32, message = "bqk,bkd->bqd"}> : () -> ()
    %cst_45 = arith.constant dense<0.000000e+00> : vector<16x16x32xf32>
    %122 = tpu.matmul %121, %109, %cst_45 {dimension_numbers = #tpu.dot_dimension_numbers<[2], [1], [1], [2], [0, 0, 0, 1, 1, 2], [0], [0]>} : vector<16x16x16xbf16>, vector<16x16x32xbf16>, vector<16x16x32xf32> -> vector<16x16x32xf32>
    "tpu.trace_stop"() : () -> ()
    %c0_46 = arith.constant 0 : index
    %c0_47 = arith.constant 0 : index
    %c96 = arith.constant 96 : index
    %123 = vector.load %arg18[%c0_46, %c0_47, %c96] : memref<16x16x128xf32, #tpu.memory_space<vmem>>, vector<16x16x32xf32>
    tpu.vector_store %arg18[%c0_46, %c0_47, %c96], %122 {strides = array<i32>} : memref<16x16x128xf32, #tpu.memory_space<vmem>>, vector<16x16x32xf32>,
    %c0_48 = arith.constant 0 : index
    %c0_49 = arith.constant 0 : index
    %c0_50 = arith.constant 0 : index
    %124 = vector.load %arg18[%c0_48, %c0_49, %c0_50] : memref<16x16x128xf32, #tpu.memory_space<vmem>>, vector<16x16x128xf32>
    %125 = arith.addf %124, %37 : vector<16x16x128xf32>
    %c0_51 = arith.constant 0 : index
    %c0_52 = arith.constant 0 : index
    %126 = vector.load %arg9[%c0_51, %c0_52] : memref<1x128xf32, #tpu.memory_space<vmem>>, vector<1x128xf32>
    %c0_53 = arith.constant 0 : index
    %c0_54 = arith.constant 0 : index
    %127 = vector.load %arg10[%c0_53, %c0_54] : memref<1x128xf32, #tpu.memory_space<vmem>>, vector<1x128xf32>
    %cst_55 = arith.constant dense<0.000000e+00> : vector<16x16xf32>
    %128 = vector.multi_reduction <add>, %125, %cst_55 [2] : vector<16x16x128xf32> to vector<16x16xf32>
    %129 = vector.shape_cast %128 : vector<16x16xf32> to vector<16x16x1xf32>
    %cst_56 = arith.constant 1.280000e+02 : f32
    %130 = vector.broadcast %cst_56 : f32 to vector<16x16x1xf32>
    %131 = arith.divf %129, %130 : vector<16x16x1xf32>
    %132 = vector.broadcast %131 : vector<16x16x1xf32> to vector<16x16x128xf32>
    %133 = arith.subf %125, %132 : vector<16x16x128xf32>
    %134 = arith.mulf %133, %133 : vector<16x16x128xf32>
    %cst_57 = arith.constant dense<0.000000e+00> : vector<16x16xf32>
    %135 = vector.multi_reduction <add>, %134, %cst_57 [2] : vector<16x16x128xf32> to vector<16x16xf32>
    %136 = vector.shape_cast %135 : vector<16x16xf32> to vector<16x16x1xf32>
    %cst_58 = arith.constant 1.280000e+02 : f32
    %137 = vector.broadcast %cst_58 : f32 to vector<16x16x1xf32>
    %138 = arith.divf %136, %137 : vector<16x16x1xf32>
    %139 = vector.broadcast %131 : vector<16x16x1xf32> to vector<16x16x128xf32>
    %140 = arith.subf %125, %139 : vector<16x16x128xf32>
    %cst_59 = arith.constant 9.99999974E-6 : f32
    %141 = vector.broadcast %cst_59 : f32 to vector<16x16x1xf32>
    %142 = arith.addf %138, %141 : vector<16x16x1xf32>
    %143 = math.rsqrt %142 : vector<16x16x1xf32>
    %144 = vector.broadcast %143 : vector<16x16x1xf32> to vector<16x16x128xf32>
    %145 = arith.mulf %140, %144 : vector<16x16x128xf32>
    %146 = vector.shape_cast %126 : vector<1x128xf32> to vector<1x1x128xf32>
    %147 = vector.broadcast %146 : vector<1x1x128xf32> to vector<16x16x128xf32>
    %148 = arith.mulf %145, %147 : vector<16x16x128xf32>
    %149 = vector.shape_cast %127 : vector<1x128xf32> to vector<1x1x128xf32>
    %150 = vector.broadcast %149 : vector<1x1x128xf32> to vector<16x16x128xf32>
    %151 = arith.addf %148, %150 : vector<16x16x128xf32>
    %152 = vector.shape_cast %151 : vector<16x16x128xf32> to vector<256x128xf32>
    %153 = arith.truncf %152 : vector<256x128xf32> to vector<256x128xbf16>
    %c0_60 = arith.constant 0 : index
    %c0_61 = arith.constant 0 : index
    %154 = vector.load %arg11[%c0_60, %c0_61] : memref<128x512xbf16, #tpu.memory_space<vmem>>, vector<128x512xbf16>
    %cst_62 = arith.constant dense<0.000000e+00> : vector<256x512xf32>
    %155 = tpu.matmul %153, %154, %cst_62 {dimension_numbers = #tpu.dot_dimension_numbers<[1], [0], [0], [1], [0, 0, 1, 1], [], []>} : vector<256x128xbf16>, vector<128x512xbf16>, vector<256x512xf32> -> vector<256x512xf32>
    %c0_63 = arith.constant 0 : index
    %c0_64 = arith.constant 0 : index
    %156 = vector.load %arg12[%c0_63, %c0_64] : memref<1x512xf32, #tpu.memory_space<vmem>>, vector<1x512xf32>
    %157 = vector.broadcast %156 : vector<1x512xf32> to vector<256x512xf32>
    %158 = arith.addf %155, %157 : vector<256x512xf32>
    %cst_65 = arith.constant 0.000000e+00 : f32
    %159 = vector.broadcast %cst_65 : f32 to vector<256x512xf32>
    %160 = arith.maximumf %158, %159 : vector<256x512xf32>
    %161 = arith.truncf %160 : vector<256x512xf32> to vector<256x512xbf16>
    %c0_66 = arith.constant 0 : index
    %c0_67 = arith.constant 0 : index
    %162 = vector.load %arg13[%c0_66, %c0_67] : memref<512x128xbf16, #tpu.memory_space<vmem>>, vector<512x128xbf16>
    %cst_68 = arith.constant dense<0.000000e+00> : vector<256x128xf32>
    %163 = tpu.matmul %161, %162, %cst_68 {dimension_numbers = #tpu.dot_dimension_numbers<[1], [0], [0], [1], [0, 0, 1, 1], [], []>} : vector<256x512xbf16>, vector<512x128xbf16>, vector<256x128xf32> -> vector<256x128xf32>
    %c0_69 = arith.constant 0 : index
    %c0_70 = arith.constant 0 : index
    %164 = vector.load %arg14[%c0_69, %c0_70] : memref<1x128xf32, #tpu.memory_space<vmem>>, vector<1x128xf32>
    %165 = vector.broadcast %164 : vector<1x128xf32> to vector<256x128xf32>
    %166 = arith.addf %163, %165 : vector<256x128xf32>
    %167 = arith.addf %166, %152 : vector<256x128xf32>
    %c0_71 = arith.constant 0 : index
    %c0_72 = arith.constant 0 : index
    %168 = vector.load %arg15[%c0_71, %c0_72] : memref<1x128xf32, #tpu.memory_space<vmem>>, vector<1x128xf32>
    %c0_73 = arith.constant 0 : index
    %c0_74 = arith.constant 0 : index
    %169 = vector.load %arg16[%c0_73, %c0_74] : memref<1x128xf32, #tpu.memory_space<vmem>>, vector<1x128xf32>
    %cst_75 = arith.constant dense<0.000000e+00> : vector<256xf32>
    %170 = vector.multi_reduction <add>, %167, %cst_75 [1] : vector<256x128xf32> to vector<256xf32>
    %171 = vector.shape_cast %170 : vector<256xf32> to vector<256x1xf32>
    %cst_76 = arith.constant 1.280000e+02 : f32
    %172 = vector.broadcast %cst_76 : f32 to vector<256x1xf32>
    %173 = arith.divf %171, %172 : vector<256x1xf32>
    %174 = vector.broadcast %173 : vector<256x1xf32> to vector<256x128xf32>
    %175 = arith.subf %167, %174 : vector<256x128xf32>
    %176 = arith.mulf %175, %175 : vector<256x128xf32>
    %cst_77 = arith.constant dense<0.000000e+00> : vector<256xf32>
    %177 = vector.multi_reduction <add>, %176, %cst_77 [1] : vector<256x128xf32> to vector<256xf32>
    %178 = vector.shape_cast %177 : vector<256xf32> to vector<256x1xf32>
    %cst_78 = arith.constant 1.280000e+02 : f32
    %179 = vector.broadcast %cst_78 : f32 to vector<256x1xf32>
    %180 = arith.divf %178, %179 : vector<256x1xf32>
    %181 = vector.broadcast %173 : vector<256x1xf32> to vector<256x128xf32>
    %182 = arith.subf %167, %181 : vector<256x128xf32>
    %cst_79 = arith.constant 9.99999974E-6 : f32
    %183 = vector.broadcast %cst_79 : f32 to vector<256x1xf32>
    %184 = arith.addf %180, %183 : vector<256x1xf32>
    %185 = math.rsqrt %184 : vector<256x1xf32>
    %186 = vector.broadcast %185 : vector<256x1xf32> to vector<256x128xf32>
    %187 = arith.mulf %182, %186 : vector<256x128xf32>
    %188 = vector.broadcast %168 : vector<1x128xf32> to vector<256x128xf32>
    %189 = arith.mulf %187, %188 : vector<256x128xf32>
    %190 = vector.broadcast %169 : vector<1x128xf32> to vector<256x128xf32>
    %191 = arith.addf %189, %190 : vector<256x128xf32>
    %192 = vector.shape_cast %191 : vector<256x128xf32> to vector<16x16x128xf32>
    %c0_80 = arith.constant 0 : index
    %c0_81 = arith.constant 0 : index
    %c0_82 = arith.constant 0 : index
    %193 = vector.load %arg17[%c0_80, %c0_81, %c0_82] : memref<16x16x128xf32, #tpu.memory_space<vmem>>, vector<16x16x128xf32>
    tpu.vector_store %arg17[%c0_80, %c0_81, %c0_82], %192 {strides = array<i32>} : memref<16x16x128xf32, #tpu.memory_space<vmem>>, vector<16x16x128xf32>,
    return
  }
  func.func @transform_0(%arg0: i32) -> (i32, i32, i32) {
    %c0_i32 = arith.constant 0 : i32
    %c0_i32_0 = arith.constant 0 : i32
    %c0_i32_1 = arith.constant 0 : i32
    return %arg0, %c0_i32, %c0_i32_0 : i32, i32, i32
  }
  func.func @transform_1(%arg0: i32) -> (i32, i32) {
    %c0_i32 = arith.constant 0 : i32
    %c0_i32_0 = arith.constant 0 : i32
    %c0_i32_1 = arith.constant 0 : i32
    return %c0_i32, %c0_i32_0 : i32, i32
  }
  func.func @transform_2(%arg0: i32) -> (i32, i32) {
    %c0_i32 = arith.constant 0 : i32
    %c0_i32_0 = arith.constant 0 : i32
    %c0_i32_1 = arith.constant 0 : i32
    return %c0_i32, %c0_i32_0 : i32, i32
  }
  func.func @transform_3(%arg0: i32) -> (i32, i32) {
    %c0_i32 = arith.constant 0 : i32
    %c0_i32_0 = arith.constant 0 : i32
    %c0_i32_1 = arith.constant 0 : i32
    return %c0_i32, %c0_i32_0 : i32, i32
  }
  func.func @transform_4(%arg0: i32) -> (i32, i32) {
    %c0_i32 = arith.constant 0 : i32
    %c0_i32_0 = arith.constant 0 : i32
    %c0_i32_1 = arith.constant 0 : i32
    return %c0_i32, %c0_i32_0 : i32, i32
  }
  func.func @transform_5(%arg0: i32) -> (i32, i32) {
    %c0_i32 = arith.constant 0 : i32
    %c0_i32_0 = arith.constant 0 : i32
    %c0_i32_1 = arith.constant 0 : i32
    return %c0_i32, %c0_i32_0 : i32, i32
  }
  func.func @transform_6(%arg0: i32) -> (i32, i32) {
    %c0_i32 = arith.constant 0 : i32
    %c0_i32_0 = arith.constant 0 : i32
    %c0_i32_1 = arith.constant 0 : i32
    return %c0_i32, %c0_i32_0 : i32, i32
  }
  func.func @transform_7(%arg0: i32) -> (i32, i32) {
    %c0_i32 = arith.constant 0 : i32
    %c0_i32_0 = arith.constant 0 : i32
    %c0_i32_1 = arith.constant 0 : i32
    return %c0_i32, %c0_i32_0 : i32, i32
  }
  func.func @transform_8(%arg0: i32) -> (i32, i32) {
    %c0_i32 = arith.constant 0 : i32
    %c0_i32_0 = arith.constant 0 : i32
    %c0_i32_1 = arith.constant 0 : i32
    return %c0_i32, %c0_i32_0 : i32, i32
  }
  func.func @transform_9(%arg0: i32) -> (i32, i32) {
    %c0_i32 = arith.constant 0 : i32
    %c0_i32_0 = arith.constant 0 : i32
    %c0_i32_1 = arith.constant 0 : i32
    return %c0_i32, %c0_i32_0 : i32, i32
  }
  func.func @transform_10(%arg0: i32) -> (i32, i32) {
    %c0_i32 = arith.constant 0 : i32
    %c0_i32_0 = arith.constant 0 : i32
    %c0_i32_1 = arith.constant 0 : i32
    return %c0_i32, %c0_i32_0 : i32, i32
  }
  func.func @transform_11(%arg0: i32) -> (i32, i32) {
    %c0_i32 = arith.constant 0 : i32
    %c0_i32_0 = arith.constant 0 : i32
    %c0_i32_1 = arith.constant 0 : i32
    return %c0_i32, %c0_i32_0 : i32, i32
  }
  func.func @transform_12(%arg0: i32) -> (i32, i32) {
    %c0_i32 = arith.constant 0 : i32
    %c0_i32_0 = arith.constant 0 : i32
    %c0_i32_1 = arith.constant 0 : i32
    return %c0_i32, %c0_i32_0 : i32, i32
  }
  func.func @transform_13(%arg0: i32) -> (i32, i32) {
    %c0_i32 = arith.constant 0 : i32
    %c0_i32_0 = arith.constant 0 : i32
    %c0_i32_1 = arith.constant 0 : i32
    return %c0_i32, %c0_i32_0 : i32, i32
  }
  func.func @transform_14(%arg0: i32) -> (i32, i32) {
    %c0_i32 = arith.constant 0 : i32
    %c0_i32_0 = arith.constant 0 : i32
    %c0_i32_1 = arith.constant 0 : i32
    return %c0_i32, %c0_i32_0 : i32, i32
  }
  func.func @transform_15(%arg0: i32) -> (i32, i32) {
    %c0_i32 = arith.constant 0 : i32
    %c0_i32_0 = arith.constant 0 : i32
    %c0_i32_1 = arith.constant 0 : i32
    return %c0_i32, %c0_i32_0 : i32, i32
  }
  func.func @transform_16(%arg0: i32) -> (i32, i32, i32) {
    %c0_i32 = arith.constant 0 : i32
    %c0_i32_0 = arith.constant 0 : i32
    %c0_i32_1 = arith.constant 0 : i32
    return %arg0, %c0_i32, %c0_i32_0 : i32, i32, i32
  }
}

</mosaic_0001>

<llo_original>
// kernel: tpu_custom_call.1
$region0: #{tpu_custom_call.1}
  #allocation0 [shape = 'u32[]', space=smem, size = 0x4, offset = 0x4, fixed_abs, tag = 'smem constant byte address 0x4 - core index']
  #allocation1 [shape = 'u32[144,128]{1,0:T(1,128)}', space=vmem, size = 0x12000, scoped, tag = 'internal scratch']
  #allocation2 [shape = 'f32[16,16,128]{2,1,0:T(8,128)}', space=vmem, size = 0x20000, scoped, tag = 'scratch operand']
  %s0 = inlined_call_operand.hbm [shape: bf16[16,16,32], index: 0, kind: input, shape index: {}]
  %s1 = inlined_call_operand.hbm [shape: f32[16,128], index: 1, kind: input, shape index: {}]
  %s2 = inlined_call_operand.hbm [shape: bf16[32,128], index: 2, kind: input, shape index: {}]
  %s3 = inlined_call_operand.vmem [shape: f32[1,128], index: 3, kind: input, shape index: {}]
  %s4 = inlined_call_operand.vmem [shape: f32[1,128], index: 4, kind: input, shape index: {}]
  %s5 = inlined_call_operand.vmem [shape: f32[1,128], index: 5, kind: input, shape index: {}]
  %s6 = inlined_call_operand.hbm [shape: bf16[128,384], index: 6, kind: input, shape index: {}]
  %s7 = inlined_call_operand.vmem [shape: f32[1,384], index: 7, kind: input, shape index: {}]
  %s8 = inlined_call_operand.vmem [shape: f32[1,128], index: 8, kind: input, shape index: {}]
  %s9 = inlined_call_operand.vmem [shape: f32[1,128], index: 9, kind: input, shape index: {}]
  %s10 = inlined_call_operand.hbm [shape: bf16[128,512], index: 10, kind: input, shape index: {}]
  %s11 = inlined_call_operand.vmem [shape: f32[1,512], index: 11, kind: input, shape index: {}]
  %s12 = inlined_call_operand.hbm [shape: bf16[512,128], index: 12, kind: input, shape index: {}]
  %s13 = inlined_call_operand.vmem [shape: f32[1,128], index: 13, kind: input, shape index: {}]
  %s14 = inlined_call_operand.vmem [shape: f32[1,128], index: 14, kind: input, shape index: {}]
  %s15 = inlined_call_operand.vmem [shape: f32[1,128], index: 15, kind: input, shape index: {}]
  %s16 = inlined_call_operand.hbm [shape: f32[16,16,128], index: 16, kind: output, shape index: {}]
  %s17 = sld [smem:[#allocation0]]
  $region98: #{tpu_custom_call.1} parent=0
    _
  %s19 = ssub.s32 1, %s17
  %s20 = scalar_select 0, %s19, %s17
  $region1: #{tpu_custom_call.1} parent=0
    #allocation3 [shape = 'u8[65536]{0}', space=vmem, size = 0x10000, scoped, tag = 'input window, operand 0, single buffered']
    #allocation4 [shape = 's32[1]{0}', space=sflag, size = 0x4, scoped, tag = 'scoped memory for tpu_custom_call.1']
    #allocation5 [shape = 's32[1]{0}', space=sflag, size = 0x4, scoped, tag = 'scoped memory for tpu_custom_call.1']
    #allocation6 [shape = 'u8[8192]{0}', space=vmem, size = 0x2000, scoped, tag = 'input window, operand 1, single buffered']
    #allocation7 [shape = 's32[1]{0}', space=sflag, size = 0x4, scoped, tag = 'scoped memory for tpu_custom_call.1']
    #allocation8 [shape = 'u8[8192]{0}', space=vmem, size = 0x2000, scoped, tag = 'input window, operand 2, single buffered']
    #allocation9 [shape = 'u8[98304]{0}', space=vmem, size = 0x18000, scoped, tag = 'input window, operand 6, single buffered']
    #allocation10 [shape = 's32[1]{0}', space=sflag, size = 0x4, scoped, tag = 'scoped memory for tpu_custom_call.1']
    #allocation11 [shape = 'u8[131072]{0}', space=vmem, size = 0x20000, scoped, tag = 'input window, operand 10, single buffered']
    #allocation12 [shape = 'u8[131072]{0}', space=vmem, size = 0x20000, scoped, tag = 'input window, operand 12, single buffered']
    #allocation13 [shape = 's32[1]{0}', space=sflag, size = 0x4, scoped, tag = 'scoped memory for tpu_custom_call.1']
    #allocation14 [shape = 'u8[131072]{0}', space=vmem, size = 0x20000, scoped, tag = 'output window, operand 0, single buffered']
    %21 = vsyncpa [#allocation4], 0
    %22 = vsyncpa [#allocation7], 0
    %23 = vsyncpa [#allocation10], 0
    %24 = vsyncpa [#allocation13], 0
    %25 = vsyncpa [#allocation5], 0
    // Predicated region
    $region2: #{tpu_custom_call.1} parent=1 // pred_check
      _
    $region3: #{tpu_custom_call.1} parent=1 // pred_check_branch
      %27 = sbr.rel (0) target = $region5
    $region4: #{tpu_custom_call.1} parent=1 // pred_region
      %s29 = ssub.s32 2048, 2048
      %30 = vsyncadd [#allocation4], %s29
      %s31 = sshll.u32 [#allocation3], 4
      %s32 = int_to_ptr.vmem [resolvable:$true] %s31
      %37 = dma.hbm_to_vmem [thread:$0]  %s0, 2048, %s32, [#allocation4], 64, 64, 4
    $region5: #{tpu_custom_call.1} parent=1 // pred_fallthru
      _
    // Predicated region
    $region6: #{tpu_custom_call.1} parent=1 // pred_check
      _
    $region7: #{tpu_custom_call.1} parent=1 // pred_check_branch
      %39 = sbr.rel (0) target = $region9
    $region8: #{tpu_custom_call.1} parent=1 // pred_region
      %s41 = ssub.s32 256, 256
      %42 = vsyncadd [#allocation7], %s41
      %s43 = sshll.u32 [#allocation6], 4
      %s44 = int_to_ptr.vmem [resolvable:$true] %s43
      %49 = dma.hbm_to_vmem [thread:$0]  %s1, 256, %s44, [#allocation7], 128, 128, 8
    $region9: #{tpu_custom_call.1} parent=1 // pred_fallthru
      _
    // Predicated region
    $region10: #{tpu_custom_call.1} parent=1 // pred_check
      _
    $region11: #{tpu_custom_call.1} parent=1 // pred_check_branch
      %51 = sbr.rel (0) target = $region13
    $region12: #{tpu_custom_call.1} parent=1 // pred_region
      %s53 = ssub.s32 256, 256
      %54 = vsyncadd [#allocation7], %s53
      %s55 = sshll.u32 [#allocation8], 4
      %s56 = int_to_ptr.vmem [resolvable:$true] %s55
      %61 = dma.hbm_to_vmem [thread:$0]  %s2, 256, %s56, [#allocation7], 64, 64, 4
    $region13: #{tpu_custom_call.1} parent=1 // pred_fallthru
      _
    // Predicated region
    $region14: #{tpu_custom_call.1} parent=1 // pred_check
      _
    $region15: #{tpu_custom_call.1} parent=1 // pred_check_branch
      %63 = sbr.rel (0) target = $region17
    $region16: #{tpu_custom_call.1} parent=1 // pred_region
      _
    $region17: #{tpu_custom_call.1} parent=1 // pred_fallthru
      _
    // Predicated region
    $region18: #{tpu_custom_call.1} parent=1 // pred_check
      _
    $region19: #{tpu_custom_call.1} parent=1 // pred_check_branch
      %65 = sbr.rel (0) target = $region21
    $region20: #{tpu_custom_call.1} parent=1 // pred_region
      _
    $region21: #{tpu_custom_call.1} parent=1 // pred_fallthru
      _
    // Predicated region
    $region22: #{tpu_custom_call.1} parent=1 // pred_check
      _
    $region23: #{tpu_custom_call.1} parent=1 // pred_check_branch
      %67 = sbr.rel (0) target = $region25
    $region24: #{tpu_custom_call.1} parent=1 // pred_region
      _
    $region25: #{tpu_custom_call.1} parent=1 // pred_fallthru
      _
    // Predicated region
    $region26: #{tpu_custom_call.1} parent=1 // pred_check
      _
    $region27: #{tpu_custom_call.1} parent=1 // pred_check_branch
      %69 = sbr.rel (0) target = $region29
    $region28: #{tpu_custom_call.1} parent=1 // pred_region
      %s71 = ssub.s32 3072, 3072
      %72 = vsyncadd [#allocation10], %s71
      %s73 = sshll.u32 [#allocation9], 4
      %s74 = int_to_ptr.vmem [resolvable:$true] %s73
      %79 = dma.hbm_to_vmem [thread:$0]  %s6, 3072, %s74, [#allocation10], 192, 192, 12
    $region29: #{tpu_custom_call.1} parent=1 // pred_fallthru
      _
    // Predicated region
    $region30: #{tpu_custom_call.1} parent=1 // pred_check
      _
    $region31: #{tpu_custom_call.1} parent=1 // pred_check_branch
      %81 = sbr.rel (0) target = $region33
    $region32: #{tpu_custom_call.1} parent=1 // pred_region
      _
    $region33: #{tpu_custom_call.1} parent=1 // pred_fallthru
      _
    // Predicated region
    $region34: #{tpu_custom_call.1} parent=1 // pred_check
      _
    $region35: #{tpu_custom_call.1} parent=1 // pred_check_branch
      %83 = sbr.rel (0) target = $region37
    $region36: #{tpu_custom_call.1} parent=1 // pred_region
      _
    $region37: #{tpu_custom_call.1} parent=1 // pred_fallthru
      _
    // Predicated region
    $region38: #{tpu_custom_call.1} parent=1 // pred_check
      _
    $region39: #{tpu_custom_call.1} parent=1 // pred_check_branch
      %85 = sbr.rel (0) target = $region41
    $region40: #{tpu_custom_call.1} parent=1 // pred_region
      _
    $region41: #{tpu_custom_call.1} parent=1 // pred_fallthru
      _
    // Predicated region
    $region42: #{tpu_custom_call.1} parent=1 // pred_check
      _
    $region43: #{tpu_custom_call.1} parent=1 // pred_check_branch
      %87 = sbr.rel (0) target = $region45
    $region44: #{tpu_custom_call.1} parent=1 // pred_region
      %s89 = ssub.s32 4096, 4096
      %90 = vsyncadd [#allocation10], %s89
      %s91 = sshll.u32 [#allocation11], 4
      %s92 = int_to_ptr.vmem [resolvable:$true] %s91
      %97 = dma.hbm_to_vmem [thread:$0]  %s10, 4096, %s92, [#allocation10], 256, 256, 16
    $region45: #{tpu_custom_call.1} parent=1 // pred_fallthru
      _
    // Predicated region
    $region46: #{tpu_custom_call.1} parent=1 // pred_check
      _
    $region47: #{tpu_custom_call.1} parent=1 // pred_check_branch
      %99 = sbr.rel (0) target = $region49
    $region48: #{tpu_custom_call.1} parent=1 // pred_region
      _
    $region49: #{tpu_custom_call.1} parent=1 // pred_fallthru
      _
    // Predicated region
    $region50: #{tpu_custom_call.1} parent=1 // pred_check
      _
    $region51: #{tpu_custom_call.1} parent=1 // pred_check_branch
      %101 = sbr.rel (0) target = $region53
    $region52: #{tpu_custom_call.1} parent=1 // pred_region
      %s103 = ssub.s32 4096, 4096
      %104 = vsyncadd [#allocation13], %s103
      %s105 = sshll.u32 [#allocation12], 4
      %s106 = int_to_ptr.vmem [resolvable:$true] %s105
      %111 = dma.hbm_to_vmem [thread:$0]  %s12, 4096, %s106, [#allocation13], 64, 64, 4
    $region53: #{tpu_custom_call.1} parent=1 // pred_fallthru
      _
    // Predicated region
    $region54: #{tpu_custom_call.1} parent=1 // pred_check
      _
    $region55: #{tpu_custom_call.1} parent=1 // pred_check_branch
      %113 = sbr.rel (0) target = $region57
    $region56: #{tpu_custom_call.1} parent=1 // pred_region
      _
    $region57: #{tpu_custom_call.1} parent=1 // pred_fallthru
      _
    // Predicated region
    $region58: #{tpu_custom_call.1} parent=1 // pred_check
      _
    $region59: #{tpu_custom_call.1} parent=1 // pred_check_branch
      %115 = sbr.rel (0) target = $region61
    $region60: #{tpu_custom_call.1} parent=1 // pred_region
      _
    $region61: #{tpu_custom_call.1} parent=1 // pred_fallthru
      _
    // Predicated region
    $region62: #{tpu_custom_call.1} parent=1 // pred_check
      _
    $region63: #{tpu_custom_call.1} parent=1 // pred_check_branch
      %117 = sbr.rel (0) target = $region65
    $region64: #{tpu_custom_call.1} parent=1 // pred_region
      _
    $region65: #{tpu_custom_call.1} parent=1 // pred_fallthru
      _
    // Predicated region
    $region66: #{tpu_custom_call.1} parent=1 // pred_check
      _
    $region67: #{tpu_custom_call.1} parent=1 // pred_check_branch
      %119 = sbr.rel (0) target = $region69
    $region68: #{tpu_custom_call.1} parent=1 // pred_region
      %120 = dma.done [#allocation4], 2048
    $region69: #{tpu_custom_call.1} parent=1 // pred_fallthru
      _
    // Predicated region
    $region70: #{tpu_custom_call.1} parent=1 // pred_check
      _
    $region71: #{tpu_custom_call.1} parent=1 // pred_check_branch
      %122 = sbr.rel (0) target = $region73
    $region72: #{tpu_custom_call.1} parent=1 // pred_region
      %123 = dma.done [#allocation7], 256
    $region73: #{tpu_custom_call.1} parent=1 // pred_fallthru
      _
    // Predicated region
    $region74: #{tpu_custom_call.1} parent=1 // pred_check
      _
    $region75: #{tpu_custom_call.1} parent=1 // pred_check_branch
      %125 = sbr.rel (0) target = $region77
    $region76: #{tpu_custom_call.1} parent=1 // pred_region
      %126 = dma.done [#allocation7], 256
    $region77: #{tpu_custom_call.1} parent=1 // pred_fallthru
      _
    // Predicated region
    $region78: #{tpu_custom_call.1} parent=1 // pred_check
      _
    $region79: #{tpu_custom_call.1} parent=1 // pred_check_branch
      %128 = sbr.rel (0) target = $region81
    $region80: #{tpu_custom_call.1} parent=1 // pred_region
      %129 = dma.done [#allocation10], 3072
    $region81: #{tpu_custom_call.1} parent=1 // pred_fallthru
      _
    // Predicated region
    $region82: #{tpu_custom_call.1} parent=1 // pred_check
      _
    $region83: #{tpu_custom_call.1} parent=1 // pred_check_branch
      %131 = sbr.rel (0) target = $region85
    $region84: #{tpu_custom_call.1} parent=1 // pred_region
      %132 = dma.done [#allocation10], 4096
    $region85: #{tpu_custom_call.1} parent=1 // pred_fallthru
      _
    // Predicated region
    $region86: #{tpu_custom_call.1} parent=1 // pred_check
      _
    $region87: #{tpu_custom_call.1} parent=1 // pred_check_branch
      %134 = sbr.rel (0) target = $region89
    $region88: #{tpu_custom_call.1} parent=1 // pred_region
      %135 = dma.done [#allocation13], 4096
    $region89: #{tpu_custom_call.1} parent=1 // pred_fallthru
      _
    %v137 = vld [vmem:[#allocation3] sm:$0xf]
    %v138 = vld [vmem:[#allocation3 + $0x4] sm:$0xf]
    %v139 = vld [vmem:[#allocation3 + $0x8] sm:$0xf]
    %v140 = vld [vmem:[#allocation3 + $0xc] sm:$0xf]
    %v141 = vld [vmem:[#allocation3 + $0x10] sm:$0xf]
    %v142 = vld [vmem:[#allocation3 + $0x14] sm:$0xf]
    %v143 = vld [vmem:[#allocation3 + $0x18] sm:$0xf]
    %v144 = vld [vmem:[#allocation3 + $0x1c] sm:$0xf]
    %v145 = vld [vmem:[#allocation3 + $0x20] sm:$0xf]
    %v146 = vld [vmem:[#allocation3 + $0x24] sm:$0xf]
    %v147 = vld [vmem:[#allocation3 + $0x28] sm:$0xf]
    %v148 = vld [vmem:[#allocation3 + $0x2c] sm:$0xf]
    %v149 = vld [vmem:[#allocation3 + $0x30] sm:$0xf]
    %v150 = vld [vmem:[#allocation3 + $0x34] sm:$0xf]
    %v151 = vld [vmem:[#allocation3 + $0x38] sm:$0xf]
    %v152 = vld [vmem:[#allocation3 + $0x3c] sm:$0xf]
    %v153 = vld [vmem:[#allocation3 + $0x40] sm:$0xf]
    %v154 = vld [vmem:[#allocation3 + $0x44] sm:$0xf]
    %v155 = vld [vmem:[#allocation3 + $0x48] sm:$0xf]
    %v156 = vld [vmem:[#allocation3 + $0x4c] sm:$0xf]
    %v157 = vld [vmem:[#allocation3 + $0x50] sm:$0xf]
    %v158 = vld [vmem:[#allocation3 + $0x54] sm:$0xf]
    %v159 = vld [vmem:[#allocation3 + $0x58] sm:$0xf]
    %v160 = vld [vmem:[#allocation3 + $0x5c] sm:$0xf]
    %v161 = vld [vmem:[#allocation3 + $0x60] sm:$0xf]
    %v162 = vld [vmem:[#allocation3 + $0x64] sm:$0xf]
    %v163 = vld [vmem:[#allocation3 + $0x68] sm:$0xf]
    %v164 = vld [vmem:[#allocation3 + $0x6c] sm:$0xf]
    %v165 = vld [vmem:[#allocation3 + $0x70] sm:$0xf]
    %v166 = vld [vmem:[#allocation3 + $0x74] sm:$0xf]
    %v167 = vld [vmem:[#allocation3 + $0x78] sm:$0xf]
    %v168 = vld [vmem:[#allocation3 + $0x7c] sm:$0xf]
    %v169 = vld [vmem:[#allocation8] sm:$0xf]
    %v170 = vld [vmem:[#allocation8 + $0x4] sm:$0xf]
    %v171 = vld [vmem:[#allocation8 + $0x8] sm:$0xf]
    %v172 = vld [vmem:[#allocation8 + $0xc] sm:$0xf]
    %v173 = vld [vmem:[%s3] sm:$0x1]
    %v175 = vlaneseq
    %v176 = vshrl.u32 %v175, 7
    %v177 = vsub.s32 0, %v176
    %v178 = vrot.slane %v173, %v177
    %v212 = vunpack.c.l.b16 %v137
    %v213 = vunpack.c.l.b16 %v138
    %v214 = vunpack.c.l.b16 %v139
    %v215 = vunpack.c.l.b16 %v140
    %v216 = vunpack.c.l.b16 %v141
    %v217 = vunpack.c.l.b16 %v142
    %v218 = vunpack.c.l.b16 %v143
    %v219 = vunpack.c.l.b16 %v144
    %v220 = vunpack.c.l.b16 %v145
    %v221 = vunpack.c.l.b16 %v146
    %v222 = vunpack.c.l.b16 %v147
    %v223 = vunpack.c.l.b16 %v148
    %v224 = vunpack.c.l.b16 %v149
    %v225 = vunpack.c.l.b16 %v150
    %v226 = vunpack.c.l.b16 %v151
    %v227 = vunpack.c.l.b16 %v152
    %v228 = vunpack.c.l.b16 %v153
    %v229 = vunpack.c.l.b16 %v154
    %v230 = vunpack.c.l.b16 %v155
    %v231 = vunpack.c.l.b16 %v156
    %v232 = vunpack.c.l.b16 %v157
    %v233 = vunpack.c.l.b16 %v158
    %v234 = vunpack.c.l.b16 %v159
    %v235 = vunpack.c.l.b16 %v160
    %v236 = vunpack.c.l.b16 %v161
    %v237 = vunpack.c.l.b16 %v162
    %v238 = vunpack.c.l.b16 %v163
    %v239 = vunpack.c.l.b16 %v164
    %v240 = vunpack.c.l.b16 %v165
    %v241 = vunpack.c.l.b16 %v166
    %v242 = vunpack.c.l.b16 %v167
    %v243 = vunpack.c.l.b16 %v168
    %v244 = vpack.c.b16 %v213, %v212
    %v245 = vpack.c.b16 %v215, %v214
    %v246 = vpack.c.b16 %v217, %v216
    %v247 = vpack.c.b16 %v219, %v218
    %v248 = vpack.c.b16 %v221, %v220
    %v249 = vpack.c.b16 %v223, %v222
    %v250 = vpack.c.b16 %v225, %v224
    %v251 = vpack.c.b16 %v227, %v226
    %v252 = vpack.c.b16 %v229, %v228
    %v253 = vpack.c.b16 %v231, %v230
    %v254 = vpack.c.b16 %v233, %v232
    %v255 = vpack.c.b16 %v235, %v234
    %v256 = vpack.c.b16 %v237, %v236
    %v257 = vpack.c.b16 %v239, %v238
    %v258 = vpack.c.b16 %v241, %v240
    %v259 = vpack.c.b16 %v243, %v242
    %v264 = vunpack.c.l.b16 %v169
    %v265 = vunpack.c.l.b16 %v170
    %v266 = vunpack.c.l.b16 %v171
    %v267 = vunpack.c.l.b16 %v172
    %v268 = vpack.c.b16 %v265, %v264
    %v269 = vpack.c.b16 %v267, %v266
    %vm272 = vcmask 261120
    %v274 = vsel %vm272, %v244, 0
    %v277 = vsel %vm272, %v245, 0
    %v280 = vsel %vm272, %v246, 0
    %v283 = vsel %vm272, %v247, 0
    %v286 = vsel %vm272, %v248, 0
    %v289 = vsel %vm272, %v249, 0
    %v292 = vsel %vm272, %v250, 0
    %v295 = vsel %vm272, %v251, 0
    %v298 = vsel %vm272, %v252, 0
    %v301 = vsel %vm272, %v253, 0
    %v304 = vsel %vm272, %v254, 0
    %v307 = vsel %vm272, %v255, 0
    %v310 = vsel %vm272, %v256, 0
    %v313 = vsel %vm272, %v257, 0
    %v316 = vsel %vm272, %v258, 0
    %v319 = vsel %vm272, %v259, 0
    %321 = vmatprep.subr.bf16.mxu0 0
    %322 = vmatpush1.bf16.msra.mxu0 %v268
    %323 = vmatprep.subr.bf16.mxu0 0
    %324 = vmatpush1.bf16.msra.mxu0 %v269
    %325 = vmatprep.subr.bf16.mxu0 0
    %326 = vmatpush1.bf16.msra.mxu0 0
    %327 = vmatprep.subr.bf16.mxu0 0
    %328 = vmatpush1.bf16.msra.mxu0 0
    %329 = vmatprep.subr.bf16.mxu0 0
    %330 = vmatpush1.bf16.msra.mxu0 0
    %331 = vmatprep.subr.bf16.mxu0 0
    %332 = vmatpush1.bf16.msra.mxu0 0
    %333 = vmatprep.subr.bf16.mxu0 0
    %334 = vmatpush1.bf16.msra.mxu0 0
    %335 = vmatprep.subr.bf16.mxu0 0
    %336 = vmatpush1.bf16.msra.mxu0 0
    %337 = vmatprep.subr.bf16.mxu0 0
    %338 = vmatpush1.bf16.msra.mxu0 0
    %339 = vmatprep.subr.bf16.mxu0 0
    %340 = vmatpush1.bf16.msra.mxu0 0
    %341 = vmatprep.subr.bf16.mxu0 0
    %342 = vmatpush1.bf16.msra.mxu0 0
    %343 = vmatprep.subr.bf16.mxu0 0
    %344 = vmatpush1.bf16.msra.mxu0 0
    %345 = vmatprep.subr.bf16.mxu0 0
    %346 = vmatpush1.bf16.msra.mxu0 0
    %347 = vmatprep.subr.bf16.mxu0 0
    %348 = vmatpush1.bf16.msra.mxu0 0
    %349 = vmatprep.subr.bf16.mxu0 0
    %350 = vmatpush1.bf16.msra.mxu0 0
    %351 = vmatprep.subr.bf16.mxu0 0
    %352 = vmatpush1.bf16.msra.mxu0 0
    %353 = vmatprep.mubr.bf16.mxu0 0
    %354 = vmatmul.mubr.bf16.gmra.mrb[0].mxu0 %v274
    %v355 = vpop.f32.mrb[0].mxu0
    %v356 = vadd.f32 %v178, %v355
    %v357 = vpop.f32.mrb[0].mxu0
    %v358 = vpop.f32.mrb[0].mxu0
    %v359 = vadd.f32 %v178, %v358
    %v360 = vpop.f32.mrb[0].mxu0
    %361 = vmatprep.mubr.bf16.mxu0 0
    %362 = vmatmul.mubr.bf16.gmra.mrb[0].mxu0 %v277
    %v363 = vpop.f32.mrb[0].mxu0
    %v364 = vadd.f32 %v178, %v363
    %v365 = vpop.f32.mrb[0].mxu0
    %v366 = vpop.f32.mrb[0].mxu0
    %v367 = vadd.f32 %v178, %v366
    %v368 = vpop.f32.mrb[0].mxu0
    %369 = vmatprep.mubr.bf16.mxu0 0
    %370 = vmatmul.mubr.bf16.gmra.mrb[0].mxu0 %v280
    %v371 = vpop.f32.mrb[0].mxu0
    %v372 = vadd.f32 %v178, %v371
    %v373 = vpop.f32.mrb[0].mxu0
    %v374 = vpop.f32.mrb[0].mxu0
    %v375 = vadd.f32 %v178, %v374
    %v376 = vpop.f32.mrb[0].mxu0
    %377 = vmatprep.mubr.bf16.mxu0 0
    %378 = vmatmul.mubr.bf16.gmra.mrb[0].mxu0 %v283
    %v379 = vpop.f32.mrb[0].mxu0
    %v380 = vadd.f32 %v178, %v379
    %v381 = vpop.f32.mrb[0].mxu0
    %v382 = vpop.f32.mrb[0].mxu0
    %v383 = vadd.f32 %v178, %v382
    %v384 = vpop.f32.mrb[0].mxu0
    %385 = vmatprep.mubr.bf16.mxu0 0
    %386 = vmatmul.mubr.bf16.gmra.mrb[0].mxu0 %v286
    %v387 = vpop.f32.mrb[0].mxu0
    %v388 = vadd.f32 %v178, %v387
    %v389 = vpop.f32.mrb[0].mxu0
    %v390 = vpop.f32.mrb[0].mxu0
    %v391 = vadd.f32 %v178, %v390
    %v392 = vpop.f32.mrb[0].mxu0
    %393 = vmatprep.mubr.bf16.mxu0 0
    %394 = vmatmul.mubr.bf16.gmra.mrb[0].mxu0 %v289
    %v395 = vpop.f32.mrb[0].mxu0
    %v396 = vadd.f32 %v178, %v395
    %v397 = vpop.f32.mrb[0].mxu0
    %v398 = vpop.f32.mrb[0].mxu0
    %v399 = vadd.f32 %v178, %v398
    %v400 = vpop.f32.mrb[0].mxu0
    %401 = vmatprep.mubr.bf16.mxu0 0
    %402 = vmatmul.mubr.bf16.gmra.mrb[0].mxu0 %v292
    %v403 = vpop.f32.mrb[0].mxu0
    %v404 = vadd.f32 %v178, %v403
    %v405 = vpop.f32.mrb[0].mxu0
    %v406 = vpop.f32.mrb[0].mxu0
    %v407 = vadd.f32 %v178, %v406
    %v408 = vpop.f32.mrb[0].mxu0
    %409 = vmatprep.mubr.bf16.mxu0 0
    %410 = vmatmul.mubr.bf16.gmra.mrb[0].mxu0 %v295
    %v411 = vpop.f32.mrb[0].mxu0
    %v412 = vadd.f32 %v178, %v411
    %v413 = vpop.f32.mrb[0].mxu0
    %v414 = vpop.f32.mrb[0].mxu0
    %v415 = vadd.f32 %v178, %v414
    %v416 = vpop.f32.mrb[0].mxu0
    %417 = vmatprep.mubr.bf16.mxu0 0
    %418 = vmatmul.mubr.bf16.gmra.mrb[0].mxu0 %v298
    %v419 = vpop.f32.mrb[0].mxu0
    %v420 = vadd.f32 %v178, %v419
    %v421 = vpop.f32.mrb[0].mxu0
    %v422 = vpop.f32.mrb[0].mxu0
    %v423 = vadd.f32 %v178, %v422
    %v424 = vpop.f32.mrb[0].mxu0
    %425 = vmatprep.mubr.bf16.mxu0 0
    %426 = vmatmul.mubr.bf16.gmra.mrb[0].mxu0 %v301
    %v427 = vpop.f32.mrb[0].mxu0
    %v428 = vadd.f32 %v178, %v427
    %v429 = vpop.f32.mrb[0].mxu0
    %v430 = vpop.f32.mrb[0].mxu0
    %v431 = vadd.f32 %v178, %v430
    %v432 = vpop.f32.mrb[0].mxu0
    %433 = vmatprep.mubr.bf16.mxu0 0
    %434 = vmatmul.mubr.bf16.gmra.mrb[0].mxu0 %v304
    %v435 = vpop.f32.mrb[0].mxu0
    %v436 = vadd.f32 %v178, %v435
    %v437 = vpop.f32.mrb[0].mxu0
    %v438 = vpop.f32.mrb[0].mxu0
    %v439 = vadd.f32 %v178, %v438
    %v440 = vpop.f32.mrb[0].mxu0
    %441 = vmatprep.mubr.bf16.mxu0 0
    %442 = vmatmul.mubr.bf16.gmra.mrb[0].mxu0 %v307
    %v443 = vpop.f32.mrb[0].mxu0
    %v444 = vadd.f32 %v178, %v443
    %v445 = vpop.f32.mrb[0].mxu0
    %v446 = vpop.f32.mrb[0].mxu0
    %v447 = vadd.f32 %v178, %v446
    %v448 = vpop.f32.mrb[0].mxu0
    %449 = vmatprep.mubr.bf16.mxu0 0
    %450 = vmatmul.mubr.bf16.gmra.mrb[0].mxu0 %v310
    %v451 = vpop.f32.mrb[0].mxu0
    %v452 = vadd.f32 %v178, %v451
    %v453 = vpop.f32.mrb[0].mxu0
    %v454 = vpop.f32.mrb[0].mxu0
    %v455 = vadd.f32 %v178, %v454
    %v456 = vpop.f32.mrb[0].mxu0
    %457 = vmatprep.mubr.bf16.mxu0 0
    %458 = vmatmul.mubr.bf16.gmra.mrb[0].mxu0 %v313
    %v459 = vpop.f32.mrb[0].mxu0
    %v460 = vadd.f32 %v178, %v459
    %v461 = vpop.f32.mrb[0].mxu0
    %v462 = vpop.f32.mrb[0].mxu0
    %v463 = vadd.f32 %v178, %v462
    %v464 = vpop.f32.mrb[0].mxu0
    %465 = vmatprep.mubr.bf16.mxu0 0
    %466 = vmatmul.mubr.bf16.gmra.mrb[0].mxu0 %v316
    %v467 = vpop.f32.mrb[0].mxu0
    %v468 = vadd.f32 %v178, %v467
    %v469 = vpop.f32.mrb[0].mxu0
    %v470 = vpop.f32.mrb[0].mxu0
    %v471 = vadd.f32 %v178, %v470
    %v472 = vpop.f32.mrb[0].mxu0
    %473 = vmatprep.mubr.bf16.mxu0 0
    %474 = vmatmul.mubr.bf16.gmra.mrb[0].mxu0 %v319
    %v475 = vpop.f32.mrb[0].mxu0
    %v476 = vadd.f32 %v178, %v475
    %v477 = vpop.f32.mrb[0].mxu0
    %v478 = vpop.f32.mrb[0].mxu0
    %v479 = vadd.f32 %v178, %v478
    %v480 = vpop.f32.mrb[0].mxu0
    %481 = vdwg.mxu0
    %v482 = vld [vmem:[#allocation6] sm:$0xff]
    %v483 = vld [vmem:[#allocation6 + $0x8] sm:$0xff]
    %v484 = vadd.f32 %v356, %v482
    %v485 = vadd.f32 %v359, %v483
    %v486 = vadd.f32 %v364, %v482
    %v487 = vadd.f32 %v367, %v483
    %v488 = vadd.f32 %v372, %v482
    %v489 = vadd.f32 %v375, %v483
    %v490 = vadd.f32 %v380, %v482
    %v491 = vadd.f32 %v383, %v483
    %v492 = vadd.f32 %v388, %v482
    %v493 = vadd.f32 %v391, %v483
    %v494 = vadd.f32 %v396, %v482
    %v495 = vadd.f32 %v399, %v483
    %v496 = vadd.f32 %v404, %v482
    %v497 = vadd.f32 %v407, %v483
    %v498 = vadd.f32 %v412, %v482
    %v499 = vadd.f32 %v415, %v483
    %v500 = vadd.f32 %v420, %v482
    %v501 = vadd.f32 %v423, %v483
    %v502 = vadd.f32 %v428, %v482
    %v503 = vadd.f32 %v431, %v483
    %v504 = vadd.f32 %v436, %v482
    %v505 = vadd.f32 %v439, %v483
    %v506 = vadd.f32 %v444, %v482
    %v507 = vadd.f32 %v447, %v483
    %v508 = vadd.f32 %v452, %v482
    %v509 = vadd.f32 %v455, %v483
    %v510 = vadd.f32 %v460, %v482
    %v511 = vadd.f32 %v463, %v483
    %v512 = vadd.f32 %v468, %v482
    %v513 = vadd.f32 %v471, %v483
    %v514 = vadd.f32 %v476, %v482
    %v515 = vadd.f32 %v479, %v483
    %v516 = vld [vmem:[%s4] sm:$0x1]
    %v517 = vld [vmem:[%s5] sm:$0x1]
    %518 = vadd.xlane.f32.xlu0 %v484
    %v519 = vpop.xlane.xlu0 %518
    %520 = vadd.xlane.f32.xlu0 %v485
    %v521 = vpop.xlane.xlu0 %520
    %522 = vadd.xlane.f32.xlu0 %v486
    %v523 = vpop.xlane.xlu0 %522
    %524 = vadd.xlane.f32.xlu0 %v487
    %v525 = vpop.xlane.xlu0 %524
    %526 = vadd.xlane.f32.xlu0 %v488
    %v527 = vpop.xlane.xlu0 %526
    %528 = vadd.xlane.f32.xlu0 %v489
    %v529 = vpop.xlane.xlu0 %528
    %530 = vadd.xlane.f32.xlu0 %v490
    %v531 = vpop.xlane.xlu0 %530
    %532 = vadd.xlane.f32.xlu0 %v491
    %v533 = vpop.xlane.xlu0 %532
    %534 = vadd.xlane.f32.xlu0 %v492
    %v535 = vpop.xlane.xlu0 %534
    %536 = vadd.xlane.f32.xlu0 %v493
    %v537 = vpop.xlane.xlu0 %536
    %538 = vadd.xlane.f32.xlu0 %v494
    %v539 = vpop.xlane.xlu0 %538
    %540 = vadd.xlane.f32.xlu0 %v495
    %v541 = vpop.xlane.xlu0 %540
    %542 = vadd.xlane.f32.xlu0 %v496
    %v543 = vpop.xlane.xlu0 %542
    %544 = vadd.xlane.f32.xlu0 %v497
    %v545 = vpop.xlane.xlu0 %544
    %546 = vadd.xlane.f32.xlu0 %v498
    %v547 = vpop.xlane.xlu0 %546
    %548 = vadd.xlane.f32.xlu0 %v499
    %v549 = vpop.xlane.xlu0 %548
    %550 = vadd.xlane.f32.xlu0 %v500
    %v551 = vpop.xlane.xlu0 %550
    %552 = vadd.xlane.f32.xlu0 %v501
    %v553 = vpop.xlane.xlu0 %552
    %554 = vadd.xlane.f32.xlu0 %v502
    %v555 = vpop.xlane.xlu0 %554
    %556 = vadd.xlane.f32.xlu0 %v503
    %v557 = vpop.xlane.xlu0 %556
    %558 = vadd.xlane.f32.xlu0 %v504
    %v559 = vpop.xlane.xlu0 %558
    %560 = vadd.xlane.f32.xlu0 %v505
    %v561 = vpop.xlane.xlu0 %560
    %562 = vadd.xlane.f32.xlu0 %v506
    %v563 = vpop.xlane.xlu0 %562
    %564 = vadd.xlane.f32.xlu0 %v507
    %v565 = vpop.xlane.xlu0 %564
    %566 = vadd.xlane.f32.xlu0 %v508
    %v567 = vpop.xlane.xlu0 %566
    %568 = vadd.xlane.f32.xlu0 %v509
    %v569 = vpop.xlane.xlu0 %568
    %570 = vadd.xlane.f32.xlu0 %v510
    %v571 = vpop.xlane.xlu0 %570
    %572 = vadd.xlane.f32.xlu0 %v511
    %v573 = vpop.xlane.xlu0 %572
    %574 = vadd.xlane.f32.xlu0 %v512
    %v575 = vpop.xlane.xlu0 %574
    %576 = vadd.xlane.f32.xlu0 %v513
    %v577 = vpop.xlane.xlu0 %576
    %578 = vadd.xlane.f32.xlu0 %v514
    %v579 = vpop.xlane.xlu0 %578
    %580 = vadd.xlane.f32.xlu0 %v515
    %v581 = vpop.xlane.xlu0 %580
    %v582 = vrcp.pop 128.0
    %v583 = vmul.f32 %v519, %v582
    %v584 = vmul.f32 %v521, %v582
    %v585 = vmul.f32 %v523, %v582
    %v586 = vmul.f32 %v525, %v582
    %v587 = vmul.f32 %v527, %v582
    %v588 = vmul.f32 %v529, %v582
    %v589 = vmul.f32 %v531, %v582
    %v590 = vmul.f32 %v533, %v582
    %v591 = vmul.f32 %v535, %v582
    %v592 = vmul.f32 %v537, %v582
    %v593 = vmul.f32 %v539, %v582
    %v594 = vmul.f32 %v541, %v582
    %v595 = vmul.f32 %v543, %v582
    %v596 = vmul.f32 %v545, %v582
    %v597 = vmul.f32 %v547, %v582
    %v598 = vmul.f32 %v549, %v582
    %v599 = vmul.f32 %v551, %v582
    %v600 = vmul.f32 %v553, %v582
    %v601 = vmul.f32 %v555, %v582
    %v602 = vmul.f32 %v557, %v582
    %v603 = vmul.f32 %v559, %v582
    %v604 = vmul.f32 %v561, %v582
    %v605 = vmul.f32 %v563, %v582
    %v606 = vmul.f32 %v565, %v582
    %v607 = vmul.f32 %v567, %v582
    %v608 = vmul.f32 %v569, %v582
    %v609 = vmul.f32 %v571, %v582
    %v610 = vmul.f32 %v573, %v582
    %v611 = vmul.f32 %v575, %v582
    %v612 = vmul.f32 %v577, %v582
    %v613 = vmul.f32 %v579, %v582
    %v614 = vmul.f32 %v581, %v582
    %v615 = vsub.f32 %v484, %v583
    %v616 = vsub.f32 %v485, %v584
    %v617 = vsub.f32 %v486, %v585
    %v618 = vsub.f32 %v487, %v586
    %v619 = vsub.f32 %v488, %v587
    %v620 = vsub.f32 %v489, %v588
    %v621 = vsub.f32 %v490, %v589
    %v622 = vsub.f32 %v491, %v590
    %v623 = vsub.f32 %v492, %v591
    %v624 = vsub.f32 %v493, %v592
    %v625 = vsub.f32 %v494, %v593
    %v626 = vsub.f32 %v495, %v594
    %v627 = vsub.f32 %v496, %v595
    %v628 = vsub.f32 %v497, %v596
    %v629 = vsub.f32 %v498, %v597
    %v630 = vsub.f32 %v499, %v598
    %v631 = vsub.f32 %v500, %v599
    %v632 = vsub.f32 %v501, %v600
    %v633 = vsub.f32 %v502, %v601
    %v634 = vsub.f32 %v503, %v602
    %v635 = vsub.f32 %v504, %v603
    %v636 = vsub.f32 %v505, %v604
    %v637 = vsub.f32 %v506, %v605
    %v638 = vsub.f32 %v507, %v606
    %v639 = vsub.f32 %v508, %v607
    %v640 = vsub.f32 %v509, %v608
    %v641 = vsub.f32 %v510, %v609
    %v642 = vsub.f32 %v511, %v610
    %v643 = vsub.f32 %v512, %v611
    %v644 = vsub.f32 %v513, %v612
    %v645 = vsub.f32 %v514, %v613
    %v646 = vsub.f32 %v515, %v614
    %v647 = vmul.f32 %v615, %v615
    %v648 = vmul.f32 %v616, %v616
    %v649 = vmul.f32 %v617, %v617
    %v650 = vmul.f32 %v618, %v618
    %v651 = vmul.f32 %v619, %v619
    %v652 = vmul.f32 %v620, %v620
    %v653 = vmul.f32 %v621, %v621
    %v654 = vmul.f32 %v622, %v622
    %v655 = vmul.f32 %v623, %v623
    %v656 = vmul.f32 %v624, %v624
    %v657 = vmul.f32 %v625, %v625
    %v658 = vmul.f32 %v626, %v626
    %v659 = vmul.f32 %v627, %v627
    %v660 = vmul.f32 %v628, %v628
    %v661 = vmul.f32 %v629, %v629
    %v662 = vmul.f32 %v630, %v630
    %v663 = vmul.f32 %v631, %v631
    %v664 = vmul.f32 %v632, %v632
    %v665 = vmul.f32 %v633, %v633
    %v666 = vmul.f32 %v634, %v634
    %v667 = vmul.f32 %v635, %v635
    %v668 = vmul.f32 %v636, %v636
    %v669 = vmul.f32 %v637, %v637
    %v670 = vmul.f32 %v638, %v638
    %v671 = vmul.f32 %v639, %v639
    %v672 = vmul.f32 %v640, %v640
    %v673 = vmul.f32 %v641, %v641
    %v674 = vmul.f32 %v642, %v642
    %v675 = vmul.f32 %v643, %v643
    %v676 = vmul.f32 %v644, %v644
    %v677 = vmul.f32 %v645, %v645
    %v678 = vmul.f32 %v646, %v646
    %679 = vadd.xlane.f32.xlu0 %v647
    %v680 = vpop.xlane.xlu0 %679
    %681 = vadd.xlane.f32.xlu0 %v648
    %v682 = vpop.xlane.xlu0 %681
    %683 = vadd.xlane.f32.xlu0 %v649
    %v684 = vpop.xlane.xlu0 %683
    %685 = vadd.xlane.f32.xlu0 %v650
    %v686 = vpop.xlane.xlu0 %685
    %687 = vadd.xlane.f32.xlu0 %v651
    %v688 = vpop.xlane.xlu0 %687
    %689 = vadd.xlane.f32.xlu0 %v652
    %v690 = vpop.xlane.xlu0 %689
    %691 = vadd.xlane.f32.xlu0 %v653
    %v692 = vpop.xlane.xlu0 %691
    %693 = vadd.xlane.f32.xlu0 %v654
    %v694 = vpop.xlane.xlu0 %693
    %695 = vadd.xlane.f32.xlu0 %v655
    %v696 = vpop.xlane.xlu0 %695
    %697 = vadd.xlane.f32.xlu0 %v656
    %v698 = vpop.xlane.xlu0 %697
    %699 = vadd.xlane.f32.xlu0 %v657
    %v700 = vpop.xlane.xlu0 %699
    %701 = vadd.xlane.f32.xlu0 %v658
    %v702 = vpop.xlane.xlu0 %701
    %703 = vadd.xlane.f32.xlu0 %v659
    %v704 = vpop.xlane.xlu0 %703
    %705 = vadd.xlane.f32.xlu0 %v660
    %v706 = vpop.xlane.xlu0 %705
    %707 = vadd.xlane.f32.xlu0 %v661
    %v708 = vpop.xlane.xlu0 %707
    %709 = vadd.xlane.f32.xlu0 %v662
    %v710 = vpop.xlane.xlu0 %709
    %711 = vadd.xlane.f32.xlu0 %v663
    %v712 = vpop.xlane.xlu0 %711
    %713 = vadd.xlane.f32.xlu0 %v664
    %v714 = vpop.xlane.xlu0 %713
    %715 = vadd.xlane.f32.xlu0 %v665
    %v716 = vpop.xlane.xlu0 %715
    %717 = vadd.xlane.f32.xlu0 %v666
    %v718 = vpop.xlane.xlu0 %717
    %719 = vadd.xlane.f32.xlu0 %v667
    %v720 = vpop.xlane.xlu0 %719
    %721 = vadd.xlane.f32.xlu0 %v668
    %v722 = vpop.xlane.xlu0 %721
    %723 = vadd.xlane.f32.xlu0 %v669
    %v724 = vpop.xlane.xlu0 %723
    %725 = vadd.xlane.f32.xlu0 %v670
    %v726 = vpop.xlane.xlu0 %725
    %727 = vadd.xlane.f32.xlu0 %v671
    %v728 = vpop.xlane.xlu0 %727
    %729 = vadd.xlane.f32.xlu0 %v672
    %v730 = vpop.xlane.xlu0 %729
    %731 = vadd.xlane.f32.xlu0 %v673
    %v732 = vpop.xlane.xlu0 %731
    %733 = vadd.xlane.f32.xlu0 %v674
    %v734 = vpop.xlane.xlu0 %733
    %735 = vadd.xlane.f32.xlu0 %v675
    %v736 = vpop.xlane.xlu0 %735
    %737 = vadd.xlane.f32.xlu0 %v676
    %v738 = vpop.xlane.xlu0 %737
    %739 = vadd.xlane.f32.xlu0 %v677
    %v740 = vpop.xlane.xlu0 %739
    %741 = vadd.xlane.f32.xlu0 %v678
    %v742 = vpop.xlane.xlu0 %741
    %v743 = vmul.f32 %v680, %v582
    %v744 = vmul.f32 %v682, %v582
    %v745 = vmul.f32 %v684, %v582
    %v746 = vmul.f32 %v686, %v582
    %v747 = vmul.f32 %v688, %v582
    %v748 = vmul.f32 %v690, %v582
    %v749 = vmul.f32 %v692, %v582
    %v750 = vmul.f32 %v694, %v582
    %v751 = vmul.f32 %v696, %v582
    %v752 = vmul.f32 %v698, %v582
    %v753 = vmul.f32 %v700, %v582
    %v754 = vmul.f32 %v702, %v582
    %v755 = vmul.f32 %v704, %v582
    %v756 = vmul.f32 %v706, %v582
    %v757 = vmul.f32 %v708, %v582
    %v758 = vmul.f32 %v710, %v582
    %v759 = vmul.f32 %v712, %v582
    %v760 = vmul.f32 %v714, %v582
    %v761 = vmul.f32 %v716, %v582
    %v762 = vmul.f32 %v718, %v582
    %v763 = vmul.f32 %v720, %v582
    %v764 = vmul.f32 %v722, %v582
    %v765 = vmul.f32 %v724, %v582
    %v766 = vmul.f32 %v726, %v582
    %v767 = vmul.f32 %v728, %v582
    %v768 = vmul.f32 %v730, %v582
    %v769 = vmul.f32 %v732, %v582
    %v770 = vmul.f32 %v734, %v582
    %v771 = vmul.f32 %v736, %v582
    %v772 = vmul.f32 %v738, %v582
    %v773 = vmul.f32 %v740, %v582
    %v774 = vmul.f32 %v742, %v582
    %v775 = vadd.f32 %v743, 1e-05
    %v776 = vadd.f32 %v744, 1e-05
    %v777 = vadd.f32 %v745, 1e-05
    %v778 = vadd.f32 %v746, 1e-05
    %v779 = vadd.f32 %v747, 1e-05
    %v780 = vadd.f32 %v748, 1e-05
    %v781 = vadd.f32 %v749, 1e-05
    %v782 = vadd.f32 %v750, 1e-05
    %v783 = vadd.f32 %v751, 1e-05
    %v784 = vadd.f32 %v752, 1e-05
    %v785 = vadd.f32 %v753, 1e-05
    %v786 = vadd.f32 %v754, 1e-05
    %v787 = vadd.f32 %v755, 1e-05
    %v788 = vadd.f32 %v756, 1e-05
    %v789 = vadd.f32 %v757, 1e-05
    %v790 = vadd.f32 %v758, 1e-05
    %v791 = vadd.f32 %v759, 1e-05
    %v792 = vadd.f32 %v760, 1e-05
    %v793 = vadd.f32 %v761, 1e-05
    %v794 = vadd.f32 %v762, 1e-05
    %v795 = vadd.f32 %v763, 1e-05
    %v796 = vadd.f32 %v764, 1e-05
    %v797 = vadd.f32 %v765, 1e-05
    %v798 = vadd.f32 %v766, 1e-05
    %v799 = vadd.f32 %v767, 1e-05
    %v800 = vadd.f32 %v768, 1e-05
    %v801 = vadd.f32 %v769, 1e-05
    %v802 = vadd.f32 %v770, 1e-05
    %v803 = vadd.f32 %v771, 1e-05
    %v804 = vadd.f32 %v772, 1e-05
    %v805 = vadd.f32 %v773, 1e-05
    %v806 = vadd.f32 %v774, 1e-05
    %v807 = vrsqrt.pop %v775
    %v808 = vrsqrt.pop %v776
    %v809 = vrsqrt.pop %v777
    %v810 = vrsqrt.pop %v778
    %v811 = vrsqrt.pop %v779
    %v812 = vrsqrt.pop %v780
    %v813 = vrsqrt.pop %v781
    %v814 = vrsqrt.pop %v782
    %v815 = vrsqrt.pop %v783
    %v816 = vrsqrt.pop %v784
    %v817 = vrsqrt.pop %v785
    %v818 = vrsqrt.pop %v786
    %v819 = vrsqrt.pop %v787
    %v820 = vrsqrt.pop %v788
    %v821 = vrsqrt.pop %v789
    %v822 = vrsqrt.pop %v790
    %v823 = vrsqrt.pop %v791
    %v824 = vrsqrt.pop %v792
    %v825 = vrsqrt.pop %v793
    %v826 = vrsqrt.pop %v794
    %v827 = vrsqrt.pop %v795
    %v828 = vrsqrt.pop %v796
    %v829 = vrsqrt.pop %v797
    %v830 = vrsqrt.pop %v798
    %v831 = vrsqrt.pop %v799
    %v832 = vrsqrt.pop %v800
    %v833 = vrsqrt.pop %v801
    %v834 = vrsqrt.pop %v802
    %v835 = vrsqrt.pop %v803
    %v836 = vrsqrt.pop %v804
    %v837 = vrsqrt.pop %v805
    %v838 = vrsqrt.pop %v806
    %v839 = vmul.f32 %v615, %v807
    %v840 = vmul.f32 %v616, %v808
    %v841 = vmul.f32 %v617, %v809
    %v842 = vmul.f32 %v618, %v810
    %v843 = vmul.f32 %v619, %v811
    %v844 = vmul.f32 %v620, %v812
    %v845 = vmul.f32 %v621, %v813
    %v846 = vmul.f32 %v622, %v814
    %v847 = vmul.f32 %v623, %v815
    %v848 = vmul.f32 %v624, %v816
    %v849 = vmul.f32 %v625, %v817
    %v850 = vmul.f32 %v626, %v818
    %v851 = vmul.f32 %v627, %v819
    %v852 = vmul.f32 %v628, %v820
    %v853 = vmul.f32 %v629, %v821
    %v854 = vmul.f32 %v630, %v822
    %v855 = vmul.f32 %v631, %v823
    %v856 = vmul.f32 %v632, %v824
    %v857 = vmul.f32 %v633, %v825
    %v858 = vmul.f32 %v634, %v826
    %v859 = vmul.f32 %v635, %v827
    %v860 = vmul.f32 %v636, %v828
    %v861 = vmul.f32 %v637, %v829
    %v862 = vmul.f32 %v638, %v830
    %v863 = vmul.f32 %v639, %v831
    %v864 = vmul.f32 %v640, %v832
    %v865 = vmul.f32 %v641, %v833
    %v866 = vmul.f32 %v642, %v834
    %v867 = vmul.f32 %v643, %v835
    %v868 = vmul.f32 %v644, %v836
    %v869 = vmul.f32 %v645, %v837
    %v870 = vmul.f32 %v646, %v838
    %v872 = vlaneseq
    %v873 = vshrl.u32 %v872, 7
    %v874 = vsub.s32 0, %v873
    %v875 = vrot.slane %v516, %v874
    %v877 = vmul.f32 %v839, %v875
    %v878 = vmul.f32 %v840, %v875
    %v879 = vmul.f32 %v841, %v875
    %v880 = vmul.f32 %v842, %v875
    %v881 = vmul.f32 %v843, %v875
    %v882 = vmul.f32 %v844, %v875
    %v883 = vmul.f32 %v845, %v875
    %v884 = vmul.f32 %v846, %v875
    %v885 = vmul.f32 %v847, %v875
    %v886 = vmul.f32 %v848, %v875
    %v887 = vmul.f32 %v849, %v875
    %v888 = vmul.f32 %v850, %v875
    %v889 = vmul.f32 %v851, %v875
    %v890 = vmul.f32 %v852, %v875
    %v891 = vmul.f32 %v853, %v875
    %v892 = vmul.f32 %v854, %v875
    %v893 = vmul.f32 %v855, %v875
    %v894 = vmul.f32 %v856, %v875
    %v895 = vmul.f32 %v857, %v875
    %v896 = vmul.f32 %v858, %v875
    %v897 = vmul.f32 %v859, %v875
    %v898 = vmul.f32 %v860, %v875
    %v899 = vmul.f32 %v861, %v875
    %v900 = vmul.f32 %v862, %v875
    %v901 = vmul.f32 %v863, %v875
    %v902 = vmul.f32 %v864, %v875
    %v903 = vmul.f32 %v865, %v875
    %v904 = vmul.f32 %v866, %v875
    %v905 = vmul.f32 %v867, %v875
    %v906 = vmul.f32 %v868, %v875
    %v907 = vmul.f32 %v869, %v875
    %v908 = vmul.f32 %v870, %v875
    %v910 = vlaneseq
    %v911 = vshrl.u32 %v910, 7
    %v912 = vsub.s32 0, %v911
    %v913 = vrot.slane %v517, %v912
    %v915 = vadd.f32 %v877, %v913
    %v916 = vadd.f32 %v878, %v913
    %v917 = vadd.f32 %v879, %v913
    %v918 = vadd.f32 %v880, %v913
    %v919 = vadd.f32 %v881, %v913
    %v920 = vadd.f32 %v882, %v913
    %v921 = vadd.f32 %v883, %v913
    %v922 = vadd.f32 %v884, %v913
    %v923 = vadd.f32 %v885, %v913
    %v924 = vadd.f32 %v886, %v913
    %v925 = vadd.f32 %v887, %v913
    %v926 = vadd.f32 %v888, %v913
    %v927 = vadd.f32 %v889, %v913
    %v928 = vadd.f32 %v890, %v913
    %v929 = vadd.f32 %v891, %v913
    %v930 = vadd.f32 %v892, %v913
    %v931 = vadd.f32 %v893, %v913
    %v932 = vadd.f32 %v894, %v913
    %v933 = vadd.f32 %v895, %v913
    %v934 = vadd.f32 %v896, %v913
    %v935 = vadd.f32 %v897, %v913
    %v936 = vadd.f32 %v898, %v913
    %v937 = vadd.f32 %v899, %v913
    %v938 = vadd.f32 %v900, %v913
    %v939 = vadd.f32 %v901, %v913
    %v940 = vadd.f32 %v902, %v913
    %v941 = vadd.f32 %v903, %v913
    %v942 = vadd.f32 %v904, %v913
    %v943 = vadd.f32 %v905, %v913
    %v944 = vadd.f32 %v906, %v913
    %v945 = vadd.f32 %v907, %v913
    %v946 = vadd.f32 %v908, %v913
    %v947 = vpack.c.bf16 %v916, %v915
    %v948 = vpack.c.bf16 %v918, %v917
    %v949 = vpack.c.bf16 %v920, %v919
    %v950 = vpack.c.bf16 %v922, %v921
    %v951 = vpack.c.bf16 %v924, %v923
    %v952 = vpack.c.bf16 %v926, %v925
    %v953 = vpack.c.bf16 %v928, %v927
    %v954 = vpack.c.bf16 %v930, %v929
    %v955 = vpack.c.bf16 %v932, %v931
    %v956 = vpack.c.bf16 %v934, %v933
    %v957 = vpack.c.bf16 %v936, %v935
    %v958 = vpack.c.bf16 %v938, %v937
    %v959 = vpack.c.bf16 %v940, %v939
    %v960 = vpack.c.bf16 %v942, %v941
    %v961 = vpack.c.bf16 %v944, %v943
    %v962 = vpack.c.bf16 %v946, %v945
    %v963 = vld [vmem:[#allocation9] sm:$0xff]
    %v964 = vld [vmem:[#allocation9 + $0x8] sm:$0xf]
    %v965 = vld [vmem:[#allocation9 + $0xc] sm:$0xff]
    %v966 = vld [vmem:[#allocation9 + $0x14] sm:$0xf]
    %v967 = vld [vmem:[#allocation9 + $0x18] sm:$0xff]
    %v968 = vld [vmem:[#allocation9 + $0x20] sm:$0xf]
    %v969 = vld [vmem:[#allocation9 + $0x24] sm:$0xff]
    %v970 = vld [vmem:[#allocation9 + $0x2c] sm:$0xf]
    %v971 = vld [vmem:[#allocation9 + $0x30] sm:$0xff]
    %v972 = vld [vmem:[#allocation9 + $0x38] sm:$0xf]
    %v973 = vld [vmem:[#allocation9 + $0x3c] sm:$0xff]
    %v974 = vld [vmem:[#allocation9 + $0x44] sm:$0xf]
    %v975 = vld [vmem:[#allocation9 + $0x48] sm:$0xff]
    %v976 = vld [vmem:[#allocation9 + $0x50] sm:$0xf]
    %v977 = vld [vmem:[#allocation9 + $0x54] sm:$0xff]
    %v978 = vld [vmem:[#allocation9 + $0x5c] sm:$0xf]
    %v979 = vld [vmem:[#allocation9 + $0x60] sm:$0xff]
    %v980 = vld [vmem:[#allocation9 + $0x68] sm:$0xf]
    %v981 = vld [vmem:[#allocation9 + $0x6c] sm:$0xff]
    %v982 = vld [vmem:[#allocation9 + $0x74] sm:$0xf]
    %v983 = vld [vmem:[#allocation9 + $0x78] sm:$0xff]
    %v984 = vld [vmem:[#allocation9 + $0x80] sm:$0xf]
    %v985 = vld [vmem:[#allocation9 + $0x84] sm:$0xff]
    %v986 = vld [vmem:[#allocation9 + $0x8c] sm:$0xf]
    %v987 = vld [vmem:[#allocation9 + $0x90] sm:$0xff]
    %v988 = vld [vmem:[#allocation9 + $0x98] sm:$0xf]
    %v989 = vld [vmem:[#allocation9 + $0x9c] sm:$0xff]
    %v990 = vld [vmem:[#allocation9 + $0xa4] sm:$0xf]
    %v991 = vld [vmem:[#allocation9 + $0xa8] sm:$0xff]
    %v992 = vld [vmem:[#allocation9 + $0xb0] sm:$0xf]
    %v993 = vld [vmem:[#allocation9 + $0xb4] sm:$0xff]
    %v994 = vld [vmem:[#allocation9 + $0xbc] sm:$0xf]
    %v995 = vld [vmem:[%s7] sm:$0x7]
    %v997 = vlaneseq
    %v998 = vshrl.u32 %v997, 7
    %v999 = vsub.s32 0, %v998
    %v1000 = vrot.slane %v995, %v999
    %v1001 = vlaneseq
    %v1002 = vshrl.u32 %v1001, 7
    %v1003 = vsub.s32 1, %v1002
    %v1004 = vrot.slane %v995, %v1003
    %v1005 = vlaneseq
    %v1006 = vshrl.u32 %v1005, 7
    %v1007 = vsub.s32 2, %v1006
    %v1008 = vrot.slane %v995, %v1007
    %v1044 = vunpack.c.l.b16 %v963
    %v1045 = vunpack.c.h.b16 %v963
    %v1046 = vunpack.c.l.b16 %v964
    %v1047 = vunpack.c.l.b16 %v965
    %v1048 = vunpack.c.h.b16 %v965
    %v1049 = vunpack.c.l.b16 %v966
    %v1050 = vunpack.c.l.b16 %v967
    %v1051 = vunpack.c.h.b16 %v967
    %v1052 = vunpack.c.l.b16 %v968
    %v1053 = vunpack.c.l.b16 %v969
    %v1054 = vunpack.c.h.b16 %v969
    %v1055 = vunpack.c.l.b16 %v970
    %v1056 = vunpack.c.l.b16 %v971
    %v1057 = vunpack.c.h.b16 %v971
    %v1058 = vunpack.c.l.b16 %v972
    %v1059 = vunpack.c.l.b16 %v973
    %v1060 = vunpack.c.h.b16 %v973
    %v1061 = vunpack.c.l.b16 %v974
    %v1062 = vunpack.c.l.b16 %v975
    %v1063 = vunpack.c.h.b16 %v975
    %v1064 = vunpack.c.l.b16 %v976
    %v1065 = vunpack.c.l.b16 %v977
    %v1066 = vunpack.c.h.b16 %v977
    %v1067 = vunpack.c.l.b16 %v978
    %v1068 = vunpack.c.l.b16 %v979
    %v1069 = vunpack.c.h.b16 %v979
    %v1070 = vunpack.c.l.b16 %v980
    %v1071 = vunpack.c.l.b16 %v981
    %v1072 = vunpack.c.h.b16 %v981
    %v1073 = vunpack.c.l.b16 %v982
    %v1074 = vunpack.c.l.b16 %v983
    %v1075 = vunpack.c.h.b16 %v983
    %v1076 = vunpack.c.l.b16 %v984
    %v1077 = vunpack.c.l.b16 %v985
    %v1078 = vunpack.c.h.b16 %v985
    %v1079 = vunpack.c.l.b16 %v986
    %v1080 = vunpack.c.l.b16 %v987
    %v1081 = vunpack.c.h.b16 %v987
    %v1082 = vunpack.c.l.b16 %v988
    %v1083 = vunpack.c.l.b16 %v989
    %v1084 = vunpack.c.h.b16 %v989
    %v1085 = vunpack.c.l.b16 %v990
    %v1086 = vunpack.c.l.b16 %v991
    %v1087 = vunpack.c.h.b16 %v991
    %v1088 = vunpack.c.l.b16 %v992
    %v1089 = vunpack.c.l.b16 %v993
    %v1090 = vunpack.c.h.b16 %v993
    %v1091 = vunpack.c.l.b16 %v994
    %v1092 = vpack.c.b16 %v1047, %v1044
    %v1093 = vpack.c.b16 %v1048, %v1045
    %v1094 = vpack.c.b16 %v1049, %v1046
    %v1095 = vpack.c.b16 %v1053, %v1050
    %v1096 = vpack.c.b16 %v1054, %v1051
    %v1097 = vpack.c.b16 %v1055, %v1052
    %v1098 = vpack.c.b16 %v1059, %v1056
    %v1099 = vpack.c.b16 %v1060, %v1057
    %v1100 = vpack.c.b16 %v1061, %v1058
    %v1101 = vpack.c.b16 %v1065, %v1062
    %v1102 = vpack.c.b16 %v1066, %v1063
    %v1103 = vpack.c.b16 %v1067, %v1064
    %v1104 = vpack.c.b16 %v1071, %v1068
    %v1105 = vpack.c.b16 %v1072, %v1069
    %v1106 = vpack.c.b16 %v1073, %v1070
    %v1107 = vpack.c.b16 %v1077, %v1074
    %v1108 = vpack.c.b16 %v1078, %v1075
    %v1109 = vpack.c.b16 %v1079, %v1076
    %v1110 = vpack.c.b16 %v1083, %v1080
    %v1111 = vpack.c.b16 %v1084, %v1081
    %v1112 = vpack.c.b16 %v1085, %v1082
    %v1113 = vpack.c.b16 %v1089, %v1086
    %v1114 = vpack.c.b16 %v1090, %v1087
    %v1115 = vpack.c.b16 %v1091, %v1088
    %1140 = vmatprep.subr.bf16.mxu0 %v1093
    %1141 = vmatpush1.bf16.msra.mxu0 %v1092
    %1142 = vmatprep.subr.bf16.mxu0 %v1096
    %1143 = vmatpush1.bf16.msra.mxu0 %v1095
    %1144 = vmatprep.subr.bf16.mxu0 %v1099
    %1145 = vmatpush1.bf16.msra.mxu0 %v1098
    %1146 = vmatprep.subr.bf16.mxu0 %v1102
    %1147 = vmatpush1.bf16.msra.mxu0 %v1101
    %1148 = vmatprep.subr.bf16.mxu0 %v1105
    %1149 = vmatpush1.bf16.msra.mxu0 %v1104
    %1150 = vmatprep.subr.bf16.mxu0 %v1108
    %1151 = vmatpush1.bf16.msra.mxu0 %v1107
    %1152 = vmatprep.subr.bf16.mxu0 %v1111
    %1153 = vmatpush1.bf16.msra.mxu0 %v1110
    %1154 = vmatprep.subr.bf16.mxu0 %v1114
    %1155 = vmatpush1.bf16.msra.mxu0 %v1113
    %1156 = vmatprep.subr.bf16.mxu0 0
    %1157 = vmatpush1.bf16.msra.mxu0 0
    %1158 = vmatprep.subr.bf16.mxu0 0
    %1159 = vmatpush1.bf16.msra.mxu0 0
    %1160 = vmatprep.subr.bf16.mxu0 0
    %1161 = vmatpush1.bf16.msra.mxu0 0
    %1162 = vmatprep.subr.bf16.mxu0 0
    %1163 = vmatpush1.bf16.msra.mxu0 0
    %1164 = vmatprep.subr.bf16.mxu0 0
    %1165 = vmatpush1.bf16.msra.mxu0 0
    %1166 = vmatprep.subr.bf16.mxu0 0
    %1167 = vmatpush1.bf16.msra.mxu0 0
    %1168 = vmatprep.subr.bf16.mxu0 0
    %1169 = vmatpush1.bf16.msra.mxu0 0
    %1170 = vmatprep.subr.bf16.mxu0 0
    %1171 = vmatpush1.bf16.msra.mxu0 0
    %1172 = vmatprep.mubr.bf16.mxu0 0
    %1173 = vmatmul.mubr.bf16.gmra.mrb[0].mxu0 %v947
    %v1174 = vpop.f32.mrb[0].mxu0
    %v1175 = vadd.f32 %v1000, %v1174
    %v1176 = vpop.f32.mrb[0].mxu0
    %v1177 = vadd.f32 %v1004, %v1176
    %v1178 = vpop.f32.mrb[0].mxu0
    %v1179 = vadd.f32 %v1000, %v1178
    %v1180 = vpop.f32.mrb[0].mxu0
    %v1181 = vadd.f32 %v1004, %v1180
    %1182 = vmatprep.mubr.bf16.mxu0 0
    %1183 = vmatmul.mubr.bf16.gmra.mrb[0].mxu0 %v948
    %v1184 = vpop.f32.mrb[0].mxu0
    %v1185 = vadd.f32 %v1000, %v1184
    %v1186 = vpop.f32.mrb[0].mxu0
    %v1187 = vadd.f32 %v1004, %v1186
    %v1188 = vpop.f32.mrb[0].mxu0
    %v1189 = vadd.f32 %v1000, %v1188
    %v1190 = vpop.f32.mrb[0].mxu0
    %v1191 = vadd.f32 %v1004, %v1190
    %1192 = vmatprep.mubr.bf16.mxu0 0
    %1193 = vmatmul.mubr.bf16.gmra.mrb[0].mxu0 %v949
    %v1194 = vpop.f32.mrb[0].mxu0
    %v1195 = vadd.f32 %v1000, %v1194
    %v1196 = vpop.f32.mrb[0].mxu0
    %v1197 = vadd.f32 %v1004, %v1196
    %v1198 = vpop.f32.mrb[0].mxu0
    %v1199 = vadd.f32 %v1000, %v1198
    %v1200 = vpop.f32.mrb[0].mxu0
    %v1201 = vadd.f32 %v1004, %v1200
    %1202 = vmatprep.mubr.bf16.mxu0 0
    %1203 = vmatmul.mubr.bf16.gmra.mrb[0].mxu0 %v950
    %v1204 = vpop.f32.mrb[0].mxu0
    %v1205 = vadd.f32 %v1000, %v1204
    %v1206 = vpop.f32.mrb[0].mxu0
    %v1207 = vadd.f32 %v1004, %v1206
    %v1208 = vpop.f32.mrb[0].mxu0
    %v1209 = vadd.f32 %v1000, %v1208
    %v1210 = vpop.f32.mrb[0].mxu0
    %v1211 = vadd.f32 %v1004, %v1210
    %1212 = vmatprep.mubr.bf16.mxu0 0
    %1213 = vmatmul.mubr.bf16.gmra.mrb[0].mxu0 %v951
    %v1214 = vpop.f32.mrb[0].mxu0
    %v1215 = vadd.f32 %v1000, %v1214
    %v1216 = vpop.f32.mrb[0].mxu0
    %v1217 = vadd.f32 %v1004, %v1216
    %v1218 = vpop.f32.mrb[0].mxu0
    %v1219 = vadd.f32 %v1000, %v1218
    %v1220 = vpop.f32.mrb[0].mxu0
    %v1221 = vadd.f32 %v1004, %v1220
    %1222 = vmatprep.mubr.bf16.mxu0 0
    %1223 = vmatmul.mubr.bf16.gmra.mrb[0].mxu0 %v952
    %v1224 = vpop.f32.mrb[0].mxu0
    %v1225 = vadd.f32 %v1000, %v1224
    %v1226 = vpop.f32.mrb[0].mxu0
    %v1227 = vadd.f32 %v1004, %v1226
    %v1228 = vpop.f32.mrb[0].mxu0
    %v1229 = vadd.f32 %v1000, %v1228
    %v1230 = vpop.f32.mrb[0].mxu0
    %v1231 = vadd.f32 %v1004, %v1230
    %1232 = vmatprep.mubr.bf16.mxu0 0
    %1233 = vmatmul.mubr.bf16.gmra.mrb[0].mxu0 %v953
    %v1234 = vpop.f32.mrb[0].mxu0
    %v1235 = vadd.f32 %v1000, %v1234
    %v1236 = vpop.f32.mrb[0].mxu0
    %v1237 = vadd.f32 %v1004, %v1236
    %v1238 = vpop.f32.mrb[0].mxu0
    %v1239 = vadd.f32 %v1000, %v1238
    %v1240 = vpop.f32.mrb[0].mxu0
    %v1241 = vadd.f32 %v1004, %v1240
    %1242 = vmatprep.mubr.bf16.mxu0 0
    %1243 = vmatmul.mubr.bf16.gmra.mrb[0].mxu0 %v954
    %v1244 = vpop.f32.mrb[0].mxu0
    %v1245 = vadd.f32 %v1000, %v1244
    %v1246 = vpop.f32.mrb[0].mxu0
    %v1247 = vadd.f32 %v1004, %v1246
    %v1248 = vpop.f32.mrb[0].mxu0
    %v1249 = vadd.f32 %v1000, %v1248
    %v1250 = vpop.f32.mrb[0].mxu0
    %v1251 = vadd.f32 %v1004, %v1250
    %1252 = vmatprep.mubr.bf16.mxu0 0
    %1253 = vmatmul.mubr.bf16.gmra.mrb[0].mxu0 %v955
    %v1254 = vpop.f32.mrb[0].mxu0
    %v1255 = vadd.f32 %v1000, %v1254
    %v1256 = vpop.f32.mrb[0].mxu0
    %v1257 = vadd.f32 %v1004, %v1256
    %v1258 = vpop.f32.mrb[0].mxu0
    %v1259 = vadd.f32 %v1000, %v1258
    %v1260 = vpop.f32.mrb[0].mxu0
    %v1261 = vadd.f32 %v1004, %v1260
    %1262 = vmatprep.mubr.bf16.mxu0 0
    %1263 = vmatmul.mubr.bf16.gmra.mrb[0].mxu0 %v956
    %v1264 = vpop.f32.mrb[0].mxu0
    %v1265 = vadd.f32 %v1000, %v1264
    %v1266 = vpop.f32.mrb[0].mxu0
    %v1267 = vadd.f32 %v1004, %v1266
    %v1268 = vpop.f32.mrb[0].mxu0
    %v1269 = vadd.f32 %v1000, %v1268
    %v1270 = vpop.f32.mrb[0].mxu0
    %v1271 = vadd.f32 %v1004, %v1270
    %1272 = vmatprep.mubr.bf16.mxu0 0
    %1273 = vmatmul.mubr.bf16.gmra.mrb[0].mxu0 %v957
    %v1274 = vpop.f32.mrb[0].mxu0
    %v1275 = vadd.f32 %v1000, %v1274
    %v1276 = vpop.f32.mrb[0].mxu0
    %v1277 = vadd.f32 %v1004, %v1276
    %v1278 = vpop.f32.mrb[0].mxu0
    %v1279 = vadd.f32 %v1000, %v1278
    %v1280 = vpop.f32.mrb[0].mxu0
    %v1281 = vadd.f32 %v1004, %v1280
    %1282 = vmatprep.mubr.bf16.mxu0 0
    %1283 = vmatmul.mubr.bf16.gmra.mrb[0].mxu0 %v958
    %v1284 = vpop.f32.mrb[0].mxu0
    %v1285 = vadd.f32 %v1000, %v1284
    %v1286 = vpop.f32.mrb[0].mxu0
    %v1287 = vadd.f32 %v1004, %v1286
    %v1288 = vpop.f32.mrb[0].mxu0
    %v1289 = vadd.f32 %v1000, %v1288
    %v1290 = vpop.f32.mrb[0].mxu0
    %v1291 = vadd.f32 %v1004, %v1290
    %1292 = vmatprep.mubr.bf16.mxu0 0
    %1293 = vmatmul.mubr.bf16.gmra.mrb[0].mxu0 %v959
    %v1294 = vpop.f32.mrb[0].mxu0
    %v1295 = vadd.f32 %v1000, %v1294
    %v1296 = vpop.f32.mrb[0].mxu0
    %v1297 = vadd.f32 %v1004, %v1296
    %v1298 = vpop.f32.mrb[0].mxu0
    %v1299 = vadd.f32 %v1000, %v1298
    %v1300 = vpop.f32.mrb[0].mxu0
    %v1301 = vadd.f32 %v1004, %v1300
    %1302 = vmatprep.mubr.bf16.mxu0 0
    %1303 = vmatmul.mubr.bf16.gmra.mrb[0].mxu0 %v960
    %v1304 = vpop.f32.mrb[0].mxu0
    %v1305 = vadd.f32 %v1000, %v1304
    %v1306 = vpop.f32.mrb[0].mxu0
    %v1307 = vadd.f32 %v1004, %v1306
    %v1308 = vpop.f32.mrb[0].mxu0
    %v1309 = vadd.f32 %v1000, %v1308
    %v1310 = vpop.f32.mrb[0].mxu0
    %v1311 = vadd.f32 %v1004, %v1310
    %1312 = vmatprep.mubr.bf16.mxu0 0
    %1313 = vmatmul.mubr.bf16.gmra.mrb[0].mxu0 %v961
    %v1314 = vpop.f32.mrb[0].mxu0
    %v1315 = vadd.f32 %v1000, %v1314
    %v1316 = vpop.f32.mrb[0].mxu0
    %v1317 = vadd.f32 %v1004, %v1316
    %v1318 = vpop.f32.mrb[0].mxu0
    %v1319 = vadd.f32 %v1000, %v1318
    %v1320 = vpop.f32.mrb[0].mxu0
    %v1321 = vadd.f32 %v1004, %v1320
    %1322 = vmatprep.mubr.bf16.mxu0 0
    %1323 = vmatmul.mubr.bf16.gmra.mrb[0].mxu0 %v962
    %v1324 = vpop.f32.mrb[0].mxu0
    %v1325 = vadd.f32 %v1000, %v1324
    %v1326 = vpop.f32.mrb[0].mxu0
    %v1327 = vadd.f32 %v1004, %v1326
    %v1328 = vpop.f32.mrb[0].mxu0
    %v1329 = vadd.f32 %v1000, %v1328
    %v1330 = vpop.f32.mrb[0].mxu0
    %v1331 = vadd.f32 %v1004, %v1330
    %1332 = vdwg.mxu0
    %1333 = vmatprep.subr.bf16.mxu0 0
    %1334 = vmatpush1.bf16.msra.mxu0 %v1094
    %1335 = vmatprep.subr.bf16.mxu0 0
    %1336 = vmatpush1.bf16.msra.mxu0 %v1097
    %1337 = vmatprep.subr.bf16.mxu0 0
    %1338 = vmatpush1.bf16.msra.mxu0 %v1100
    %1339 = vmatprep.subr.bf16.mxu0 0
    %1340 = vmatpush1.bf16.msra.mxu0 %v1103
    %1341 = vmatprep.subr.bf16.mxu0 0
    %1342 = vmatpush1.bf16.msra.mxu0 %v1106
    %1343 = vmatprep.subr.bf16.mxu0 0
    %1344 = vmatpush1.bf16.msra.mxu0 %v1109
    %1345 = vmatprep.subr.bf16.mxu0 0
    %1346 = vmatpush1.bf16.msra.mxu0 %v1112
    %1347 = vmatprep.subr.bf16.mxu0 0
    %1348 = vmatpush1.bf16.msra.mxu0 %v1115
    %1349 = vmatprep.subr.bf16.mxu0 0
    %1350 = vmatpush1.bf16.msra.mxu0 0
    %1351 = vmatprep.subr.bf16.mxu0 0
    %1352 = vmatpush1.bf16.msra.mxu0 0
    %1353 = vmatprep.subr.bf16.mxu0 0
    %1354 = vmatpush1.bf16.msra.mxu0 0
    %1355 = vmatprep.subr.bf16.mxu0 0
    %1356 = vmatpush1.bf16.msra.mxu0 0
    %1357 = vmatprep.subr.bf16.mxu0 0
    %1358 = vmatpush1.bf16.msra.mxu0 0
    %1359 = vmatprep.subr.bf16.mxu0 0
    %1360 = vmatpush1.bf16.msra.mxu0 0
    %1361 = vmatprep.subr.bf16.mxu0 0
    %1362 = vmatpush1.bf16.msra.mxu0 0
    %1363 = vmatprep.subr.bf16.mxu0 0
    %1364 = vmatpush1.bf16.msra.mxu0 0
    %1365 = vmatprep.mubr.bf16.mxu0 0
    %1366 = vmatmul.mubr.bf16.gmra.mrb[0].mxu0 %v947
    %v1367 = vpop.f32.mrb[0].mxu0
    %v1368 = vadd.f32 %v1008, %v1367
    %v1369 = vpop.f32.mrb[0].mxu0
    %v1370 = vpop.f32.mrb[0].mxu0
    %v1371 = vadd.f32 %v1008, %v1370
    %v1372 = vpop.f32.mrb[0].mxu0
    %1373 = vmatprep.mubr.bf16.mxu0 0
    %1374 = vmatmul.mubr.bf16.gmra.mrb[0].mxu0 %v948
    %v1375 = vpop.f32.mrb[0].mxu0
    %v1376 = vadd.f32 %v1008, %v1375
    %v1377 = vpop.f32.mrb[0].mxu0
    %v1378 = vpop.f32.mrb[0].mxu0
    %v1379 = vadd.f32 %v1008, %v1378
    %v1380 = vpop.f32.mrb[0].mxu0
    %1381 = vmatprep.mubr.bf16.mxu0 0
    %1382 = vmatmul.mubr.bf16.gmra.mrb[0].mxu0 %v949
    %v1383 = vpop.f32.mrb[0].mxu0
    %v1384 = vadd.f32 %v1008, %v1383
    %v1385 = vpop.f32.mrb[0].mxu0
    %v1386 = vpop.f32.mrb[0].mxu0
    %v1387 = vadd.f32 %v1008, %v1386
    %v1388 = vpop.f32.mrb[0].mxu0
    %1389 = vmatprep.mubr.bf16.mxu0 0
    %1390 = vmatmul.mubr.bf16.gmra.mrb[0].mxu0 %v950
    %v1391 = vpop.f32.mrb[0].mxu0
    %v1392 = vadd.f32 %v1008, %v1391
    %v1393 = vpop.f32.mrb[0].mxu0
    %v1394 = vpop.f32.mrb[0].mxu0
    %v1395 = vadd.f32 %v1008, %v1394
    %v1396 = vpop.f32.mrb[0].mxu0
    %1397 = vmatprep.mubr.bf16.mxu0 0
    %1398 = vmatmul.mubr.bf16.gmra.mrb[0].mxu0 %v951
    %v1399 = vpop.f32.mrb[0].mxu0
    %v1400 = vadd.f32 %v1008, %v1399
    %v1401 = vpop.f32.mrb[0].mxu0
    %v1402 = vpop.f32.mrb[0].mxu0
    %v1403 = vadd.f32 %v1008, %v1402
    %v1404 = vpop.f32.mrb[0].mxu0
    %1405 = vmatprep.mubr.bf16.mxu0 0
    %1406 = vmatmul.mubr.bf16.gmra.mrb[0].mxu0 %v952
    %v1407 = vpop.f32.mrb[0].mxu0
    %v1408 = vadd.f32 %v1008, %v1407
    %v1409 = vpop.f32.mrb[0].mxu0
    %v1410 = vpop.f32.mrb[0].mxu0
    %v1411 = vadd.f32 %v1008, %v1410
    %v1412 = vpop.f32.mrb[0].mxu0
    %1413 = vmatprep.mubr.bf16.mxu0 0
    %1414 = vmatmul.mubr.bf16.gmra.mrb[0].mxu0 %v953
    %v1415 = vpop.f32.mrb[0].mxu0
    %v1416 = vadd.f32 %v1008, %v1415
    %v1417 = vpop.f32.mrb[0].mxu0
    %v1418 = vpop.f32.mrb[0].mxu0
    %v1419 = vadd.f32 %v1008, %v1418
    %v1420 = vpop.f32.mrb[0].mxu0
    %1421 = vmatprep.mubr.bf16.mxu0 0
    %1422 = vmatmul.mubr.bf16.gmra.mrb[0].mxu0 %v954
    %v1423 = vpop.f32.mrb[0].mxu0
    %v1424 = vadd.f32 %v1008, %v1423
    %v1425 = vpop.f32.mrb[0].mxu0
    %v1426 = vpop.f32.mrb[0].mxu0
    %v1427 = vadd.f32 %v1008, %v1426
    %v1428 = vpop.f32.mrb[0].mxu0
    %1429 = vmatprep.mubr.bf16.mxu0 0
    %1430 = vmatmul.mubr.bf16.gmra.mrb[0].mxu0 %v955
    %v1431 = vpop.f32.mrb[0].mxu0
    %v1432 = vadd.f32 %v1008, %v1431
    %v1433 = vpop.f32.mrb[0].mxu0
    %v1434 = vpop.f32.mrb[0].mxu0
    %v1435 = vadd.f32 %v1008, %v1434
    %v1436 = vpop.f32.mrb[0].mxu0
    %1437 = vmatprep.mubr.bf16.mxu0 0
    %1438 = vmatmul.mubr.bf16.gmra.mrb[0].mxu0 %v956
    %v1439 = vpop.f32.mrb[0].mxu0
    %v1440 = vadd.f32 %v1008, %v1439
    %v1441 = vpop.f32.mrb[0].mxu0
    %v1442 = vpop.f32.mrb[0].mxu0
    %v1443 = vadd.f32 %v1008, %v1442
    %v1444 = vpop.f32.mrb[0].mxu0
    %1445 = vmatprep.mubr.bf16.mxu0 0
    %1446 = vmatmul.mubr.bf16.gmra.mrb[0].mxu0 %v957
    %v1447 = vpop.f32.mrb[0].mxu0
    %v1448 = vadd.f32 %v1008, %v1447
    %v1449 = vpop.f32.mrb[0].mxu0
    %v1450 = vpop.f32.mrb[0].mxu0
    %v1451 = vadd.f32 %v1008, %v1450
    %v1452 = vpop.f32.mrb[0].mxu0
    %1453 = vmatprep.mubr.bf16.mxu0 0
    %1454 = vmatmul.mubr.bf16.gmra.mrb[0].mxu0 %v958
    %v1455 = vpop.f32.mrb[0].mxu0
    %v1456 = vadd.f32 %v1008, %v1455
    %v1457 = vpop.f32.mrb[0].mxu0
    %v1458 = vpop.f32.mrb[0].mxu0
    %v1459 = vadd.f32 %v1008, %v1458
    %v1460 = vpop.f32.mrb[0].mxu0
    %1461 = vmatprep.mubr.bf16.mxu0 0
    %1462 = vmatmul.mubr.bf16.gmra.mrb[0].mxu0 %v959
    %v1463 = vpop.f32.mrb[0].mxu0
    %v1464 = vadd.f32 %v1008, %v1463
    %v1465 = vpop.f32.mrb[0].mxu0
    %v1466 = vpop.f32.mrb[0].mxu0
    %v1467 = vadd.f32 %v1008, %v1466
    %v1468 = vpop.f32.mrb[0].mxu0
    %1469 = vmatprep.mubr.bf16.mxu0 0
    %1470 = vmatmul.mubr.bf16.gmra.mrb[0].mxu0 %v960
    %v1471 = vpop.f32.mrb[0].mxu0
    %v1472 = vadd.f32 %v1008, %v1471
    %v1473 = vpop.f32.mrb[0].mxu0
    %v1474 = vpop.f32.mrb[0].mxu0
    %v1475 = vadd.f32 %v1008, %v1474
    %v1476 = vpop.f32.mrb[0].mxu0
    %1477 = vmatprep.mubr.bf16.mxu0 0
    %1478 = vmatmul.mubr.bf16.gmra.mrb[0].mxu0 %v961
    %v1479 = vpop.f32.mrb[0].mxu0
    %v1480 = vadd.f32 %v1008, %v1479
    %v1481 = vpop.f32.mrb[0].mxu0
    %v1482 = vpop.f32.mrb[0].mxu0
    %v1483 = vadd.f32 %v1008, %v1482
    %v1484 = vpop.f32.mrb[0].mxu0
    %1485 = vmatprep.mubr.bf16.mxu0 0
    %1486 = vmatmul.mubr.bf16.gmra.mrb[0].mxu0 %v962
    %v1487 = vpop.f32.mrb[0].mxu0
    %v1488 = vadd.f32 %v1008, %v1487
    %v1489 = vpop.f32.mrb[0].mxu0
    %v1490 = vpop.f32.mrb[0].mxu0
    %v1491 = vadd.f32 %v1008, %v1490
    %v1492 = vpop.f32.mrb[0].mxu0
    %1493 = vdwg.mxu0
    %v1494 = vmul.f32 %v1175, 0.17677669
    %v1495 = vmul.f32 %v1179, 0.17677669
    %v1496 = vmul.f32 %v1185, 0.17677669
    %v1497 = vmul.f32 %v1189, 0.17677669
    %v1498 = vmul.f32 %v1195, 0.17677669
    %v1499 = vmul.f32 %v1199, 0.17677669
    %v1500 = vmul.f32 %v1205, 0.17677669
    %v1501 = vmul.f32 %v1209, 0.17677669
    %v1502 = vmul.f32 %v1215, 0.17677669
    %v1503 = vmul.f32 %v1219, 0.17677669
    %v1504 = vmul.f32 %v1225, 0.17677669
    %v1505 = vmul.f32 %v1229, 0.17677669
    %v1506 = vmul.f32 %v1235, 0.17677669
    %v1507 = vmul.f32 %v1239, 0.17677669
    %v1508 = vmul.f32 %v1245, 0.17677669
    %v1509 = vmul.f32 %v1249, 0.17677669
    %v1510 = vmul.f32 %v1255, 0.17677669
    %v1511 = vmul.f32 %v1259, 0.17677669
    %v1512 = vmul.f32 %v1265, 0.17677669
    %v1513 = vmul.f32 %v1269, 0.17677669
    %v1514 = vmul.f32 %v1275, 0.17677669
    %v1515 = vmul.f32 %v1279, 0.17677669
    %v1516 = vmul.f32 %v1285, 0.17677669
    %v1517 = vmul.f32 %v1289, 0.17677669
    %v1518 = vmul.f32 %v1295, 0.17677669
    %v1519 = vmul.f32 %v1299, 0.17677669
    %v1520 = vmul.f32 %v1305, 0.17677669
    %v1521 = vmul.f32 %v1309, 0.17677669
    %v1522 = vmul.f32 %v1315, 0.17677669
    %v1523 = vmul.f32 %v1319, 0.17677669
    %v1524 = vmul.f32 %v1325, 0.17677669
    %v1525 = vmul.f32 %v1329, 0.17677669
    %v1526 = vpack.c.bf16 %v1495, %v1494
    %v1527 = vpack.c.bf16 %v1497, %v1496
    %v1528 = vpack.c.bf16 %v1499, %v1498
    %v1529 = vpack.c.bf16 %v1501, %v1500
    %v1530 = vpack.c.bf16 %v1503, %v1502
    %v1531 = vpack.c.bf16 %v1505, %v1504
    %v1532 = vpack.c.bf16 %v1507, %v1506
    %v1533 = vpack.c.bf16 %v1509, %v1508
    %v1534 = vpack.c.bf16 %v1511, %v1510
    %v1535 = vpack.c.bf16 %v1513, %v1512
    %v1536 = vpack.c.bf16 %v1515, %v1514
    %v1537 = vpack.c.bf16 %v1517, %v1516
    %v1538 = vpack.c.bf16 %v1519, %v1518
    %v1539 = vpack.c.bf16 %v1521, %v1520
    %v1540 = vpack.c.bf16 %v1523, %v1522
    %v1541 = vpack.c.bf16 %v1525, %v1524
    %v1542 = vpack.c.bf16 %v1181, %v1177
    %v1543 = vpack.c.bf16 %v1191, %v1187
    %v1544 = vpack.c.bf16 %v1201, %v1197
    %v1545 = vpack.c.bf16 %v1211, %v1207
    %v1546 = vpack.c.bf16 %v1221, %v1217
    %v1547 = vpack.c.bf16 %v1231, %v1227
    %v1548 = vpack.c.bf16 %v1241, %v1237
    %v1549 = vpack.c.bf16 %v1251, %v1247
    %v1550 = vpack.c.bf16 %v1261, %v1257
    %v1551 = vpack.c.bf16 %v1271, %v1267
    %v1552 = vpack.c.bf16 %v1281, %v1277
    %v1553 = vpack.c.bf16 %v1291, %v1287
    %v1554 = vpack.c.bf16 %v1301, %v1297
    %v1555 = vpack.c.bf16 %v1311, %v1307
    %v1556 = vpack.c.bf16 %v1321, %v1317
    %v1557 = vpack.c.bf16 %v1331, %v1327
    %v1558 = vpack.c.bf16 %v1371, %v1368
    %v1559 = vpack.c.bf16 %v1379, %v1376
    %v1560 = vpack.c.bf16 %v1387, %v1384
    %v1561 = vpack.c.bf16 %v1395, %v1392
    %v1562 = vpack.c.bf16 %v1403, %v1400
    %v1563 = vpack.c.bf16 %v1411, %v1408
    %v1564 = vpack.c.bf16 %v1419, %v1416
    %v1565 = vpack.c.bf16 %v1427, %v1424
    %v1566 = vpack.c.bf16 %v1435, %v1432
    %v1567 = vpack.c.bf16 %v1443, %v1440
    %v1568 = vpack.c.bf16 %v1451, %v1448
    %v1569 = vpack.c.bf16 %v1459, %v1456
    %v1570 = vpack.c.bf16 %v1467, %v1464
    %v1571 = vpack.c.bf16 %v1475, %v1472
    %v1572 = vpack.c.bf16 %v1483, %v1480
    %v1573 = vpack.c.bf16 %v1491, %v1488
    %v1575 = vsel %vm272, %v1526, 0
    %v1578 = vsel %vm272, %v1542, 0
    %1580 = vmatprep.subr.bf16.mxu0 0
    %1581 = vmatpush1.bf16.xpose.msra.mxu0 %v1578
    %1582 = vmatprep.subr.bf16.mxu0 0
    %1583 = vmatpush1.bf16.xpose.msra.mxu0 0
    %1584 = vmatprep.subr.bf16.mxu0 0
    %1585 = vmatpush1.bf16.xpose.msra.mxu0 0
    %1586 = vmatprep.subr.bf16.mxu0 0
    %1587 = vmatpush1.bf16.xpose.msra.mxu0 0
    %1588 = vmatprep.subr.bf16.mxu0 0
    %1589 = vmatpush1.bf16.xpose.msra.mxu0 0
    %1590 = vmatprep.subr.bf16.mxu0 0
    %1591 = vmatpush1.bf16.xpose.msra.mxu0 0
    %1592 = vmatprep.subr.bf16.mxu0 0
    %1593 = vmatpush1.bf16.xpose.msra.mxu0 0
    %1594 = vmatprep.subr.bf16.mxu0 0
    %1595 = vmatpush1.bf16.xpose.msra.mxu0 0
    %1596 = vmatprep.subr.bf16.mxu0 0
    %1597 = vmatpush1.bf16.xpose.msra.mxu0 0
    %1598 = vmatprep.subr.bf16.mxu0 0
    %1599 = vmatpush1.bf16.xpose.msra.mxu0 0
    %1600 = vmatprep.subr.bf16.mxu0 0
    %1601 = vmatpush1.bf16.xpose.msra.mxu0 0
    %1602 = vmatprep.subr.bf16.mxu0 0
    %1603 = vmatpush1.bf16.xpose.msra.mxu0 0
    %1604 = vmatprep.subr.bf16.mxu0 0
    %1605 = vmatpush1.bf16.xpose.msra.mxu0 0
    %1606 = vmatprep.subr.bf16.mxu0 0
    %1607 = vmatpush1.bf16.xpose.msra.mxu0 0
    %1608 = vmatprep.subr.bf16.mxu0 0
    %1609 = vmatpush1.bf16.xpose.msra.mxu0 0
    %1610 = vmatprep.subr.bf16.mxu0 0
    %1611 = vmatpush1.bf16.xpose.msra.mxu0 0
    %1612 = vmatprep.mubr.bf16.mxu0 0
    %1613 = vmatmul.mubr.bf16.gmra.mrb[0].mxu0 %v1575
    %v1614 = vpop.f32.mrb[0].mxu0
    %v1615 = vadd.f32 0.0, %v1614
    %v1616 = vpop.f32.mrb[0].mxu0
    %v1617 = vpop.f32.mrb[0].mxu0
    %v1618 = vadd.f32 0.0, %v1617
    %v1619 = vpop.f32.mrb[0].mxu0
    %1620 = vdwg.mxu0
    %v1622 = vsel %vm272, %v1527, 0
    %v1625 = vsel %vm272, %v1543, 0
    %1627 = vmatprep.subr.bf16.mxu0 0
    %1628 = vmatpush1.bf16.xpose.msra.mxu0 %v1625
    %1629 = vmatprep.subr.bf16.mxu0 0
    %1630 = vmatpush1.bf16.xpose.msra.mxu0 0
    %1631 = vmatprep.subr.bf16.mxu0 0
    %1632 = vmatpush1.bf16.xpose.msra.mxu0 0
    %1633 = vmatprep.subr.bf16.mxu0 0
    %1634 = vmatpush1.bf16.xpose.msra.mxu0 0
    %1635 = vmatprep.subr.bf16.mxu0 0
    %1636 = vmatpush1.bf16.xpose.msra.mxu0 0
    %1637 = vmatprep.subr.bf16.mxu0 0
    %1638 = vmatpush1.bf16.xpose.msra.mxu0 0
    %1639 = vmatprep.subr.bf16.mxu0 0
    %1640 = vmatpush1.bf16.xpose.msra.mxu0 0
    %1641 = vmatprep.subr.bf16.mxu0 0
    %1642 = vmatpush1.bf16.xpose.msra.mxu0 0
    %1643 = vmatprep.subr.bf16.mxu0 0
    %1644 = vmatpush1.bf16.xpose.msra.mxu0 0
    %1645 = vmatprep.subr.bf16.mxu0 0
    %1646 = vmatpush1.bf16.xpose.msra.mxu0 0
    %1647 = vmatprep.subr.bf16.mxu0 0
    %1648 = vmatpush1.bf16.xpose.msra.mxu0 0
    %1649 = vmatprep.subr.bf16.mxu0 0
    %1650 = vmatpush1.bf16.xpose.msra.mxu0 0
    %1651 = vmatprep.subr.bf16.mxu0 0
    %1652 = vmatpush1.bf16.xpose.msra.mxu0 0
    %1653 = vmatprep.subr.bf16.mxu0 0
    %1654 = vmatpush1.bf16.xpose.msra.mxu0 0
    %1655 = vmatprep.subr.bf16.mxu0 0
    %1656 = vmatpush1.bf16.xpose.msra.mxu0 0
    %1657 = vmatprep.subr.bf16.mxu0 0
    %1658 = vmatpush1.bf16.xpose.msra.mxu0 0
    %1659 = vmatprep.mubr.bf16.mxu0 0
    %1660 = vmatmul.mubr.bf16.gmra.mrb[0].mxu0 %v1622
    %v1661 = vpop.f32.mrb[0].mxu0
    %v1662 = vadd.f32 0.0, %v1661
    %v1663 = vpop.f32.mrb[0].mxu0
    %v1664 = vpop.f32.mrb[0].mxu0
    %v1665 = vadd.f32 0.0, %v1664
    %v1666 = vpop.f32.mrb[0].mxu0
    %1667 = vdwg.mxu0
    %v1669 = vsel %vm272, %v1528, 0
    %v1672 = vsel %vm272, %v1544, 0
    %1674 = vmatprep.subr.bf16.mxu0 0
    %1675 = vmatpush1.bf16.xpose.msra.mxu0 %v1672
    %1676 = vmatprep.subr.bf16.mxu0 0
    %1677 = vmatpush1.bf16.xpose.msra.mxu0 0
    %1678 = vmatprep.subr.bf16.mxu0 0
    %1679 = vmatpush1.bf16.xpose.msra.mxu0 0
    %1680 = vmatprep.subr.bf16.mxu0 0
    %1681 = vmatpush1.bf16.xpose.msra.mxu0 0
    %1682 = vmatprep.subr.bf16.mxu0 0
    %1683 = vmatpush1.bf16.xpose.msra.mxu0 0
    %1684 = vmatprep.subr.bf16.mxu0 0
    %1685 = vmatpush1.bf16.xpose.msra.mxu0 0
    %1686 = vmatprep.subr.bf16.mxu0 0
    %1687 = vmatpush1.bf16.xpose.msra.mxu0 0
    %1688 = vmatprep.subr.bf16.mxu0 0
    %1689 = vmatpush1.bf16.xpose.msra.mxu0 0
    %1690 = vmatprep.subr.bf16.mxu0 0
    %1691 = vmatpush1.bf16.xpose.msra.mxu0 0
    %1692 = vmatprep.subr.bf16.mxu0 0
    %1693 = vmatpush1.bf16.xpose.msra.mxu0 0
    %1694 = vmatprep.subr.bf16.mxu0 0
    %1695 = vmatpush1.bf16.xpose.msra.mxu0 0
    %1696 = vmatprep.subr.bf16.mxu0 0
    %1697 = vmatpush1.bf16.xpose.msra.mxu0 0
    %1698 = vmatprep.subr.bf16.mxu0 0
    %1699 = vmatpush1.bf16.xpose.msra.mxu0 0
    %1700 = vmatprep.subr.bf16.mxu0 0
    %1701 = vmatpush1.bf16.xpose.msra.mxu0 0
    %1702 = vmatprep.subr.bf16.mxu0 0
    %1703 = vmatpush1.bf16.xpose.msra.mxu0 0
    %1704 = vmatprep.subr.bf16.mxu0 0
    %1705 = vmatpush1.bf16.xpose.msra.mxu0 0
    %1706 = vmatprep.mubr.bf16.mxu0 0
    %1707 = vmatmul.mubr.bf16.gmra.mrb[0].mxu0 %v1669
    %v1708 = vpop.f32.mrb[0].mxu0
    %v1709 = vadd.f32 0.0, %v1708
    %v1710 = vpop.f32.mrb[0].mxu0
    %v1711 = vpop.f32.mrb[0].mxu0
    %v1712 = vadd.f32 0.0, %v1711
    %v1713 = vpop.f32.mrb[0].mxu0
    %1714 = vdwg.mxu0
    %v1716 = vsel %vm272, %v1529, 0
    %v1719 = vsel %vm272, %v1545, 0
    %1721 = vmatprep.subr.bf16.mxu0 0
    %1722 = vmatpush1.bf16.xpose.msra.mxu0 %v1719
    %1723 = vmatprep.subr.bf16.mxu0 0
    %1724 = vmatpush1.bf16.xpose.msra.mxu0 0
    %1725 = vmatprep.subr.bf16.mxu0 0
    %1726 = vmatpush1.bf16.xpose.msra.mxu0 0
    %1727 = vmatprep.subr.bf16.mxu0 0
    %1728 = vmatpush1.bf16.xpose.msra.mxu0 0
    %1729 = vmatprep.subr.bf16.mxu0 0
    %1730 = vmatpush1.bf16.xpose.msra.mxu0 0
    %1731 = vmatprep.subr.bf16.mxu0 0
    %1732 = vmatpush1.bf16.xpose.msra.mxu0 0
    %1733 = vmatprep.subr.bf16.mxu0 0
    %1734 = vmatpush1.bf16.xpose.msra.mxu0 0
    %1735 = vmatprep.subr.bf16.mxu0 0
    %1736 = vmatpush1.bf16.xpose.msra.mxu0 0
    %1737 = vmatprep.subr.bf16.mxu0 0
    %1738 = vmatpush1.bf16.xpose.msra.mxu0 0
    %1739 = vmatprep.subr.bf16.mxu0 0
    %1740 = vmatpush1.bf16.xpose.msra.mxu0 0
    %1741 = vmatprep.subr.bf16.mxu0 0
    %1742 = vmatpush1.bf16.xpose.msra.mxu0 0
    %1743 = vmatprep.subr.bf16.mxu0 0
    %1744 = vmatpush1.bf16.xpose.msra.mxu0 0
    %1745 = vmatprep.subr.bf16.mxu0 0
    %1746 = vmatpush1.bf16.xpose.msra.mxu0 0
    %1747 = vmatprep.subr.bf16.mxu0 0
    %1748 = vmatpush1.bf16.xpose.msra.mxu0 0
    %1749 = vmatprep.subr.bf16.mxu0 0
    %1750 = vmatpush1.bf16.xpose.msra.mxu0 0
    %1751 = vmatprep.subr.bf16.mxu0 0
    %1752 = vmatpush1.bf16.xpose.msra.mxu0 0
    %1753 = vmatprep.mubr.bf16.mxu0 0
    %1754 = vmatmul.mubr.bf16.gmra.mrb[0].mxu0 %v1716
    %v1755 = vpop.f32.mrb[0].mxu0
    %v1756 = vadd.f32 0.0, %v1755
    %v1757 = vpop.f32.mrb[0].mxu0
    %v1758 = vpop.f32.mrb[0].mxu0
    %v1759 = vadd.f32 0.0, %v1758
    %v1760 = vpop.f32.mrb[0].mxu0
    %1761 = vdwg.mxu0
    %v1763 = vsel %vm272, %v1530, 0
    %v1766 = vsel %vm272, %v1546, 0
    %1768 = vmatprep.subr.bf16.mxu0 0
    %1769 = vmatpush1.bf16.xpose.msra.mxu0 %v1766
    %1770 = vmatprep.subr.bf16.mxu0 0
    %1771 = vmatpush1.bf16.xpose.msra.mxu0 0
    %1772 = vmatprep.subr.bf16.mxu0 0
    %1773 = vmatpush1.bf16.xpose.msra.mxu0 0
    %1774 = vmatprep.subr.bf16.mxu0 0
    %1775 = vmatpush1.bf16.xpose.msra.mxu0 0
    %1776 = vmatprep.subr.bf16.mxu0 0
    %1777 = vmatpush1.bf16.xpose.msra.mxu0 0
    %1778 = vmatprep.subr.bf16.mxu0 0
    %1779 = vmatpush1.bf16.xpose.msra.mxu0 0
    %1780 = vmatprep.subr.bf16.mxu0 0
    %1781 = vmatpush1.bf16.xpose.msra.mxu0 0
    %1782 = vmatprep.subr.bf16.mxu0 0
    %1783 = vmatpush1.bf16.xpose.msra.mxu0 0
    %1784 = vmatprep.subr.bf16.mxu0 0
    %1785 = vmatpush1.bf16.xpose.msra.mxu0 0
    %1786 = vmatprep.subr.bf16.mxu0 0
    %1787 = vmatpush1.bf16.xpose.msra.mxu0 0
    %1788 = vmatprep.subr.bf16.mxu0 0
    %1789 = vmatpush1.bf16.xpose.msra.mxu0 0
    %1790 = vmatprep.subr.bf16.mxu0 0
    %1791 = vmatpush1.bf16.xpose.msra.mxu0 0
    %1792 = vmatprep.subr.bf16.mxu0 0
    %1793 = vmatpush1.bf16.xpose.msra.mxu0 0
    %1794 = vmatprep.subr.bf16.mxu0 0
    %1795 = vmatpush1.bf16.xpose.msra.mxu0 0
    %1796 = vmatprep.subr.bf16.mxu0 0
    %1797 = vmatpush1.bf16.xpose.msra.mxu0 0
    %1798 = vmatprep.subr.bf16.mxu0 0
    %1799 = vmatpush1.bf16.xpose.msra.mxu0 0
    %1800 = vmatprep.mubr.bf16.mxu0 0
    %1801 = vmatmul.mubr.bf16.gmra.mrb[0].mxu0 %v1763
    %v1802 = vpop.f32.mrb[0].mxu0
    %v1803 = vadd.f32 0.0, %v1802
    %v1804 = vpop.f32.mrb[0].mxu0
    %v1805 = vpop.f32.mrb[0].mxu0
    %v1806 = vadd.f32 0.0, %v1805
    %v1807 = vpop.f32.mrb[0].mxu0
    %1808 = vdwg.mxu0
    %v1810 = vsel %vm272, %v1531, 0
    %v1813 = vsel %vm272, %v1547, 0
    %1815 = vmatprep.subr.bf16.mxu0 0
    %1816 = vmatpush1.bf16.xpose.msra.mxu0 %v1813
    %1817 = vmatprep.subr.bf16.mxu0 0
    %1818 = vmatpush1.bf16.xpose.msra.mxu0 0
    %1819 = vmatprep.subr.bf16.mxu0 0
    %1820 = vmatpush1.bf16.xpose.msra.mxu0 0
    %1821 = vmatprep.subr.bf16.mxu0 0
    %1822 = vmatpush1.bf16.xpose.msra.mxu0 0
    %1823 = vmatprep.subr.bf16.mxu0 0
    %1824 = vmatpush1.bf16.xpose.msra.mxu0 0
    %1825 = vmatprep.subr.bf16.mxu0 0
    %1826 = vmatpush1.bf16.xpose.msra.mxu0 0
    %1827 = vmatprep.subr.bf16.mxu0 0
    %1828 = vmatpush1.bf16.xpose.msra.mxu0 0
    %1829 = vmatprep.subr.bf16.mxu0 0
    %1830 = vmatpush1.bf16.xpose.msra.mxu0 0
    %1831 = vmatprep.subr.bf16.mxu0 0
    %1832 = vmatpush1.bf16.xpose.msra.mxu0 0
    %1833 = vmatprep.subr.bf16.mxu0 0
    %1834 = vmatpush1.bf16.xpose.msra.mxu0 0
    %1835 = vmatprep.subr.bf16.mxu0 0
    %1836 = vmatpush1.bf16.xpose.msra.mxu0 0
    %1837 = vmatprep.subr.bf16.mxu0 0
    %1838 = vmatpush1.bf16.xpose.msra.mxu0 0
    %1839 = vmatprep.subr.bf16.mxu0 0
    %1840 = vmatpush1.bf16.xpose.msra.mxu0 0
    %1841 = vmatprep.subr.bf16.mxu0 0
    %1842 = vmatpush1.bf16.xpose.msra.mxu0 0
    %1843 = vmatprep.subr.bf16.mxu0 0
    %1844 = vmatpush1.bf16.xpose.msra.mxu0 0
    %1845 = vmatprep.subr.bf16.mxu0 0
    %1846 = vmatpush1.bf16.xpose.msra.mxu0 0
    %1847 = vmatprep.mubr.bf16.mxu0 0
    %1848 = vmatmul.mubr.bf16.gmra.mrb[0].mxu0 %v1810
    %v1849 = vpop.f32.mrb[0].mxu0
    %v1850 = vadd.f32 0.0, %v1849
    %v1851 = vpop.f32.mrb[0].mxu0
    %v1852 = vpop.f32.mrb[0].mxu0
    %v1853 = vadd.f32 0.0, %v1852
    %v1854 = vpop.f32.mrb[0].mxu0
    %1855 = vdwg.mxu0
    %v1857 = vsel %vm272, %v1532, 0
    %v1860 = vsel %vm272, %v1548, 0
    %1862 = vmatprep.subr.bf16.mxu0 0
    %1863 = vmatpush1.bf16.xpose.msra.mxu0 %v1860
    %1864 = vmatprep.subr.bf16.mxu0 0
    %1865 = vmatpush1.bf16.xpose.msra.mxu0 0
    %1866 = vmatprep.subr.bf16.mxu0 0
    %1867 = vmatpush1.bf16.xpose.msra.mxu0 0
    %1868 = vmatprep.subr.bf16.mxu0 0
    %1869 = vmatpush1.bf16.xpose.msra.mxu0 0
    %1870 = vmatprep.subr.bf16.mxu0 0
    %1871 = vmatpush1.bf16.xpose.msra.mxu0 0
    %1872 = vmatprep.subr.bf16.mxu0 0
    %1873 = vmatpush1.bf16.xpose.msra.mxu0 0
    %1874 = vmatprep.subr.bf16.mxu0 0
    %1875 = vmatpush1.bf16.xpose.msra.mxu0 0
    %1876 = vmatprep.subr.bf16.mxu0 0
    %1877 = vmatpush1.bf16.xpose.msra.mxu0 0
    %1878 = vmatprep.subr.bf16.mxu0 0
    %1879 = vmatpush1.bf16.xpose.msra.mxu0 0
    %1880 = vmatprep.subr.bf16.mxu0 0
    %1881 = vmatpush1.bf16.xpose.msra.mxu0 0
    %1882 = vmatprep.subr.bf16.mxu0 0
    %1883 = vmatpush1.bf16.xpose.msra.mxu0 0
    %1884 = vmatprep.subr.bf16.mxu0 0
    %1885 = vmatpush1.bf16.xpose.msra.mxu0 0
    %1886 = vmatprep.subr.bf16.mxu0 0
    %1887 = vmatpush1.bf16.xpose.msra.mxu0 0
    %1888 = vmatprep.subr.bf16.mxu0 0
    %1889 = vmatpush1.bf16.xpose.msra.mxu0 0
    %1890 = vmatprep.subr.bf16.mxu0 0
    %1891 = vmatpush1.bf16.xpose.msra.mxu0 0
    %1892 = vmatprep.subr.bf16.mxu0 0
    %1893 = vmatpush1.bf16.xpose.msra.mxu0 0
    %1894 = vmatprep.mubr.bf16.mxu0 0
    %1895 = vmatmul.mubr.bf16.gmra.mrb[0].mxu0 %v1857
    %v1896 = vpop.f32.mrb[0].mxu0
    %v1897 = vadd.f32 0.0, %v1896
    %v1898 = vpop.f32.mrb[0].mxu0
    %v1899 = vpop.f32.mrb[0].mxu0
    %v1900 = vadd.f32 0.0, %v1899
    %v1901 = vpop.f32.mrb[0].mxu0
    %1902 = vdwg.mxu0
    %v1904 = vsel %vm272, %v1533, 0
    %v1907 = vsel %vm272, %v1549, 0
    %1909 = vmatprep.subr.bf16.mxu0 0
    %1910 = vmatpush1.bf16.xpose.msra.mxu0 %v1907
    %1911 = vmatprep.subr.bf16.mxu0 0
    %1912 = vmatpush1.bf16.xpose.msra.mxu0 0
    %1913 = vmatprep.subr.bf16.mxu0 0
    %1914 = vmatpush1.bf16.xpose.msra.mxu0 0
    %1915 = vmatprep.subr.bf16.mxu0 0
    %1916 = vmatpush1.bf16.xpose.msra.mxu0 0
    %1917 = vmatprep.subr.bf16.mxu0 0
    %1918 = vmatpush1.bf16.xpose.msra.mxu0 0
    %1919 = vmatprep.subr.bf16.mxu0 0
    %1920 = vmatpush1.bf16.xpose.msra.mxu0 0
    %1921 = vmatprep.subr.bf16.mxu0 0
    %1922 = vmatpush1.bf16.xpose.msra.mxu0 0
    %1923 = vmatprep.subr.bf16.mxu0 0
    %1924 = vmatpush1.bf16.xpose.msra.mxu0 0
    %1925 = vmatprep.subr.bf16.mxu0 0
    %1926 = vmatpush1.bf16.xpose.msra.mxu0 0
    %1927 = vmatprep.subr.bf16.mxu0 0
    %1928 = vmatpush1.bf16.xpose.msra.mxu0 0
    %1929 = vmatprep.subr.bf16.mxu0 0
    %1930 = vmatpush1.bf16.xpose.msra.mxu0 0
    %1931 = vmatprep.subr.bf16.mxu0 0
    %1932 = vmatpush1.bf16.xpose.msra.mxu0 0
    %1933 = vmatprep.subr.bf16.mxu0 0
    %1934 = vmatpush1.bf16.xpose.msra.mxu0 0
    %1935 = vmatprep.subr.bf16.mxu0 0
    %1936 = vmatpush1.bf16.xpose.msra.mxu0 0
    %1937 = vmatprep.subr.bf16.mxu0 0
    %1938 = vmatpush1.bf16.xpose.msra.mxu0 0
    %1939 = vmatprep.subr.bf16.mxu0 0
    %1940 = vmatpush1.bf16.xpose.msra.mxu0 0
    %1941 = vmatprep.mubr.bf16.mxu0 0
    %1942 = vmatmul.mubr.bf16.gmra.mrb[0].mxu0 %v1904
    %v1943 = vpop.f32.mrb[0].mxu0
    %v1944 = vadd.f32 0.0, %v1943
    %v1945 = vpop.f32.mrb[0].mxu0
    %v1946 = vpop.f32.mrb[0].mxu0
    %v1947 = vadd.f32 0.0, %v1946
    %v1948 = vpop.f32.mrb[0].mxu0
    %1949 = vdwg.mxu0
    %v1951 = vsel %vm272, %v1534, 0
    %v1954 = vsel %vm272, %v1550, 0
    %1956 = vmatprep.subr.bf16.mxu0 0
    %1957 = vmatpush1.bf16.xpose.msra.mxu0 %v1954
    %1958 = vmatprep.subr.bf16.mxu0 0
    %1959 = vmatpush1.bf16.xpose.msra.mxu0 0
    %1960 = vmatprep.subr.bf16.mxu0 0
    %1961 = vmatpush1.bf16.xpose.msra.mxu0 0
    %1962 = vmatprep.subr.bf16.mxu0 0
    %1963 = vmatpush1.bf16.xpose.msra.mxu0 0
    %1964 = vmatprep.subr.bf16.mxu0 0
    %1965 = vmatpush1.bf16.xpose.msra.mxu0 0
    %1966 = vmatprep.subr.bf16.mxu0 0
    %1967 = vmatpush1.bf16.xpose.msra.mxu0 0
    %1968 = vmatprep.subr.bf16.mxu0 0
    %1969 = vmatpush1.bf16.xpose.msra.mxu0 0
    %1970 = vmatprep.subr.bf16.mxu0 0
    %1971 = vmatpush1.bf16.xpose.msra.mxu0 0
    %1972 = vmatprep.subr.bf16.mxu0 0
    %1973 = vmatpush1.bf16.xpose.msra.mxu0 0
    %1974 = vmatprep.subr.bf16.mxu0 0
    %1975 = vmatpush1.bf16.xpose.msra.mxu0 0
    %1976 = vmatprep.subr.bf16.mxu0 0
    %1977 = vmatpush1.bf16.xpose.msra.mxu0 0
    %1978 = vmatprep.subr.bf16.mxu0 0
    %1979 = vmatpush1.bf16.xpose.msra.mxu0 0
    %1980 = vmatprep.subr.bf16.mxu0 0
    %1981 = vmatpush1.bf16.xpose.msra.mxu0 0
    %1982 = vmatprep.subr.bf16.mxu0 0
    %1983 = vmatpush1.bf16.xpose.msra.mxu0 0
    %1984 = vmatprep.subr.bf16.mxu0 0
    %1985 = vmatpush1.bf16.xpose.msra.mxu0 0
    %1986 = vmatprep.subr.bf16.mxu0 0
    %1987 = vmatpush1.bf16.xpose.msra.mxu0 0
    %1988 = vmatprep.mubr.bf16.mxu0 0
    %1989 = vmatmul.mubr.bf16.gmra.mrb[0].mxu0 %v1951
    %v1990 = vpop.f32.mrb[0].mxu0
    %v1991 = vadd.f32 0.0, %v1990
    %v1992 = vpop.f32.mrb[0].mxu0
    %v1993 = vpop.f32.mrb[0].mxu0
    %v1994 = vadd.f32 0.0, %v1993
    %v1995 = vpop.f32.mrb[0].mxu0
    %1996 = vdwg.mxu0
    %v1998 = vsel %vm272, %v1535, 0
    %v2001 = vsel %vm272, %v1551, 0
    %2003 = vmatprep.subr.bf16.mxu0 0
    %2004 = vmatpush1.bf16.xpose.msra.mxu0 %v2001
    %2005 = vmatprep.subr.bf16.mxu0 0
    %2006 = vmatpush1.bf16.xpose.msra.mxu0 0
    %2007 = vmatprep.subr.bf16.mxu0 0
    %2008 = vmatpush1.bf16.xpose.msra.mxu0 0
    %2009 = vmatprep.subr.bf16.mxu0 0
    %2010 = vmatpush1.bf16.xpose.msra.mxu0 0
    %2011 = vmatprep.subr.bf16.mxu0 0
    %2012 = vmatpush1.bf16.xpose.msra.mxu0 0
    %2013 = vmatprep.subr.bf16.mxu0 0
    %2014 = vmatpush1.bf16.xpose.msra.mxu0 0
    %2015 = vmatprep.subr.bf16.mxu0 0
    %2016 = vmatpush1.bf16.xpose.msra.mxu0 0
    %2017 = vmatprep.subr.bf16.mxu0 0
    %2018 = vmatpush1.bf16.xpose.msra.mxu0 0
    %2019 = vmatprep.subr.bf16.mxu0 0
    %2020 = vmatpush1.bf16.xpose.msra.mxu0 0
    %2021 = vmatprep.subr.bf16.mxu0 0
    %2022 = vmatpush1.bf16.xpose.msra.mxu0 0
    %2023 = vmatprep.subr.bf16.mxu0 0
    %2024 = vmatpush1.bf16.xpose.msra.mxu0 0
    %2025 = vmatprep.subr.bf16.mxu0 0
    %2026 = vmatpush1.bf16.xpose.msra.mxu0 0
    %2027 = vmatprep.subr.bf16.mxu0 0
    %2028 = vmatpush1.bf16.xpose.msra.mxu0 0
    %2029 = vmatprep.subr.bf16.mxu0 0
    %2030 = vmatpush1.bf16.xpose.msra.mxu0 0
    %2031 = vmatprep.subr.bf16.mxu0 0
    %2032 = vmatpush1.bf16.xpose.msra.mxu0 0
    %2033 = vmatprep.subr.bf16.mxu0 0
    %2034 = vmatpush1.bf16.xpose.msra.mxu0 0
    %2035 = vmatprep.mubr.bf16.mxu0 0
    %2036 = vmatmul.mubr.bf16.gmra.mrb[0].mxu0 %v1998
    %v2037 = vpop.f32.mrb[0].mxu0
    %v2038 = vadd.f32 0.0, %v2037
    %v2039 = vpop.f32.mrb[0].mxu0
    %v2040 = vpop.f32.mrb[0].mxu0
    %v2041 = vadd.f32 0.0, %v2040
    %v2042 = vpop.f32.mrb[0].mxu0
    %2043 = vdwg.mxu0
    %v2045 = vsel %vm272, %v1536, 0
    %v2048 = vsel %vm272, %v1552, 0
    %2050 = vmatprep.subr.bf16.mxu0 0
    %2051 = vmatpush1.bf16.xpose.msra.mxu0 %v2048
    %2052 = vmatprep.subr.bf16.mxu0 0
    %2053 = vmatpush1.bf16.xpose.msra.mxu0 0
    %2054 = vmatprep.subr.bf16.mxu0 0
    %2055 = vmatpush1.bf16.xpose.msra.mxu0 0
    %2056 = vmatprep.subr.bf16.mxu0 0
    %2057 = vmatpush1.bf16.xpose.msra.mxu0 0
    %2058 = vmatprep.subr.bf16.mxu0 0
    %2059 = vmatpush1.bf16.xpose.msra.mxu0 0
    %2060 = vmatprep.subr.bf16.mxu0 0
    %2061 = vmatpush1.bf16.xpose.msra.mxu0 0
    %2062 = vmatprep.subr.bf16.mxu0 0
    %2063 = vmatpush1.bf16.xpose.msra.mxu0 0
    %2064 = vmatprep.subr.bf16.mxu0 0
    %2065 = vmatpush1.bf16.xpose.msra.mxu0 0
    %2066 = vmatprep.subr.bf16.mxu0 0
    %2067 = vmatpush1.bf16.xpose.msra.mxu0 0
    %2068 = vmatprep.subr.bf16.mxu0 0
    %2069 = vmatpush1.bf16.xpose.msra.mxu0 0
    %2070 = vmatprep.subr.bf16.mxu0 0
    %2071 = vmatpush1.bf16.xpose.msra.mxu0 0
    %2072 = vmatprep.subr.bf16.mxu0 0
    %2073 = vmatpush1.bf16.xpose.msra.mxu0 0
    %2074 = vmatprep.subr.bf16.mxu0 0
    %2075 = vmatpush1.bf16.xpose.msra.mxu0 0
    %2076 = vmatprep.subr.bf16.mxu0 0
    %2077 = vmatpush1.bf16.xpose.msra.mxu0 0
    %2078 = vmatprep.subr.bf16.mxu0 0
    %2079 = vmatpush1.bf16.xpose.msra.mxu0 0
    %2080 = vmatprep.subr.bf16.mxu0 0
    %2081 = vmatpush1.bf16.xpose.msra.mxu0 0
    %2082 = vmatprep.mubr.bf16.mxu0 0
    %2083 = vmatmul.mubr.bf16.gmra.mrb[0].mxu0 %v2045
    %v2084 = vpop.f32.mrb[0].mxu0
    %v2085 = vadd.f32 0.0, %v2084
    %v2086 = vpop.f32.mrb[0].mxu0
    %v2087 = vpop.f32.mrb[0].mxu0
    %v2088 = vadd.f32 0.0, %v2087
    %v2089 = vpop.f32.mrb[0].mxu0
    %2090 = vdwg.mxu0
    %v2092 = vsel %vm272, %v1537, 0
    %v2095 = vsel %vm272, %v1553, 0
    %2097 = vmatprep.subr.bf16.mxu0 0
    %2098 = vmatpush1.bf16.xpose.msra.mxu0 %v2095
    %2099 = vmatprep.subr.bf16.mxu0 0
    %2100 = vmatpush1.bf16.xpose.msra.mxu0 0
    %2101 = vmatprep.subr.bf16.mxu0 0
    %2102 = vmatpush1.bf16.xpose.msra.mxu0 0
    %2103 = vmatprep.subr.bf16.mxu0 0
    %2104 = vmatpush1.bf16.xpose.msra.mxu0 0
    %2105 = vmatprep.subr.bf16.mxu0 0
    %2106 = vmatpush1.bf16.xpose.msra.mxu0 0
    %2107 = vmatprep.subr.bf16.mxu0 0
    %2108 = vmatpush1.bf16.xpose.msra.mxu0 0
    %2109 = vmatprep.subr.bf16.mxu0 0
    %2110 = vmatpush1.bf16.xpose.msra.mxu0 0
    %2111 = vmatprep.subr.bf16.mxu0 0
    %2112 = vmatpush1.bf16.xpose.msra.mxu0 0
    %2113 = vmatprep.subr.bf16.mxu0 0
    %2114 = vmatpush1.bf16.xpose.msra.mxu0 0
    %2115 = vmatprep.subr.bf16.mxu0 0
    %2116 = vmatpush1.bf16.xpose.msra.mxu0 0
    %2117 = vmatprep.subr.bf16.mxu0 0
    %2118 = vmatpush1.bf16.xpose.msra.mxu0 0
    %2119 = vmatprep.subr.bf16.mxu0 0
    %2120 = vmatpush1.bf16.xpose.msra.mxu0 0
    %2121 = vmatprep.subr.bf16.mxu0 0
    %2122 = vmatpush1.bf16.xpose.msra.mxu0 0
    %2123 = vmatprep.subr.bf16.mxu0 0
    %2124 = vmatpush1.bf16.xpose.msra.mxu0 0
    %2125 = vmatprep.subr.bf16.mxu0 0
    %2126 = vmatpush1.bf16.xpose.msra.mxu0 0
    %2127 = vmatprep.subr.bf16.mxu0 0
    %2128 = vmatpush1.bf16.xpose.msra.mxu0 0
    %2129 = vmatprep.mubr.bf16.mxu0 0
    %2130 = vmatmul.mubr.bf16.gmra.mrb[0].mxu0 %v2092
    %v2131 = vpop.f32.mrb[0].mxu0
    %v2132 = vadd.f32 0.0, %v2131
    %v2133 = vpop.f32.mrb[0].mxu0
    %v2134 = vpop.f32.mrb[0].mxu0
    %v2135 = vadd.f32 0.0, %v2134
    %v2136 = vpop.f32.mrb[0].mxu0
    %2137 = vdwg.mxu0
    %v2139 = vsel %vm272, %v1538, 0
    %v2142 = vsel %vm272, %v1554, 0
    %2144 = vmatprep.subr.bf16.mxu0 0
    %2145 = vmatpush1.bf16.xpose.msra.mxu0 %v2142
    %2146 = vmatprep.subr.bf16.mxu0 0
    %2147 = vmatpush1.bf16.xpose.msra.mxu0 0
    %2148 = vmatprep.subr.bf16.mxu0 0
    %2149 = vmatpush1.bf16.xpose.msra.mxu0 0
    %2150 = vmatprep.subr.bf16.mxu0 0
    %2151 = vmatpush1.bf16.xpose.msra.mxu0 0
    %2152 = vmatprep.subr.bf16.mxu0 0
    %2153 = vmatpush1.bf16.xpose.msra.mxu0 0
    %2154 = vmatprep.subr.bf16.mxu0 0
    %2155 = vmatpush1.bf16.xpose.msra.mxu0 0
    %2156 = vmatprep.subr.bf16.mxu0 0
    %2157 = vmatpush1.bf16.xpose.msra.mxu0 0
    %2158 = vmatprep.subr.bf16.mxu0 0
    %2159 = vmatpush1.bf16.xpose.msra.mxu0 0
    %2160 = vmatprep.subr.bf16.mxu0 0
    %2161 = vmatpush1.bf16.xpose.msra.mxu0 0
    %2162 = vmatprep.subr.bf16.mxu0 0
    %2163 = vmatpush1.bf16.xpose.msra.mxu0 0
    %2164 = vmatprep.subr.bf16.mxu0 0
    %2165 = vmatpush1.bf16.xpose.msra.mxu0 0
    %2166 = vmatprep.subr.bf16.mxu0 0
    %2167 = vmatpush1.bf16.xpose.msra.mxu0 0
    %2168 = vmatprep.subr.bf16.mxu0 0
    %2169 = vmatpush1.bf16.xpose.msra.mxu0 0
    %2170 = vmatprep.subr.bf16.mxu0 0
    %2171 = vmatpush1.bf16.xpose.msra.mxu0 0
    %2172 = vmatprep.subr.bf16.mxu0 0
    %2173 = vmatpush1.bf16.xpose.msra.mxu0 0
    %2174 = vmatprep.subr.bf16.mxu0 0
    %2175 = vmatpush1.bf16.xpose.msra.mxu0 0
    %2176 = vmatprep.mubr.bf16.mxu0 0
    %2177 = vmatmul.mubr.bf16.gmra.mrb[0].mxu0 %v2139
    %v2178 = vpop.f32.mrb[0].mxu0
    %v2179 = vadd.f32 0.0, %v2178
    %v2180 = vpop.f32.mrb[0].mxu0
    %v2181 = vpop.f32.mrb[0].mxu0
    %v2182 = vadd.f32 0.0, %v2181
    %v2183 = vpop.f32.mrb[0].mxu0
    %2184 = vdwg.mxu0
    %v2186 = vsel %vm272, %v1539, 0
    %v2189 = vsel %vm272, %v1555, 0
    %2191 = vmatprep.subr.bf16.mxu0 0
    %2192 = vmatpush1.bf16.xpose.msra.mxu0 %v2189
    %2193 = vmatprep.subr.bf16.mxu0 0
    %2194 = vmatpush1.bf16.xpose.msra.mxu0 0
    %2195 = vmatprep.subr.bf16.mxu0 0
    %2196 = vmatpush1.bf16.xpose.msra.mxu0 0
    %2197 = vmatprep.subr.bf16.mxu0 0
    %2198 = vmatpush1.bf16.xpose.msra.mxu0 0
    %2199 = vmatprep.subr.bf16.mxu0 0
    %2200 = vmatpush1.bf16.xpose.msra.mxu0 0
    %2201 = vmatprep.subr.bf16.mxu0 0
    %2202 = vmatpush1.bf16.xpose.msra.mxu0 0
    %2203 = vmatprep.subr.bf16.mxu0 0
    %2204 = vmatpush1.bf16.xpose.msra.mxu0 0
    %2205 = vmatprep.subr.bf16.mxu0 0
    %2206 = vmatpush1.bf16.xpose.msra.mxu0 0
    %2207 = vmatprep.subr.bf16.mxu0 0
    %2208 = vmatpush1.bf16.xpose.msra.mxu0 0
    %2209 = vmatprep.subr.bf16.mxu0 0
    %2210 = vmatpush1.bf16.xpose.msra.mxu0 0
    %2211 = vmatprep.subr.bf16.mxu0 0
    %2212 = vmatpush1.bf16.xpose.msra.mxu0 0
    %2213 = vmatprep.subr.bf16.mxu0 0
    %2214 = vmatpush1.bf16.xpose.msra.mxu0 0
    %2215 = vmatprep.subr.bf16.mxu0 0
    %2216 = vmatpush1.bf16.xpose.msra.mxu0 0
    %2217 = vmatprep.subr.bf16.mxu0 0
    %2218 = vmatpush1.bf16.xpose.msra.mxu0 0
    %2219 = vmatprep.subr.bf16.mxu0 0
    %2220 = vmatpush1.bf16.xpose.msra.mxu0 0
    %2221 = vmatprep.subr.bf16.mxu0 0
    %2222 = vmatpush1.bf16.xpose.msra.mxu0 0
    %2223 = vmatprep.mubr.bf16.mxu0 0
    %2224 = vmatmul.mubr.bf16.gmra.mrb[0].mxu0 %v2186
    %v2225 = vpop.f32.mrb[0].mxu0
    %v2226 = vadd.f32 0.0, %v2225
    %v2227 = vpop.f32.mrb[0].mxu0
    %v2228 = vpop.f32.mrb[0].mxu0
    %v2229 = vadd.f32 0.0, %v2228
    %v2230 = vpop.f32.mrb[0].mxu0
    %2231 = vdwg.mxu0
    %v2233 = vsel %vm272, %v1540, 0
    %v2236 = vsel %vm272, %v1556, 0
    %2238 = vmatprep.subr.bf16.mxu0 0
    %2239 = vmatpush1.bf16.xpose.msra.mxu0 %v2236
    %2240 = vmatprep.subr.bf16.mxu0 0
    %2241 = vmatpush1.bf16.xpose.msra.mxu0 0
    %2242 = vmatprep.subr.bf16.mxu0 0
    %2243 = vmatpush1.bf16.xpose.msra.mxu0 0
    %2244 = vmatprep.subr.bf16.mxu0 0
    %2245 = vmatpush1.bf16.xpose.msra.mxu0 0
    %2246 = vmatprep.subr.bf16.mxu0 0
    %2247 = vmatpush1.bf16.xpose.msra.mxu0 0
    %2248 = vmatprep.subr.bf16.mxu0 0
    %2249 = vmatpush1.bf16.xpose.msra.mxu0 0
    %2250 = vmatprep.subr.bf16.mxu0 0
    %2251 = vmatpush1.bf16.xpose.msra.mxu0 0
    %2252 = vmatprep.subr.bf16.mxu0 0
    %2253 = vmatpush1.bf16.xpose.msra.mxu0 0
    %2254 = vmatprep.subr.bf16.mxu0 0
    %2255 = vmatpush1.bf16.xpose.msra.mxu0 0
    %2256 = vmatprep.subr.bf16.mxu0 0
    %2257 = vmatpush1.bf16.xpose.msra.mxu0 0
    %2258 = vmatprep.subr.bf16.mxu0 0
    %2259 = vmatpush1.bf16.xpose.msra.mxu0 0
    %2260 = vmatprep.subr.bf16.mxu0 0
    %2261 = vmatpush1.bf16.xpose.msra.mxu0 0
    %2262 = vmatprep.subr.bf16.mxu0 0
    %2263 = vmatpush1.bf16.xpose.msra.mxu0 0
    %2264 = vmatprep.subr.bf16.mxu0 0
    %2265 = vmatpush1.bf16.xpose.msra.mxu0 0
    %2266 = vmatprep.subr.bf16.mxu0 0
    %2267 = vmatpush1.bf16.xpose.msra.mxu0 0
    %2268 = vmatprep.subr.bf16.mxu0 0
    %2269 = vmatpush1.bf16.xpose.msra.mxu0 0
    %2270 = vmatprep.mubr.bf16.mxu0 0
    %2271 = vmatmul.mubr.bf16.gmra.mrb[0].mxu0 %v2233
    %v2272 = vpop.f32.mrb[0].mxu0
    %v2273 = vadd.f32 0.0, %v2272
    %v2274 = vpop.f32.mrb[0].mxu0
    %v2275 = vpop.f32.mrb[0].mxu0
    %v2276 = vadd.f32 0.0, %v2275
    %v2277 = vpop.f32.mrb[0].mxu0
    %2278 = vdwg.mxu0
    %v2280 = vsel %vm272, %v1541, 0
    %v2283 = vsel %vm272, %v1557, 0
    %2285 = vmatprep.subr.bf16.mxu0 0
    %2286 = vmatpush1.bf16.xpose.msra.mxu0 %v2283
    %2287 = vmatprep.subr.bf16.mxu0 0
    %2288 = vmatpush1.bf16.xpose.msra.mxu0 0
    %2289 = vmatprep.subr.bf16.mxu0 0
    %2290 = vmatpush1.bf16.xpose.msra.mxu0 0
    %2291 = vmatprep.subr.bf16.mxu0 0
    %2292 = vmatpush1.bf16.xpose.msra.mxu0 0
    %2293 = vmatprep.subr.bf16.mxu0 0
    %2294 = vmatpush1.bf16.xpose.msra.mxu0 0
    %2295 = vmatprep.subr.bf16.mxu0 0
    %2296 = vmatpush1.bf16.xpose.msra.mxu0 0
    %2297 = vmatprep.subr.bf16.mxu0 0
    %2298 = vmatpush1.bf16.xpose.msra.mxu0 0
    %2299 = vmatprep.subr.bf16.mxu0 0
    %2300 = vmatpush1.bf16.xpose.msra.mxu0 0
    %2301 = vmatprep.subr.bf16.mxu0 0
    %2302 = vmatpush1.bf16.xpose.msra.mxu0 0
    %2303 = vmatprep.subr.bf16.mxu0 0
    %2304 = vmatpush1.bf16.xpose.msra.mxu0 0
    %2305 = vmatprep.subr.bf16.mxu0 0
    %2306 = vmatpush1.bf16.xpose.msra.mxu0 0
    %2307 = vmatprep.subr.bf16.mxu0 0
    %2308 = vmatpush1.bf16.xpose.msra.mxu0 0
    %2309 = vmatprep.subr.bf16.mxu0 0
    %2310 = vmatpush1.bf16.xpose.msra.mxu0 0
    %2311 = vmatprep.subr.bf16.mxu0 0
    %2312 = vmatpush1.bf16.xpose.msra.mxu0 0
    %2313 = vmatprep.subr.bf16.mxu0 0
    %2314 = vmatpush1.bf16.xpose.msra.mxu0 0
    %2315 = vmatprep.subr.bf16.mxu0 0
    %2316 = vmatpush1.bf16.xpose.msra.mxu0 0
    %2317 = vmatprep.mubr.bf16.mxu0 0
    %2318 = vmatmul.mubr.bf16.gmra.mrb[0].mxu0 %v2280
    %v2319 = vpop.f32.mrb[0].mxu0
    %v2320 = vadd.f32 0.0, %v2319
    %v2321 = vpop.f32.mrb[0].mxu0
    %v2322 = vpop.f32.mrb[0].mxu0
    %v2323 = vadd.f32 0.0, %v2322
    %v2324 = vpop.f32.mrb[0].mxu0
    %2325 = vdwg.mxu0
    %vm2326 = vcmask 130048
    %v2327 = vsel %vm2326, %v1615, -inf
    %2328 = vmax.xlane.f32.xlu0 %v2327
    %v2329 = vpop.xlane.xlu0 %2328
    %v2330 = vsel %vm2326, %v1618, -inf
    %2331 = vmax.xlane.f32.xlu0 %v2330
    %v2332 = vpop.xlane.xlu0 %2331
    %v2333 = vsel %vm2326, %v1662, -inf
    %2334 = vmax.xlane.f32.xlu0 %v2333
    %v2335 = vpop.xlane.xlu0 %2334
    %v2336 = vsel %vm2326, %v1665, -inf
    %2337 = vmax.xlane.f32.xlu0 %v2336
    %v2338 = vpop.xlane.xlu0 %2337
    %v2339 = vsel %vm2326, %v1709, -inf
    %2340 = vmax.xlane.f32.xlu0 %v2339
    %v2341 = vpop.xlane.xlu0 %2340
    %v2342 = vsel %vm2326, %v1712, -inf
    %2343 = vmax.xlane.f32.xlu0 %v2342
    %v2344 = vpop.xlane.xlu0 %2343
    %v2345 = vsel %vm2326, %v1756, -inf
    %2346 = vmax.xlane.f32.xlu0 %v2345
    %v2347 = vpop.xlane.xlu0 %2346
    %v2348 = vsel %vm2326, %v1759, -inf
    %2349 = vmax.xlane.f32.xlu0 %v2348
    %v2350 = vpop.xlane.xlu0 %2349
    %v2351 = vsel %vm2326, %v1803, -inf
    %2352 = vmax.xlane.f32.xlu0 %v2351
    %v2353 = vpop.xlane.xlu0 %2352
    %v2354 = vsel %vm2326, %v1806, -inf
    %2355 = vmax.xlane.f32.xlu0 %v2354
    %v2356 = vpop.xlane.xlu0 %2355
    %v2357 = vsel %vm2326, %v1850, -inf
    %2358 = vmax.xlane.f32.xlu0 %v2357
    %v2359 = vpop.xlane.xlu0 %2358
    %v2360 = vsel %vm2326, %v1853, -inf
    %2361 = vmax.xlane.f32.xlu0 %v2360
    %v2362 = vpop.xlane.xlu0 %2361
    %v2363 = vsel %vm2326, %v1897, -inf
    %2364 = vmax.xlane.f32.xlu0 %v2363
    %v2365 = vpop.xlane.xlu0 %2364
    %v2366 = vsel %vm2326, %v1900, -inf
    %2367 = vmax.xlane.f32.xlu0 %v2366
    %v2368 = vpop.xlane.xlu0 %2367
    %v2369 = vsel %vm2326, %v1944, -inf
    %2370 = vmax.xlane.f32.xlu0 %v2369
    %v2371 = vpop.xlane.xlu0 %2370
    %v2372 = vsel %vm2326, %v1947, -inf
    %2373 = vmax.xlane.f32.xlu0 %v2372
    %v2374 = vpop.xlane.xlu0 %2373
    %v2375 = vsel %vm2326, %v1991, -inf
    %2376 = vmax.xlane.f32.xlu0 %v2375
    %v2377 = vpop.xlane.xlu0 %2376
    %v2378 = vsel %vm2326, %v1994, -inf
    %2379 = vmax.xlane.f32.xlu0 %v2378
    %v2380 = vpop.xlane.xlu0 %2379
    %v2381 = vsel %vm2326, %v2038, -inf
    %2382 = vmax.xlane.f32.xlu0 %v2381
    %v2383 = vpop.xlane.xlu0 %2382
    %v2384 = vsel %vm2326, %v2041, -inf
    %2385 = vmax.xlane.f32.xlu0 %v2384
    %v2386 = vpop.xlane.xlu0 %2385
    %v2387 = vsel %vm2326, %v2085, -inf
    %2388 = vmax.xlane.f32.xlu0 %v2387
    %v2389 = vpop.xlane.xlu0 %2388
    %v2390 = vsel %vm2326, %v2088, -inf
    %2391 = vmax.xlane.f32.xlu0 %v2390
    %v2392 = vpop.xlane.xlu0 %2391
    %v2393 = vsel %vm2326, %v2132, -inf
    %2394 = vmax.xlane.f32.xlu0 %v2393
    %v2395 = vpop.xlane.xlu0 %2394
    %v2396 = vsel %vm2326, %v2135, -inf
    %2397 = vmax.xlane.f32.xlu0 %v2396
    %v2398 = vpop.xlane.xlu0 %2397
    %v2399 = vsel %vm2326, %v2179, -inf
    %2400 = vmax.xlane.f32.xlu0 %v2399
    %v2401 = vpop.xlane.xlu0 %2400
    %v2402 = vsel %vm2326, %v2182, -inf
    %2403 = vmax.xlane.f32.xlu0 %v2402
    %v2404 = vpop.xlane.xlu0 %2403
    %v2405 = vsel %vm2326, %v2226, -inf
    %2406 = vmax.xlane.f32.xlu0 %v2405
    %v2407 = vpop.xlane.xlu0 %2406
    %v2408 = vsel %vm2326, %v2229, -inf
    %2409 = vmax.xlane.f32.xlu0 %v2408
    %v2410 = vpop.xlane.xlu0 %2409
    %v2411 = vsel %vm2326, %v2273, -inf
    %2412 = vmax.xlane.f32.xlu0 %v2411
    %v2413 = vpop.xlane.xlu0 %2412
    %v2414 = vsel %vm2326, %v2276, -inf
    %2415 = vmax.xlane.f32.xlu0 %v2414
    %v2416 = vpop.xlane.xlu0 %2415
    %v2417 = vsel %vm2326, %v2320, -inf
    %2418 = vmax.xlane.f32.xlu0 %v2417
    %v2419 = vpop.xlane.xlu0 %2418
    %v2420 = vsel %vm2326, %v2323, -inf
    %2421 = vmax.xlane.f32.xlu0 %v2420
    %v2422 = vpop.xlane.xlu0 %2421
    %v2423 = vsub.f32 %v1615, %v2329
    %v2424 = vsub.f32 %v1618, %v2332
    %v2425 = vsub.f32 %v1662, %v2335
    %v2426 = vsub.f32 %v1665, %v2338
    %v2427 = vsub.f32 %v1709, %v2341
    %v2428 = vsub.f32 %v1712, %v2344
    %v2429 = vsub.f32 %v1756, %v2347
    %v2430 = vsub.f32 %v1759, %v2350
    %v2431 = vsub.f32 %v1803, %v2353
    %v2432 = vsub.f32 %v1806, %v2356
    %v2433 = vsub.f32 %v1850, %v2359
    %v2434 = vsub.f32 %v1853, %v2362
    %v2435 = vsub.f32 %v1897, %v2365
    %v2436 = vsub.f32 %v1900, %v2368
    %v2437 = vsub.f32 %v1944, %v2371
    %v2438 = vsub.f32 %v1947, %v2374
    %v2439 = vsub.f32 %v1991, %v2377
    %v2440 = vsub.f32 %v1994, %v2380
    %v2441 = vsub.f32 %v2038, %v2383
    %v2442 = vsub.f32 %v2041, %v2386
    %v2443 = vsub.f32 %v2085, %v2389
    %v2444 = vsub.f32 %v2088, %v2392
    %v2445 = vsub.f32 %v2132, %v2395
    %v2446 = vsub.f32 %v2135, %v2398
    %v2447 = vsub.f32 %v2179, %v2401
    %v2448 = vsub.f32 %v2182, %v2404
    %v2449 = vsub.f32 %v2226, %v2407
    %v2450 = vsub.f32 %v2229, %v2410
    %v2451 = vsub.f32 %v2273, %v2413
    %v2452 = vsub.f32 %v2276, %v2416
    %v2453 = vsub.f32 %v2320, %v2419
    %v2454 = vsub.f32 %v2323, %v2422
    %v2455 = vmul.f32 %v2423, 1.442695
    %v2456 = vpow.pop %v2455
    %v2457 = vmul.f32 %v2424, 1.442695
    %v2458 = vpow.pop %v2457
    %v2459 = vmul.f32 %v2425, 1.442695
    %v2460 = vpow.pop %v2459
    %v2461 = vmul.f32 %v2426, 1.442695
    %v2462 = vpow.pop %v2461
    %v2463 = vmul.f32 %v2427, 1.442695
    %v2464 = vpow.pop %v2463
    %v2465 = vmul.f32 %v2428, 1.442695
    %v2466 = vpow.pop %v2465
    %v2467 = vmul.f32 %v2429, 1.442695
    %v2468 = vpow.pop %v2467
    %v2469 = vmul.f32 %v2430, 1.442695
    %v2470 = vpow.pop %v2469
    %v2471 = vmul.f32 %v2431, 1.442695
    %v2472 = vpow.pop %v2471
    %v2473 = vmul.f32 %v2432, 1.442695
    %v2474 = vpow.pop %v2473
    %v2475 = vmul.f32 %v2433, 1.442695
    %v2476 = vpow.pop %v2475
    %v2477 = vmul.f32 %v2434, 1.442695
    %v2478 = vpow.pop %v2477
    %v2479 = vmul.f32 %v2435, 1.442695
    %v2480 = vpow.pop %v2479
    %v2481 = vmul.f32 %v2436, 1.442695
    %v2482 = vpow.pop %v2481
    %v2483 = vmul.f32 %v2437, 1.442695
    %v2484 = vpow.pop %v2483
    %v2485 = vmul.f32 %v2438, 1.442695
    %v2486 = vpow.pop %v2485
    %v2487 = vmul.f32 %v2439, 1.442695
    %v2488 = vpow.pop %v2487
    %v2489 = vmul.f32 %v2440, 1.442695
    %v2490 = vpow.pop %v2489
    %v2491 = vmul.f32 %v2441, 1.442695
    %v2492 = vpow.pop %v2491
    %v2493 = vmul.f32 %v2442, 1.442695
    %v2494 = vpow.pop %v2493
    %v2495 = vmul.f32 %v2443, 1.442695
    %v2496 = vpow.pop %v2495
    %v2497 = vmul.f32 %v2444, 1.442695
    %v2498 = vpow.pop %v2497
    %v2499 = vmul.f32 %v2445, 1.442695
    %v2500 = vpow.pop %v2499
    %v2501 = vmul.f32 %v2446, 1.442695
    %v2502 = vpow.pop %v2501
    %v2503 = vmul.f32 %v2447, 1.442695
    %v2504 = vpow.pop %v2503
    %v2505 = vmul.f32 %v2448, 1.442695
    %v2506 = vpow.pop %v2505
    %v2507 = vmul.f32 %v2449, 1.442695
    %v2508 = vpow.pop %v2507
    %v2509 = vmul.f32 %v2450, 1.442695
    %v2510 = vpow.pop %v2509
    %v2511 = vmul.f32 %v2451, 1.442695
    %v2512 = vpow.pop %v2511
    %v2513 = vmul.f32 %v2452, 1.442695
    %v2514 = vpow.pop %v2513
    %v2515 = vmul.f32 %v2453, 1.442695
    %v2516 = vpow.pop %v2515
    %v2517 = vmul.f32 %v2454, 1.442695
    %v2518 = vpow.pop %v2517
    %v2519 = vsel %vm2326, %v2456, 0.0
    %2520 = vadd.xlane.f32.xlu0 %v2519
    %v2521 = vpop.xlane.xlu0 %2520
    %v2522 = vsel %vm2326, %v2458, 0.0
    %2523 = vadd.xlane.f32.xlu0 %v2522
    %v2524 = vpop.xlane.xlu0 %2523
    %v2525 = vsel %vm2326, %v2460, 0.0
    %2526 = vadd.xlane.f32.xlu0 %v2525
    %v2527 = vpop.xlane.xlu0 %2526
    %v2528 = vsel %vm2326, %v2462, 0.0
    %2529 = vadd.xlane.f32.xlu0 %v2528
    %v2530 = vpop.xlane.xlu0 %2529
    %v2531 = vsel %vm2326, %v2464, 0.0
    %2532 = vadd.xlane.f32.xlu0 %v2531
    %v2533 = vpop.xlane.xlu0 %2532
    %v2534 = vsel %vm2326, %v2466, 0.0
    %2535 = vadd.xlane.f32.xlu0 %v2534
    %v2536 = vpop.xlane.xlu0 %2535
    %v2537 = vsel %vm2326, %v2468, 0.0
    %2538 = vadd.xlane.f32.xlu0 %v2537
    %v2539 = vpop.xlane.xlu0 %2538
    %v2540 = vsel %vm2326, %v2470, 0.0
    %2541 = vadd.xlane.f32.xlu0 %v2540
    %v2542 = vpop.xlane.xlu0 %2541
    %v2543 = vsel %vm2326, %v2472, 0.0
    %2544 = vadd.xlane.f32.xlu0 %v2543
    %v2545 = vpop.xlane.xlu0 %2544
    %v2546 = vsel %vm2326, %v2474, 0.0
    %2547 = vadd.xlane.f32.xlu0 %v2546
    %v2548 = vpop.xlane.xlu0 %2547
    %v2549 = vsel %vm2326, %v2476, 0.0
    %2550 = vadd.xlane.f32.xlu0 %v2549
    %v2551 = vpop.xlane.xlu0 %2550
    %v2552 = vsel %vm2326, %v2478, 0.0
    %2553 = vadd.xlane.f32.xlu0 %v2552
    %v2554 = vpop.xlane.xlu0 %2553
    %v2555 = vsel %vm2326, %v2480, 0.0
    %2556 = vadd.xlane.f32.xlu0 %v2555
    %v2557 = vpop.xlane.xlu0 %2556
    %v2558 = vsel %vm2326, %v2482, 0.0
    %2559 = vadd.xlane.f32.xlu0 %v2558
    %v2560 = vpop.xlane.xlu0 %2559
    %v2561 = vsel %vm2326, %v2484, 0.0
    %2562 = vadd.xlane.f32.xlu0 %v2561
    %v2563 = vpop.xlane.xlu0 %2562
    %v2564 = vsel %vm2326, %v2486, 0.0
    %2565 = vadd.xlane.f32.xlu0 %v2564
    %v2566 = vpop.xlane.xlu0 %2565
    %v2567 = vsel %vm2326, %v2488, 0.0
    %2568 = vadd.xlane.f32.xlu0 %v2567
    %v2569 = vpop.xlane.xlu0 %2568
    %v2570 = vsel %vm2326, %v2490, 0.0
    %2571 = vadd.xlane.f32.xlu0 %v2570
    %v2572 = vpop.xlane.xlu0 %2571
    %v2573 = vsel %vm2326, %v2492, 0.0
    %2574 = vadd.xlane.f32.xlu0 %v2573
    %v2575 = vpop.xlane.xlu0 %2574
    %v2576 = vsel %vm2326, %v2494, 0.0
    %2577 = vadd.xlane.f32.xlu0 %v2576
    %v2578 = vpop.xlane.xlu0 %2577
    %v2579 = vsel %vm2326, %v2496, 0.0
    %2580 = vadd.xlane.f32.xlu0 %v2579
    %v2581 = vpop.xlane.xlu0 %2580
    %v2582 = vsel %vm2326, %v2498, 0.0
    %2583 = vadd.xlane.f32.xlu0 %v2582
    %v2584 = vpop.xlane.xlu0 %2583
    %v2585 = vsel %vm2326, %v2500, 0.0
    %2586 = vadd.xlane.f32.xlu0 %v2585
    %v2587 = vpop.xlane.xlu0 %2586
    %v2588 = vsel %vm2326, %v2502, 0.0
    %2589 = vadd.xlane.f32.xlu0 %v2588
    %v2590 = vpop.xlane.xlu0 %2589
    %v2591 = vsel %vm2326, %v2504, 0.0
    %2592 = vadd.xlane.f32.xlu0 %v2591
    %v2593 = vpop.xlane.xlu0 %2592
    %v2594 = vsel %vm2326, %v2506, 0.0
    %2595 = vadd.xlane.f32.xlu0 %v2594
    %v2596 = vpop.xlane.xlu0 %2595
    %v2597 = vsel %vm2326, %v2508, 0.0
    %2598 = vadd.xlane.f32.xlu0 %v2597
    %v2599 = vpop.xlane.xlu0 %2598
    %v2600 = vsel %vm2326, %v2510, 0.0
    %2601 = vadd.xlane.f32.xlu0 %v2600
    %v2602 = vpop.xlane.xlu0 %2601
    %v2603 = vsel %vm2326, %v2512, 0.0
    %2604 = vadd.xlane.f32.xlu0 %v2603
    %v2605 = vpop.xlane.xlu0 %2604
    %v2606 = vsel %vm2326, %v2514, 0.0
    %2607 = vadd.xlane.f32.xlu0 %v2606
    %v2608 = vpop.xlane.xlu0 %2607
    %v2609 = vsel %vm2326, %v2516, 0.0
    %2610 = vadd.xlane.f32.xlu0 %v2609
    %v2611 = vpop.xlane.xlu0 %2610
    %v2612 = vsel %vm2326, %v2518, 0.0
    %2613 = vadd.xlane.f32.xlu0 %v2612
    %v2614 = vpop.xlane.xlu0 %2613
    %v2615 = vrcp.pop %v2521
    %v2616 = vrcp.pop %v2524
    %v2617 = vrcp.pop %v2527
    %v2618 = vrcp.pop %v2530
    %v2619 = vrcp.pop %v2533
    %v2620 = vrcp.pop %v2536
    %v2621 = vrcp.pop %v2539
    %v2622 = vrcp.pop %v2542
    %v2623 = vrcp.pop %v2545
    %v2624 = vrcp.pop %v2548
    %v2625 = vrcp.pop %v2551
    %v2626 = vrcp.pop %v2554
    %v2627 = vrcp.pop %v2557
    %v2628 = vrcp.pop %v2560
    %v2629 = vrcp.pop %v2563
    %v2630 = vrcp.pop %v2566
    %v2631 = vrcp.pop %v2569
    %v2632 = vrcp.pop %v2572
    %v2633 = vrcp.pop %v2575
    %v2634 = vrcp.pop %v2578
    %v2635 = vrcp.pop %v2581
    %v2636 = vrcp.pop %v2584
    %v2637 = vrcp.pop %v2587
    %v2638 = vrcp.pop %v2590
    %v2639 = vrcp.pop %v2593
    %v2640 = vrcp.pop %v2596
    %v2641 = vrcp.pop %v2599
    %v2642 = vrcp.pop %v2602
    %v2643 = vrcp.pop %v2605
    %v2644 = vrcp.pop %v2608
    %v2645 = vrcp.pop %v2611
    %v2646 = vrcp.pop %v2614
    %v2647 = vmul.f32 %v2456, %v2615
    %v2648 = vmul.f32 %v2458, %v2616
    %v2649 = vmul.f32 %v2460, %v2617
    %v2650 = vmul.f32 %v2462, %v2618
    %v2651 = vmul.f32 %v2464, %v2619
    %v2652 = vmul.f32 %v2466, %v2620
    %v2653 = vmul.f32 %v2468, %v2621
    %v2654 = vmul.f32 %v2470, %v2622
    %v2655 = vmul.f32 %v2472, %v2623
    %v2656 = vmul.f32 %v2474, %v2624
    %v2657 = vmul.f32 %v2476, %v2625
    %v2658 = vmul.f32 %v2478, %v2626
    %v2659 = vmul.f32 %v2480, %v2627
    %v2660 = vmul.f32 %v2482, %v2628
    %v2661 = vmul.f32 %v2484, %v2629
    %v2662 = vmul.f32 %v2486, %v2630
    %v2663 = vmul.f32 %v2488, %v2631
    %v2664 = vmul.f32 %v2490, %v2632
    %v2665 = vmul.f32 %v2492, %v2633
    %v2666 = vmul.f32 %v2494, %v2634
    %v2667 = vmul.f32 %v2496, %v2635
    %v2668 = vmul.f32 %v2498, %v2636
    %v2669 = vmul.f32 %v2500, %v2637
    %v2670 = vmul.f32 %v2502, %v2638
    %v2671 = vmul.f32 %v2504, %v2639
    %v2672 = vmul.f32 %v2506, %v2640
    %v2673 = vmul.f32 %v2508, %v2641
    %v2674 = vmul.f32 %v2510, %v2642
    %v2675 = vmul.f32 %v2512, %v2643
    %v2676 = vmul.f32 %v2514, %v2644
    %v2677 = vmul.f32 %v2516, %v2645
    %v2678 = vmul.f32 %v2518, %v2646
    %v2679 = vpack.c.bf16 %v2648, %v2647
    %v2680 = vpack.c.bf16 %v2650, %v2649
    %v2681 = vpack.c.bf16 %v2652, %v2651
    %v2682 = vpack.c.bf16 %v2654, %v2653
    %v2683 = vpack.c.bf16 %v2656, %v2655
    %v2684 = vpack.c.bf16 %v2658, %v2657
    %v2685 = vpack.c.bf16 %v2660, %v2659
    %v2686 = vpack.c.bf16 %v2662, %v2661
    %v2687 = vpack.c.bf16 %v2664, %v2663
    %v2688 = vpack.c.bf16 %v2666, %v2665
    %v2689 = vpack.c.bf16 %v2668, %v2667
    %v2690 = vpack.c.bf16 %v2670, %v2669
    %v2691 = vpack.c.bf16 %v2672, %v2671
    %v2692 = vpack.c.bf16 %v2674, %v2673
    %v2693 = vpack.c.bf16 %v2676, %v2675
    %v2694 = vpack.c.bf16 %v2678, %v2677
    %v2696 = vsel %vm2326, %v2679, 0
    %2698 = vmatprep.subr.bf16.mxu0 0
    %2699 = vmatpush1.bf16.msra.mxu0 %v1558
    %2700 = vmatprep.subr.bf16.mxu0 0
    %2701 = vmatpush1.bf16.msra.mxu0 0
    %2702 = vmatprep.subr.bf16.mxu0 0
    %2703 = vmatpush1.bf16.msra.mxu0 0
    %2704 = vmatprep.subr.bf16.mxu0 0
    %2705 = vmatpush1.bf16.msra.mxu0 0
    %2706 = vmatprep.subr.bf16.mxu0 0
    %2707 = vmatpush1.bf16.msra.mxu0 0
    %2708 = vmatprep.subr.bf16.mxu0 0
    %2709 = vmatpush1.bf16.msra.mxu0 0
    %2710 = vmatprep.subr.bf16.mxu0 0
    %2711 = vmatpush1.bf16.msra.mxu0 0
    %2712 = vmatprep.subr.bf16.mxu0 0
    %2713 = vmatpush1.bf16.msra.mxu0 0
    %2714 = vmatprep.subr.bf16.mxu0 0
    %2715 = vmatpush1.bf16.msra.mxu0 0
    %2716 = vmatprep.subr.bf16.mxu0 0
    %2717 = vmatpush1.bf16.msra.mxu0 0
    %2718 = vmatprep.subr.bf16.mxu0 0
    %2719 = vmatpush1.bf16.msra.mxu0 0
    %2720 = vmatprep.subr.bf16.mxu0 0
    %2721 = vmatpush1.bf16.msra.mxu0 0
    %2722 = vmatprep.subr.bf16.mxu0 0
    %2723 = vmatpush1.bf16.msra.mxu0 0
    %2724 = vmatprep.subr.bf16.mxu0 0
    %2725 = vmatpush1.bf16.msra.mxu0 0
    %2726 = vmatprep.subr.bf16.mxu0 0
    %2727 = vmatpush1.bf16.msra.mxu0 0
    %2728 = vmatprep.subr.bf16.mxu0 0
    %2729 = vmatpush1.bf16.msra.mxu0 0
    %2730 = vmatprep.mubr.bf16.mxu0 0
    %2731 = vmatmul.mubr.bf16.gmra.mrb[0].mxu0 %v2696
    %v2732 = vpop.f32.mrb[0].mxu0
    %v2733 = vadd.f32 0.0, %v2732
    %v2734 = vpop.f32.mrb[0].mxu0
    %v2735 = vpop.f32.mrb[0].mxu0
    %v2736 = vadd.f32 0.0, %v2735
    %v2737 = vpop.f32.mrb[0].mxu0
    %2738 = vdwg.mxu0
    %v2740 = vsel %vm2326, %v2680, 0
    %2742 = vmatprep.subr.bf16.mxu0 0
    %2743 = vmatpush1.bf16.msra.mxu0 %v1559
    %2744 = vmatprep.subr.bf16.mxu0 0
    %2745 = vmatpush1.bf16.msra.mxu0 0
    %2746 = vmatprep.subr.bf16.mxu0 0
    %2747 = vmatpush1.bf16.msra.mxu0 0
    %2748 = vmatprep.subr.bf16.mxu0 0
    %2749 = vmatpush1.bf16.msra.mxu0 0
    %2750 = vmatprep.subr.bf16.mxu0 0
    %2751 = vmatpush1.bf16.msra.mxu0 0
    %2752 = vmatprep.subr.bf16.mxu0 0
    %2753 = vmatpush1.bf16.msra.mxu0 0
    %2754 = vmatprep.subr.bf16.mxu0 0
    %2755 = vmatpush1.bf16.msra.mxu0 0
    %2756 = vmatprep.subr.bf16.mxu0 0
    %2757 = vmatpush1.bf16.msra.mxu0 0
    %2758 = vmatprep.subr.bf16.mxu0 0
    %2759 = vmatpush1.bf16.msra.mxu0 0
    %2760 = vmatprep.subr.bf16.mxu0 0
    %2761 = vmatpush1.bf16.msra.mxu0 0
    %2762 = vmatprep.subr.bf16.mxu0 0
    %2763 = vmatpush1.bf16.msra.mxu0 0
    %2764 = vmatprep.subr.bf16.mxu0 0
    %2765 = vmatpush1.bf16.msra.mxu0 0
    %2766 = vmatprep.subr.bf16.mxu0 0
    %2767 = vmatpush1.bf16.msra.mxu0 0
    %2768 = vmatprep.subr.bf16.mxu0 0
    %2769 = vmatpush1.bf16.msra.mxu0 0
    %2770 = vmatprep.subr.bf16.mxu0 0
    %2771 = vmatpush1.bf16.msra.mxu0 0
    %2772 = vmatprep.subr.bf16.mxu0 0
    %2773 = vmatpush1.bf16.msra.mxu0 0
    %2774 = vmatprep.mubr.bf16.mxu0 0
    %2775 = vmatmul.mubr.bf16.gmra.mrb[0].mxu0 %v2740
    %v2776 = vpop.f32.mrb[0].mxu0
    %v2777 = vadd.f32 0.0, %v2776
    %v2778 = vpop.f32.mrb[0].mxu0
    %v2779 = vpop.f32.mrb[0].mxu0
    %v2780 = vadd.f32 0.0, %v2779
    %v2781 = vpop.f32.mrb[0].mxu0
    %2782 = vdwg.mxu0
    %v2784 = vsel %vm2326, %v2681, 0
    %2786 = vmatprep.subr.bf16.mxu0 0
    %2787 = vmatpush1.bf16.msra.mxu0 %v1560
    %2788 = vmatprep.subr.bf16.mxu0 0
    %2789 = vmatpush1.bf16.msra.mxu0 0
    %2790 = vmatprep.subr.bf16.mxu0 0
    %2791 = vmatpush1.bf16.msra.mxu0 0
    %2792 = vmatprep.subr.bf16.mxu0 0
    %2793 = vmatpush1.bf16.msra.mxu0 0
    %2794 = vmatprep.subr.bf16.mxu0 0
    %2795 = vmatpush1.bf16.msra.mxu0 0
    %2796 = vmatprep.subr.bf16.mxu0 0
    %2797 = vmatpush1.bf16.msra.mxu0 0
    %2798 = vmatprep.subr.bf16.mxu0 0
    %2799 = vmatpush1.bf16.msra.mxu0 0
    %2800 = vmatprep.subr.bf16.mxu0 0
    %2801 = vmatpush1.bf16.msra.mxu0 0
    %2802 = vmatprep.subr.bf16.mxu0 0
    %2803 = vmatpush1.bf16.msra.mxu0 0
    %2804 = vmatprep.subr.bf16.mxu0 0
    %2805 = vmatpush1.bf16.msra.mxu0 0
    %2806 = vmatprep.subr.bf16.mxu0 0
    %2807 = vmatpush1.bf16.msra.mxu0 0
    %2808 = vmatprep.subr.bf16.mxu0 0
    %2809 = vmatpush1.bf16.msra.mxu0 0
    %2810 = vmatprep.subr.bf16.mxu0 0
    %2811 = vmatpush1.bf16.msra.mxu0 0
    %2812 = vmatprep.subr.bf16.mxu0 0
    %2813 = vmatpush1.bf16.msra.mxu0 0
    %2814 = vmatprep.subr.bf16.mxu0 0
    %2815 = vmatpush1.bf16.msra.mxu0 0
    %2816 = vmatprep.subr.bf16.mxu0 0
    %2817 = vmatpush1.bf16.msra.mxu0 0
    %2818 = vmatprep.mubr.bf16.mxu0 0
    %2819 = vmatmul.mubr.bf16.gmra.mrb[0].mxu0 %v2784
    %v2820 = vpop.f32.mrb[0].mxu0
    %v2821 = vadd.f32 0.0, %v2820
    %v2822 = vpop.f32.mrb[0].mxu0
    %v2823 = vpop.f32.mrb[0].mxu0
    %v2824 = vadd.f32 0.0, %v2823
    %v2825 = vpop.f32.mrb[0].mxu0
    %2826 = vdwg.mxu0
    %v2828 = vsel %vm2326, %v2682, 0
    %2830 = vmatprep.subr.bf16.mxu0 0
    %2831 = vmatpush1.bf16.msra.mxu0 %v1561
    %2832 = vmatprep.subr.bf16.mxu0 0
    %2833 = vmatpush1.bf16.msra.mxu0 0
    %2834 = vmatprep.subr.bf16.mxu0 0
    %2835 = vmatpush1.bf16.msra.mxu0 0
    %2836 = vmatprep.subr.bf16.mxu0 0
    %2837 = vmatpush1.bf16.msra.mxu0 0
    %2838 = vmatprep.subr.bf16.mxu0 0
    %2839 = vmatpush1.bf16.msra.mxu0 0
    %2840 = vmatprep.subr.bf16.mxu0 0
    %2841 = vmatpush1.bf16.msra.mxu0 0
    %2842 = vmatprep.subr.bf16.mxu0 0
    %2843 = vmatpush1.bf16.msra.mxu0 0
    %2844 = vmatprep.subr.bf16.mxu0 0
    %2845 = vmatpush1.bf16.msra.mxu0 0
    %2846 = vmatprep.subr.bf16.mxu0 0
    %2847 = vmatpush1.bf16.msra.mxu0 0
    %2848 = vmatprep.subr.bf16.mxu0 0
    %2849 = vmatpush1.bf16.msra.mxu0 0
    %2850 = vmatprep.subr.bf16.mxu0 0
    %2851 = vmatpush1.bf16.msra.mxu0 0
    %2852 = vmatprep.subr.bf16.mxu0 0
    %2853 = vmatpush1.bf16.msra.mxu0 0
    %2854 = vmatprep.subr.bf16.mxu0 0
    %2855 = vmatpush1.bf16.msra.mxu0 0
    %2856 = vmatprep.subr.bf16.mxu0 0
    %2857 = vmatpush1.bf16.msra.mxu0 0
    %2858 = vmatprep.subr.bf16.mxu0 0
    %2859 = vmatpush1.bf16.msra.mxu0 0
    %2860 = vmatprep.subr.bf16.mxu0 0
    %2861 = vmatpush1.bf16.msra.mxu0 0
    %2862 = vmatprep.mubr.bf16.mxu0 0
    %2863 = vmatmul.mubr.bf16.gmra.mrb[0].mxu0 %v2828
    %v2864 = vpop.f32.mrb[0].mxu0
    %v2865 = vadd.f32 0.0, %v2864
    %v2866 = vpop.f32.mrb[0].mxu0
    %v2867 = vpop.f32.mrb[0].mxu0
    %v2868 = vadd.f32 0.0, %v2867
    %v2869 = vpop.f32.mrb[0].mxu0
    %2870 = vdwg.mxu0
    %v2872 = vsel %vm2326, %v2683, 0
    %2874 = vmatprep.subr.bf16.mxu0 0
    %2875 = vmatpush1.bf16.msra.mxu0 %v1562
    %2876 = vmatprep.subr.bf16.mxu0 0
    %2877 = vmatpush1.bf16.msra.mxu0 0
    %2878 = vmatprep.subr.bf16.mxu0 0
    %2879 = vmatpush1.bf16.msra.mxu0 0
    %2880 = vmatprep.subr.bf16.mxu0 0
    %2881 = vmatpush1.bf16.msra.mxu0 0
    %2882 = vmatprep.subr.bf16.mxu0 0
    %2883 = vmatpush1.bf16.msra.mxu0 0
    %2884 = vmatprep.subr.bf16.mxu0 0
    %2885 = vmatpush1.bf16.msra.mxu0 0
    %2886 = vmatprep.subr.bf16.mxu0 0
    %2887 = vmatpush1.bf16.msra.mxu0 0
    %2888 = vmatprep.subr.bf16.mxu0 0
    %2889 = vmatpush1.bf16.msra.mxu0 0
    %2890 = vmatprep.subr.bf16.mxu0 0
    %2891 = vmatpush1.bf16.msra.mxu0 0
    %2892 = vmatprep.subr.bf16.mxu0 0
    %2893 = vmatpush1.bf16.msra.mxu0 0
    %2894 = vmatprep.subr.bf16.mxu0 0
    %2895 = vmatpush1.bf16.msra.mxu0 0
    %2896 = vmatprep.subr.bf16.mxu0 0
    %2897 = vmatpush1.bf16.msra.mxu0 0
    %2898 = vmatprep.subr.bf16.mxu0 0
    %2899 = vmatpush1.bf16.msra.mxu0 0
    %2900 = vmatprep.subr.bf16.mxu0 0
    %2901 = vmatpush1.bf16.msra.mxu0 0
    %2902 = vmatprep.subr.bf16.mxu0 0
    %2903 = vmatpush1.bf16.msra.mxu0 0
    %2904 = vmatprep.subr.bf16.mxu0 0
    %2905 = vmatpush1.bf16.msra.mxu0 0
    %2906 = vmatprep.mubr.bf16.mxu0 0
    %2907 = vmatmul.mubr.bf16.gmra.mrb[0].mxu0 %v2872
    %v2908 = vpop.f32.mrb[0].mxu0
    %v2909 = vadd.f32 0.0, %v2908
    %v2910 = vpop.f32.mrb[0].mxu0
    %v2911 = vpop.f32.mrb[0].mxu0
    %v2912 = vadd.f32 0.0, %v2911
    %v2913 = vpop.f32.mrb[0].mxu0
    %2914 = vdwg.mxu0
    %v2916 = vsel %vm2326, %v2684, 0
    %2918 = vmatprep.subr.bf16.mxu0 0
    %2919 = vmatpush1.bf16.msra.mxu0 %v1563
    %2920 = vmatprep.subr.bf16.mxu0 0
    %2921 = vmatpush1.bf16.msra.mxu0 0
    %2922 = vmatprep.subr.bf16.mxu0 0
    %2923 = vmatpush1.bf16.msra.mxu0 0
    %2924 = vmatprep.subr.bf16.mxu0 0
    %2925 = vmatpush1.bf16.msra.mxu0 0
    %2926 = vmatprep.subr.bf16.mxu0 0
    %2927 = vmatpush1.bf16.msra.mxu0 0
    %2928 = vmatprep.subr.bf16.mxu0 0
    %2929 = vmatpush1.bf16.msra.mxu0 0
    %2930 = vmatprep.subr.bf16.mxu0 0
    %2931 = vmatpush1.bf16.msra.mxu0 0
    %2932 = vmatprep.subr.bf16.mxu0 0
    %2933 = vmatpush1.bf16.msra.mxu0 0
    %2934 = vmatprep.subr.bf16.mxu0 0
    %2935 = vmatpush1.bf16.msra.mxu0 0
    %2936 = vmatprep.subr.bf16.mxu0 0
    %2937 = vmatpush1.bf16.msra.mxu0 0
    %2938 = vmatprep.subr.bf16.mxu0 0
    %2939 = vmatpush1.bf16.msra.mxu0 0
    %2940 = vmatprep.subr.bf16.mxu0 0
    %2941 = vmatpush1.bf16.msra.mxu0 0
    %2942 = vmatprep.subr.bf16.mxu0 0
    %2943 = vmatpush1.bf16.msra.mxu0 0
    %2944 = vmatprep.subr.bf16.mxu0 0
    %2945 = vmatpush1.bf16.msra.mxu0 0
    %2946 = vmatprep.subr.bf16.mxu0 0
    %2947 = vmatpush1.bf16.msra.mxu0 0
    %2948 = vmatprep.subr.bf16.mxu0 0
    %2949 = vmatpush1.bf16.msra.mxu0 0
    %2950 = vmatprep.mubr.bf16.mxu0 0
    %2951 = vmatmul.mubr.bf16.gmra.mrb[0].mxu0 %v2916
    %v2952 = vpop.f32.mrb[0].mxu0
    %v2953 = vadd.f32 0.0, %v2952
    %v2954 = vpop.f32.mrb[0].mxu0
    %v2955 = vpop.f32.mrb[0].mxu0
    %v2956 = vadd.f32 0.0, %v2955
    %v2957 = vpop.f32.mrb[0].mxu0
    %2958 = vdwg.mxu0
    %v2960 = vsel %vm2326, %v2685, 0
    %2962 = vmatprep.subr.bf16.mxu0 0
    %2963 = vmatpush1.bf16.msra.mxu0 %v1564
    %2964 = vmatprep.subr.bf16.mxu0 0
    %2965 = vmatpush1.bf16.msra.mxu0 0
    %2966 = vmatprep.subr.bf16.mxu0 0
    %2967 = vmatpush1.bf16.msra.mxu0 0
    %2968 = vmatprep.subr.bf16.mxu0 0
    %2969 = vmatpush1.bf16.msra.mxu0 0
    %2970 = vmatprep.subr.bf16.mxu0 0
    %2971 = vmatpush1.bf16.msra.mxu0 0
    %2972 = vmatprep.subr.bf16.mxu0 0
    %2973 = vmatpush1.bf16.msra.mxu0 0
    %2974 = vmatprep.subr.bf16.mxu0 0
    %2975 = vmatpush1.bf16.msra.mxu0 0
    %2976 = vmatprep.subr.bf16.mxu0 0
    %2977 = vmatpush1.bf16.msra.mxu0 0
    %2978 = vmatprep.subr.bf16.mxu0 0
    %2979 = vmatpush1.bf16.msra.mxu0 0
    %2980 = vmatprep.subr.bf16.mxu0 0
    %2981 = vmatpush1.bf16.msra.mxu0 0
    %2982 = vmatprep.subr.bf16.mxu0 0
    %2983 = vmatpush1.bf16.msra.mxu0 0
    %2984 = vmatprep.subr.bf16.mxu0 0
    %2985 = vmatpush1.bf16.msra.mxu0 0
    %2986 = vmatprep.subr.bf16.mxu0 0
    %2987 = vmatpush1.bf16.msra.mxu0 0
    %2988 = vmatprep.subr.bf16.mxu0 0
    %2989 = vmatpush1.bf16.msra.mxu0 0
    %2990 = vmatprep.subr.bf16.mxu0 0
    %2991 = vmatpush1.bf16.msra.mxu0 0
    %2992 = vmatprep.subr.bf16.mxu0 0
    %2993 = vmatpush1.bf16.msra.mxu0 0
    %2994 = vmatprep.mubr.bf16.mxu0 0
    %2995 = vmatmul.mubr.bf16.gmra.mrb[0].mxu0 %v2960
    %v2996 = vpop.f32.mrb[0].mxu0
    %v2997 = vadd.f32 0.0, %v2996
    %v2998 = vpop.f32.mrb[0].mxu0
    %v2999 = vpop.f32.mrb[0].mxu0
    %v3000 = vadd.f32 0.0, %v2999
    %v3001 = vpop.f32.mrb[0].mxu0
    %3002 = vdwg.mxu0
    %v3004 = vsel %vm2326, %v2686, 0
    %3006 = vmatprep.subr.bf16.mxu0 0
    %3007 = vmatpush1.bf16.msra.mxu0 %v1565
    %3008 = vmatprep.subr.bf16.mxu0 0
    %3009 = vmatpush1.bf16.msra.mxu0 0
    %3010 = vmatprep.subr.bf16.mxu0 0
    %3011 = vmatpush1.bf16.msra.mxu0 0
    %3012 = vmatprep.subr.bf16.mxu0 0
    %3013 = vmatpush1.bf16.msra.mxu0 0
    %3014 = vmatprep.subr.bf16.mxu0 0
    %3015 = vmatpush1.bf16.msra.mxu0 0
    %3016 = vmatprep.subr.bf16.mxu0 0
    %3017 = vmatpush1.bf16.msra.mxu0 0
    %3018 = vmatprep.subr.bf16.mxu0 0
    %3019 = vmatpush1.bf16.msra.mxu0 0
    %3020 = vmatprep.subr.bf16.mxu0 0
    %3021 = vmatpush1.bf16.msra.mxu0 0
    %3022 = vmatprep.subr.bf16.mxu0 0
    %3023 = vmatpush1.bf16.msra.mxu0 0
    %3024 = vmatprep.subr.bf16.mxu0 0
    %3025 = vmatpush1.bf16.msra.mxu0 0
    %3026 = vmatprep.subr.bf16.mxu0 0
    %3027 = vmatpush1.bf16.msra.mxu0 0
    %3028 = vmatprep.subr.bf16.mxu0 0
    %3029 = vmatpush1.bf16.msra.mxu0 0
    %3030 = vmatprep.subr.bf16.mxu0 0
    %3031 = vmatpush1.bf16.msra.mxu0 0
    %3032 = vmatprep.subr.bf16.mxu0 0
    %3033 = vmatpush1.bf16.msra.mxu0 0
    %3034 = vmatprep.subr.bf16.mxu0 0
    %3035 = vmatpush1.bf16.msra.mxu0 0
    %3036 = vmatprep.subr.bf16.mxu0 0
    %3037 = vmatpush1.bf16.msra.mxu0 0
    %3038 = vmatprep.mubr.bf16.mxu0 0
    %3039 = vmatmul.mubr.bf16.gmra.mrb[0].mxu0 %v3004
    %v3040 = vpop.f32.mrb[0].mxu0
    %v3041 = vadd.f32 0.0, %v3040
    %v3042 = vpop.f32.mrb[0].mxu0
    %v3043 = vpop.f32.mrb[0].mxu0
    %v3044 = vadd.f32 0.0, %v3043
    %v3045 = vpop.f32.mrb[0].mxu0
    %3046 = vdwg.mxu0
    %v3048 = vsel %vm2326, %v2687, 0
    %3050 = vmatprep.subr.bf16.mxu0 0
    %3051 = vmatpush1.bf16.msra.mxu0 %v1566
    %3052 = vmatprep.subr.bf16.mxu0 0
    %3053 = vmatpush1.bf16.msra.mxu0 0
    %3054 = vmatprep.subr.bf16.mxu0 0
    %3055 = vmatpush1.bf16.msra.mxu0 0
    %3056 = vmatprep.subr.bf16.mxu0 0
    %3057 = vmatpush1.bf16.msra.mxu0 0
    %3058 = vmatprep.subr.bf16.mxu0 0
    %3059 = vmatpush1.bf16.msra.mxu0 0
    %3060 = vmatprep.subr.bf16.mxu0 0
    %3061 = vmatpush1.bf16.msra.mxu0 0
    %3062 = vmatprep.subr.bf16.mxu0 0
    %3063 = vmatpush1.bf16.msra.mxu0 0
    %3064 = vmatprep.subr.bf16.mxu0 0
    %3065 = vmatpush1.bf16.msra.mxu0 0
    %3066 = vmatprep.subr.bf16.mxu0 0
    %3067 = vmatpush1.bf16.msra.mxu0 0
    %3068 = vmatprep.subr.bf16.mxu0 0
    %3069 = vmatpush1.bf16.msra.mxu0 0
    %3070 = vmatprep.subr.bf16.mxu0 0
    %3071 = vmatpush1.bf16.msra.mxu0 0
    %3072 = vmatprep.subr.bf16.mxu0 0
    %3073 = vmatpush1.bf16.msra.mxu0 0
    %3074 = vmatprep.subr.bf16.mxu0 0
    %3075 = vmatpush1.bf16.msra.mxu0 0
    %3076 = vmatprep.subr.bf16.mxu0 0
    %3077 = vmatpush1.bf16.msra.mxu0 0
    %3078 = vmatprep.subr.bf16.mxu0 0
    %3079 = vmatpush1.bf16.msra.mxu0 0
    %3080 = vmatprep.subr.bf16.mxu0 0
    %3081 = vmatpush1.bf16.msra.mxu0 0
    %3082 = vmatprep.mubr.bf16.mxu0 0
    %3083 = vmatmul.mubr.bf16.gmra.mrb[0].mxu0 %v3048
    %v3084 = vpop.f32.mrb[0].mxu0
    %v3085 = vadd.f32 0.0, %v3084
    %v3086 = vpop.f32.mrb[0].mxu0
    %v3087 = vpop.f32.mrb[0].mxu0
    %v3088 = vadd.f32 0.0, %v3087
    %v3089 = vpop.f32.mrb[0].mxu0
    %3090 = vdwg.mxu0
    %v3092 = vsel %vm2326, %v2688, 0
    %3094 = vmatprep.subr.bf16.mxu0 0
    %3095 = vmatpush1.bf16.msra.mxu0 %v1567
    %3096 = vmatprep.subr.bf16.mxu0 0
    %3097 = vmatpush1.bf16.msra.mxu0 0
    %3098 = vmatprep.subr.bf16.mxu0 0
    %3099 = vmatpush1.bf16.msra.mxu0 0
    %3100 = vmatprep.subr.bf16.mxu0 0
    %3101 = vmatpush1.bf16.msra.mxu0 0
    %3102 = vmatprep.subr.bf16.mxu0 0
    %3103 = vmatpush1.bf16.msra.mxu0 0
    %3104 = vmatprep.subr.bf16.mxu0 0
    %3105 = vmatpush1.bf16.msra.mxu0 0
    %3106 = vmatprep.subr.bf16.mxu0 0
    %3107 = vmatpush1.bf16.msra.mxu0 0
    %3108 = vmatprep.subr.bf16.mxu0 0
    %3109 = vmatpush1.bf16.msra.mxu0 0
    %3110 = vmatprep.subr.bf16.mxu0 0
    %3111 = vmatpush1.bf16.msra.mxu0 0
    %3112 = vmatprep.subr.bf16.mxu0 0
    %3113 = vmatpush1.bf16.msra.mxu0 0
    %3114 = vmatprep.subr.bf16.mxu0 0
    %3115 = vmatpush1.bf16.msra.mxu0 0
    %3116 = vmatprep.subr.bf16.mxu0 0
    %3117 = vmatpush1.bf16.msra.mxu0 0
    %3118 = vmatprep.subr.bf16.mxu0 0
    %3119 = vmatpush1.bf16.msra.mxu0 0
    %3120 = vmatprep.subr.bf16.mxu0 0
    %3121 = vmatpush1.bf16.msra.mxu0 0
    %3122 = vmatprep.subr.bf16.mxu0 0
    %3123 = vmatpush1.bf16.msra.mxu0 0
    %3124 = vmatprep.subr.bf16.mxu0 0
    %3125 = vmatpush1.bf16.msra.mxu0 0
    %3126 = vmatprep.mubr.bf16.mxu0 0
    %3127 = vmatmul.mubr.bf16.gmra.mrb[0].mxu0 %v3092
    %v3128 = vpop.f32.mrb[0].mxu0
    %v3129 = vadd.f32 0.0, %v3128
    %v3130 = vpop.f32.mrb[0].mxu0
    %v3131 = vpop.f32.mrb[0].mxu0
    %v3132 = vadd.f32 0.0, %v3131
    %v3133 = vpop.f32.mrb[0].mxu0
    %3134 = vdwg.mxu0
    %v3136 = vsel %vm2326, %v2689, 0
    %3138 = vmatprep.subr.bf16.mxu0 0
    %3139 = vmatpush1.bf16.msra.mxu0 %v1568
    %3140 = vmatprep.subr.bf16.mxu0 0
    %3141 = vmatpush1.bf16.msra.mxu0 0
    %3142 = vmatprep.subr.bf16.mxu0 0
    %3143 = vmatpush1.bf16.msra.mxu0 0
    %3144 = vmatprep.subr.bf16.mxu0 0
    %3145 = vmatpush1.bf16.msra.mxu0 0
    %3146 = vmatprep.subr.bf16.mxu0 0
    %3147 = vmatpush1.bf16.msra.mxu0 0
    %3148 = vmatprep.subr.bf16.mxu0 0
    %3149 = vmatpush1.bf16.msra.mxu0 0
    %3150 = vmatprep.subr.bf16.mxu0 0
    %3151 = vmatpush1.bf16.msra.mxu0 0
    %3152 = vmatprep.subr.bf16.mxu0 0
    %3153 = vmatpush1.bf16.msra.mxu0 0
    %3154 = vmatprep.subr.bf16.mxu0 0
    %3155 = vmatpush1.bf16.msra.mxu0 0
    %3156 = vmatprep.subr.bf16.mxu0 0
    %3157 = vmatpush1.bf16.msra.mxu0 0
    %3158 = vmatprep.subr.bf16.mxu0 0
    %3159 = vmatpush1.bf16.msra.mxu0 0
    %3160 = vmatprep.subr.bf16.mxu0 0
    %3161 = vmatpush1.bf16.msra.mxu0 0
    %3162 = vmatprep.subr.bf16.mxu0 0
    %3163 = vmatpush1.bf16.msra.mxu0 0
    %3164 = vmatprep.subr.bf16.mxu0 0
    %3165 = vmatpush1.bf16.msra.mxu0 0
    %3166 = vmatprep.subr.bf16.mxu0 0
    %3167 = vmatpush1.bf16.msra.mxu0 0
    %3168 = vmatprep.subr.bf16.mxu0 0
    %3169 = vmatpush1.bf16.msra.mxu0 0
    %3170 = vmatprep.mubr.bf16.mxu0 0
    %3171 = vmatmul.mubr.bf16.gmra.mrb[0].mxu0 %v3136
    %v3172 = vpop.f32.mrb[0].mxu0
    %v3173 = vadd.f32 0.0, %v3172
    %v3174 = vpop.f32.mrb[0].mxu0
    %v3175 = vpop.f32.mrb[0].mxu0
    %v3176 = vadd.f32 0.0, %v3175
    %v3177 = vpop.f32.mrb[0].mxu0
    %3178 = vdwg.mxu0
    %v3180 = vsel %vm2326, %v2690, 0
    %3182 = vmatprep.subr.bf16.mxu0 0
    %3183 = vmatpush1.bf16.msra.mxu0 %v1569
    %3184 = vmatprep.subr.bf16.mxu0 0
    %3185 = vmatpush1.bf16.msra.mxu0 0
    %3186 = vmatprep.subr.bf16.mxu0 0
    %3187 = vmatpush1.bf16.msra.mxu0 0
    %3188 = vmatprep.subr.bf16.mxu0 0
    %3189 = vmatpush1.bf16.msra.mxu0 0
    %3190 = vmatprep.subr.bf16.mxu0 0
    %3191 = vmatpush1.bf16.msra.mxu0 0
    %3192 = vmatprep.subr.bf16.mxu0 0
    %3193 = vmatpush1.bf16.msra.mxu0 0
    %3194 = vmatprep.subr.bf16.mxu0 0
    %3195 = vmatpush1.bf16.msra.mxu0 0
    %3196 = vmatprep.subr.bf16.mxu0 0
    %3197 = vmatpush1.bf16.msra.mxu0 0
    %3198 = vmatprep.subr.bf16.mxu0 0
    %3199 = vmatpush1.bf16.msra.mxu0 0
    %3200 = vmatprep.subr.bf16.mxu0 0
    %3201 = vmatpush1.bf16.msra.mxu0 0
    %3202 = vmatprep.subr.bf16.mxu0 0
    %3203 = vmatpush1.bf16.msra.mxu0 0
    %3204 = vmatprep.subr.bf16.mxu0 0
    %3205 = vmatpush1.bf16.msra.mxu0 0
    %3206 = vmatprep.subr.bf16.mxu0 0
    %3207 = vmatpush1.bf16.msra.mxu0 0
    %3208 = vmatprep.subr.bf16.mxu0 0
    %3209 = vmatpush1.bf16.msra.mxu0 0
    %3210 = vmatprep.subr.bf16.mxu0 0
    %3211 = vmatpush1.bf16.msra.mxu0 0
    %3212 = vmatprep.subr.bf16.mxu0 0
    %3213 = vmatpush1.bf16.msra.mxu0 0
    %3214 = vmatprep.mubr.bf16.mxu0 0
    %3215 = vmatmul.mubr.bf16.gmra.mrb[0].mxu0 %v3180
    %v3216 = vpop.f32.mrb[0].mxu0
    %v3217 = vadd.f32 0.0, %v3216
    %v3218 = vpop.f32.mrb[0].mxu0
    %v3219 = vpop.f32.mrb[0].mxu0
    %v3220 = vadd.f32 0.0, %v3219
    %v3221 = vpop.f32.mrb[0].mxu0
    %3222 = vdwg.mxu0
    %v3224 = vsel %vm2326, %v2691, 0
    %3226 = vmatprep.subr.bf16.mxu0 0
    %3227 = vmatpush1.bf16.msra.mxu0 %v1570
    %3228 = vmatprep.subr.bf16.mxu0 0
    %3229 = vmatpush1.bf16.msra.mxu0 0
    %3230 = vmatprep.subr.bf16.mxu0 0
    %3231 = vmatpush1.bf16.msra.mxu0 0
    %3232 = vmatprep.subr.bf16.mxu0 0
    %3233 = vmatpush1.bf16.msra.mxu0 0
    %3234 = vmatprep.subr.bf16.mxu0 0
    %3235 = vmatpush1.bf16.msra.mxu0 0
    %3236 = vmatprep.subr.bf16.mxu0 0
    %3237 = vmatpush1.bf16.msra.mxu0 0
    %3238 = vmatprep.subr.bf16.mxu0 0
    %3239 = vmatpush1.bf16.msra.mxu0 0
    %3240 = vmatprep.subr.bf16.mxu0 0
    %3241 = vmatpush1.bf16.msra.mxu0 0
    %3242 = vmatprep.subr.bf16.mxu0 0
    %3243 = vmatpush1.bf16.msra.mxu0 0
    %3244 = vmatprep.subr.bf16.mxu0 0
    %3245 = vmatpush1.bf16.msra.mxu0 0
    %3246 = vmatprep.subr.bf16.mxu0 0
    %3247 = vmatpush1.bf16.msra.mxu0 0
    %3248 = vmatprep.subr.bf16.mxu0 0
    %3249 = vmatpush1.bf16.msra.mxu0 0
    %3250 = vmatprep.subr.bf16.mxu0 0
    %3251 = vmatpush1.bf16.msra.mxu0 0
    %3252 = vmatprep.subr.bf16.mxu0 0
    %3253 = vmatpush1.bf16.msra.mxu0 0
    %3254 = vmatprep.subr.bf16.mxu0 0
    %3255 = vmatpush1.bf16.msra.mxu0 0
    %3256 = vmatprep.subr.bf16.mxu0 0
    %3257 = vmatpush1.bf16.msra.mxu0 0
    %3258 = vmatprep.mubr.bf16.mxu0 0
    %3259 = vmatmul.mubr.bf16.gmra.mrb[0].mxu0 %v3224
    %v3260 = vpop.f32.mrb[0].mxu0
    %v3261 = vadd.f32 0.0, %v3260
    %v3262 = vpop.f32.mrb[0].mxu0
    %v3263 = vpop.f32.mrb[0].mxu0
    %v3264 = vadd.f32 0.0, %v3263
    %v3265 = vpop.f32.mrb[0].mxu0
    %3266 = vdwg.mxu0
    %v3268 = vsel %vm2326, %v2692, 0
    %3270 = vmatprep.subr.bf16.mxu0 0
    %3271 = vmatpush1.bf16.msra.mxu0 %v1571
    %3272 = vmatprep.subr.bf16.mxu0 0
    %3273 = vmatpush1.bf16.msra.mxu0 0
    %3274 = vmatprep.subr.bf16.mxu0 0
    %3275 = vmatpush1.bf16.msra.mxu0 0
    %3276 = vmatprep.subr.bf16.mxu0 0
    %3277 = vmatpush1.bf16.msra.mxu0 0
    %3278 = vmatprep.subr.bf16.mxu0 0
    %3279 = vmatpush1.bf16.msra.mxu0 0
    %3280 = vmatprep.subr.bf16.mxu0 0
    %3281 = vmatpush1.bf16.msra.mxu0 0
    %3282 = vmatprep.subr.bf16.mxu0 0
    %3283 = vmatpush1.bf16.msra.mxu0 0
    %3284 = vmatprep.subr.bf16.mxu0 0
    %3285 = vmatpush1.bf16.msra.mxu0 0
    %3286 = vmatprep.subr.bf16.mxu0 0
    %3287 = vmatpush1.bf16.msra.mxu0 0
    %3288 = vmatprep.subr.bf16.mxu0 0
    %3289 = vmatpush1.bf16.msra.mxu0 0
    %3290 = vmatprep.subr.bf16.mxu0 0
    %3291 = vmatpush1.bf16.msra.mxu0 0
    %3292 = vmatprep.subr.bf16.mxu0 0
    %3293 = vmatpush1.bf16.msra.mxu0 0
    %3294 = vmatprep.subr.bf16.mxu0 0
    %3295 = vmatpush1.bf16.msra.mxu0 0
    %3296 = vmatprep.subr.bf16.mxu0 0
    %3297 = vmatpush1.bf16.msra.mxu0 0
    %3298 = vmatprep.subr.bf16.mxu0 0
    %3299 = vmatpush1.bf16.msra.mxu0 0
    %3300 = vmatprep.subr.bf16.mxu0 0
    %3301 = vmatpush1.bf16.msra.mxu0 0
    %3302 = vmatprep.mubr.bf16.mxu0 0
    %3303 = vmatmul.mubr.bf16.gmra.mrb[0].mxu0 %v3268
    %v3304 = vpop.f32.mrb[0].mxu0
    %v3305 = vadd.f32 0.0, %v3304
    %v3306 = vpop.f32.mrb[0].mxu0
    %v3307 = vpop.f32.mrb[0].mxu0
    %v3308 = vadd.f32 0.0, %v3307
    %v3309 = vpop.f32.mrb[0].mxu0
    %3310 = vdwg.mxu0
    %v3312 = vsel %vm2326, %v2693, 0
    %3314 = vmatprep.subr.bf16.mxu0 0
    %3315 = vmatpush1.bf16.msra.mxu0 %v1572
    %3316 = vmatprep.subr.bf16.mxu0 0
    %3317 = vmatpush1.bf16.msra.mxu0 0
    %3318 = vmatprep.subr.bf16.mxu0 0
    %3319 = vmatpush1.bf16.msra.mxu0 0
    %3320 = vmatprep.subr.bf16.mxu0 0
    %3321 = vmatpush1.bf16.msra.mxu0 0
    %3322 = vmatprep.subr.bf16.mxu0 0
    %3323 = vmatpush1.bf16.msra.mxu0 0
    %3324 = vmatprep.subr.bf16.mxu0 0
    %3325 = vmatpush1.bf16.msra.mxu0 0
    %3326 = vmatprep.subr.bf16.mxu0 0
    %3327 = vmatpush1.bf16.msra.mxu0 0
    %3328 = vmatprep.subr.bf16.mxu0 0
    %3329 = vmatpush1.bf16.msra.mxu0 0
    %3330 = vmatprep.subr.bf16.mxu0 0
    %3331 = vmatpush1.bf16.msra.mxu0 0
    %3332 = vmatprep.subr.bf16.mxu0 0
    %3333 = vmatpush1.bf16.msra.mxu0 0
    %3334 = vmatprep.subr.bf16.mxu0 0
    %3335 = vmatpush1.bf16.msra.mxu0 0
    %3336 = vmatprep.subr.bf16.mxu0 0
    %3337 = vmatpush1.bf16.msra.mxu0 0
    %3338 = vmatprep.subr.bf16.mxu0 0
    %3339 = vmatpush1.bf16.msra.mxu0 0
    %3340 = vmatprep.subr.bf16.mxu0 0
    %3341 = vmatpush1.bf16.msra.mxu0 0
    %3342 = vmatprep.subr.bf16.mxu0 0
    %3343 = vmatpush1.bf16.msra.mxu0 0
    %3344 = vmatprep.subr.bf16.mxu0 0
    %3345 = vmatpush1.bf16.msra.mxu0 0
    %3346 = vmatprep.mubr.bf16.mxu0 0
    %3347 = vmatmul.mubr.bf16.gmra.mrb[0].mxu0 %v3312
    %v3348 = vpop.f32.mrb[0].mxu0
    %v3349 = vadd.f32 0.0, %v3348
    %v3350 = vpop.f32.mrb[0].mxu0
    %v3351 = vpop.f32.mrb[0].mxu0
    %v3352 = vadd.f32 0.0, %v3351
    %v3353 = vpop.f32.mrb[0].mxu0
    %3354 = vdwg.mxu0
    %v3356 = vsel %vm2326, %v2694, 0
    %3358 = vmatprep.subr.bf16.mxu0 0
    %3359 = vmatpush1.bf16.msra.mxu0 %v1573
    %3360 = vmatprep.subr.bf16.mxu0 0
    %3361 = vmatpush1.bf16.msra.mxu0 0
    %3362 = vmatprep.subr.bf16.mxu0 0
    %3363 = vmatpush1.bf16.msra.mxu0 0
    %3364 = vmatprep.subr.bf16.mxu0 0
    %3365 = vmatpush1.bf16.msra.mxu0 0
    %3366 = vmatprep.subr.bf16.mxu0 0
    %3367 = vmatpush1.bf16.msra.mxu0 0
    %3368 = vmatprep.subr.bf16.mxu0 0
    %3369 = vmatpush1.bf16.msra.mxu0 0
    %3370 = vmatprep.subr.bf16.mxu0 0
    %3371 = vmatpush1.bf16.msra.mxu0 0
    %3372 = vmatprep.subr.bf16.mxu0 0
    %3373 = vmatpush1.bf16.msra.mxu0 0
    %3374 = vmatprep.subr.bf16.mxu0 0
    %3375 = vmatpush1.bf16.msra.mxu0 0
    %3376 = vmatprep.subr.bf16.mxu0 0
    %3377 = vmatpush1.bf16.msra.mxu0 0
    %3378 = vmatprep.subr.bf16.mxu0 0
    %3379 = vmatpush1.bf16.msra.mxu0 0
    %3380 = vmatprep.subr.bf16.mxu0 0
    %3381 = vmatpush1.bf16.msra.mxu0 0
    %3382 = vmatprep.subr.bf16.mxu0 0
    %3383 = vmatpush1.bf16.msra.mxu0 0
    %3384 = vmatprep.subr.bf16.mxu0 0
    %3385 = vmatpush1.bf16.msra.mxu0 0
    %3386 = vmatprep.subr.bf16.mxu0 0
    %3387 = vmatpush1.bf16.msra.mxu0 0
    %3388 = vmatprep.subr.bf16.mxu0 0
    %3389 = vmatpush1.bf16.msra.mxu0 0
    %3390 = vmatprep.mubr.bf16.mxu0 0
    %3391 = vmatmul.mubr.bf16.gmra.mrb[0].mxu0 %v3356
    %v3392 = vpop.f32.mrb[0].mxu0
    %v3393 = vadd.f32 0.0, %v3392
    %v3394 = vpop.f32.mrb[0].mxu0
    %v3395 = vpop.f32.mrb[0].mxu0
    %v3396 = vadd.f32 0.0, %v3395
    %v3397 = vpop.f32.mrb[0].mxu0
    %3398 = vdwg.mxu0
    %3399 = vst.msk [vmem:[#allocation2] sm:$0xff] %vm272, %v2733
    %3400 = vst.msk [vmem:[#allocation2 + $0x8] sm:$0xff] %vm272, %v2736
    %3401 = vst.msk [vmem:[#allocation2 + $0x10] sm:$0xff] %vm272, %v2777
    %3402 = vst.msk [vmem:[#allocation2 + $0x18] sm:$0xff] %vm272, %v2780
    %3403 = vst.msk [vmem:[#allocation2 + $0x20] sm:$0xff] %vm272, %v2821
    %3404 = vst.msk [vmem:[#allocation2 + $0x28] sm:$0xff] %vm272, %v2824
    %3405 = vst.msk [vmem:[#allocation2 + $0x30] sm:$0xff] %vm272, %v2865
    %3406 = vst.msk [vmem:[#allocation2 + $0x38] sm:$0xff] %vm272, %v2868
    %3407 = vst.msk [vmem:[#allocation2 + $0x40] sm:$0xff] %vm272, %v2909
    %3408 = vst.msk [vmem:[#allocation2 + $0x48] sm:$0xff] %vm272, %v2912
    %3409 = vst.msk [vmem:[#allocation2 + $0x50] sm:$0xff] %vm272, %v2953
    %3410 = vst.msk [vmem:[#allocation2 + $0x58] sm:$0xff] %vm272, %v2956
    %3411 = vst.msk [vmem:[#allocation2 + $0x60] sm:$0xff] %vm272, %v2997
    %3412 = vst.msk [vmem:[#allocation2 + $0x68] sm:$0xff] %vm272, %v3000
    %3413 = vst.msk [vmem:[#allocation2 + $0x70] sm:$0xff] %vm272, %v3041
    %3414 = vst.msk [vmem:[#allocation2 + $0x78] sm:$0xff] %vm272, %v3044
    %3415 = vst.msk [vmem:[#allocation2 + $0x80] sm:$0xff] %vm272, %v3085
    %3416 = vst.msk [vmem:[#allocation2 + $0x88] sm:$0xff] %vm272, %v3088
    %3417 = vst.msk [vmem:[#allocation2 + $0x90] sm:$0xff] %vm272, %v3129
    %3418 = vst.msk [vmem:[#allocation2 + $0x98] sm:$0xff] %vm272, %v3132
    %3419 = vst.msk [vmem:[#allocation2 + $0xa0] sm:$0xff] %vm272, %v3173
    %3420 = vst.msk [vmem:[#allocation2 + $0xa8] sm:$0xff] %vm272, %v3176
    %3421 = vst.msk [vmem:[#allocation2 + $0xb0] sm:$0xff] %vm272, %v3217
    %3422 = vst.msk [vmem:[#allocation2 + $0xb8] sm:$0xff] %vm272, %v3220
    %3423 = vst.msk [vmem:[#allocation2 + $0xc0] sm:$0xff] %vm272, %v3261
    %3424 = vst.msk [vmem:[#allocation2 + $0xc8] sm:$0xff] %vm272, %v3264
    %3425 = vst.msk [vmem:[#allocation2 + $0xd0] sm:$0xff] %vm272, %v3305
    %3426 = vst.msk [vmem:[#allocation2 + $0xd8] sm:$0xff] %vm272, %v3308
    %3427 = vst.msk [vmem:[#allocation2 + $0xe0] sm:$0xff] %vm272, %v3349
    %3428 = vst.msk [vmem:[#allocation2 + $0xe8] sm:$0xff] %vm272, %v3352
    %3429 = vst.msk [vmem:[#allocation2 + $0xf0] sm:$0xff] %vm272, %v3393
    %3430 = vst.msk [vmem:[#allocation2 + $0xf8] sm:$0xff] %vm272, %v3396
    %3432 = vrot.lane.b32.xlu0 %v1526, 96
    %v3433 = vpop.permute.xlu0 %3432
    %3435 = vrot.lane.b32.xlu0 %v1542, 96
    %v3436 = vpop.permute.xlu0 %3435
    %v3438 = vsel %vm272, %v3433, 0
    %v3441 = vsel %vm272, %v3436, 0
    %3443 = vmatprep.subr.bf16.mxu0 0
    %3444 = vmatpush1.bf16.xpose.msra.mxu0 %v3441
    %3445 = vmatprep.subr.bf16.mxu0 0
    %3446 = vmatpush1.bf16.xpose.msra.mxu0 0
    %3447 = vmatprep.subr.bf16.mxu0 0
    %3448 = vmatpush1.bf16.xpose.msra.mxu0 0
    %3449 = vmatprep.subr.bf16.mxu0 0
    %3450 = vmatpush1.bf16.xpose.msra.mxu0 0
    %3451 = vmatprep.subr.bf16.mxu0 0
    %3452 = vmatpush1.bf16.xpose.msra.mxu0 0
    %3453 = vmatprep.subr.bf16.mxu0 0
    %3454 = vmatpush1.bf16.xpose.msra.mxu0 0
    %3455 = vmatprep.subr.bf16.mxu0 0
    %3456 = vmatpush1.bf16.xpose.msra.mxu0 0
    %3457 = vmatprep.subr.bf16.mxu0 0
    %3458 = vmatpush1.bf16.xpose.msra.mxu0 0
    %3459 = vmatprep.subr.bf16.mxu0 0
    %3460 = vmatpush1.bf16.xpose.msra.mxu0 0
    %3461 = vmatprep.subr.bf16.mxu0 0
    %3462 = vmatpush1.bf16.xpose.msra.mxu0 0
    %3463 = vmatprep.subr.bf16.mxu0 0
    %3464 = vmatpush1.bf16.xpose.msra.mxu0 0
    %3465 = vmatprep.subr.bf16.mxu0 0
    %3466 = vmatpush1.bf16.xpose.msra.mxu0 0
    %3467 = vmatprep.subr.bf16.mxu0 0
    %3468 = vmatpush1.bf16.xpose.msra.mxu0 0
    %3469 = vmatprep.subr.bf16.mxu0 0
    %3470 = vmatpush1.bf16.xpose.msra.mxu0 0
    %3471 = vmatprep.subr.bf16.mxu0 0
    %3472 = vmatpush1.bf16.xpose.msra.mxu0 0
    %3473 = vmatprep.subr.bf16.mxu0 0
    %3474 = vmatpush1.bf16.xpose.msra.mxu0 0
    %3475 = vmatprep.mubr.bf16.mxu0 0
    %3476 = vmatmul.mubr.bf16.gmra.mrb[0].mxu0 %v3438
    %v3477 = vpop.f32.mrb[0].mxu0
    %v3478 = vadd.f32 0.0, %v3477
    %v3479 = vpop.f32.mrb[0].mxu0
    %v3480 = vpop.f32.mrb[0].mxu0
    %v3481 = vadd.f32 0.0, %v3480
    %v3482 = vpop.f32.mrb[0].mxu0
    %3483 = vdwg.mxu0
    %3485 = vrot.lane.b32.xlu0 %v1527, 96
    %v3486 = vpop.permute.xlu0 %3485
    %3488 = vrot.lane.b32.xlu0 %v1543, 96
    %v3489 = vpop.permute.xlu0 %3488
    %v3491 = vsel %vm272, %v3486, 0
    %v3494 = vsel %vm272, %v3489, 0
    %3496 = vmatprep.subr.bf16.mxu0 0
    %3497 = vmatpush1.bf16.xpose.msra.mxu0 %v3494
    %3498 = vmatprep.subr.bf16.mxu0 0
    %3499 = vmatpush1.bf16.xpose.msra.mxu0 0
    %3500 = vmatprep.subr.bf16.mxu0 0
    %3501 = vmatpush1.bf16.xpose.msra.mxu0 0
    %3502 = vmatprep.subr.bf16.mxu0 0
    %3503 = vmatpush1.bf16.xpose.msra.mxu0 0
    %3504 = vmatprep.subr.bf16.mxu0 0
    %3505 = vmatpush1.bf16.xpose.msra.mxu0 0
    %3506 = vmatprep.subr.bf16.mxu0 0
    %3507 = vmatpush1.bf16.xpose.msra.mxu0 0
    %3508 = vmatprep.subr.bf16.mxu0 0
    %3509 = vmatpush1.bf16.xpose.msra.mxu0 0
    %3510 = vmatprep.subr.bf16.mxu0 0
    %3511 = vmatpush1.bf16.xpose.msra.mxu0 0
    %3512 = vmatprep.subr.bf16.mxu0 0
    %3513 = vmatpush1.bf16.xpose.msra.mxu0 0
    %3514 = vmatprep.subr.bf16.mxu0 0
    %3515 = vmatpush1.bf16.xpose.msra.mxu0 0
    %3516 = vmatprep.subr.bf16.mxu0 0
    %3517 = vmatpush1.bf16.xpose.msra.mxu0 0
    %3518 = vmatprep.subr.bf16.mxu0 0
    %3519 = vmatpush1.bf16.xpose.msra.mxu0 0
    %3520 = vmatprep.subr.bf16.mxu0 0
    %3521 = vmatpush1.bf16.xpose.msra.mxu0 0
    %3522 = vmatprep.subr.bf16.mxu0 0
    %3523 = vmatpush1.bf16.xpose.msra.mxu0 0
    %3524 = vmatprep.subr.bf16.mxu0 0
    %3525 = vmatpush1.bf16.xpose.msra.mxu0 0
    %3526 = vmatprep.subr.bf16.mxu0 0
    %3527 = vmatpush1.bf16.xpose.msra.mxu0 0
    %3528 = vmatprep.mubr.bf16.mxu0 0
    %3529 = vmatmul.mubr.bf16.gmra.mrb[0].mxu0 %v3491
    %v3530 = vpop.f32.mrb[0].mxu0
    %v3531 = vadd.f32 0.0, %v3530
    %v3532 = vpop.f32.mrb[0].mxu0
    %v3533 = vpop.f32.mrb[0].mxu0
    %v3534 = vadd.f32 0.0, %v3533
    %v3535 = vpop.f32.mrb[0].mxu0
    %3536 = vdwg.mxu0
    %3538 = vrot.lane.b32.xlu0 %v1528, 96
    %v3539 = vpop.permute.xlu0 %3538
    %3541 = vrot.lane.b32.xlu0 %v1544, 96
    %v3542 = vpop.permute.xlu0 %3541
    %v3544 = vsel %vm272, %v3539, 0
    %v3547 = vsel %vm272, %v3542, 0
    %3549 = vmatprep.subr.bf16.mxu0 0
    %3550 = vmatpush1.bf16.xpose.msra.mxu0 %v3547
    %3551 = vmatprep.subr.bf16.mxu0 0
    %3552 = vmatpush1.bf16.xpose.msra.mxu0 0
    %3553 = vmatprep.subr.bf16.mxu0 0
    %3554 = vmatpush1.bf16.xpose.msra.mxu0 0
    %3555 = vmatprep.subr.bf16.mxu0 0
    %3556 = vmatpush1.bf16.xpose.msra.mxu0 0
    %3557 = vmatprep.subr.bf16.mxu0 0
    %3558 = vmatpush1.bf16.xpose.msra.mxu0 0
    %3559 = vmatprep.subr.bf16.mxu0 0
    %3560 = vmatpush1.bf16.xpose.msra.mxu0 0
    %3561 = vmatprep.subr.bf16.mxu0 0
    %3562 = vmatpush1.bf16.xpose.msra.mxu0 0
    %3563 = vmatprep.subr.bf16.mxu0 0
    %3564 = vmatpush1.bf16.xpose.msra.mxu0 0
    %3565 = vmatprep.subr.bf16.mxu0 0
    %3566 = vmatpush1.bf16.xpose.msra.mxu0 0
    %3567 = vmatprep.subr.bf16.mxu0 0
    %3568 = vmatpush1.bf16.xpose.msra.mxu0 0
    %3569 = vmatprep.subr.bf16.mxu0 0
    %3570 = vmatpush1.bf16.xpose.msra.mxu0 0
    %3571 = vmatprep.subr.bf16.mxu0 0
    %3572 = vmatpush1.bf16.xpose.msra.mxu0 0
    %3573 = vmatprep.subr.bf16.mxu0 0
    %3574 = vmatpush1.bf16.xpose.msra.mxu0 0
    %3575 = vmatprep.subr.bf16.mxu0 0
    %3576 = vmatpush1.bf16.xpose.msra.mxu0 0
    %3577 = vmatprep.subr.bf16.mxu0 0
    %3578 = vmatpush1.bf16.xpose.msra.mxu0 0
    %3579 = vmatprep.subr.bf16.mxu0 0
    %3580 = vmatpush1.bf16.xpose.msra.mxu0 0
    %3581 = vmatprep.mubr.bf16.mxu0 0
    %3582 = vmatmul.mubr.bf16.gmra.mrb[0].mxu0 %v3544
    %v3583 = vpop.f32.mrb[0].mxu0
    %v3584 = vadd.f32 0.0, %v3583
    %v3585 = vpop.f32.mrb[0].mxu0
    %v3586 = vpop.f32.mrb[0].mxu0
    %v3587 = vadd.f32 0.0, %v3586
    %v3588 = vpop.f32.mrb[0].mxu0
    %3589 = vdwg.mxu0
    %3591 = vrot.lane.b32.xlu0 %v1529, 96
    %v3592 = vpop.permute.xlu0 %3591
    %3594 = vrot.lane.b32.xlu0 %v1545, 96
    %v3595 = vpop.permute.xlu0 %3594
    %v3597 = vsel %vm272, %v3592, 0
    %v3600 = vsel %vm272, %v3595, 0
    %3602 = vmatprep.subr.bf16.mxu0 0
    %3603 = vmatpush1.bf16.xpose.msra.mxu0 %v3600
    %3604 = vmatprep.subr.bf16.mxu0 0
    %3605 = vmatpush1.bf16.xpose.msra.mxu0 0
    %3606 = vmatprep.subr.bf16.mxu0 0
    %3607 = vmatpush1.bf16.xpose.msra.mxu0 0
    %3608 = vmatprep.subr.bf16.mxu0 0
    %3609 = vmatpush1.bf16.xpose.msra.mxu0 0
    %3610 = vmatprep.subr.bf16.mxu0 0
    %3611 = vmatpush1.bf16.xpose.msra.mxu0 0
    %3612 = vmatprep.subr.bf16.mxu0 0
    %3613 = vmatpush1.bf16.xpose.msra.mxu0 0
    %3614 = vmatprep.subr.bf16.mxu0 0
    %3615 = vmatpush1.bf16.xpose.msra.mxu0 0
    %3616 = vmatprep.subr.bf16.mxu0 0
    %3617 = vmatpush1.bf16.xpose.msra.mxu0 0
    %3618 = vmatprep.subr.bf16.mxu0 0
    %3619 = vmatpush1.bf16.xpose.msra.mxu0 0
    %3620 = vmatprep.subr.bf16.mxu0 0
    %3621 = vmatpush1.bf16.xpose.msra.mxu0 0
    %3622 = vmatprep.subr.bf16.mxu0 0
    %3623 = vmatpush1.bf16.xpose.msra.mxu0 0
    %3624 = vmatprep.subr.bf16.mxu0 0
    %3625 = vmatpush1.bf16.xpose.msra.mxu0 0
    %3626 = vmatprep.subr.bf16.mxu0 0
    %3627 = vmatpush1.bf16.xpose.msra.mxu0 0
    %3628 = vmatprep.subr.bf16.mxu0 0
    %3629 = vmatpush1.bf16.xpose.msra.mxu0 0
    %3630 = vmatprep.subr.bf16.mxu0 0
    %3631 = vmatpush1.bf16.xpose.msra.mxu0 0
    %3632 = vmatprep.subr.bf16.mxu0 0
    %3633 = vmatpush1.bf16.xpose.msra.mxu0 0
    %3634 = vmatprep.mubr.bf16.mxu0 0
    %3635 = vmatmul.mubr.bf16.gmra.mrb[0].mxu0 %v3597
    %v3636 = vpop.f32.mrb[0].mxu0
    %v3637 = vadd.f32 0.0, %v3636
    %v3638 = vpop.f32.mrb[0].mxu0
    %v3639 = vpop.f32.mrb[0].mxu0
    %v3640 = vadd.f32 0.0, %v3639
    %v3641 = vpop.f32.mrb[0].mxu0
    %3642 = vdwg.mxu0
    %3644 = vrot.lane.b32.xlu0 %v1530, 96
    %v3645 = vpop.permute.xlu0 %3644
    %3647 = vrot.lane.b32.xlu0 %v1546, 96
    %v3648 = vpop.permute.xlu0 %3647
    %v3650 = vsel %vm272, %v3645, 0
    %v3653 = vsel %vm272, %v3648, 0
    %3655 = vmatprep.subr.bf16.mxu0 0
    %3656 = vmatpush1.bf16.xpose.msra.mxu0 %v3653
    %3657 = vmatprep.subr.bf16.mxu0 0
    %3658 = vmatpush1.bf16.xpose.msra.mxu0 0
    %3659 = vmatprep.subr.bf16.mxu0 0
    %3660 = vmatpush1.bf16.xpose.msra.mxu0 0
    %3661 = vmatprep.subr.bf16.mxu0 0
    %3662 = vmatpush1.bf16.xpose.msra.mxu0 0
    %3663 = vmatprep.subr.bf16.mxu0 0
    %3664 = vmatpush1.bf16.xpose.msra.mxu0 0
    %3665 = vmatprep.subr.bf16.mxu0 0
    %3666 = vmatpush1.bf16.xpose.msra.mxu0 0
    %3667 = vmatprep.subr.bf16.mxu0 0
    %3668 = vmatpush1.bf16.xpose.msra.mxu0 0
    %3669 = vmatprep.subr.bf16.mxu0 0
    %3670 = vmatpush1.bf16.xpose.msra.mxu0 0
    %3671 = vmatprep.subr.bf16.mxu0 0
    %3672 = vmatpush1.bf16.xpose.msra.mxu0 0
    %3673 = vmatprep.subr.bf16.mxu0 0
    %3674 = vmatpush1.bf16.xpose.msra.mxu0 0
    %3675 = vmatprep.subr.bf16.mxu0 0
    %3676 = vmatpush1.bf16.xpose.msra.mxu0 0
    %3677 = vmatprep.subr.bf16.mxu0 0
    %3678 = vmatpush1.bf16.xpose.msra.mxu0 0
    %3679 = vmatprep.subr.bf16.mxu0 0
    %3680 = vmatpush1.bf16.xpose.msra.mxu0 0
    %3681 = vmatprep.subr.bf16.mxu0 0
    %3682 = vmatpush1.bf16.xpose.msra.mxu0 0
    %3683 = vmatprep.subr.bf16.mxu0 0
    %3684 = vmatpush1.bf16.xpose.msra.mxu0 0
    %3685 = vmatprep.subr.bf16.mxu0 0
    %3686 = vmatpush1.bf16.xpose.msra.mxu0 0
    %3687 = vmatprep.mubr.bf16.mxu0 0
    %3688 = vmatmul.mubr.bf16.gmra.mrb[0].mxu0 %v3650
    %v3689 = vpop.f32.mrb[0].mxu0
    %v3690 = vadd.f32 0.0, %v3689
    %v3691 = vpop.f32.mrb[0].mxu0
    %v3692 = vpop.f32.mrb[0].mxu0
    %v3693 = vadd.f32 0.0, %v3692
    %v3694 = vpop.f32.mrb[0].mxu0
    %3695 = vdwg.mxu0
    %3697 = vrot.lane.b32.xlu0 %v1531, 96
    %v3698 = vpop.permute.xlu0 %3697
    %3700 = vrot.lane.b32.xlu0 %v1547, 96
    %v3701 = vpop.permute.xlu0 %3700
    %v3703 = vsel %vm272, %v3698, 0
    %v3706 = vsel %vm272, %v3701, 0
    %3708 = vmatprep.subr.bf16.mxu0 0
    %3709 = vmatpush1.bf16.xpose.msra.mxu0 %v3706
    %3710 = vmatprep.subr.bf16.mxu0 0
    %3711 = vmatpush1.bf16.xpose.msra.mxu0 0
    %3712 = vmatprep.subr.bf16.mxu0 0
    %3713 = vmatpush1.bf16.xpose.msra.mxu0 0
    %3714 = vmatprep.subr.bf16.mxu0 0
    %3715 = vmatpush1.bf16.xpose.msra.mxu0 0
    %3716 = vmatprep.subr.bf16.mxu0 0
    %3717 = vmatpush1.bf16.xpose.msra.mxu0 0
    %3718 = vmatprep.subr.bf16.mxu0 0
    %3719 = vmatpush1.bf16.xpose.msra.mxu0 0
    %3720 = vmatprep.subr.bf16.mxu0 0
    %3721 = vmatpush1.bf16.xpose.msra.mxu0 0
    %3722 = vmatprep.subr.bf16.mxu0 0
    %3723 = vmatpush1.bf16.xpose.msra.mxu0 0
    %3724 = vmatprep.subr.bf16.mxu0 0
    %3725 = vmatpush1.bf16.xpose.msra.mxu0 0
    %3726 = vmatprep.subr.bf16.mxu0 0
    %3727 = vmatpush1.bf16.xpose.msra.mxu0 0
    %3728 = vmatprep.subr.bf16.mxu0 0
    %3729 = vmatpush1.bf16.xpose.msra.mxu0 0
    %3730 = vmatprep.subr.bf16.mxu0 0
    %3731 = vmatpush1.bf16.xpose.msra.mxu0 0
    %3732 = vmatprep.subr.bf16.mxu0 0
    %3733 = vmatpush1.bf16.xpose.msra.mxu0 0
    %3734 = vmatprep.subr.bf16.mxu0 0
    %3735 = vmatpush1.bf16.xpose.msra.mxu0 0
    %3736 = vmatprep.subr.bf16.mxu0 0
    %3737 = vmatpush1.bf16.xpose.msra.mxu0 0
    %3738 = vmatprep.subr.bf16.mxu0 0
    %3739 = vmatpush1.bf16.xpose.msra.mxu0 0
    %3740 = vmatprep.mubr.bf16.mxu0 0
    %3741 = vmatmul.mubr.bf16.gmra.mrb[0].mxu0 %v3703
    %v3742 = vpop.f32.mrb[0].mxu0
    %v3743 = vadd.f32 0.0, %v3742
    %v3744 = vpop.f32.mrb[0].mxu0
    %v3745 = vpop.f32.mrb[0].mxu0
    %v3746 = vadd.f32 0.0, %v3745
    %v3747 = vpop.f32.mrb[0].mxu0
    %3748 = vdwg.mxu0
    %3750 = vrot.lane.b32.xlu0 %v1532, 96
    %v3751 = vpop.permute.xlu0 %3750
    %3753 = vrot.lane.b32.xlu0 %v1548, 96
    %v3754 = vpop.permute.xlu0 %3753
    %v3756 = vsel %vm272, %v3751, 0
    %v3759 = vsel %vm272, %v3754, 0
    %3761 = vmatprep.subr.bf16.mxu0 0
    %3762 = vmatpush1.bf16.xpose.msra.mxu0 %v3759
    %3763 = vmatprep.subr.bf16.mxu0 0
    %3764 = vmatpush1.bf16.xpose.msra.mxu0 0
    %3765 = vmatprep.subr.bf16.mxu0 0
    %3766 = vmatpush1.bf16.xpose.msra.mxu0 0
    %3767 = vmatprep.subr.bf16.mxu0 0
    %3768 = vmatpush1.bf16.xpose.msra.mxu0 0
    %3769 = vmatprep.subr.bf16.mxu0 0
    %3770 = vmatpush1.bf16.xpose.msra.mxu0 0
    %3771 = vmatprep.subr.bf16.mxu0 0
    %3772 = vmatpush1.bf16.xpose.msra.mxu0 0
    %3773 = vmatprep.subr.bf16.mxu0 0
    %3774 = vmatpush1.bf16.xpose.msra.mxu0 0
    %3775 = vmatprep.subr.bf16.mxu0 0
    %3776 = vmatpush1.bf16.xpose.msra.mxu0 0
    %3777 = vmatprep.subr.bf16.mxu0 0
    %3778 = vmatpush1.bf16.xpose.msra.mxu0 0
    %3779 = vmatprep.subr.bf16.mxu0 0
    %3780 = vmatpush1.bf16.xpose.msra.mxu0 0
    %3781 = vmatprep.subr.bf16.mxu0 0
    %3782 = vmatpush1.bf16.xpose.msra.mxu0 0
    %3783 = vmatprep.subr.bf16.mxu0 0
    %3784 = vmatpush1.bf16.xpose.msra.mxu0 0
    %3785 = vmatprep.subr.bf16.mxu0 0
    %3786 = vmatpush1.bf16.xpose.msra.mxu0 0
    %3787 = vmatprep.subr.bf16.mxu0 0
    %3788 = vmatpush1.bf16.xpose.msra.mxu0 0
    %3789 = vmatprep.subr.bf16.mxu0 0
    %3790 = vmatpush1.bf16.xpose.msra.mxu0 0
    %3791 = vmatprep.subr.bf16.mxu0 0
    %3792 = vmatpush1.bf16.xpose.msra.mxu0 0
    %3793 = vmatprep.mubr.bf16.mxu0 0
    %3794 = vmatmul.mubr.bf16.gmra.mrb[0].mxu0 %v3756
    %v3795 = vpop.f32.mrb[0].mxu0
    %v3796 = vadd.f32 0.0, %v3795
    %v3797 = vpop.f32.mrb[0].mxu0
    %v3798 = vpop.f32.mrb[0].mxu0
    %v3799 = vadd.f32 0.0, %v3798
    %v3800 = vpop.f32.mrb[0].mxu0
    %3801 = vdwg.mxu0
    %3803 = vrot.lane.b32.xlu0 %v1533, 96
    %v3804 = vpop.permute.xlu0 %3803
    %3806 = vrot.lane.b32.xlu0 %v1549, 96
    %v3807 = vpop.permute.xlu0 %3806
    %v3809 = vsel %vm272, %v3804, 0
    %v3812 = vsel %vm272, %v3807, 0
    %3814 = vmatprep.subr.bf16.mxu0 0
    %3815 = vmatpush1.bf16.xpose.msra.mxu0 %v3812
    %3816 = vmatprep.subr.bf16.mxu0 0
    %3817 = vmatpush1.bf16.xpose.msra.mxu0 0
    %3818 = vmatprep.subr.bf16.mxu0 0
    %3819 = vmatpush1.bf16.xpose.msra.mxu0 0
    %3820 = vmatprep.subr.bf16.mxu0 0
    %3821 = vmatpush1.bf16.xpose.msra.mxu0 0
    %3822 = vmatprep.subr.bf16.mxu0 0
    %3823 = vmatpush1.bf16.xpose.msra.mxu0 0
    %3824 = vmatprep.subr.bf16.mxu0 0
    %3825 = vmatpush1.bf16.xpose.msra.mxu0 0
    %3826 = vmatprep.subr.bf16.mxu0 0
    %3827 = vmatpush1.bf16.xpose.msra.mxu0 0
    %3828 = vmatprep.subr.bf16.mxu0 0
    %3829 = vmatpush1.bf16.xpose.msra.mxu0 0
    %3830 = vmatprep.subr.bf16.mxu0 0
    %3831 = vmatpush1.bf16.xpose.msra.mxu0 0
    %3832 = vmatprep.subr.bf16.mxu0 0
    %3833 = vmatpush1.bf16.xpose.msra.mxu0 0
    %3834 = vmatprep.subr.bf16.mxu0 0
    %3835 = vmatpush1.bf16.xpose.msra.mxu0 0
    %3836 = vmatprep.subr.bf16.mxu0 0
    %3837 = vmatpush1.bf16.xpose.msra.mxu0 0
    %3838 = vmatprep.subr.bf16.mxu0 0
    %3839 = vmatpush1.bf16.xpose.msra.mxu0 0
    %3840 = vmatprep.subr.bf16.mxu0 0
    %3841 = vmatpush1.bf16.xpose.msra.mxu0 0
    %3842 = vmatprep.subr.bf16.mxu0 0
    %3843 = vmatpush1.bf16.xpose.msra.mxu0 0
    %3844 = vmatprep.subr.bf16.mxu0 0
    %3845 = vmatpush1.bf16.xpose.msra.mxu0 0
    %3846 = vmatprep.mubr.bf16.mxu0 0
    %3847 = vmatmul.mubr.bf16.gmra.mrb[0].mxu0 %v3809
    %v3848 = vpop.f32.mrb[0].mxu0
    %v3849 = vadd.f32 0.0, %v3848
    %v3850 = vpop.f32.mrb[0].mxu0
    %v3851 = vpop.f32.mrb[0].mxu0
    %v3852 = vadd.f32 0.0, %v3851
    %v3853 = vpop.f32.mrb[0].mxu0
    %3854 = vdwg.mxu0
    %3856 = vrot.lane.b32.xlu0 %v1534, 96
    %v3857 = vpop.permute.xlu0 %3856
    %3859 = vrot.lane.b32.xlu0 %v1550, 96
    %v3860 = vpop.permute.xlu0 %3859
    %v3862 = vsel %vm272, %v3857, 0
    %v3865 = vsel %vm272, %v3860, 0
    %3867 = vmatprep.subr.bf16.mxu0 0
    %3868 = vmatpush1.bf16.xpose.msra.mxu0 %v3865
    %3869 = vmatprep.subr.bf16.mxu0 0
    %3870 = vmatpush1.bf16.xpose.msra.mxu0 0
    %3871 = vmatprep.subr.bf16.mxu0 0
    %3872 = vmatpush1.bf16.xpose.msra.mxu0 0
    %3873 = vmatprep.subr.bf16.mxu0 0
    %3874 = vmatpush1.bf16.xpose.msra.mxu0 0
    %3875 = vmatprep.subr.bf16.mxu0 0
    %3876 = vmatpush1.bf16.xpose.msra.mxu0 0
    %3877 = vmatprep.subr.bf16.mxu0 0
    %3878 = vmatpush1.bf16.xpose.msra.mxu0 0
    %3879 = vmatprep.subr.bf16.mxu0 0
    %3880 = vmatpush1.bf16.xpose.msra.mxu0 0
    %3881 = vmatprep.subr.bf16.mxu0 0
    %3882 = vmatpush1.bf16.xpose.msra.mxu0 0
    %3883 = vmatprep.subr.bf16.mxu0 0
    %3884 = vmatpush1.bf16.xpose.msra.mxu0 0
    %3885 = vmatprep.subr.bf16.mxu0 0
    %3886 = vmatpush1.bf16.xpose.msra.mxu0 0
    %3887 = vmatprep.subr.bf16.mxu0 0
    %3888 = vmatpush1.bf16.xpose.msra.mxu0 0
    %3889 = vmatprep.subr.bf16.mxu0 0
    %3890 = vmatpush1.bf16.xpose.msra.mxu0 0
    %3891 = vmatprep.subr.bf16.mxu0 0
    %3892 = vmatpush1.bf16.xpose.msra.mxu0 0
    %3893 = vmatprep.subr.bf16.mxu0 0
    %3894 = vmatpush1.bf16.xpose.msra.mxu0 0
    %3895 = vmatprep.subr.bf16.mxu0 0
    %3896 = vmatpush1.bf16.xpose.msra.mxu0 0
    %3897 = vmatprep.subr.bf16.mxu0 0
    %3898 = vmatpush1.bf16.xpose.msra.mxu0 0
    %3899 = vmatprep.mubr.bf16.mxu0 0
    %3900 = vmatmul.mubr.bf16.gmra.mrb[0].mxu0 %v3862
    %v3901 = vpop.f32.mrb[0].mxu0
    %v3902 = vadd.f32 0.0, %v3901
    %v3903 = vpop.f32.mrb[0].mxu0
    %v3904 = vpop.f32.mrb[0].mxu0
    %v3905 = vadd.f32 0.0, %v3904
    %v3906 = vpop.f32.mrb[0].mxu0
    %3907 = vdwg.mxu0
    %3909 = vrot.lane.b32.xlu0 %v1535, 96
    %v3910 = vpop.permute.xlu0 %3909
    %3912 = vrot.lane.b32.xlu0 %v1551, 96
    %v3913 = vpop.permute.xlu0 %3912
    %v3915 = vsel %vm272, %v3910, 0
    %v3918 = vsel %vm272, %v3913, 0
    %3920 = vmatprep.subr.bf16.mxu0 0
    %3921 = vmatpush1.bf16.xpose.msra.mxu0 %v3918
    %3922 = vmatprep.subr.bf16.mxu0 0
    %3923 = vmatpush1.bf16.xpose.msra.mxu0 0
    %3924 = vmatprep.subr.bf16.mxu0 0
    %3925 = vmatpush1.bf16.xpose.msra.mxu0 0
    %3926 = vmatprep.subr.bf16.mxu0 0
    %3927 = vmatpush1.bf16.xpose.msra.mxu0 0
    %3928 = vmatprep.subr.bf16.mxu0 0
    %3929 = vmatpush1.bf16.xpose.msra.mxu0 0
    %3930 = vmatprep.subr.bf16.mxu0 0
    %3931 = vmatpush1.bf16.xpose.msra.mxu0 0
    %3932 = vmatprep.subr.bf16.mxu0 0
    %3933 = vmatpush1.bf16.xpose.msra.mxu0 0
    %3934 = vmatprep.subr.bf16.mxu0 0
    %3935 = vmatpush1.bf16.xpose.msra.mxu0 0
    %3936 = vmatprep.subr.bf16.mxu0 0
    %3937 = vmatpush1.bf16.xpose.msra.mxu0 0
    %3938 = vmatprep.subr.bf16.mxu0 0
    %3939 = vmatpush1.bf16.xpose.msra.mxu0 0
    %3940 = vmatprep.subr.bf16.mxu0 0
    %3941 = vmatpush1.bf16.xpose.msra.mxu0 0
    %3942 = vmatprep.subr.bf16.mxu0 0
    %3943 = vmatpush1.bf16.xpose.msra.mxu0 0
    %3944 = vmatprep.subr.bf16.mxu0 0
    %3945 = vmatpush1.bf16.xpose.msra.mxu0 0
    %3946 = vmatprep.subr.bf16.mxu0 0
    %3947 = vmatpush1.bf16.xpose.msra.mxu0 0
    %3948 = vmatprep.subr.bf16.mxu0 0
    %3949 = vmatpush1.bf16.xpose.msra.mxu0 0
    %3950 = vmatprep.subr.bf16.mxu0 0
    %3951 = vmatpush1.bf16.xpose.msra.mxu0 0
    %3952 = vmatprep.mubr.bf16.mxu0 0
    %3953 = vmatmul.mubr.bf16.gmra.mrb[0].mxu0 %v3915
    %v3954 = vpop.f32.mrb[0].mxu0
    %v3955 = vadd.f32 0.0, %v3954
    %v3956 = vpop.f32.mrb[0].mxu0
    %v3957 = vpop.f32.mrb[0].mxu0
    %v3958 = vadd.f32 0.0, %v3957
    %v3959 = vpop.f32.mrb[0].mxu0
    %3960 = vdwg.mxu0
    %3962 = vrot.lane.b32.xlu0 %v1536, 96
    %v3963 = vpop.permute.xlu0 %3962
    %3965 = vrot.lane.b32.xlu0 %v1552, 96
    %v3966 = vpop.permute.xlu0 %3965
    %v3968 = vsel %vm272, %v3963, 0
    %v3971 = vsel %vm272, %v3966, 0
    %3973 = vmatprep.subr.bf16.mxu0 0
    %3974 = vmatpush1.bf16.xpose.msra.mxu0 %v3971
    %3975 = vmatprep.subr.bf16.mxu0 0
    %3976 = vmatpush1.bf16.xpose.msra.mxu0 0
    %3977 = vmatprep.subr.bf16.mxu0 0
    %3978 = vmatpush1.bf16.xpose.msra.mxu0 0
    %3979 = vmatprep.subr.bf16.mxu0 0
    %3980 = vmatpush1.bf16.xpose.msra.mxu0 0
    %3981 = vmatprep.subr.bf16.mxu0 0
    %3982 = vmatpush1.bf16.xpose.msra.mxu0 0
    %3983 = vmatprep.subr.bf16.mxu0 0
    %3984 = vmatpush1.bf16.xpose.msra.mxu0 0
    %3985 = vmatprep.subr.bf16.mxu0 0
    %3986 = vmatpush1.bf16.xpose.msra.mxu0 0
    %3987 = vmatprep.subr.bf16.mxu0 0
    %3988 = vmatpush1.bf16.xpose.msra.mxu0 0
    %3989 = vmatprep.subr.bf16.mxu0 0
    %3990 = vmatpush1.bf16.xpose.msra.mxu0 0
    %3991 = vmatprep.subr.bf16.mxu0 0
    %3992 = vmatpush1.bf16.xpose.msra.mxu0 0
    %3993 = vmatprep.subr.bf16.mxu0 0
    %3994 = vmatpush1.bf16.xpose.msra.mxu0 0
    %3995 = vmatprep.subr.bf16.mxu0 0
    %3996 = vmatpush1.bf16.xpose.msra.mxu0 0
    %3997 = vmatprep.subr.bf16.mxu0 0
    %3998 = vmatpush1.bf16.xpose.msra.mxu0 0
    %3999 = vmatprep.subr.bf16.mxu0 0
    %4000 = vmatpush1.bf16.xpose.msra.mxu0 0
    %4001 = vmatprep.subr.bf16.mxu0 0
    %4002 = vmatpush1.bf16.xpose.msra.mxu0 0
    %4003 = vmatprep.subr.bf16.mxu0 0
    %4004 = vmatpush1.bf16.xpose.msra.mxu0 0
    %4005 = vmatprep.mubr.bf16.mxu0 0
    %4006 = vmatmul.mubr.bf16.gmra.mrb[0].mxu0 %v3968
    %v4007 = vpop.f32.mrb[0].mxu0
    %v4008 = vadd.f32 0.0, %v4007
    %v4009 = vpop.f32.mrb[0].mxu0
    %v4010 = vpop.f32.mrb[0].mxu0
    %v4011 = vadd.f32 0.0, %v4010
    %v4012 = vpop.f32.mrb[0].mxu0
    %4013 = vdwg.mxu0
    %4015 = vrot.lane.b32.xlu0 %v1537, 96
    %v4016 = vpop.permute.xlu0 %4015
    %4018 = vrot.lane.b32.xlu0 %v1553, 96
    %v4019 = vpop.permute.xlu0 %4018
    %v4021 = vsel %vm272, %v4016, 0
    %v4024 = vsel %vm272, %v4019, 0
    %4026 = vmatprep.subr.bf16.mxu0 0
    %4027 = vmatpush1.bf16.xpose.msra.mxu0 %v4024
    %4028 = vmatprep.subr.bf16.mxu0 0
    %4029 = vmatpush1.bf16.xpose.msra.mxu0 0
    %4030 = vmatprep.subr.bf16.mxu0 0
    %4031 = vmatpush1.bf16.xpose.msra.mxu0 0
    %4032 = vmatprep.subr.bf16.mxu0 0
    %4033 = vmatpush1.bf16.xpose.msra.mxu0 0
    %4034 = vmatprep.subr.bf16.mxu0 0
    %4035 = vmatpush1.bf16.xpose.msra.mxu0 0
    %4036 = vmatprep.subr.bf16.mxu0 0
    %4037 = vmatpush1.bf16.xpose.msra.mxu0 0
    %4038 = vmatprep.subr.bf16.mxu0 0
    %4039 = vmatpush1.bf16.xpose.msra.mxu0 0
    %4040 = vmatprep.subr.bf16.mxu0 0
    %4041 = vmatpush1.bf16.xpose.msra.mxu0 0
    %4042 = vmatprep.subr.bf16.mxu0 0
    %4043 = vmatpush1.bf16.xpose.msra.mxu0 0
    %4044 = vmatprep.subr.bf16.mxu0 0
    %4045 = vmatpush1.bf16.xpose.msra.mxu0 0
    %4046 = vmatprep.subr.bf16.mxu0 0
    %4047 = vmatpush1.bf16.xpose.msra.mxu0 0
    %4048 = vmatprep.subr.bf16.mxu0 0
    %4049 = vmatpush1.bf16.xpose.msra.mxu0 0
    %4050 = vmatprep.subr.bf16.mxu0 0
    %4051 = vmatpush1.bf16.xpose.msra.mxu0 0
    %4052 = vmatprep.subr.bf16.mxu0 0
    %4053 = vmatpush1.bf16.xpose.msra.mxu0 0
    %4054 = vmatprep.subr.bf16.mxu0 0
    %4055 = vmatpush1.bf16.xpose.msra.mxu0 0
    %4056 = vmatprep.subr.bf16.mxu0 0
    %4057 = vmatpush1.bf16.xpose.msra.mxu0 0
    %4058 = vmatprep.mubr.bf16.mxu0 0
    %4059 = vmatmul.mubr.bf16.gmra.mrb[0].mxu0 %v4021
    %v4060 = vpop.f32.mrb[0].mxu0
    %v4061 = vadd.f32 0.0, %v4060
    %v4062 = vpop.f32.mrb[0].mxu0
    %v4063 = vpop.f32.mrb[0].mxu0
    %v4064 = vadd.f32 0.0, %v4063
    %v4065 = vpop.f32.mrb[0].mxu0
    %4066 = vdwg.mxu0
    %4068 = vrot.lane.b32.xlu0 %v1538, 96
    %v4069 = vpop.permute.xlu0 %4068
    %4071 = vrot.lane.b32.xlu0 %v1554, 96
    %v4072 = vpop.permute.xlu0 %4071
    %v4074 = vsel %vm272, %v4069, 0
    %v4077 = vsel %vm272, %v4072, 0
    %4079 = vmatprep.subr.bf16.mxu0 0
    %4080 = vmatpush1.bf16.xpose.msra.mxu0 %v4077
    %4081 = vmatprep.subr.bf16.mxu0 0
    %4082 = vmatpush1.bf16.xpose.msra.mxu0 0
    %4083 = vmatprep.subr.bf16.mxu0 0
    %4084 = vmatpush1.bf16.xpose.msra.mxu0 0
    %4085 = vmatprep.subr.bf16.mxu0 0
    %4086 = vmatpush1.bf16.xpose.msra.mxu0 0
    %4087 = vmatprep.subr.bf16.mxu0 0
    %4088 = vmatpush1.bf16.xpose.msra.mxu0 0
    %4089 = vmatprep.subr.bf16.mxu0 0
    %4090 = vmatpush1.bf16.xpose.msra.mxu0 0
    %4091 = vmatprep.subr.bf16.mxu0 0
    %4092 = vmatpush1.bf16.xpose.msra.mxu0 0
    %4093 = vmatprep.subr.bf16.mxu0 0
    %4094 = vmatpush1.bf16.xpose.msra.mxu0 0
    %4095 = vmatprep.subr.bf16.mxu0 0
    %4096 = vmatpush1.bf16.xpose.msra.mxu0 0
    %4097 = vmatprep.subr.bf16.mxu0 0
    %4098 = vmatpush1.bf16.xpose.msra.mxu0 0
    %4099 = vmatprep.subr.bf16.mxu0 0
    %4100 = vmatpush1.bf16.xpose.msra.mxu0 0
    %4101 = vmatprep.subr.bf16.mxu0 0
    %4102 = vmatpush1.bf16.xpose.msra.mxu0 0
    %4103 = vmatprep.subr.bf16.mxu0 0
    %4104 = vmatpush1.bf16.xpose.msra.mxu0 0
    %4105 = vmatprep.subr.bf16.mxu0 0
    %4106 = vmatpush1.bf16.xpose.msra.mxu0 0
    %4107 = vmatprep.subr.bf16.mxu0 0
    %4108 = vmatpush1.bf16.xpose.msra.mxu0 0
    %4109 = vmatprep.subr.bf16.mxu0 0
    %4110 = vmatpush1.bf16.xpose.msra.mxu0 0
    %4111 = vmatprep.mubr.bf16.mxu0 0
    %4112 = vmatmul.mubr.bf16.gmra.mrb[0].mxu0 %v4074
    %v4113 = vpop.f32.mrb[0].mxu0
    %v4114 = vadd.f32 0.0, %v4113
    %v4115 = vpop.f32.mrb[0].mxu0
    %v4116 = vpop.f32.mrb[0].mxu0
    %v4117 = vadd.f32 0.0, %v4116
    %v4118 = vpop.f32.mrb[0].mxu0
    %4119 = vdwg.mxu0
    %4121 = vrot.lane.b32.xlu0 %v1539, 96
    %v4122 = vpop.permute.xlu0 %4121
    %4124 = vrot.lane.b32.xlu0 %v1555, 96
    %v4125 = vpop.permute.xlu0 %4124
    %v4127 = vsel %vm272, %v4122, 0
    %v4130 = vsel %vm272, %v4125, 0
    %4132 = vmatprep.subr.bf16.mxu0 0
    %4133 = vmatpush1.bf16.xpose.msra.mxu0 %v4130
    %4134 = vmatprep.subr.bf16.mxu0 0
    %4135 = vmatpush1.bf16.xpose.msra.mxu0 0
    %4136 = vmatprep.subr.bf16.mxu0 0
    %4137 = vmatpush1.bf16.xpose.msra.mxu0 0
    %4138 = vmatprep.subr.bf16.mxu0 0
    %4139 = vmatpush1.bf16.xpose.msra.mxu0 0
    %4140 = vmatprep.subr.bf16.mxu0 0
    %4141 = vmatpush1.bf16.xpose.msra.mxu0 0
    %4142 = vmatprep.subr.bf16.mxu0 0
    %4143 = vmatpush1.bf16.xpose.msra.mxu0 0
    %4144 = vmatprep.subr.bf16.mxu0 0
    %4145 = vmatpush1.bf16.xpose.msra.mxu0 0
    %4146 = vmatprep.subr.bf16.mxu0 0
    %4147 = vmatpush1.bf16.xpose.msra.mxu0 0
    %4148 = vmatprep.subr.bf16.mxu0 0
    %4149 = vmatpush1.bf16.xpose.msra.mxu0 0
    %4150 = vmatprep.subr.bf16.mxu0 0
    %4151 = vmatpush1.bf16.xpose.msra.mxu0 0
    %4152 = vmatprep.subr.bf16.mxu0 0
    %4153 = vmatpush1.bf16.xpose.msra.mxu0 0
    %4154 = vmatprep.subr.bf16.mxu0 0
    %4155 = vmatpush1.bf16.xpose.msra.mxu0 0
    %4156 = vmatprep.subr.bf16.mxu0 0
    %4157 = vmatpush1.bf16.xpose.msra.mxu0 0
    %4158 = vmatprep.subr.bf16.mxu0 0
    %4159 = vmatpush1.bf16.xpose.msra.mxu0 0
    %4160 = vmatprep.subr.bf16.mxu0 0
    %4161 = vmatpush1.bf16.xpose.msra.mxu0 0
    %4162 = vmatprep.subr.bf16.mxu0 0
    %4163 = vmatpush1.bf16.xpose.msra.mxu0 0
    %4164 = vmatprep.mubr.bf16.mxu0 0
    %4165 = vmatmul.mubr.bf16.gmra.mrb[0].mxu0 %v4127
    %v4166 = vpop.f32.mrb[0].mxu0
    %v4167 = vadd.f32 0.0, %v4166
    %v4168 = vpop.f32.mrb[0].mxu0
    %v4169 = vpop.f32.mrb[0].mxu0
    %v4170 = vadd.f32 0.0, %v4169
    %v4171 = vpop.f32.mrb[0].mxu0
    %4172 = vdwg.mxu0
    %4174 = vrot.lane.b32.xlu0 %v1540, 96
    %v4175 = vpop.permute.xlu0 %4174
    %4177 = vrot.lane.b32.xlu0 %v1556, 96
    %v4178 = vpop.permute.xlu0 %4177
    %v4180 = vsel %vm272, %v4175, 0
    %v4183 = vsel %vm272, %v4178, 0
    %4185 = vmatprep.subr.bf16.mxu0 0
    %4186 = vmatpush1.bf16.xpose.msra.mxu0 %v4183
    %4187 = vmatprep.subr.bf16.mxu0 0
    %4188 = vmatpush1.bf16.xpose.msra.mxu0 0
    %4189 = vmatprep.subr.bf16.mxu0 0
    %4190 = vmatpush1.bf16.xpose.msra.mxu0 0
    %4191 = vmatprep.subr.bf16.mxu0 0
    %4192 = vmatpush1.bf16.xpose.msra.mxu0 0
    %4193 = vmatprep.subr.bf16.mxu0 0
    %4194 = vmatpush1.bf16.xpose.msra.mxu0 0
    %4195 = vmatprep.subr.bf16.mxu0 0
    %4196 = vmatpush1.bf16.xpose.msra.mxu0 0
    %4197 = vmatprep.subr.bf16.mxu0 0
    %4198 = vmatpush1.bf16.xpose.msra.mxu0 0
    %4199 = vmatprep.subr.bf16.mxu0 0
    %4200 = vmatpush1.bf16.xpose.msra.mxu0 0
    %4201 = vmatprep.subr.bf16.mxu0 0
    %4202 = vmatpush1.bf16.xpose.msra.mxu0 0
    %4203 = vmatprep.subr.bf16.mxu0 0
    %4204 = vmatpush1.bf16.xpose.msra.mxu0 0
    %4205 = vmatprep.subr.bf16.mxu0 0
    %4206 = vmatpush1.bf16.xpose.msra.mxu0 0
    %4207 = vmatprep.subr.bf16.mxu0 0
    %4208 = vmatpush1.bf16.xpose.msra.mxu0 0
    %4209 = vmatprep.subr.bf16.mxu0 0
    %4210 = vmatpush1.bf16.xpose.msra.mxu0 0
    %4211 = vmatprep.subr.bf16.mxu0 0
    %4212 = vmatpush1.bf16.xpose.msra.mxu0 0
    %4213 = vmatprep.subr.bf16.mxu0 0
    %4214 = vmatpush1.bf16.xpose.msra.mxu0 0
    %4215 = vmatprep.subr.bf16.mxu0 0
    %4216 = vmatpush1.bf16.xpose.msra.mxu0 0
    %4217 = vmatprep.mubr.bf16.mxu0 0
    %4218 = vmatmul.mubr.bf16.gmra.mrb[0].mxu0 %v4180
    %v4219 = vpop.f32.mrb[0].mxu0
    %v4220 = vadd.f32 0.0, %v4219
    %v4221 = vpop.f32.mrb[0].mxu0
    %v4222 = vpop.f32.mrb[0].mxu0
    %v4223 = vadd.f32 0.0, %v4222
    %v4224 = vpop.f32.mrb[0].mxu0
    %4225 = vdwg.mxu0
    %4227 = vrot.lane.b32.xlu0 %v1541, 96
    %v4228 = vpop.permute.xlu0 %4227
    %4230 = vrot.lane.b32.xlu0 %v1557, 96
    %v4231 = vpop.permute.xlu0 %4230
    %v4233 = vsel %vm272, %v4228, 0
    %v4236 = vsel %vm272, %v4231, 0
    %4238 = vmatprep.subr.bf16.mxu0 0
    %4239 = vmatpush1.bf16.xpose.msra.mxu0 %v4236
    %4240 = vmatprep.subr.bf16.mxu0 0
    %4241 = vmatpush1.bf16.xpose.msra.mxu0 0
    %4242 = vmatprep.subr.bf16.mxu0 0
    %4243 = vmatpush1.bf16.xpose.msra.mxu0 0
    %4244 = vmatprep.subr.bf16.mxu0 0
    %4245 = vmatpush1.bf16.xpose.msra.mxu0 0
    %4246 = vmatprep.subr.bf16.mxu0 0
    %4247 = vmatpush1.bf16.xpose.msra.mxu0 0
    %4248 = vmatprep.subr.bf16.mxu0 0
    %4249 = vmatpush1.bf16.xpose.msra.mxu0 0
    %4250 = vmatprep.subr.bf16.mxu0 0
    %4251 = vmatpush1.bf16.xpose.msra.mxu0 0
    %4252 = vmatprep.subr.bf16.mxu0 0
    %4253 = vmatpush1.bf16.xpose.msra.mxu0 0
    %4254 = vmatprep.subr.bf16.mxu0 0
    %4255 = vmatpush1.bf16.xpose.msra.mxu0 0
    %4256 = vmatprep.subr.bf16.mxu0 0
    %4257 = vmatpush1.bf16.xpose.msra.mxu0 0
    %4258 = vmatprep.subr.bf16.mxu0 0
    %4259 = vmatpush1.bf16.xpose.msra.mxu0 0
    %4260 = vmatprep.subr.bf16.mxu0 0
    %4261 = vmatpush1.bf16.xpose.msra.mxu0 0
    %4262 = vmatprep.subr.bf16.mxu0 0
    %4263 = vmatpush1.bf16.xpose.msra.mxu0 0
    %4264 = vmatprep.subr.bf16.mxu0 0
    %4265 = vmatpush1.bf16.xpose.msra.mxu0 0
    %4266 = vmatprep.subr.bf16.mxu0 0
    %4267 = vmatpush1.bf16.xpose.msra.mxu0 0
    %4268 = vmatprep.subr.bf16.mxu0 0
    %4269 = vmatpush1.bf16.xpose.msra.mxu0 0
    %4270 = vmatprep.mubr.bf16.mxu0 0
    %4271 = vmatmul.mubr.bf16.gmra.mrb[0].mxu0 %v4233
    %v4272 = vpop.f32.mrb[0].mxu0
    %v4273 = vadd.f32 0.0, %v4272
    %v4274 = vpop.f32.mrb[0].mxu0
    %v4275 = vpop.f32.mrb[0].mxu0
    %v4276 = vadd.f32 0.0, %v4275
    %v4277 = vpop.f32.mrb[0].mxu0
    %4278 = vdwg.mxu0
    %v4279 = vsel %vm2326, %v3478, -inf
    %4280 = vmax.xlane.f32.xlu0 %v4279
    %v4281 = vpop.xlane.xlu0 %4280
    %v4282 = vsel %vm2326, %v3481, -inf
    %4283 = vmax.xlane.f32.xlu0 %v4282
    %v4284 = vpop.xlane.xlu0 %4283
    %v4285 = vsel %vm2326, %v3531, -inf
    %4286 = vmax.xlane.f32.xlu0 %v4285
    %v4287 = vpop.xlane.xlu0 %4286
    %v4288 = vsel %vm2326, %v3534, -inf
    %4289 = vmax.xlane.f32.xlu0 %v4288
    %v4290 = vpop.xlane.xlu0 %4289
    %v4291 = vsel %vm2326, %v3584, -inf
    %4292 = vmax.xlane.f32.xlu0 %v4291
    %v4293 = vpop.xlane.xlu0 %4292
    %v4294 = vsel %vm2326, %v3587, -inf
    %4295 = vmax.xlane.f32.xlu0 %v4294
    %v4296 = vpop.xlane.xlu0 %4295
    %v4297 = vsel %vm2326, %v3637, -inf
    %4298 = vmax.xlane.f32.xlu0 %v4297
    %v4299 = vpop.xlane.xlu0 %4298
    %v4300 = vsel %vm2326, %v3640, -inf
    %4301 = vmax.xlane.f32.xlu0 %v4300
    %v4302 = vpop.xlane.xlu0 %4301
    %v4303 = vsel %vm2326, %v3690, -inf
    %4304 = vmax.xlane.f32.xlu0 %v4303
    %v4305 = vpop.xlane.xlu0 %4304
    %v4306 = vsel %vm2326, %v3693, -inf
    %4307 = vmax.xlane.f32.xlu0 %v4306
    %v4308 = vpop.xlane.xlu0 %4307
    %v4309 = vsel %vm2326, %v3743, -inf
    %4310 = vmax.xlane.f32.xlu0 %v4309
    %v4311 = vpop.xlane.xlu0 %4310
    %v4312 = vsel %vm2326, %v3746, -inf
    %4313 = vmax.xlane.f32.xlu0 %v4312
    %v4314 = vpop.xlane.xlu0 %4313
    %v4315 = vsel %vm2326, %v3796, -inf
    %4316 = vmax.xlane.f32.xlu0 %v4315
    %v4317 = vpop.xlane.xlu0 %4316
    %v4318 = vsel %vm2326, %v3799, -inf
    %4319 = vmax.xlane.f32.xlu0 %v4318
    %v4320 = vpop.xlane.xlu0 %4319
    %v4321 = vsel %vm2326, %v3849, -inf
    %4322 = vmax.xlane.f32.xlu0 %v4321
    %v4323 = vpop.xlane.xlu0 %4322
    %v4324 = vsel %vm2326, %v3852, -inf
    %4325 = vmax.xlane.f32.xlu0 %v4324
    %v4326 = vpop.xlane.xlu0 %4325
    %v4327 = vsel %vm2326, %v3902, -inf
    %4328 = vmax.xlane.f32.xlu0 %v4327
    %v4329 = vpop.xlane.xlu0 %4328
    %v4330 = vsel %vm2326, %v3905, -inf
    %4331 = vmax.xlane.f32.xlu0 %v4330
    %v4332 = vpop.xlane.xlu0 %4331
    %v4333 = vsel %vm2326, %v3955, -inf
    %4334 = vmax.xlane.f32.xlu0 %v4333
    %v4335 = vpop.xlane.xlu0 %4334
    %v4336 = vsel %vm2326, %v3958, -inf
    %4337 = vmax.xlane.f32.xlu0 %v4336
    %v4338 = vpop.xlane.xlu0 %4337
    %v4339 = vsel %vm2326, %v4008, -inf
    %4340 = vmax.xlane.f32.xlu0 %v4339
    %v4341 = vpop.xlane.xlu0 %4340
    %v4342 = vsel %vm2326, %v4011, -inf
    %4343 = vmax.xlane.f32.xlu0 %v4342
    %v4344 = vpop.xlane.xlu0 %4343
    %v4345 = vsel %vm2326, %v4061, -inf
    %4346 = vmax.xlane.f32.xlu0 %v4345
    %v4347 = vpop.xlane.xlu0 %4346
    %v4348 = vsel %vm2326, %v4064, -inf
    %4349 = vmax.xlane.f32.xlu0 %v4348
    %v4350 = vpop.xlane.xlu0 %4349
    %v4351 = vsel %vm2326, %v4114, -inf
    %4352 = vmax.xlane.f32.xlu0 %v4351
    %v4353 = vpop.xlane.xlu0 %4352
    %v4354 = vsel %vm2326, %v4117, -inf
    %4355 = vmax.xlane.f32.xlu0 %v4354
    %v4356 = vpop.xlane.xlu0 %4355
    %v4357 = vsel %vm2326, %v4167, -inf
    %4358 = vmax.xlane.f32.xlu0 %v4357
    %v4359 = vpop.xlane.xlu0 %4358
    %v4360 = vsel %vm2326, %v4170, -inf
    %4361 = vmax.xlane.f32.xlu0 %v4360
    %v4362 = vpop.xlane.xlu0 %4361
    %v4363 = vsel %vm2326, %v4220, -inf
    %4364 = vmax.xlane.f32.xlu0 %v4363
    %v4365 = vpop.xlane.xlu0 %4364
    %v4366 = vsel %vm2326, %v4223, -inf
    %4367 = vmax.xlane.f32.xlu0 %v4366
    %v4368 = vpop.xlane.xlu0 %4367
    %v4369 = vsel %vm2326, %v4273, -inf
    %4370 = vmax.xlane.f32.xlu0 %v4369
    %v4371 = vpop.xlane.xlu0 %4370
    %v4372 = vsel %vm2326, %v4276, -inf
    %4373 = vmax.xlane.f32.xlu0 %v4372
    %v4374 = vpop.xlane.xlu0 %4373
    %v4375 = vsub.f32 %v3478, %v4281
    %v4376 = vsub.f32 %v3481, %v4284
    %v4377 = vsub.f32 %v3531, %v4287
    %v4378 = vsub.f32 %v3534, %v4290
    %v4379 = vsub.f32 %v3584, %v4293
    %v4380 = vsub.f32 %v3587, %v4296
    %v4381 = vsub.f32 %v3637, %v4299
    %v4382 = vsub.f32 %v3640, %v4302
    %v4383 = vsub.f32 %v3690, %v4305
    %v4384 = vsub.f32 %v3693, %v4308
    %v4385 = vsub.f32 %v3743, %v4311
    %v4386 = vsub.f32 %v3746, %v4314
    %v4387 = vsub.f32 %v3796, %v4317
    %v4388 = vsub.f32 %v3799, %v4320
    %v4389 = vsub.f32 %v3849, %v4323
    %v4390 = vsub.f32 %v3852, %v4326
    %v4391 = vsub.f32 %v3902, %v4329
    %v4392 = vsub.f32 %v3905, %v4332
    %v4393 = vsub.f32 %v3955, %v4335
    %v4394 = vsub.f32 %v3958, %v4338
    %v4395 = vsub.f32 %v4008, %v4341
    %v4396 = vsub.f32 %v4011, %v4344
    %v4397 = vsub.f32 %v4061, %v4347
    %v4398 = vsub.f32 %v4064, %v4350
    %v4399 = vsub.f32 %v4114, %v4353
    %v4400 = vsub.f32 %v4117, %v4356
    %v4401 = vsub.f32 %v4167, %v4359
    %v4402 = vsub.f32 %v4170, %v4362
    %v4403 = vsub.f32 %v4220, %v4365
    %v4404 = vsub.f32 %v4223, %v4368
    %v4405 = vsub.f32 %v4273, %v4371
    %v4406 = vsub.f32 %v4276, %v4374
    %v4407 = vmul.f32 %v4375, 1.442695
    %v4408 = vpow.pop %v4407
    %v4409 = vmul.f32 %v4376, 1.442695
    %v4410 = vpow.pop %v4409
    %v4411 = vmul.f32 %v4377, 1.442695
    %v4412 = vpow.pop %v4411
    %v4413 = vmul.f32 %v4378, 1.442695
    %v4414 = vpow.pop %v4413
    %v4415 = vmul.f32 %v4379, 1.442695
    %v4416 = vpow.pop %v4415
    %v4417 = vmul.f32 %v4380, 1.442695
    %v4418 = vpow.pop %v4417
    %v4419 = vmul.f32 %v4381, 1.442695
    %v4420 = vpow.pop %v4419
    %v4421 = vmul.f32 %v4382, 1.442695
    %v4422 = vpow.pop %v4421
    %v4423 = vmul.f32 %v4383, 1.442695
    %v4424 = vpow.pop %v4423
    %v4425 = vmul.f32 %v4384, 1.442695
    %v4426 = vpow.pop %v4425
    %v4427 = vmul.f32 %v4385, 1.442695
    %v4428 = vpow.pop %v4427
    %v4429 = vmul.f32 %v4386, 1.442695
    %v4430 = vpow.pop %v4429
    %v4431 = vmul.f32 %v4387, 1.442695
    %v4432 = vpow.pop %v4431
    %v4433 = vmul.f32 %v4388, 1.442695
    %v4434 = vpow.pop %v4433
    %v4435 = vmul.f32 %v4389, 1.442695
    %v4436 = vpow.pop %v4435
    %v4437 = vmul.f32 %v4390, 1.442695
    %v4438 = vpow.pop %v4437
    %v4439 = vmul.f32 %v4391, 1.442695
    %v4440 = vpow.pop %v4439
    %v4441 = vmul.f32 %v4392, 1.442695
    %v4442 = vpow.pop %v4441
    %v4443 = vmul.f32 %v4393, 1.442695
    %v4444 = vpow.pop %v4443
    %v4445 = vmul.f32 %v4394, 1.442695
    %v4446 = vpow.pop %v4445
    %v4447 = vmul.f32 %v4395, 1.442695
    %v4448 = vpow.pop %v4447
    %v4449 = vmul.f32 %v4396, 1.442695
    %v4450 = vpow.pop %v4449
    %v4451 = vmul.f32 %v4397, 1.442695
    %v4452 = vpow.pop %v4451
    %v4453 = vmul.f32 %v4398, 1.442695
    %v4454 = vpow.pop %v4453
    %v4455 = vmul.f32 %v4399, 1.442695
    %v4456 = vpow.pop %v4455
    %v4457 = vmul.f32 %v4400, 1.442695
    %v4458 = vpow.pop %v4457
    %v4459 = vmul.f32 %v4401, 1.442695
    %v4460 = vpow.pop %v4459
    %v4461 = vmul.f32 %v4402, 1.442695
    %v4462 = vpow.pop %v4461
    %v4463 = vmul.f32 %v4403, 1.442695
    %v4464 = vpow.pop %v4463
    %v4465 = vmul.f32 %v4404, 1.442695
    %v4466 = vpow.pop %v4465
    %v4467 = vmul.f32 %v4405, 1.442695
    %v4468 = vpow.pop %v4467
    %v4469 = vmul.f32 %v4406, 1.442695
    %v4470 = vpow.pop %v4469
    %v4471 = vsel %vm2326, %v4408, 0.0
    %4472 = vadd.xlane.f32.xlu0 %v4471
    %v4473 = vpop.xlane.xlu0 %4472
    %v4474 = vsel %vm2326, %v4410, 0.0
    %4475 = vadd.xlane.f32.xlu0 %v4474
    %v4476 = vpop.xlane.xlu0 %4475
    %v4477 = vsel %vm2326, %v4412, 0.0
    %4478 = vadd.xlane.f32.xlu0 %v4477
    %v4479 = vpop.xlane.xlu0 %4478
    %v4480 = vsel %vm2326, %v4414, 0.0
    %4481 = vadd.xlane.f32.xlu0 %v4480
    %v4482 = vpop.xlane.xlu0 %4481
    %v4483 = vsel %vm2326, %v4416, 0.0
    %4484 = vadd.xlane.f32.xlu0 %v4483
    %v4485 = vpop.xlane.xlu0 %4484
    %v4486 = vsel %vm2326, %v4418, 0.0
    %4487 = vadd.xlane.f32.xlu0 %v4486
    %v4488 = vpop.xlane.xlu0 %4487
    %v4489 = vsel %vm2326, %v4420, 0.0
    %4490 = vadd.xlane.f32.xlu0 %v4489
    %v4491 = vpop.xlane.xlu0 %4490
    %v4492 = vsel %vm2326, %v4422, 0.0
    %4493 = vadd.xlane.f32.xlu0 %v4492
    %v4494 = vpop.xlane.xlu0 %4493
    %v4495 = vsel %vm2326, %v4424, 0.0
    %4496 = vadd.xlane.f32.xlu0 %v4495
    %v4497 = vpop.xlane.xlu0 %4496
    %v4498 = vsel %vm2326, %v4426, 0.0
    %4499 = vadd.xlane.f32.xlu0 %v4498
    %v4500 = vpop.xlane.xlu0 %4499
    %v4501 = vsel %vm2326, %v4428, 0.0
    %4502 = vadd.xlane.f32.xlu0 %v4501
    %v4503 = vpop.xlane.xlu0 %4502
    %v4504 = vsel %vm2326, %v4430, 0.0
    %4505 = vadd.xlane.f32.xlu0 %v4504
    %v4506 = vpop.xlane.xlu0 %4505
    %v4507 = vsel %vm2326, %v4432, 0.0
    %4508 = vadd.xlane.f32.xlu0 %v4507
    %v4509 = vpop.xlane.xlu0 %4508
    %v4510 = vsel %vm2326, %v4434, 0.0
    %4511 = vadd.xlane.f32.xlu0 %v4510
    %v4512 = vpop.xlane.xlu0 %4511
    %v4513 = vsel %vm2326, %v4436, 0.0
    %4514 = vadd.xlane.f32.xlu0 %v4513
    %v4515 = vpop.xlane.xlu0 %4514
    %v4516 = vsel %vm2326, %v4438, 0.0
    %4517 = vadd.xlane.f32.xlu0 %v4516
    %v4518 = vpop.xlane.xlu0 %4517
    %v4519 = vsel %vm2326, %v4440, 0.0
    %4520 = vadd.xlane.f32.xlu0 %v4519
    %v4521 = vpop.xlane.xlu0 %4520
    %v4522 = vsel %vm2326, %v4442, 0.0
    %4523 = vadd.xlane.f32.xlu0 %v4522
    %v4524 = vpop.xlane.xlu0 %4523
    %v4525 = vsel %vm2326, %v4444, 0.0
    %4526 = vadd.xlane.f32.xlu0 %v4525
    %v4527 = vpop.xlane.xlu0 %4526
    %v4528 = vsel %vm2326, %v4446, 0.0
    %4529 = vadd.xlane.f32.xlu0 %v4528
    %v4530 = vpop.xlane.xlu0 %4529
    %v4531 = vsel %vm2326, %v4448, 0.0
    %4532 = vadd.xlane.f32.xlu0 %v4531
    %v4533 = vpop.xlane.xlu0 %4532
    %v4534 = vsel %vm2326, %v4450, 0.0
    %4535 = vadd.xlane.f32.xlu0 %v4534
    %v4536 = vpop.xlane.xlu0 %4535
    %v4537 = vsel %vm2326, %v4452, 0.0
    %4538 = vadd.xlane.f32.xlu0 %v4537
    %v4539 = vpop.xlane.xlu0 %4538
    %v4540 = vsel %vm2326, %v4454, 0.0
    %4541 = vadd.xlane.f32.xlu0 %v4540
    %v4542 = vpop.xlane.xlu0 %4541
    %v4543 = vsel %vm2326, %v4456, 0.0
    %4544 = vadd.xlane.f32.xlu0 %v4543
    %v4545 = vpop.xlane.xlu0 %4544
    %v4546 = vsel %vm2326, %v4458, 0.0
    %4547 = vadd.xlane.f32.xlu0 %v4546
    %v4548 = vpop.xlane.xlu0 %4547
    %v4549 = vsel %vm2326, %v4460, 0.0
    %4550 = vadd.xlane.f32.xlu0 %v4549
    %v4551 = vpop.xlane.xlu0 %4550
    %v4552 = vsel %vm2326, %v4462, 0.0
    %4553 = vadd.xlane.f32.xlu0 %v4552
    %v4554 = vpop.xlane.xlu0 %4553
    %v4555 = vsel %vm2326, %v4464, 0.0
    %4556 = vadd.xlane.f32.xlu0 %v4555
    %v4557 = vpop.xlane.xlu0 %4556
    %v4558 = vsel %vm2326, %v4466, 0.0
    %4559 = vadd.xlane.f32.xlu0 %v4558
    %v4560 = vpop.xlane.xlu0 %4559
    %v4561 = vsel %vm2326, %v4468, 0.0
    %4562 = vadd.xlane.f32.xlu0 %v4561
    %v4563 = vpop.xlane.xlu0 %4562
    %v4564 = vsel %vm2326, %v4470, 0.0
    %4565 = vadd.xlane.f32.xlu0 %v4564
    %v4566 = vpop.xlane.xlu0 %4565
    %v4567 = vrcp.pop %v4473
    %v4568 = vrcp.pop %v4476
    %v4569 = vrcp.pop %v4479
    %v4570 = vrcp.pop %v4482
    %v4571 = vrcp.pop %v4485
    %v4572 = vrcp.pop %v4488
    %v4573 = vrcp.pop %v4491
    %v4574 = vrcp.pop %v4494
    %v4575 = vrcp.pop %v4497
    %v4576 = vrcp.pop %v4500
    %v4577 = vrcp.pop %v4503
    %v4578 = vrcp.pop %v4506
    %v4579 = vrcp.pop %v4509
    %v4580 = vrcp.pop %v4512
    %v4581 = vrcp.pop %v4515
    %v4582 = vrcp.pop %v4518
    %v4583 = vrcp.pop %v4521
    %v4584 = vrcp.pop %v4524
    %v4585 = vrcp.pop %v4527
    %v4586 = vrcp.pop %v4530
    %v4587 = vrcp.pop %v4533
    %v4588 = vrcp.pop %v4536
    %v4589 = vrcp.pop %v4539
    %v4590 = vrcp.pop %v4542
    %v4591 = vrcp.pop %v4545
    %v4592 = vrcp.pop %v4548
    %v4593 = vrcp.pop %v4551
    %v4594 = vrcp.pop %v4554
    %v4595 = vrcp.pop %v4557
    %v4596 = vrcp.pop %v4560
    %v4597 = vrcp.pop %v4563
    %v4598 = vrcp.pop %v4566
    %v4599 = vmul.f32 %v4408, %v4567
    %v4600 = vmul.f32 %v4410, %v4568
    %v4601 = vmul.f32 %v4412, %v4569
    %v4602 = vmul.f32 %v4414, %v4570
    %v4603 = vmul.f32 %v4416, %v4571
    %v4604 = vmul.f32 %v4418, %v4572
    %v4605 = vmul.f32 %v4420, %v4573
    %v4606 = vmul.f32 %v4422, %v4574
    %v4607 = vmul.f32 %v4424, %v4575
    %v4608 = vmul.f32 %v4426, %v4576
    %v4609 = vmul.f32 %v4428, %v4577
    %v4610 = vmul.f32 %v4430, %v4578
    %v4611 = vmul.f32 %v4432, %v4579
    %v4612 = vmul.f32 %v4434, %v4580
    %v4613 = vmul.f32 %v4436, %v4581
    %v4614 = vmul.f32 %v4438, %v4582
    %v4615 = vmul.f32 %v4440, %v4583
    %v4616 = vmul.f32 %v4442, %v4584
    %v4617 = vmul.f32 %v4444, %v4585
    %v4618 = vmul.f32 %v4446, %v4586
    %v4619 = vmul.f32 %v4448, %v4587
    %v4620 = vmul.f32 %v4450, %v4588
    %v4621 = vmul.f32 %v4452, %v4589
    %v4622 = vmul.f32 %v4454, %v4590
    %v4623 = vmul.f32 %v4456, %v4591
    %v4624 = vmul.f32 %v4458, %v4592
    %v4625 = vmul.f32 %v4460, %v4593
    %v4626 = vmul.f32 %v4462, %v4594
    %v4627 = vmul.f32 %v4464, %v4595
    %v4628 = vmul.f32 %v4466, %v4596
    %v4629 = vmul.f32 %v4468, %v4597
    %v4630 = vmul.f32 %v4470, %v4598
    %v4631 = vpack.c.bf16 %v4600, %v4599
    %v4632 = vpack.c.bf16 %v4602, %v4601
    %v4633 = vpack.c.bf16 %v4604, %v4603
    %v4634 = vpack.c.bf16 %v4606, %v4605
    %v4635 = vpack.c.bf16 %v4608, %v4607
    %v4636 = vpack.c.bf16 %v4610, %v4609
    %v4637 = vpack.c.bf16 %v4612, %v4611
    %v4638 = vpack.c.bf16 %v4614, %v4613
    %v4639 = vpack.c.bf16 %v4616, %v4615
    %v4640 = vpack.c.bf16 %v4618, %v4617
    %v4641 = vpack.c.bf16 %v4620, %v4619
    %v4642 = vpack.c.bf16 %v4622, %v4621
    %v4643 = vpack.c.bf16 %v4624, %v4623
    %v4644 = vpack.c.bf16 %v4626, %v4625
    %v4645 = vpack.c.bf16 %v4628, %v4627
    %v4646 = vpack.c.bf16 %v4630, %v4629
    %4648 = vrot.lane.b32.xlu0 %v1558, 96
    %v4649 = vpop.permute.xlu0 %4648
    %v4652 = vsel %vm2326, %v4631, 0
    %4654 = vmatprep.subr.bf16.mxu0 0
    %4655 = vmatpush1.bf16.msra.mxu0 %v4649
    %4656 = vmatprep.subr.bf16.mxu0 0
    %4657 = vmatpush1.bf16.msra.mxu0 0
    %4658 = vmatprep.subr.bf16.mxu0 0
    %4659 = vmatpush1.bf16.msra.mxu0 0
    %4660 = vmatprep.subr.bf16.mxu0 0
    %4661 = vmatpush1.bf16.msra.mxu0 0
    %4662 = vmatprep.subr.bf16.mxu0 0
    %4663 = vmatpush1.bf16.msra.mxu0 0
    %4664 = vmatprep.subr.bf16.mxu0 0
    %4665 = vmatpush1.bf16.msra.mxu0 0
    %4666 = vmatprep.subr.bf16.mxu0 0
    %4667 = vmatpush1.bf16.msra.mxu0 0
    %4668 = vmatprep.subr.bf16.mxu0 0
    %4669 = vmatpush1.bf16.msra.mxu0 0
    %4670 = vmatprep.subr.bf16.mxu0 0
    %4671 = vmatpush1.bf16.msra.mxu0 0
    %4672 = vmatprep.subr.bf16.mxu0 0
    %4673 = vmatpush1.bf16.msra.mxu0 0
    %4674 = vmatprep.subr.bf16.mxu0 0
    %4675 = vmatpush1.bf16.msra.mxu0 0
    %4676 = vmatprep.subr.bf16.mxu0 0
    %4677 = vmatpush1.bf16.msra.mxu0 0
    %4678 = vmatprep.subr.bf16.mxu0 0
    %4679 = vmatpush1.bf16.msra.mxu0 0
    %4680 = vmatprep.subr.bf16.mxu0 0
    %4681 = vmatpush1.bf16.msra.mxu0 0
    %4682 = vmatprep.subr.bf16.mxu0 0
    %4683 = vmatpush1.bf16.msra.mxu0 0
    %4684 = vmatprep.subr.bf16.mxu0 0
    %4685 = vmatpush1.bf16.msra.mxu0 0
    %4686 = vmatprep.mubr.bf16.mxu0 0
    %4687 = vmatmul.mubr.bf16.gmra.mrb[0].mxu0 %v4652
    %v4688 = vpop.f32.mrb[0].mxu0
    %v4689 = vadd.f32 0.0, %v4688
    %v4690 = vpop.f32.mrb[0].mxu0
    %v4691 = vpop.f32.mrb[0].mxu0
    %v4692 = vadd.f32 0.0, %v4691
    %v4693 = vpop.f32.mrb[0].mxu0
    %4694 = vdwg.mxu0
    %4696 = vrot.lane.b32.xlu0 %v1559, 96
    %v4697 = vpop.permute.xlu0 %4696
    %v4700 = vsel %vm2326, %v4632, 0
    %4702 = vmatprep.subr.bf16.mxu0 0
    %4703 = vmatpush1.bf16.msra.mxu0 %v4697
    %4704 = vmatprep.subr.bf16.mxu0 0
    %4705 = vmatpush1.bf16.msra.mxu0 0
    %4706 = vmatprep.subr.bf16.mxu0 0
    %4707 = vmatpush1.bf16.msra.mxu0 0
    %4708 = vmatprep.subr.bf16.mxu0 0
    %4709 = vmatpush1.bf16.msra.mxu0 0
    %4710 = vmatprep.subr.bf16.mxu0 0
    %4711 = vmatpush1.bf16.msra.mxu0 0
    %4712 = vmatprep.subr.bf16.mxu0 0
    %4713 = vmatpush1.bf16.msra.mxu0 0
    %4714 = vmatprep.subr.bf16.mxu0 0
    %4715 = vmatpush1.bf16.msra.mxu0 0
    %4716 = vmatprep.subr.bf16.mxu0 0
    %4717 = vmatpush1.bf16.msra.mxu0 0
    %4718 = vmatprep.subr.bf16.mxu0 0
    %4719 = vmatpush1.bf16.msra.mxu0 0
    %4720 = vmatprep.subr.bf16.mxu0 0
    %4721 = vmatpush1.bf16.msra.mxu0 0
    %4722 = vmatprep.subr.bf16.mxu0 0
    %4723 = vmatpush1.bf16.msra.mxu0 0
    %4724 = vmatprep.subr.bf16.mxu0 0
    %4725 = vmatpush1.bf16.msra.mxu0 0
    %4726 = vmatprep.subr.bf16.mxu0 0
    %4727 = vmatpush1.bf16.msra.mxu0 0
    %4728 = vmatprep.subr.bf16.mxu0 0
    %4729 = vmatpush1.bf16.msra.mxu0 0
    %4730 = vmatprep.subr.bf16.mxu0 0
    %4731 = vmatpush1.bf16.msra.mxu0 0
    %4732 = vmatprep.subr.bf16.mxu0 0
    %4733 = vmatpush1.bf16.msra.mxu0 0
    %4734 = vmatprep.mubr.bf16.mxu0 0
    %4735 = vmatmul.mubr.bf16.gmra.mrb[0].mxu0 %v4700
    %v4736 = vpop.f32.mrb[0].mxu0
    %v4737 = vadd.f32 0.0, %v4736
    %v4738 = vpop.f32.mrb[0].mxu0
    %v4739 = vpop.f32.mrb[0].mxu0
    %v4740 = vadd.f32 0.0, %v4739
    %v4741 = vpop.f32.mrb[0].mxu0
    %4742 = vdwg.mxu0
    %4744 = vrot.lane.b32.xlu0 %v1560, 96
    %v4745 = vpop.permute.xlu0 %4744
    %v4748 = vsel %vm2326, %v4633, 0
    %4750 = vmatprep.subr.bf16.mxu0 0
    %4751 = vmatpush1.bf16.msra.mxu0 %v4745
    %4752 = vmatprep.subr.bf16.mxu0 0
    %4753 = vmatpush1.bf16.msra.mxu0 0
    %4754 = vmatprep.subr.bf16.mxu0 0
    %4755 = vmatpush1.bf16.msra.mxu0 0
    %4756 = vmatprep.subr.bf16.mxu0 0
    %4757 = vmatpush1.bf16.msra.mxu0 0
    %4758 = vmatprep.subr.bf16.mxu0 0
    %4759 = vmatpush1.bf16.msra.mxu0 0
    %4760 = vmatprep.subr.bf16.mxu0 0
    %4761 = vmatpush1.bf16.msra.mxu0 0
    %4762 = vmatprep.subr.bf16.mxu0 0
    %4763 = vmatpush1.bf16.msra.mxu0 0
    %4764 = vmatprep.subr.bf16.mxu0 0
    %4765 = vmatpush1.bf16.msra.mxu0 0
    %4766 = vmatprep.subr.bf16.mxu0 0
    %4767 = vmatpush1.bf16.msra.mxu0 0
    %4768 = vmatprep.subr.bf16.mxu0 0
    %4769 = vmatpush1.bf16.msra.mxu0 0
    %4770 = vmatprep.subr.bf16.mxu0 0
    %4771 = vmatpush1.bf16.msra.mxu0 0
    %4772 = vmatprep.subr.bf16.mxu0 0
    %4773 = vmatpush1.bf16.msra.mxu0 0
    %4774 = vmatprep.subr.bf16.mxu0 0
    %4775 = vmatpush1.bf16.msra.mxu0 0
    %4776 = vmatprep.subr.bf16.mxu0 0
    %4777 = vmatpush1.bf16.msra.mxu0 0
    %4778 = vmatprep.subr.bf16.mxu0 0
    %4779 = vmatpush1.bf16.msra.mxu0 0
    %4780 = vmatprep.subr.bf16.mxu0 0
    %4781 = vmatpush1.bf16.msra.mxu0 0
    %4782 = vmatprep.mubr.bf16.mxu0 0
    %4783 = vmatmul.mubr.bf16.gmra.mrb[0].mxu0 %v4748
    %v4784 = vpop.f32.mrb[0].mxu0
    %v4785 = vadd.f32 0.0, %v4784
    %v4786 = vpop.f32.mrb[0].mxu0
    %v4787 = vpop.f32.mrb[0].mxu0
    %v4788 = vadd.f32 0.0, %v4787
    %v4789 = vpop.f32.mrb[0].mxu0
    %4790 = vdwg.mxu0
    %4792 = vrot.lane.b32.xlu0 %v1561, 96
    %v4793 = vpop.permute.xlu0 %4792
    %v4796 = vsel %vm2326, %v4634, 0
    %4798 = vmatprep.subr.bf16.mxu0 0
    %4799 = vmatpush1.bf16.msra.mxu0 %v4793
    %4800 = vmatprep.subr.bf16.mxu0 0
    %4801 = vmatpush1.bf16.msra.mxu0 0
    %4802 = vmatprep.subr.bf16.mxu0 0
    %4803 = vmatpush1.bf16.msra.mxu0 0
    %4804 = vmatprep.subr.bf16.mxu0 0
    %4805 = vmatpush1.bf16.msra.mxu0 0
    %4806 = vmatprep.subr.bf16.mxu0 0
    %4807 = vmatpush1.bf16.msra.mxu0 0
    %4808 = vmatprep.subr.bf16.mxu0 0
    %4809 = vmatpush1.bf16.msra.mxu0 0
    %4810 = vmatprep.subr.bf16.mxu0 0
    %4811 = vmatpush1.bf16.msra.mxu0 0
    %4812 = vmatprep.subr.bf16.mxu0 0
    %4813 = vmatpush1.bf16.msra.mxu0 0
    %4814 = vmatprep.subr.bf16.mxu0 0
    %4815 = vmatpush1.bf16.msra.mxu0 0
    %4816 = vmatprep.subr.bf16.mxu0 0
    %4817 = vmatpush1.bf16.msra.mxu0 0
    %4818 = vmatprep.subr.bf16.mxu0 0
    %4819 = vmatpush1.bf16.msra.mxu0 0
    %4820 = vmatprep.subr.bf16.mxu0 0
    %4821 = vmatpush1.bf16.msra.mxu0 0
    %4822 = vmatprep.subr.bf16.mxu0 0
    %4823 = vmatpush1.bf16.msra.mxu0 0
    %4824 = vmatprep.subr.bf16.mxu0 0
    %4825 = vmatpush1.bf16.msra.mxu0 0
    %4826 = vmatprep.subr.bf16.mxu0 0
    %4827 = vmatpush1.bf16.msra.mxu0 0
    %4828 = vmatprep.subr.bf16.mxu0 0
    %4829 = vmatpush1.bf16.msra.mxu0 0
    %4830 = vmatprep.mubr.bf16.mxu0 0
    %4831 = vmatmul.mubr.bf16.gmra.mrb[0].mxu0 %v4796
    %v4832 = vpop.f32.mrb[0].mxu0
    %v4833 = vadd.f32 0.0, %v4832
    %v4834 = vpop.f32.mrb[0].mxu0
    %v4835 = vpop.f32.mrb[0].mxu0
    %v4836 = vadd.f32 0.0, %v4835
    %v4837 = vpop.f32.mrb[0].mxu0
    %4838 = vdwg.mxu0
    %4840 = vrot.lane.b32.xlu0 %v1562, 96
    %v4841 = vpop.permute.xlu0 %4840
    %v4844 = vsel %vm2326, %v4635, 0
    %4846 = vmatprep.subr.bf16.mxu0 0
    %4847 = vmatpush1.bf16.msra.mxu0 %v4841
    %4848 = vmatprep.subr.bf16.mxu0 0
    %4849 = vmatpush1.bf16.msra.mxu0 0
    %4850 = vmatprep.subr.bf16.mxu0 0
    %4851 = vmatpush1.bf16.msra.mxu0 0
    %4852 = vmatprep.subr.bf16.mxu0 0
    %4853 = vmatpush1.bf16.msra.mxu0 0
    %4854 = vmatprep.subr.bf16.mxu0 0
    %4855 = vmatpush1.bf16.msra.mxu0 0
    %4856 = vmatprep.subr.bf16.mxu0 0
    %4857 = vmatpush1.bf16.msra.mxu0 0
    %4858 = vmatprep.subr.bf16.mxu0 0
    %4859 = vmatpush1.bf16.msra.mxu0 0
    %4860 = vmatprep.subr.bf16.mxu0 0
    %4861 = vmatpush1.bf16.msra.mxu0 0
    %4862 = vmatprep.subr.bf16.mxu0 0
    %4863 = vmatpush1.bf16.msra.mxu0 0
    %4864 = vmatprep.subr.bf16.mxu0 0
    %4865 = vmatpush1.bf16.msra.mxu0 0
    %4866 = vmatprep.subr.bf16.mxu0 0
    %4867 = vmatpush1.bf16.msra.mxu0 0
    %4868 = vmatprep.subr.bf16.mxu0 0
    %4869 = vmatpush1.bf16.msra.mxu0 0
    %4870 = vmatprep.subr.bf16.mxu0 0
    %4871 = vmatpush1.bf16.msra.mxu0 0
    %4872 = vmatprep.subr.bf16.mxu0 0
    %4873 = vmatpush1.bf16.msra.mxu0 0
    %4874 = vmatprep.subr.bf16.mxu0 0
    %4875 = vmatpush1.bf16.msra.mxu0 0
    %4876 = vmatprep.subr.bf16.mxu0 0
    %4877 = vmatpush1.bf16.msra.mxu0 0
    %4878 = vmatprep.mubr.bf16.mxu0 0
    %4879 = vmatmul.mubr.bf16.gmra.mrb[0].mxu0 %v4844
    %v4880 = vpop.f32.mrb[0].mxu0
    %v4881 = vadd.f32 0.0, %v4880
    %v4882 = vpop.f32.mrb[0].mxu0
    %v4883 = vpop.f32.mrb[0].mxu0
    %v4884 = vadd.f32 0.0, %v4883
    %v4885 = vpop.f32.mrb[0].mxu0
    %4886 = vdwg.mxu0
    %4888 = vrot.lane.b32.xlu0 %v1563, 96
    %v4889 = vpop.permute.xlu0 %4888
    %v4892 = vsel %vm2326, %v4636, 0
    %4894 = vmatprep.subr.bf16.mxu0 0
    %4895 = vmatpush1.bf16.msra.mxu0 %v4889
    %4896 = vmatprep.subr.bf16.mxu0 0
    %4897 = vmatpush1.bf16.msra.mxu0 0
    %4898 = vmatprep.subr.bf16.mxu0 0
    %4899 = vmatpush1.bf16.msra.mxu0 0
    %4900 = vmatprep.subr.bf16.mxu0 0
    %4901 = vmatpush1.bf16.msra.mxu0 0
    %4902 = vmatprep.subr.bf16.mxu0 0
    %4903 = vmatpush1.bf16.msra.mxu0 0
    %4904 = vmatprep.subr.bf16.mxu0 0
    %4905 = vmatpush1.bf16.msra.mxu0 0
    %4906 = vmatprep.subr.bf16.mxu0 0
    %4907 = vmatpush1.bf16.msra.mxu0 0
    %4908 = vmatprep.subr.bf16.mxu0 0
    %4909 = vmatpush1.bf16.msra.mxu0 0
    %4910 = vmatprep.subr.bf16.mxu0 0
    %4911 = vmatpush1.bf16.msra.mxu0 0
    %4912 = vmatprep.subr.bf16.mxu0 0
    %4913 = vmatpush1.bf16.msra.mxu0 0
    %4914 = vmatprep.subr.bf16.mxu0 0
    %4915 = vmatpush1.bf16.msra.mxu0 0
    %4916 = vmatprep.subr.bf16.mxu0 0
    %4917 = vmatpush1.bf16.msra.mxu0 0
    %4918 = vmatprep.subr.bf16.mxu0 0
    %4919 = vmatpush1.bf16.msra.mxu0 0
    %4920 = vmatprep.subr.bf16.mxu0 0
    %4921 = vmatpush1.bf16.msra.mxu0 0
    %4922 = vmatprep.subr.bf16.mxu0 0
    %4923 = vmatpush1.bf16.msra.mxu0 0
    %4924 = vmatprep.subr.bf16.mxu0 0
    %4925 = vmatpush1.bf16.msra.mxu0 0
    %4926 = vmatprep.mubr.bf16.mxu0 0
    %4927 = vmatmul.mubr.bf16.gmra.mrb[0].mxu0 %v4892
    %v4928 = vpop.f32.mrb[0].mxu0
    %v4929 = vadd.f32 0.0, %v4928
    %v4930 = vpop.f32.mrb[0].mxu0
    %v4931 = vpop.f32.mrb[0].mxu0
    %v4932 = vadd.f32 0.0, %v4931
    %v4933 = vpop.f32.mrb[0].mxu0
    %4934 = vdwg.mxu0
    %4936 = vrot.lane.b32.xlu0 %v1564, 96
    %v4937 = vpop.permute.xlu0 %4936
    %v4940 = vsel %vm2326, %v4637, 0
    %4942 = vmatprep.subr.bf16.mxu0 0
    %4943 = vmatpush1.bf16.msra.mxu0 %v4937
    %4944 = vmatprep.subr.bf16.mxu0 0
    %4945 = vmatpush1.bf16.msra.mxu0 0
    %4946 = vmatprep.subr.bf16.mxu0 0
    %4947 = vmatpush1.bf16.msra.mxu0 0
    %4948 = vmatprep.subr.bf16.mxu0 0
    %4949 = vmatpush1.bf16.msra.mxu0 0
    %4950 = vmatprep.subr.bf16.mxu0 0
    %4951 = vmatpush1.bf16.msra.mxu0 0
    %4952 = vmatprep.subr.bf16.mxu0 0
    %4953 = vmatpush1.bf16.msra.mxu0 0
    %4954 = vmatprep.subr.bf16.mxu0 0
    %4955 = vmatpush1.bf16.msra.mxu0 0
    %4956 = vmatprep.subr.bf16.mxu0 0
    %4957 = vmatpush1.bf16.msra.mxu0 0
    %4958 = vmatprep.subr.bf16.mxu0 0
    %4959 = vmatpush1.bf16.msra.mxu0 0
    %4960 = vmatprep.subr.bf16.mxu0 0
    %4961 = vmatpush1.bf16.msra.mxu0 0
    %4962 = vmatprep.subr.bf16.mxu0 0
    %4963 = vmatpush1.bf16.msra.mxu0 0
    %4964 = vmatprep.subr.bf16.mxu0 0
    %4965 = vmatpush1.bf16.msra.mxu0 0
    %4966 = vmatprep.subr.bf16.mxu0 0
    %4967 = vmatpush1.bf16.msra.mxu0 0
    %4968 = vmatprep.subr.bf16.mxu0 0
    %4969 = vmatpush1.bf16.msra.mxu0 0
    %4970 = vmatprep.subr.bf16.mxu0 0
    %4971 = vmatpush1.bf16.msra.mxu0 0
    %4972 = vmatprep.subr.bf16.mxu0 0
    %4973 = vmatpush1.bf16.msra.mxu0 0
    %4974 = vmatprep.mubr.bf16.mxu0 0
    %4975 = vmatmul.mubr.bf16.gmra.mrb[0].mxu0 %v4940
    %v4976 = vpop.f32.mrb[0].mxu0
    %v4977 = vadd.f32 0.0, %v4976
    %v4978 = vpop.f32.mrb[0].mxu0
    %v4979 = vpop.f32.mrb[0].mxu0
    %v4980 = vadd.f32 0.0, %v4979
    %v4981 = vpop.f32.mrb[0].mxu0
    %4982 = vdwg.mxu0
    %4984 = vrot.lane.b32.xlu0 %v1565, 96
    %v4985 = vpop.permute.xlu0 %4984
    %v4988 = vsel %vm2326, %v4638, 0
    %4990 = vmatprep.subr.bf16.mxu0 0
    %4991 = vmatpush1.bf16.msra.mxu0 %v4985
    %4992 = vmatprep.subr.bf16.mxu0 0
    %4993 = vmatpush1.bf16.msra.mxu0 0
    %4994 = vmatprep.subr.bf16.mxu0 0
    %4995 = vmatpush1.bf16.msra.mxu0 0
    %4996 = vmatprep.subr.bf16.mxu0 0
    %4997 = vmatpush1.bf16.msra.mxu0 0
    %4998 = vmatprep.subr.bf16.mxu0 0
    %4999 = vmatpush1.bf16.msra.mxu0 0
    %5000 = vmatprep.subr.bf16.mxu0 0
    %5001 = vmatpush1.bf16.msra.mxu0 0
    %5002 = vmatprep.subr.bf16.mxu0 0
    %5003 = vmatpush1.bf16.msra.mxu0 0
    %5004 = vmatprep.subr.bf16.mxu0 0
    %5005 = vmatpush1.bf16.msra.mxu0 0
    %5006 = vmatprep.subr.bf16.mxu0 0
    %5007 = vmatpush1.bf16.msra.mxu0 0
    %5008 = vmatprep.subr.bf16.mxu0 0
    %5009 = vmatpush1.bf16.msra.mxu0 0
    %5010 = vmatprep.subr.bf16.mxu0 0
    %5011 = vmatpush1.bf16.msra.mxu0 0
    %5012 = vmatprep.subr.bf16.mxu0 0
    %5013 = vmatpush1.bf16.msra.mxu0 0
    %5014 = vmatprep.subr.bf16.mxu0 0
    %5015 = vmatpush1.bf16.msra.mxu0 0
    %5016 = vmatprep.subr.bf16.mxu0 0
    %5017 = vmatpush1.bf16.msra.mxu0 0
    %5018 = vmatprep.subr.bf16.mxu0 0
    %5019 = vmatpush1.bf16.msra.mxu0 0
    %5020 = vmatprep.subr.bf16.mxu0 0
    %5021 = vmatpush1.bf16.msra.mxu0 0
    %5022 = vmatprep.mubr.bf16.mxu0 0
    %5023 = vmatmul.mubr.bf16.gmra.mrb[0].mxu0 %v4988
    %v5024 = vpop.f32.mrb[0].mxu0
    %v5025 = vadd.f32 0.0, %v5024
    %v5026 = vpop.f32.mrb[0].mxu0
    %v5027 = vpop.f32.mrb[0].mxu0
    %v5028 = vadd.f32 0.0, %v5027
    %v5029 = vpop.f32.mrb[0].mxu0
    %5030 = vdwg.mxu0
    %5032 = vrot.lane.b32.xlu0 %v1566, 96
    %v5033 = vpop.permute.xlu0 %5032
    %v5036 = vsel %vm2326, %v4639, 0
    %5038 = vmatprep.subr.bf16.mxu0 0
    %5039 = vmatpush1.bf16.msra.mxu0 %v5033
    %5040 = vmatprep.subr.bf16.mxu0 0
    %5041 = vmatpush1.bf16.msra.mxu0 0
    %5042 = vmatprep.subr.bf16.mxu0 0
    %5043 = vmatpush1.bf16.msra.mxu0 0
    %5044 = vmatprep.subr.bf16.mxu0 0
    %5045 = vmatpush1.bf16.msra.mxu0 0
    %5046 = vmatprep.subr.bf16.mxu0 0
    %5047 = vmatpush1.bf16.msra.mxu0 0
    %5048 = vmatprep.subr.bf16.mxu0 0
    %5049 = vmatpush1.bf16.msra.mxu0 0
    %5050 = vmatprep.subr.bf16.mxu0 0
    %5051 = vmatpush1.bf16.msra.mxu0 0
    %5052 = vmatprep.subr.bf16.mxu0 0
    %5053 = vmatpush1.bf16.msra.mxu0 0
    %5054 = vmatprep.subr.bf16.mxu0 0
    %5055 = vmatpush1.bf16.msra.mxu0 0
    %5056 = vmatprep.subr.bf16.mxu0 0
    %5057 = vmatpush1.bf16.msra.mxu0 0
    %5058 = vmatprep.subr.bf16.mxu0 0
    %5059 = vmatpush1.bf16.msra.mxu0 0
    %5060 = vmatprep.subr.bf16.mxu0 0
    %5061 = vmatpush1.bf16.msra.mxu0 0
    %5062 = vmatprep.subr.bf16.mxu0 0
    %5063 = vmatpush1.bf16.msra.mxu0 0
    %5064 = vmatprep.subr.bf16.mxu0 0
    %5065 = vmatpush1.bf16.msra.mxu0 0
    %5066 = vmatprep.subr.bf16.mxu0 0
    %5067 = vmatpush1.bf16.msra.mxu0 0
    %5068 = vmatprep.subr.bf16.mxu0 0
    %5069 = vmatpush1.bf16.msra.mxu0 0
    %5070 = vmatprep.mubr.bf16.mxu0 0
    %5071 = vmatmul.mubr.bf16.gmra.mrb[0].mxu0 %v5036
    %v5072 = vpop.f32.mrb[0].mxu0
    %v5073 = vadd.f32 0.0, %v5072
    %v5074 = vpop.f32.mrb[0].mxu0
    %v5075 = vpop.f32.mrb[0].mxu0
    %v5076 = vadd.f32 0.0, %v5075
    %v5077 = vpop.f32.mrb[0].mxu0
    %5078 = vdwg.mxu0
    %5080 = vrot.lane.b32.xlu0 %v1567, 96
    %v5081 = vpop.permute.xlu0 %5080
    %v5084 = vsel %vm2326, %v4640, 0
    %5086 = vmatprep.subr.bf16.mxu0 0
    %5087 = vmatpush1.bf16.msra.mxu0 %v5081
    %5088 = vmatprep.subr.bf16.mxu0 0
    %5089 = vmatpush1.bf16.msra.mxu0 0
    %5090 = vmatprep.subr.bf16.mxu0 0
    %5091 = vmatpush1.bf16.msra.mxu0 0
    %5092 = vmatprep.subr.bf16.mxu0 0
    %5093 = vmatpush1.bf16.msra.mxu0 0
    %5094 = vmatprep.subr.bf16.mxu0 0
    %5095 = vmatpush1.bf16.msra.mxu0 0
    %5096 = vmatprep.subr.bf16.mxu0 0
    %5097 = vmatpush1.bf16.msra.mxu0 0
    %5098 = vmatprep.subr.bf16.mxu0 0
    %5099 = vmatpush1.bf16.msra.mxu0 0
    %5100 = vmatprep.subr.bf16.mxu0 0
    %5101 = vmatpush1.bf16.msra.mxu0 0
    %5102 = vmatprep.subr.bf16.mxu0 0
    %5103 = vmatpush1.bf16.msra.mxu0 0
    %5104 = vmatprep.subr.bf16.mxu0 0
    %5105 = vmatpush1.bf16.msra.mxu0 0
    %5106 = vmatprep.subr.bf16.mxu0 0
    %5107 = vmatpush1.bf16.msra.mxu0 0
    %5108 = vmatprep.subr.bf16.mxu0 0
    %5109 = vmatpush1.bf16.msra.mxu0 0
    %5110 = vmatprep.subr.bf16.mxu0 0
    %5111 = vmatpush1.bf16.msra.mxu0 0
    %5112 = vmatprep.subr.bf16.mxu0 0
    %5113 = vmatpush1.bf16.msra.mxu0 0
    %5114 = vmatprep.subr.bf16.mxu0 0
    %5115 = vmatpush1.bf16.msra.mxu0 0
    %5116 = vmatprep.subr.bf16.mxu0 0
    %5117 = vmatpush1.bf16.msra.mxu0 0
    %5118 = vmatprep.mubr.bf16.mxu0 0
    %5119 = vmatmul.mubr.bf16.gmra.mrb[0].mxu0 %v5084
    %v5120 = vpop.f32.mrb[0].mxu0
    %v5121 = vadd.f32 0.0, %v5120
    %v5122 = vpop.f32.mrb[0].mxu0
    %v5123 = vpop.f32.mrb[0].mxu0
    %v5124 = vadd.f32 0.0, %v5123
    %v5125 = vpop.f32.mrb[0].mxu0
    %5126 = vdwg.mxu0
    %5128 = vrot.lane.b32.xlu0 %v1568, 96
    %v5129 = vpop.permute.xlu0 %5128
    %v5132 = vsel %vm2326, %v4641, 0
    %5134 = vmatprep.subr.bf16.mxu0 0
    %5135 = vmatpush1.bf16.msra.mxu0 %v5129
    %5136 = vmatprep.subr.bf16.mxu0 0
    %5137 = vmatpush1.bf16.msra.mxu0 0
    %5138 = vmatprep.subr.bf16.mxu0 0
    %5139 = vmatpush1.bf16.msra.mxu0 0
    %5140 = vmatprep.subr.bf16.mxu0 0
    %5141 = vmatpush1.bf16.msra.mxu0 0
    %5142 = vmatprep.subr.bf16.mxu0 0
    %5143 = vmatpush1.bf16.msra.mxu0 0
    %5144 = vmatprep.subr.bf16.mxu0 0
    %5145 = vmatpush1.bf16.msra.mxu0 0
    %5146 = vmatprep.subr.bf16.mxu0 0
    %5147 = vmatpush1.bf16.msra.mxu0 0
    %5148 = vmatprep.subr.bf16.mxu0 0
    %5149 = vmatpush1.bf16.msra.mxu0 0
    %5150 = vmatprep.subr.bf16.mxu0 0
    %5151 = vmatpush1.bf16.msra.mxu0 0
    %5152 = vmatprep.subr.bf16.mxu0 0
    %5153 = vmatpush1.bf16.msra.mxu0 0
    %5154 = vmatprep.subr.bf16.mxu0 0
    %5155 = vmatpush1.bf16.msra.mxu0 0
    %5156 = vmatprep.subr.bf16.mxu0 0
    %5157 = vmatpush1.bf16.msra.mxu0 0
    %5158 = vmatprep.subr.bf16.mxu0 0
    %5159 = vmatpush1.bf16.msra.mxu0 0
    %5160 = vmatprep.subr.bf16.mxu0 0
    %5161 = vmatpush1.bf16.msra.mxu0 0
    %5162 = vmatprep.subr.bf16.mxu0 0
    %5163 = vmatpush1.bf16.msra.mxu0 0
    %5164 = vmatprep.subr.bf16.mxu0 0
    %5165 = vmatpush1.bf16.msra.mxu0 0
    %5166 = vmatprep.mubr.bf16.mxu0 0
    %5167 = vmatmul.mubr.bf16.gmra.mrb[0].mxu0 %v5132
    %v5168 = vpop.f32.mrb[0].mxu0
    %v5169 = vadd.f32 0.0, %v5168
    %v5170 = vpop.f32.mrb[0].mxu0
    %v5171 = vpop.f32.mrb[0].mxu0
    %v5172 = vadd.f32 0.0, %v5171
    %v5173 = vpop.f32.mrb[0].mxu0
    %5174 = vdwg.mxu0
    %5176 = vrot.lane.b32.xlu0 %v1569, 96
    %v5177 = vpop.permute.xlu0 %5176
    %v5180 = vsel %vm2326, %v4642, 0
    %5182 = vmatprep.subr.bf16.mxu0 0
    %5183 = vmatpush1.bf16.msra.mxu0 %v5177
    %5184 = vmatprep.subr.bf16.mxu0 0
    %5185 = vmatpush1.bf16.msra.mxu0 0
    %5186 = vmatprep.subr.bf16.mxu0 0
    %5187 = vmatpush1.bf16.msra.mxu0 0
    %5188 = vmatprep.subr.bf16.mxu0 0
    %5189 = vmatpush1.bf16.msra.mxu0 0
    %5190 = vmatprep.subr.bf16.mxu0 0
    %5191 = vmatpush1.bf16.msra.mxu0 0
    %5192 = vmatprep.subr.bf16.mxu0 0
    %5193 = vmatpush1.bf16.msra.mxu0 0
    %5194 = vmatprep.subr.bf16.mxu0 0
    %5195 = vmatpush1.bf16.msra.mxu0 0
    %5196 = vmatprep.subr.bf16.mxu0 0
    %5197 = vmatpush1.bf16.msra.mxu0 0
    %5198 = vmatprep.subr.bf16.mxu0 0
    %5199 = vmatpush1.bf16.msra.mxu0 0
    %5200 = vmatprep.subr.bf16.mxu0 0
    %5201 = vmatpush1.bf16.msra.mxu0 0
    %5202 = vmatprep.subr.bf16.mxu0 0
    %5203 = vmatpush1.bf16.msra.mxu0 0
    %5204 = vmatprep.subr.bf16.mxu0 0
    %5205 = vmatpush1.bf16.msra.mxu0 0
    %5206 = vmatprep.subr.bf16.mxu0 0
    %5207 = vmatpush1.bf16.msra.mxu0 0
    %5208 = vmatprep.subr.bf16.mxu0 0
    %5209 = vmatpush1.bf16.msra.mxu0 0
    %5210 = vmatprep.subr.bf16.mxu0 0
    %5211 = vmatpush1.bf16.msra.mxu0 0
    %5212 = vmatprep.subr.bf16.mxu0 0
    %5213 = vmatpush1.bf16.msra.mxu0 0
    %5214 = vmatprep.mubr.bf16.mxu0 0
    %5215 = vmatmul.mubr.bf16.gmra.mrb[0].mxu0 %v5180
    %v5216 = vpop.f32.mrb[0].mxu0
    %v5217 = vadd.f32 0.0, %v5216
    %v5218 = vpop.f32.mrb[0].mxu0
    %v5219 = vpop.f32.mrb[0].mxu0
    %v5220 = vadd.f32 0.0, %v5219
    %v5221 = vpop.f32.mrb[0].mxu0
    %5222 = vdwg.mxu0
    %5224 = vrot.lane.b32.xlu0 %v1570, 96
    %v5225 = vpop.permute.xlu0 %5224
    %v5228 = vsel %vm2326, %v4643, 0
    %5230 = vmatprep.subr.bf16.mxu0 0
    %5231 = vmatpush1.bf16.msra.mxu0 %v5225
    %5232 = vmatprep.subr.bf16.mxu0 0
    %5233 = vmatpush1.bf16.msra.mxu0 0
    %5234 = vmatprep.subr.bf16.mxu0 0
    %5235 = vmatpush1.bf16.msra.mxu0 0
    %5236 = vmatprep.subr.bf16.mxu0 0
    %5237 = vmatpush1.bf16.msra.mxu0 0
    %5238 = vmatprep.subr.bf16.mxu0 0
    %5239 = vmatpush1.bf16.msra.mxu0 0
    %5240 = vmatprep.subr.bf16.mxu0 0
    %5241 = vmatpush1.bf16.msra.mxu0 0
    %5242 = vmatprep.subr.bf16.mxu0 0
    %5243 = vmatpush1.bf16.msra.mxu0 0
    %5244 = vmatprep.subr.bf16.mxu0 0
    %5245 = vmatpush1.bf16.msra.mxu0 0
    %5246 = vmatprep.subr.bf16.mxu0 0
    %5247 = vmatpush1.bf16.msra.mxu0 0
    %5248 = vmatprep.subr.bf16.mxu0 0
    %5249 = vmatpush1.bf16.msra.mxu0 0
    %5250 = vmatprep.subr.bf16.mxu0 0
    %5251 = vmatpush1.bf16.msra.mxu0 0
    %5252 = vmatprep.subr.bf16.mxu0 0
    %5253 = vmatpush1.bf16.msra.mxu0 0
    %5254 = vmatprep.subr.bf16.mxu0 0
    %5255 = vmatpush1.bf16.msra.mxu0 0
    %5256 = vmatprep.subr.bf16.mxu0 0
    %5257 = vmatpush1.bf16.msra.mxu0 0
    %5258 = vmatprep.subr.bf16.mxu0 0
    %5259 = vmatpush1.bf16.msra.mxu0 0
    %5260 = vmatprep.subr.bf16.mxu0 0
    %5261 = vmatpush1.bf16.msra.mxu0 0
    %5262 = vmatprep.mubr.bf16.mxu0 0
    %5263 = vmatmul.mubr.bf16.gmra.mrb[0].mxu0 %v5228
    %v5264 = vpop.f32.mrb[0].mxu0
    %v5265 = vadd.f32 0.0, %v5264
    %v5266 = vpop.f32.mrb[0].mxu0
    %v5267 = vpop.f32.mrb[0].mxu0
    %v5268 = vadd.f32 0.0, %v5267
    %v5269 = vpop.f32.mrb[0].mxu0
    %5270 = vdwg.mxu0
    %5272 = vrot.lane.b32.xlu0 %v1571, 96
    %v5273 = vpop.permute.xlu0 %5272
    %v5276 = vsel %vm2326, %v4644, 0
    %5278 = vmatprep.subr.bf16.mxu0 0
    %5279 = vmatpush1.bf16.msra.mxu0 %v5273
    %5280 = vmatprep.subr.bf16.mxu0 0
    %5281 = vmatpush1.bf16.msra.mxu0 0
    %5282 = vmatprep.subr.bf16.mxu0 0
    %5283 = vmatpush1.bf16.msra.mxu0 0
    %5284 = vmatprep.subr.bf16.mxu0 0
    %5285 = vmatpush1.bf16.msra.mxu0 0
    %5286 = vmatprep.subr.bf16.mxu0 0
    %5287 = vmatpush1.bf16.msra.mxu0 0
    %5288 = vmatprep.subr.bf16.mxu0 0
    %5289 = vmatpush1.bf16.msra.mxu0 0
    %5290 = vmatprep.subr.bf16.mxu0 0
    %5291 = vmatpush1.bf16.msra.mxu0 0
    %5292 = vmatprep.subr.bf16.mxu0 0
    %5293 = vmatpush1.bf16.msra.mxu0 0
    %5294 = vmatprep.subr.bf16.mxu0 0
    %5295 = vmatpush1.bf16.msra.mxu0 0
    %5296 = vmatprep.subr.bf16.mxu0 0
    %5297 = vmatpush1.bf16.msra.mxu0 0
    %5298 = vmatprep.subr.bf16.mxu0 0
    %5299 = vmatpush1.bf16.msra.mxu0 0
    %5300 = vmatprep.subr.bf16.mxu0 0
    %5301 = vmatpush1.bf16.msra.mxu0 0
    %5302 = vmatprep.subr.bf16.mxu0 0
    %5303 = vmatpush1.bf16.msra.mxu0 0
    %5304 = vmatprep.subr.bf16.mxu0 0
    %5305 = vmatpush1.bf16.msra.mxu0 0
    %5306 = vmatprep.subr.bf16.mxu0 0
    %5307 = vmatpush1.bf16.msra.mxu0 0
    %5308 = vmatprep.subr.bf16.mxu0 0
    %5309 = vmatpush1.bf16.msra.mxu0 0
    %5310 = vmatprep.mubr.bf16.mxu0 0
    %5311 = vmatmul.mubr.bf16.gmra.mrb[0].mxu0 %v5276
    %v5312 = vpop.f32.mrb[0].mxu0
    %v5313 = vadd.f32 0.0, %v5312
    %v5314 = vpop.f32.mrb[0].mxu0
    %v5315 = vpop.f32.mrb[0].mxu0
    %v5316 = vadd.f32 0.0, %v5315
    %v5317 = vpop.f32.mrb[0].mxu0
    %5318 = vdwg.mxu0
    %5320 = vrot.lane.b32.xlu0 %v1572, 96
    %v5321 = vpop.permute.xlu0 %5320
    %v5324 = vsel %vm2326, %v4645, 0
    %5326 = vmatprep.subr.bf16.mxu0 0
    %5327 = vmatpush1.bf16.msra.mxu0 %v5321
    %5328 = vmatprep.subr.bf16.mxu0 0
    %5329 = vmatpush1.bf16.msra.mxu0 0
    %5330 = vmatprep.subr.bf16.mxu0 0
    %5331 = vmatpush1.bf16.msra.mxu0 0
    %5332 = vmatprep.subr.bf16.mxu0 0
    %5333 = vmatpush1.bf16.msra.mxu0 0
    %5334 = vmatprep.subr.bf16.mxu0 0
    %5335 = vmatpush1.bf16.msra.mxu0 0
    %5336 = vmatprep.subr.bf16.mxu0 0
    %5337 = vmatpush1.bf16.msra.mxu0 0
    %5338 = vmatprep.subr.bf16.mxu0 0
    %5339 = vmatpush1.bf16.msra.mxu0 0
    %5340 = vmatprep.subr.bf16.mxu0 0
    %5341 = vmatpush1.bf16.msra.mxu0 0
    %5342 = vmatprep.subr.bf16.mxu0 0
    %5343 = vmatpush1.bf16.msra.mxu0 0
    %5344 = vmatprep.subr.bf16.mxu0 0
    %5345 = vmatpush1.bf16.msra.mxu0 0
    %5346 = vmatprep.subr.bf16.mxu0 0
    %5347 = vmatpush1.bf16.msra.mxu0 0
    %5348 = vmatprep.subr.bf16.mxu0 0
    %5349 = vmatpush1.bf16.msra.mxu0 0
    %5350 = vmatprep.subr.bf16.mxu0 0
    %5351 = vmatpush1.bf16.msra.mxu0 0
    %5352 = vmatprep.subr.bf16.mxu0 0
    %5353 = vmatpush1.bf16.msra.mxu0 0
    %5354 = vmatprep.subr.bf16.mxu0 0
    %5355 = vmatpush1.bf16.msra.mxu0 0
    %5356 = vmatprep.subr.bf16.mxu0 0
    %5357 = vmatpush1.bf16.msra.mxu0 0
    %5358 = vmatprep.mubr.bf16.mxu0 0
    %5359 = vmatmul.mubr.bf16.gmra.mrb[0].mxu0 %v5324
    %v5360 = vpop.f32.mrb[0].mxu0
    %v5361 = vadd.f32 0.0, %v5360
    %v5362 = vpop.f32.mrb[0].mxu0
    %v5363 = vpop.f32.mrb[0].mxu0
    %v5364 = vadd.f32 0.0, %v5363
    %v5365 = vpop.f32.mrb[0].mxu0
    %5366 = vdwg.mxu0
    %5368 = vrot.lane.b32.xlu0 %v1573, 96
    %v5369 = vpop.permute.xlu0 %5368
    %v5372 = vsel %vm2326, %v4646, 0
    %5374 = vmatprep.subr.bf16.mxu0 0
    %5375 = vmatpush1.bf16.msra.mxu0 %v5369
    %5376 = vmatprep.subr.bf16.mxu0 0
    %5377 = vmatpush1.bf16.msra.mxu0 0
    %5378 = vmatprep.subr.bf16.mxu0 0
    %5379 = vmatpush1.bf16.msra.mxu0 0
    %5380 = vmatprep.subr.bf16.mxu0 0
    %5381 = vmatpush1.bf16.msra.mxu0 0
    %5382 = vmatprep.subr.bf16.mxu0 0
    %5383 = vmatpush1.bf16.msra.mxu0 0
    %5384 = vmatprep.subr.bf16.mxu0 0
    %5385 = vmatpush1.bf16.msra.mxu0 0
    %5386 = vmatprep.subr.bf16.mxu0 0
    %5387 = vmatpush1.bf16.msra.mxu0 0
    %5388 = vmatprep.subr.bf16.mxu0 0
    %5389 = vmatpush1.bf16.msra.mxu0 0
    %5390 = vmatprep.subr.bf16.mxu0 0
    %5391 = vmatpush1.bf16.msra.mxu0 0
    %5392 = vmatprep.subr.bf16.mxu0 0
    %5393 = vmatpush1.bf16.msra.mxu0 0
    %5394 = vmatprep.subr.bf16.mxu0 0
    %5395 = vmatpush1.bf16.msra.mxu0 0
    %5396 = vmatprep.subr.bf16.mxu0 0
    %5397 = vmatpush1.bf16.msra.mxu0 0
    %5398 = vmatprep.subr.bf16.mxu0 0
    %5399 = vmatpush1.bf16.msra.mxu0 0
    %5400 = vmatprep.subr.bf16.mxu0 0
    %5401 = vmatpush1.bf16.msra.mxu0 0
    %5402 = vmatprep.subr.bf16.mxu0 0
    %5403 = vmatpush1.bf16.msra.mxu0 0
    %5404 = vmatprep.subr.bf16.mxu0 0
    %5405 = vmatpush1.bf16.msra.mxu0 0
    %5406 = vmatprep.mubr.bf16.mxu0 0
    %5407 = vmatmul.mubr.bf16.gmra.mrb[0].mxu0 %v5372
    %v5408 = vpop.f32.mrb[0].mxu0
    %v5409 = vadd.f32 0.0, %v5408
    %v5410 = vpop.f32.mrb[0].mxu0
    %v5411 = vpop.f32.mrb[0].mxu0
    %v5412 = vadd.f32 0.0, %v5411
    %v5413 = vpop.f32.mrb[0].mxu0
    %5414 = vdwg.mxu0
    %5447 = vrot.lane.b32.xlu0 %v4689, 32
    %v5448 = vpop.permute.xlu0 %5447
    %5449 = vrot.lane.b32.xlu0 %v4692, 32
    %v5450 = vpop.permute.xlu0 %5449
    %5451 = vrot.lane.b32.xlu0 %v4737, 32
    %v5452 = vpop.permute.xlu0 %5451
    %5453 = vrot.lane.b32.xlu0 %v4740, 32
    %v5454 = vpop.permute.xlu0 %5453
    %5455 = vrot.lane.b32.xlu0 %v4785, 32
    %v5456 = vpop.permute.xlu0 %5455
    %5457 = vrot.lane.b32.xlu0 %v4788, 32
    %v5458 = vpop.permute.xlu0 %5457
    %5459 = vrot.lane.b32.xlu0 %v4833, 32
    %v5460 = vpop.permute.xlu0 %5459
    %5461 = vrot.lane.b32.xlu0 %v4836, 32
    %v5462 = vpop.permute.xlu0 %5461
    %5463 = vrot.lane.b32.xlu0 %v4881, 32
    %v5464 = vpop.permute.xlu0 %5463
    %5465 = vrot.lane.b32.xlu0 %v4884, 32
    %v5466 = vpop.permute.xlu0 %5465
    %5467 = vrot.lane.b32.xlu0 %v4929, 32
    %v5468 = vpop.permute.xlu0 %5467
    %5469 = vrot.lane.b32.xlu0 %v4932, 32
    %v5470 = vpop.permute.xlu0 %5469
    %5471 = vrot.lane.b32.xlu0 %v4977, 32
    %v5472 = vpop.permute.xlu0 %5471
    %5473 = vrot.lane.b32.xlu0 %v4980, 32
    %v5474 = vpop.permute.xlu0 %5473
    %5475 = vrot.lane.b32.xlu0 %v5025, 32
    %v5476 = vpop.permute.xlu0 %5475
    %5477 = vrot.lane.b32.xlu0 %v5028, 32
    %v5478 = vpop.permute.xlu0 %5477
    %5479 = vrot.lane.b32.xlu0 %v5073, 32
    %v5480 = vpop.permute.xlu0 %5479
    %5481 = vrot.lane.b32.xlu0 %v5076, 32
    %v5482 = vpop.permute.xlu0 %5481
    %5483 = vrot.lane.b32.xlu0 %v5121, 32
    %v5484 = vpop.permute.xlu0 %5483
    %5485 = vrot.lane.b32.xlu0 %v5124, 32
    %v5486 = vpop.permute.xlu0 %5485
    %5487 = vrot.lane.b32.xlu0 %v5169, 32
    %v5488 = vpop.permute.xlu0 %5487
    %5489 = vrot.lane.b32.xlu0 %v5172, 32
    %v5490 = vpop.permute.xlu0 %5489
    %5491 = vrot.lane.b32.xlu0 %v5217, 32
    %v5492 = vpop.permute.xlu0 %5491
    %5493 = vrot.lane.b32.xlu0 %v5220, 32
    %v5494 = vpop.permute.xlu0 %5493
    %5495 = vrot.lane.b32.xlu0 %v5265, 32
    %v5496 = vpop.permute.xlu0 %5495
    %5497 = vrot.lane.b32.xlu0 %v5268, 32
    %v5498 = vpop.permute.xlu0 %5497
    %5499 = vrot.lane.b32.xlu0 %v5313, 32
    %v5500 = vpop.permute.xlu0 %5499
    %5501 = vrot.lane.b32.xlu0 %v5316, 32
    %v5502 = vpop.permute.xlu0 %5501
    %5503 = vrot.lane.b32.xlu0 %v5361, 32
    %v5504 = vpop.permute.xlu0 %5503
    %5505 = vrot.lane.b32.xlu0 %v5364, 32
    %v5506 = vpop.permute.xlu0 %5505
    %5507 = vrot.lane.b32.xlu0 %v5409, 32
    %v5508 = vpop.permute.xlu0 %5507
    %5509 = vrot.lane.b32.xlu0 %v5412, 32
    %v5510 = vpop.permute.xlu0 %5509
    %vm5543 = vcmask 523520
    %5544 = vst.msk [vmem:[#allocation2] sm:$0xff] %vm5543, %v5448
    %5545 = vst.msk [vmem:[#allocation2 + $0x8] sm:$0xff] %vm5543, %v5450
    %5546 = vst.msk [vmem:[#allocation2 + $0x10] sm:$0xff] %vm5543, %v5452
    %5547 = vst.msk [vmem:[#allocation2 + $0x18] sm:$0xff] %vm5543, %v5454
    %5548 = vst.msk [vmem:[#allocation2 + $0x20] sm:$0xff] %vm5543, %v5456
    %5549 = vst.msk [vmem:[#allocation2 + $0x28] sm:$0xff] %vm5543, %v5458
    %5550 = vst.msk [vmem:[#allocation2 + $0x30] sm:$0xff] %vm5543, %v5460
    %5551 = vst.msk [vmem:[#allocation2 + $0x38] sm:$0xff] %vm5543, %v5462
    %5552 = vst.msk [vmem:[#allocation2 + $0x40] sm:$0xff] %vm5543, %v5464
    %5553 = vst.msk [vmem:[#allocation2 + $0x48] sm:$0xff] %vm5543, %v5466
    %5554 = vst.msk [vmem:[#allocation2 + $0x50] sm:$0xff] %vm5543, %v5468
    %5555 = vst.msk [vmem:[#allocation2 + $0x58] sm:$0xff] %vm5543, %v5470
    %5556 = vst.msk [vmem:[#allocation2 + $0x60] sm:$0xff] %vm5543, %v5472
    %5557 = vst.msk [vmem:[#allocation2 + $0x68] sm:$0xff] %vm5543, %v5474
    %5558 = vst.msk [vmem:[#allocation2 + $0x70] sm:$0xff] %vm5543, %v5476
    %5559 = vst.msk [vmem:[#allocation2 + $0x78] sm:$0xff] %vm5543, %v5478
    %5560 = vst.msk [vmem:[#allocation2 + $0x80] sm:$0xff] %vm5543, %v5480
    %5561 = vst.msk [vmem:[#allocation2 + $0x88] sm:$0xff] %vm5543, %v5482
    %5562 = vst.msk [vmem:[#allocation2 + $0x90] sm:$0xff] %vm5543, %v5484
    %5563 = vst.msk [vmem:[#allocation2 + $0x98] sm:$0xff] %vm5543, %v5486
    %5564 = vst.msk [vmem:[#allocation2 + $0xa0] sm:$0xff] %vm5543, %v5488
    %5565 = vst.msk [vmem:[#allocation2 + $0xa8] sm:$0xff] %vm5543, %v5490
    %5566 = vst.msk [vmem:[#allocation2 + $0xb0] sm:$0xff] %vm5543, %v5492
    %5567 = vst.msk [vmem:[#allocation2 + $0xb8] sm:$0xff] %vm5543, %v5494
    %5568 = vst.msk [vmem:[#allocation2 + $0xc0] sm:$0xff] %vm5543, %v5496
    %5569 = vst.msk [vmem:[#allocation2 + $0xc8] sm:$0xff] %vm5543, %v5498
    %5570 = vst.msk [vmem:[#allocation2 + $0xd0] sm:$0xff] %vm5543, %v5500
    %5571 = vst.msk [vmem:[#allocation2 + $0xd8] sm:$0xff] %vm5543, %v5502
    %5572 = vst.msk [vmem:[#allocation2 + $0xe0] sm:$0xff] %vm5543, %v5504
    %5573 = vst.msk [vmem:[#allocation2 + $0xe8] sm:$0xff] %vm5543, %v5506
    %5574 = vst.msk [vmem:[#allocation2 + $0xf0] sm:$0xff] %vm5543, %v5508
    %5575 = vst.msk [vmem:[#allocation2 + $0xf8] sm:$0xff] %vm5543, %v5510
    %5576 = vrot.lane.b32.xlu0 %v1526, 64
    %v5577 = vpop.permute.xlu0 %5576
    %5578 = vrot.lane.b32.xlu0 %v1542, 64
    %v5579 = vpop.permute.xlu0 %5578
    %v5581 = vsel %vm272, %v5577, 0
    %v5584 = vsel %vm272, %v5579, 0
    %5586 = vmatprep.subr.bf16.mxu0 0
    %5587 = vmatpush1.bf16.xpose.msra.mxu0 %v5584
    %5588 = vmatprep.subr.bf16.mxu0 0
    %5589 = vmatpush1.bf16.xpose.msra.mxu0 0
    %5590 = vmatprep.subr.bf16.mxu0 0
    %5591 = vmatpush1.bf16.xpose.msra.mxu0 0
    %5592 = vmatprep.subr.bf16.mxu0 0
    %5593 = vmatpush1.bf16.xpose.msra.mxu0 0
    %5594 = vmatprep.subr.bf16.mxu0 0
    %5595 = vmatpush1.bf16.xpose.msra.mxu0 0
    %5596 = vmatprep.subr.bf16.mxu0 0
    %5597 = vmatpush1.bf16.xpose.msra.mxu0 0
    %5598 = vmatprep.subr.bf16.mxu0 0
    %5599 = vmatpush1.bf16.xpose.msra.mxu0 0
    %5600 = vmatprep.subr.bf16.mxu0 0
    %5601 = vmatpush1.bf16.xpose.msra.mxu0 0
    %5602 = vmatprep.subr.bf16.mxu0 0
    %5603 = vmatpush1.bf16.xpose.msra.mxu0 0
    %5604 = vmatprep.subr.bf16.mxu0 0
    %5605 = vmatpush1.bf16.xpose.msra.mxu0 0
    %5606 = vmatprep.subr.bf16.mxu0 0
    %5607 = vmatpush1.bf16.xpose.msra.mxu0 0
    %5608 = vmatprep.subr.bf16.mxu0 0
    %5609 = vmatpush1.bf16.xpose.msra.mxu0 0
    %5610 = vmatprep.subr.bf16.mxu0 0
    %5611 = vmatpush1.bf16.xpose.msra.mxu0 0
    %5612 = vmatprep.subr.bf16.mxu0 0
    %5613 = vmatpush1.bf16.xpose.msra.mxu0 0
    %5614 = vmatprep.subr.bf16.mxu0 0
    %5615 = vmatpush1.bf16.xpose.msra.mxu0 0
    %5616 = vmatprep.subr.bf16.mxu0 0
    %5617 = vmatpush1.bf16.xpose.msra.mxu0 0
    %5618 = vmatprep.mubr.bf16.mxu0 0
    %5619 = vmatmul.mubr.bf16.gmra.mrb[0].mxu0 %v5581
    %v5620 = vpop.f32.mrb[0].mxu0
    %v5621 = vadd.f32 0.0, %v5620
    %v5622 = vpop.f32.mrb[0].mxu0
    %v5623 = vpop.f32.mrb[0].mxu0
    %v5624 = vadd.f32 0.0, %v5623
    %v5625 = vpop.f32.mrb[0].mxu0
    %5626 = vdwg.mxu0
    %5627 = vrot.lane.b32.xlu0 %v1527, 64
    %v5628 = vpop.permute.xlu0 %5627
    %5629 = vrot.lane.b32.xlu0 %v1543, 64
    %v5630 = vpop.permute.xlu0 %5629
    %v5632 = vsel %vm272, %v5628, 0
    %v5635 = vsel %vm272, %v5630, 0
    %5637 = vmatprep.subr.bf16.mxu0 0
    %5638 = vmatpush1.bf16.xpose.msra.mxu0 %v5635
    %5639 = vmatprep.subr.bf16.mxu0 0
    %5640 = vmatpush1.bf16.xpose.msra.mxu0 0
    %5641 = vmatprep.subr.bf16.mxu0 0
    %5642 = vmatpush1.bf16.xpose.msra.mxu0 0
    %5643 = vmatprep.subr.bf16.mxu0 0
    %5644 = vmatpush1.bf16.xpose.msra.mxu0 0
    %5645 = vmatprep.subr.bf16.mxu0 0
    %5646 = vmatpush1.bf16.xpose.msra.mxu0 0
    %5647 = vmatprep.subr.bf16.mxu0 0
    %5648 = vmatpush1.bf16.xpose.msra.mxu0 0
    %5649 = vmatprep.subr.bf16.mxu0 0
    %5650 = vmatpush1.bf16.xpose.msra.mxu0 0
    %5651 = vmatprep.subr.bf16.mxu0 0
    %5652 = vmatpush1.bf16.xpose.msra.mxu0 0
    %5653 = vmatprep.subr.bf16.mxu0 0
    %5654 = vmatpush1.bf16.xpose.msra.mxu0 0
    %5655 = vmatprep.subr.bf16.mxu0 0
    %5656 = vmatpush1.bf16.xpose.msra.mxu0 0
    %5657 = vmatprep.subr.bf16.mxu0 0
    %5658 = vmatpush1.bf16.xpose.msra.mxu0 0
    %5659 = vmatprep.subr.bf16.mxu0 0
    %5660 = vmatpush1.bf16.xpose.msra.mxu0 0
    %5661 = vmatprep.subr.bf16.mxu0 0
    %5662 = vmatpush1.bf16.xpose.msra.mxu0 0
    %5663 = vmatprep.subr.bf16.mxu0 0
    %5664 = vmatpush1.bf16.xpose.msra.mxu0 0
    %5665 = vmatprep.subr.bf16.mxu0 0
    %5666 = vmatpush1.bf16.xpose.msra.mxu0 0
    %5667 = vmatprep.subr.bf16.mxu0 0
    %5668 = vmatpush1.bf16.xpose.msra.mxu0 0
    %5669 = vmatprep.mubr.bf16.mxu0 0
    %5670 = vmatmul.mubr.bf16.gmra.mrb[0].mxu0 %v5632
    %v5671 = vpop.f32.mrb[0].mxu0
    %v5672 = vadd.f32 0.0, %v5671
    %v5673 = vpop.f32.mrb[0].mxu0
    %v5674 = vpop.f32.mrb[0].mxu0
    %v5675 = vadd.f32 0.0, %v5674
    %v5676 = vpop.f32.mrb[0].mxu0
    %5677 = vdwg.mxu0
    %5678 = vrot.lane.b32.xlu0 %v1528, 64
    %v5679 = vpop.permute.xlu0 %5678
    %5680 = vrot.lane.b32.xlu0 %v1544, 64
    %v5681 = vpop.permute.xlu0 %5680
    %v5683 = vsel %vm272, %v5679, 0
    %v5686 = vsel %vm272, %v5681, 0
    %5688 = vmatprep.subr.bf16.mxu0 0
    %5689 = vmatpush1.bf16.xpose.msra.mxu0 %v5686
    %5690 = vmatprep.subr.bf16.mxu0 0
    %5691 = vmatpush1.bf16.xpose.msra.mxu0 0
    %5692 = vmatprep.subr.bf16.mxu0 0
    %5693 = vmatpush1.bf16.xpose.msra.mxu0 0
    %5694 = vmatprep.subr.bf16.mxu0 0
    %5695 = vmatpush1.bf16.xpose.msra.mxu0 0
    %5696 = vmatprep.subr.bf16.mxu0 0
    %5697 = vmatpush1.bf16.xpose.msra.mxu0 0
    %5698 = vmatprep.subr.bf16.mxu0 0
    %5699 = vmatpush1.bf16.xpose.msra.mxu0 0
    %5700 = vmatprep.subr.bf16.mxu0 0
    %5701 = vmatpush1.bf16.xpose.msra.mxu0 0
    %5702 = vmatprep.subr.bf16.mxu0 0
    %5703 = vmatpush1.bf16.xpose.msra.mxu0 0
    %5704 = vmatprep.subr.bf16.mxu0 0
    %5705 = vmatpush1.bf16.xpose.msra.mxu0 0
    %5706 = vmatprep.subr.bf16.mxu0 0
    %5707 = vmatpush1.bf16.xpose.msra.mxu0 0
    %5708 = vmatprep.subr.bf16.mxu0 0
    %5709 = vmatpush1.bf16.xpose.msra.mxu0 0
    %5710 = vmatprep.subr.bf16.mxu0 0
    %5711 = vmatpush1.bf16.xpose.msra.mxu0 0
    %5712 = vmatprep.subr.bf16.mxu0 0
    %5713 = vmatpush1.bf16.xpose.msra.mxu0 0
    %5714 = vmatprep.subr.bf16.mxu0 0
    %5715 = vmatpush1.bf16.xpose.msra.mxu0 0
    %5716 = vmatprep.subr.bf16.mxu0 0
    %5717 = vmatpush1.bf16.xpose.msra.mxu0 0
    %5718 = vmatprep.subr.bf16.mxu0 0
    %5719 = vmatpush1.bf16.xpose.msra.mxu0 0
    %5720 = vmatprep.mubr.bf16.mxu0 0
    %5721 = vmatmul.mubr.bf16.gmra.mrb[0].mxu0 %v5683
    %v5722 = vpop.f32.mrb[0].mxu0
    %v5723 = vadd.f32 0.0, %v5722
    %v5724 = vpop.f32.mrb[0].mxu0
    %v5725 = vpop.f32.mrb[0].mxu0
    %v5726 = vadd.f32 0.0, %v5725
    %v5727 = vpop.f32.mrb[0].mxu0
    %5728 = vdwg.mxu0
    %5729 = vrot.lane.b32.xlu0 %v1529, 64
    %v5730 = vpop.permute.xlu0 %5729
    %5731 = vrot.lane.b32.xlu0 %v1545, 64
    %v5732 = vpop.permute.xlu0 %5731
    %v5734 = vsel %vm272, %v5730, 0
    %v5737 = vsel %vm272, %v5732, 0
    %5739 = vmatprep.subr.bf16.mxu0 0
    %5740 = vmatpush1.bf16.xpose.msra.mxu0 %v5737
    %5741 = vmatprep.subr.bf16.mxu0 0
    %5742 = vmatpush1.bf16.xpose.msra.mxu0 0
    %5743 = vmatprep.subr.bf16.mxu0 0
    %5744 = vmatpush1.bf16.xpose.msra.mxu0 0
    %5745 = vmatprep.subr.bf16.mxu0 0
    %5746 = vmatpush1.bf16.xpose.msra.mxu0 0
    %5747 = vmatprep.subr.bf16.mxu0 0
    %5748 = vmatpush1.bf16.xpose.msra.mxu0 0
    %5749 = vmatprep.subr.bf16.mxu0 0
    %5750 = vmatpush1.bf16.xpose.msra.mxu0 0
    %5751 = vmatprep.subr.bf16.mxu0 0
    %5752 = vmatpush1.bf16.xpose.msra.mxu0 0
    %5753 = vmatprep.subr.bf16.mxu0 0
    %5754 = vmatpush1.bf16.xpose.msra.mxu0 0
    %5755 = vmatprep.subr.bf16.mxu0 0
    %5756 = vmatpush1.bf16.xpose.msra.mxu0 0
    %5757 = vmatprep.subr.bf16.mxu0 0
    %5758 = vmatpush1.bf16.xpose.msra.mxu0 0
    %5759 = vmatprep.subr.bf16.mxu0 0
    %5760 = vmatpush1.bf16.xpose.msra.mxu0 0
    %5761 = vmatprep.subr.bf16.mxu0 0
    %5762 = vmatpush1.bf16.xpose.msra.mxu0 0
    %5763 = vmatprep.subr.bf16.mxu0 0
    %5764 = vmatpush1.bf16.xpose.msra.mxu0 0
    %5765 = vmatprep.subr.bf16.mxu0 0
    %5766 = vmatpush1.bf16.xpose.msra.mxu0 0
    %5767 = vmatprep.subr.bf16.mxu0 0
    %5768 = vmatpush1.bf16.xpose.msra.mxu0 0
    %5769 = vmatprep.subr.bf16.mxu0 0
    %5770 = vmatpush1.bf16.xpose.msra.mxu0 0
    %5771 = vmatprep.mubr.bf16.mxu0 0
    %5772 = vmatmul.mubr.bf16.gmra.mrb[0].mxu0 %v5734
    %v5773 = vpop.f32.mrb[0].mxu0
    %v5774 = vadd.f32 0.0, %v5773
    %v5775 = vpop.f32.mrb[0].mxu0
    %v5776 = vpop.f32.mrb[0].mxu0
    %v5777 = vadd.f32 0.0, %v5776
    %v5778 = vpop.f32.mrb[0].mxu0
    %5779 = vdwg.mxu0
    %5780 = vrot.lane.b32.xlu0 %v1530, 64
    %v5781 = vpop.permute.xlu0 %5780
    %5782 = vrot.lane.b32.xlu0 %v1546, 64
    %v5783 = vpop.permute.xlu0 %5782
    %v5785 = vsel %vm272, %v5781, 0
    %v5788 = vsel %vm272, %v5783, 0
    %5790 = vmatprep.subr.bf16.mxu0 0
    %5791 = vmatpush1.bf16.xpose.msra.mxu0 %v5788
    %5792 = vmatprep.subr.bf16.mxu0 0
    %5793 = vmatpush1.bf16.xpose.msra.mxu0 0
    %5794 = vmatprep.subr.bf16.mxu0 0
    %5795 = vmatpush1.bf16.xpose.msra.mxu0 0
    %5796 = vmatprep.subr.bf16.mxu0 0
    %5797 = vmatpush1.bf16.xpose.msra.mxu0 0
    %5798 = vmatprep.subr.bf16.mxu0 0
    %5799 = vmatpush1.bf16.xpose.msra.mxu0 0
    %5800 = vmatprep.subr.bf16.mxu0 0
    %5801 = vmatpush1.bf16.xpose.msra.mxu0 0
    %5802 = vmatprep.subr.bf16.mxu0 0
    %5803 = vmatpush1.bf16.xpose.msra.mxu0 0
    %5804 = vmatprep.subr.bf16.mxu0 0
    %5805 = vmatpush1.bf16.xpose.msra.mxu0 0
    %5806 = vmatprep.subr.bf16.mxu0 0
    %5807 = vmatpush1.bf16.xpose.msra.mxu0 0
    %5808 = vmatprep.subr.bf16.mxu0 0
    %5809 = vmatpush1.bf16.xpose.msra.mxu0 0
    %5810 = vmatprep.subr.bf16.mxu0 0
    %5811 = vmatpush1.bf16.xpose.msra.mxu0 0
    %5812 = vmatprep.subr.bf16.mxu0 0
    %5813 = vmatpush1.bf16.xpose.msra.mxu0 0
    %5814 = vmatprep.subr.bf16.mxu0 0
    %5815 = vmatpush1.bf16.xpose.msra.mxu0 0
    %5816 = vmatprep.subr.bf16.mxu0 0
    %5817 = vmatpush1.bf16.xpose.msra.mxu0 0
    %5818 = vmatprep.subr.bf16.mxu0 0
    %5819 = vmatpush1.bf16.xpose.msra.mxu0 0
    %5820 = vmatprep.subr.bf16.mxu0 0
    %5821 = vmatpush1.bf16.xpose.msra.mxu0 0
    %5822 = vmatprep.mubr.bf16.mxu0 0
    %5823 = vmatmul.mubr.bf16.gmra.mrb[0].mxu0 %v5785
    %v5824 = vpop.f32.mrb[0].mxu0
    %v5825 = vadd.f32 0.0, %v5824
    %v5826 = vpop.f32.mrb[0].mxu0
    %v5827 = vpop.f32.mrb[0].mxu0
    %v5828 = vadd.f32 0.0, %v5827
    %v5829 = vpop.f32.mrb[0].mxu0
    %5830 = vdwg.mxu0
    %5831 = vrot.lane.b32.xlu0 %v1531, 64
    %v5832 = vpop.permute.xlu0 %5831
    %5833 = vrot.lane.b32.xlu0 %v1547, 64
    %v5834 = vpop.permute.xlu0 %5833
    %v5836 = vsel %vm272, %v5832, 0
    %v5839 = vsel %vm272, %v5834, 0
    %5841 = vmatprep.subr.bf16.mxu0 0
    %5842 = vmatpush1.bf16.xpose.msra.mxu0 %v5839
    %5843 = vmatprep.subr.bf16.mxu0 0
    %5844 = vmatpush1.bf16.xpose.msra.mxu0 0
    %5845 = vmatprep.subr.bf16.mxu0 0
    %5846 = vmatpush1.bf16.xpose.msra.mxu0 0
    %5847 = vmatprep.subr.bf16.mxu0 0
    %5848 = vmatpush1.bf16.xpose.msra.mxu0 0
    %5849 = vmatprep.subr.bf16.mxu0 0
    %5850 = vmatpush1.bf16.xpose.msra.mxu0 0
    %5851 = vmatprep.subr.bf16.mxu0 0
    %5852 = vmatpush1.bf16.xpose.msra.mxu0 0
    %5853 = vmatprep.subr.bf16.mxu0 0
    %5854 = vmatpush1.bf16.xpose.msra.mxu0 0
    %5855 = vmatprep.subr.bf16.mxu0 0
    %5856 = vmatpush1.bf16.xpose.msra.mxu0 0
    %5857 = vmatprep.subr.bf16.mxu0 0
    %5858 = vmatpush1.bf16.xpose.msra.mxu0 0
    %5859 = vmatprep.subr.bf16.mxu0 0
    %5860 = vmatpush1.bf16.xpose.msra.mxu0 0
    %5861 = vmatprep.subr.bf16.mxu0 0
    %5862 = vmatpush1.bf16.xpose.msra.mxu0 0
    %5863 = vmatprep.subr.bf16.mxu0 0
    %5864 = vmatpush1.bf16.xpose.msra.mxu0 0
    %5865 = vmatprep.subr.bf16.mxu0 0
    %5866 = vmatpush1.bf16.xpose.msra.mxu0 0
    %5867 = vmatprep.subr.bf16.mxu0 0
    %5868 = vmatpush1.bf16.xpose.msra.mxu0 0
    %5869 = vmatprep.subr.bf16.mxu0 0
    %5870 = vmatpush1.bf16.xpose.msra.mxu0 0
    %5871 = vmatprep.subr.bf16.mxu0 0
    %5872 = vmatpush1.bf16.xpose.msra.mxu0 0
    %5873 = vmatprep.mubr.bf16.mxu0 0
    %5874 = vmatmul.mubr.bf16.gmra.mrb[0].mxu0 %v5836
    %v5875 = vpop.f32.mrb[0].mxu0
    %v5876 = vadd.f32 0.0, %v5875
    %v5877 = vpop.f32.mrb[0].mxu0
    %v5878 = vpop.f32.mrb[0].mxu0
    %v5879 = vadd.f32 0.0, %v5878
    %v5880 = vpop.f32.mrb[0].mxu0
    %5881 = vdwg.mxu0
    %5882 = vrot.lane.b32.xlu0 %v1532, 64
    %v5883 = vpop.permute.xlu0 %5882
    %5884 = vrot.lane.b32.xlu0 %v1548, 64
    %v5885 = vpop.permute.xlu0 %5884
    %v5887 = vsel %vm272, %v5883, 0
    %v5890 = vsel %vm272, %v5885, 0
    %5892 = vmatprep.subr.bf16.mxu0 0
    %5893 = vmatpush1.bf16.xpose.msra.mxu0 %v5890
    %5894 = vmatprep.subr.bf16.mxu0 0
    %5895 = vmatpush1.bf16.xpose.msra.mxu0 0
    %5896 = vmatprep.subr.bf16.mxu0 0
    %5897 = vmatpush1.bf16.xpose.msra.mxu0 0
    %5898 = vmatprep.subr.bf16.mxu0 0
    %5899 = vmatpush1.bf16.xpose.msra.mxu0 0
    %5900 = vmatprep.subr.bf16.mxu0 0
    %5901 = vmatpush1.bf16.xpose.msra.mxu0 0
    %5902 = vmatprep.subr.bf16.mxu0 0
    %5903 = vmatpush1.bf16.xpose.msra.mxu0 0
    %5904 = vmatprep.subr.bf16.mxu0 0
    %5905 = vmatpush1.bf16.xpose.msra.mxu0 0
    %5906 = vmatprep.subr.bf16.mxu0 0
    %5907 = vmatpush1.bf16.xpose.msra.mxu0 0
    %5908 = vmatprep.subr.bf16.mxu0 0
    %5909 = vmatpush1.bf16.xpose.msra.mxu0 0
    %5910 = vmatprep.subr.bf16.mxu0 0
    %5911 = vmatpush1.bf16.xpose.msra.mxu0 0
    %5912 = vmatprep.subr.bf16.mxu0 0
    %5913 = vmatpush1.bf16.xpose.msra.mxu0 0
    %5914 = vmatprep.subr.bf16.mxu0 0
    %5915 = vmatpush1.bf16.xpose.msra.mxu0 0
    %5916 = vmatprep.subr.bf16.mxu0 0
    %5917 = vmatpush1.bf16.xpose.msra.mxu0 0
    %5918 = vmatprep.subr.bf16.mxu0 0
    %5919 = vmatpush1.bf16.xpose.msra.mxu0 0
    %5920 = vmatprep.subr.bf16.mxu0 0
    %5921 = vmatpush1.bf16.xpose.msra.mxu0 0
    %5922 = vmatprep.subr.bf16.mxu0 0
    %5923 = vmatpush1.bf16.xpose.msra.mxu0 0
    %5924 = vmatprep.mubr.bf16.mxu0 0
    %5925 = vmatmul.mubr.bf16.gmra.mrb[0].mxu0 %v5887
    %v5926 = vpop.f32.mrb[0].mxu0
    %v5927 = vadd.f32 0.0, %v5926
    %v5928 = vpop.f32.mrb[0].mxu0
    %v5929 = vpop.f32.mrb[0].mxu0
    %v5930 = vadd.f32 0.0, %v5929
    %v5931 = vpop.f32.mrb[0].mxu0
    %5932 = vdwg.mxu0
    %5933 = vrot.lane.b32.xlu0 %v1533, 64
    %v5934 = vpop.permute.xlu0 %5933
    %5935 = vrot.lane.b32.xlu0 %v1549, 64
    %v5936 = vpop.permute.xlu0 %5935
    %v5938 = vsel %vm272, %v5934, 0
    %v5941 = vsel %vm272, %v5936, 0
    %5943 = vmatprep.subr.bf16.mxu0 0
    %5944 = vmatpush1.bf16.xpose.msra.mxu0 %v5941
    %5945 = vmatprep.subr.bf16.mxu0 0
    %5946 = vmatpush1.bf16.xpose.msra.mxu0 0
    %5947 = vmatprep.subr.bf16.mxu0 0
    %5948 = vmatpush1.bf16.xpose.msra.mxu0 0
    %5949 = vmatprep.subr.bf16.mxu0 0
    %5950 = vmatpush1.bf16.xpose.msra.mxu0 0
    %5951 = vmatprep.subr.bf16.mxu0 0
    %5952 = vmatpush1.bf16.xpose.msra.mxu0 0
    %5953 = vmatprep.subr.bf16.mxu0 0
    %5954 = vmatpush1.bf16.xpose.msra.mxu0 0
    %5955 = vmatprep.subr.bf16.mxu0 0
    %5956 = vmatpush1.bf16.xpose.msra.mxu0 0
    %5957 = vmatprep.subr.bf16.mxu0 0
    %5958 = vmatpush1.bf16.xpose.msra.mxu0 0
    %5959 = vmatprep.subr.bf16.mxu0 0
    %5960 = vmatpush1.bf16.xpose.msra.mxu0 0
    %5961 = vmatprep.subr.bf16.mxu0 0
    %5962 = vmatpush1.bf16.xpose.msra.mxu0 0
    %5963 = vmatprep.subr.bf16.mxu0 0
    %5964 = vmatpush1.bf16.xpose.msra.mxu0 0
    %5965 = vmatprep.subr.bf16.mxu0 0
    %5966 = vmatpush1.bf16.xpose.msra.mxu0 0
    %5967 = vmatprep.subr.bf16.mxu0 0
    %5968 = vmatpush1.bf16.xpose.msra.mxu0 0
    %5969 = vmatprep.subr.bf16.mxu0 0
    %5970 = vmatpush1.bf16.xpose.msra.mxu0 0
    %5971 = vmatprep.subr.bf16.mxu0 0
    %5972 = vmatpush1.bf16.xpose.msra.mxu0 0
    %5973 = vmatprep.subr.bf16.mxu0 0
    %5974 = vmatpush1.bf16.xpose.msra.mxu0 0
    %5975 = vmatprep.mubr.bf16.mxu0 0
    %5976 = vmatmul.mubr.bf16.gmra.mrb[0].mxu0 %v5938
    %v5977 = vpop.f32.mrb[0].mxu0
    %v5978 = vadd.f32 0.0, %v5977
    %v5979 = vpop.f32.mrb[0].mxu0
    %v5980 = vpop.f32.mrb[0].mxu0
    %v5981 = vadd.f32 0.0, %v5980
    %v5982 = vpop.f32.mrb[0].mxu0
    %5983 = vdwg.mxu0
    %5984 = vrot.lane.b32.xlu0 %v1534, 64
    %v5985 = vpop.permute.xlu0 %5984
    %5986 = vrot.lane.b32.xlu0 %v1550, 64
    %v5987 = vpop.permute.xlu0 %5986
    %v5989 = vsel %vm272, %v5985, 0
    %v5992 = vsel %vm272, %v5987, 0
    %5994 = vmatprep.subr.bf16.mxu0 0
    %5995 = vmatpush1.bf16.xpose.msra.mxu0 %v5992
    %5996 = vmatprep.subr.bf16.mxu0 0
    %5997 = vmatpush1.bf16.xpose.msra.mxu0 0
    %5998 = vmatprep.subr.bf16.mxu0 0
    %5999 = vmatpush1.bf16.xpose.msra.mxu0 0
    %6000 = vmatprep.subr.bf16.mxu0 0
    %6001 = vmatpush1.bf16.xpose.msra.mxu0 0
    %6002 = vmatprep.subr.bf16.mxu0 0
    %6003 = vmatpush1.bf16.xpose.msra.mxu0 0
    %6004 = vmatprep.subr.bf16.mxu0 0
    %6005 = vmatpush1.bf16.xpose.msra.mxu0 0
    %6006 = vmatprep.subr.bf16.mxu0 0
    %6007 = vmatpush1.bf16.xpose.msra.mxu0 0
    %6008 = vmatprep.subr.bf16.mxu0 0
    %6009 = vmatpush1.bf16.xpose.msra.mxu0 0
    %6010 = vmatprep.subr.bf16.mxu0 0
    %6011 = vmatpush1.bf16.xpose.msra.mxu0 0
    %6012 = vmatprep.subr.bf16.mxu0 0
    %6013 = vmatpush1.bf16.xpose.msra.mxu0 0
    %6014 = vmatprep.subr.bf16.mxu0 0
    %6015 = vmatpush1.bf16.xpose.msra.mxu0 0
    %6016 = vmatprep.subr.bf16.mxu0 0
    %6017 = vmatpush1.bf16.xpose.msra.mxu0 0
    %6018 = vmatprep.subr.bf16.mxu0 0
    %6019 = vmatpush1.bf16.xpose.msra.mxu0 0
    %6020 = vmatprep.subr.bf16.mxu0 0
    %6021 = vmatpush1.bf16.xpose.msra.mxu0 0
    %6022 = vmatprep.subr.bf16.mxu0 0
    %6023 = vmatpush1.bf16.xpose.msra.mxu0 0
    %6024 = vmatprep.subr.bf16.mxu0 0
    %6025 = vmatpush1.bf16.xpose.msra.mxu0 0
    %6026 = vmatprep.mubr.bf16.mxu0 0
    %6027 = vmatmul.mubr.bf16.gmra.mrb[0].mxu0 %v5989
    %v6028 = vpop.f32.mrb[0].mxu0
    %v6029 = vadd.f32 0.0, %v6028
    %v6030 = vpop.f32.mrb[0].mxu0
    %v6031 = vpop.f32.mrb[0].mxu0
    %v6032 = vadd.f32 0.0, %v6031
    %v6033 = vpop.f32.mrb[0].mxu0
    %6034 = vdwg.mxu0
    %6035 = vrot.lane.b32.xlu0 %v1535, 64
    %v6036 = vpop.permute.xlu0 %6035
    %6037 = vrot.lane.b32.xlu0 %v1551, 64
    %v6038 = vpop.permute.xlu0 %6037
    %v6040 = vsel %vm272, %v6036, 0
    %v6043 = vsel %vm272, %v6038, 0
    %6045 = vmatprep.subr.bf16.mxu0 0
    %6046 = vmatpush1.bf16.xpose.msra.mxu0 %v6043
    %6047 = vmatprep.subr.bf16.mxu0 0
    %6048 = vmatpush1.bf16.xpose.msra.mxu0 0
    %6049 = vmatprep.subr.bf16.mxu0 0
    %6050 = vmatpush1.bf16.xpose.msra.mxu0 0
    %6051 = vmatprep.subr.bf16.mxu0 0
    %6052 = vmatpush1.bf16.xpose.msra.mxu0 0
    %6053 = vmatprep.subr.bf16.mxu0 0
    %6054 = vmatpush1.bf16.xpose.msra.mxu0 0
    %6055 = vmatprep.subr.bf16.mxu0 0
    %6056 = vmatpush1.bf16.xpose.msra.mxu0 0
    %6057 = vmatprep.subr.bf16.mxu0 0
    %6058 = vmatpush1.bf16.xpose.msra.mxu0 0
    %6059 = vmatprep.subr.bf16.mxu0 0
    %6060 = vmatpush1.bf16.xpose.msra.mxu0 0
    %6061 = vmatprep.subr.bf16.mxu0 0
    %6062 = vmatpush1.bf16.xpose.msra.mxu0 0
    %6063 = vmatprep.subr.bf16.mxu0 0
    %6064 = vmatpush1.bf16.xpose.msra.mxu0 0
    %6065 = vmatprep.subr.bf16.mxu0 0
    %6066 = vmatpush1.bf16.xpose.msra.mxu0 0
    %6067 = vmatprep.subr.bf16.mxu0 0
    %6068 = vmatpush1.bf16.xpose.msra.mxu0 0
    %6069 = vmatprep.subr.bf16.mxu0 0
    %6070 = vmatpush1.bf16.xpose.msra.mxu0 0
    %6071 = vmatprep.subr.bf16.mxu0 0
    %6072 = vmatpush1.bf16.xpose.msra.mxu0 0
    %6073 = vmatprep.subr.bf16.mxu0 0
    %6074 = vmatpush1.bf16.xpose.msra.mxu0 0
    %6075 = vmatprep.subr.bf16.mxu0 0
    %6076 = vmatpush1.bf16.xpose.msra.mxu0 0
    %6077 = vmatprep.mubr.bf16.mxu0 0
    %6078 = vmatmul.mubr.bf16.gmra.mrb[0].mxu0 %v6040
    %v6079 = vpop.f32.mrb[0].mxu0
    %v6080 = vadd.f32 0.0, %v6079
    %v6081 = vpop.f32.mrb[0].mxu0
    %v6082 = vpop.f32.mrb[0].mxu0
    %v6083 = vadd.f32 0.0, %v6082
    %v6084 = vpop.f32.mrb[0].mxu0
    %6085 = vdwg.mxu0
    %6086 = vrot.lane.b32.xlu0 %v1536, 64
    %v6087 = vpop.permute.xlu0 %6086
    %6088 = vrot.lane.b32.xlu0 %v1552, 64
    %v6089 = vpop.permute.xlu0 %6088
    %v6091 = vsel %vm272, %v6087, 0
    %v6094 = vsel %vm272, %v6089, 0
    %6096 = vmatprep.subr.bf16.mxu0 0
    %6097 = vmatpush1.bf16.xpose.msra.mxu0 %v6094
    %6098 = vmatprep.subr.bf16.mxu0 0
    %6099 = vmatpush1.bf16.xpose.msra.mxu0 0
    %6100 = vmatprep.subr.bf16.mxu0 0
    %6101 = vmatpush1.bf16.xpose.msra.mxu0 0
    %6102 = vmatprep.subr.bf16.mxu0 0
    %6103 = vmatpush1.bf16.xpose.msra.mxu0 0
    %6104 = vmatprep.subr.bf16.mxu0 0
    %6105 = vmatpush1.bf16.xpose.msra.mxu0 0
    %6106 = vmatprep.subr.bf16.mxu0 0
    %6107 = vmatpush1.bf16.xpose.msra.mxu0 0
    %6108 = vmatprep.subr.bf16.mxu0 0
    %6109 = vmatpush1.bf16.xpose.msra.mxu0 0
    %6110 = vmatprep.subr.bf16.mxu0 0
    %6111 = vmatpush1.bf16.xpose.msra.mxu0 0
    %6112 = vmatprep.subr.bf16.mxu0 0
    %6113 = vmatpush1.bf16.xpose.msra.mxu0 0
    %6114 = vmatprep.subr.bf16.mxu0 0
    %6115 = vmatpush1.bf16.xpose.msra.mxu0 0
    %6116 = vmatprep.subr.bf16.mxu0 0
    %6117 = vmatpush1.bf16.xpose.msra.mxu0 0
    %6118 = vmatprep.subr.bf16.mxu0 0
    %6119 = vmatpush1.bf16.xpose.msra.mxu0 0
    %6120 = vmatprep.subr.bf16.mxu0 0
    %6121 = vmatpush1.bf16.xpose.msra.mxu0 0
    %6122 = vmatprep.subr.bf16.mxu0 0
    %6123 = vmatpush1.bf16.xpose.msra.mxu0 0
    %6124 = vmatprep.subr.bf16.mxu0 0
    %6125 = vmatpush1.bf16.xpose.msra.mxu0 0
    %6126 = vmatprep.subr.bf16.mxu0 0
    %6127 = vmatpush1.bf16.xpose.msra.mxu0 0
    %6128 = vmatprep.mubr.bf16.mxu0 0
    %6129 = vmatmul.mubr.bf16.gmra.mrb[0].mxu0 %v6091
    %v6130 = vpop.f32.mrb[0].mxu0
    %v6131 = vadd.f32 0.0, %v6130
    %v6132 = vpop.f32.mrb[0].mxu0
    %v6133 = vpop.f32.mrb[0].mxu0
    %v6134 = vadd.f32 0.0, %v6133
    %v6135 = vpop.f32.mrb[0].mxu0
    %6136 = vdwg.mxu0
    %6137 = vrot.lane.b32.xlu0 %v1537, 64
    %v6138 = vpop.permute.xlu0 %6137
    %6139 = vrot.lane.b32.xlu0 %v1553, 64
    %v6140 = vpop.permute.xlu0 %6139
    %v6142 = vsel %vm272, %v6138, 0
    %v6145 = vsel %vm272, %v6140, 0
    %6147 = vmatprep.subr.bf16.mxu0 0
    %6148 = vmatpush1.bf16.xpose.msra.mxu0 %v6145
    %6149 = vmatprep.subr.bf16.mxu0 0
    %6150 = vmatpush1.bf16.xpose.msra.mxu0 0
    %6151 = vmatprep.subr.bf16.mxu0 0
    %6152 = vmatpush1.bf16.xpose.msra.mxu0 0
    %6153 = vmatprep.subr.bf16.mxu0 0
    %6154 = vmatpush1.bf16.xpose.msra.mxu0 0
    %6155 = vmatprep.subr.bf16.mxu0 0
    %6156 = vmatpush1.bf16.xpose.msra.mxu0 0
    %6157 = vmatprep.subr.bf16.mxu0 0
    %6158 = vmatpush1.bf16.xpose.msra.mxu0 0
    %6159 = vmatprep.subr.bf16.mxu0 0
    %6160 = vmatpush1.bf16.xpose.msra.mxu0 0
    %6161 = vmatprep.subr.bf16.mxu0 0
    %6162 = vmatpush1.bf16.xpose.msra.mxu0 0
    %6163 = vmatprep.subr.bf16.mxu0 0
    %6164 = vmatpush1.bf16.xpose.msra.mxu0 0
    %6165 = vmatprep.subr.bf16.mxu0 0
    %6166 = vmatpush1.bf16.xpose.msra.mxu0 0
    %6167 = vmatprep.subr.bf16.mxu0 0
    %6168 = vmatpush1.bf16.xpose.msra.mxu0 0
    %6169 = vmatprep.subr.bf16.mxu0 0
    %6170 = vmatpush1.bf16.xpose.msra.mxu0 0
    %6171 = vmatprep.subr.bf16.mxu0 0
    %6172 = vmatpush1.bf16.xpose.msra.mxu0 0
    %6173 = vmatprep.subr.bf16.mxu0 0
    %6174 = vmatpush1.bf16.xpose.msra.mxu0 0
    %6175 = vmatprep.subr.bf16.mxu0 0
    %6176 = vmatpush1.bf16.xpose.msra.mxu0 0
    %6177 = vmatprep.subr.bf16.mxu0 0
    %6178 = vmatpush1.bf16.xpose.msra.mxu0 0
    %6179 = vmatprep.mubr.bf16.mxu0 0
    %6180 = vmatmul.mubr.bf16.gmra.mrb[0].mxu0 %v6142
    %v6181 = vpop.f32.mrb[0].mxu0
    %v6182 = vadd.f32 0.0, %v6181
    %v6183 = vpop.f32.mrb[0].mxu0
    %v6184 = vpop.f32.mrb[0].mxu0
    %v6185 = vadd.f32 0.0, %v6184
    %v6186 = vpop.f32.mrb[0].mxu0
    %6187 = vdwg.mxu0
    %6188 = vrot.lane.b32.xlu0 %v1538, 64
    %v6189 = vpop.permute.xlu0 %6188
    %6190 = vrot.lane.b32.xlu0 %v1554, 64
    %v6191 = vpop.permute.xlu0 %6190
    %v6193 = vsel %vm272, %v6189, 0
    %v6196 = vsel %vm272, %v6191, 0
    %6198 = vmatprep.subr.bf16.mxu0 0
    %6199 = vmatpush1.bf16.xpose.msra.mxu0 %v6196
    %6200 = vmatprep.subr.bf16.mxu0 0
    %6201 = vmatpush1.bf16.xpose.msra.mxu0 0
    %6202 = vmatprep.subr.bf16.mxu0 0
    %6203 = vmatpush1.bf16.xpose.msra.mxu0 0
    %6204 = vmatprep.subr.bf16.mxu0 0
    %6205 = vmatpush1.bf16.xpose.msra.mxu0 0
    %6206 = vmatprep.subr.bf16.mxu0 0
    %6207 = vmatpush1.bf16.xpose.msra.mxu0 0
    %6208 = vmatprep.subr.bf16.mxu0 0
    %6209 = vmatpush1.bf16.xpose.msra.mxu0 0
    %6210 = vmatprep.subr.bf16.mxu0 0
    %6211 = vmatpush1.bf16.xpose.msra.mxu0 0
    %6212 = vmatprep.subr.bf16.mxu0 0
    %6213 = vmatpush1.bf16.xpose.msra.mxu0 0
    %6214 = vmatprep.subr.bf16.mxu0 0
    %6215 = vmatpush1.bf16.xpose.msra.mxu0 0
    %6216 = vmatprep.subr.bf16.mxu0 0
    %6217 = vmatpush1.bf16.xpose.msra.mxu0 0
    %6218 = vmatprep.subr.bf16.mxu0 0
    %6219 = vmatpush1.bf16.xpose.msra.mxu0 0
    %6220 = vmatprep.subr.bf16.mxu0 0
    %6221 = vmatpush1.bf16.xpose.msra.mxu0 0
    %6222 = vmatprep.subr.bf16.mxu0 0
    %6223 = vmatpush1.bf16.xpose.msra.mxu0 0
    %6224 = vmatprep.subr.bf16.mxu0 0
    %6225 = vmatpush1.bf16.xpose.msra.mxu0 0
    %6226 = vmatprep.subr.bf16.mxu0 0
    %6227 = vmatpush1.bf16.xpose.msra.mxu0 0
    %6228 = vmatprep.subr.bf16.mxu0 0
    %6229 = vmatpush1.bf16.xpose.msra.mxu0 0
    %6230 = vmatprep.mubr.bf16.mxu0 0
    %6231 = vmatmul.mubr.bf16.gmra.mrb[0].mxu0 %v6193
    %v6232 = vpop.f32.mrb[0].mxu0
    %v6233 = vadd.f32 0.0, %v6232
    %v6234 = vpop.f32.mrb[0].mxu0
    %v6235 = vpop.f32.mrb[0].mxu0
    %v6236 = vadd.f32 0.0, %v6235
    %v6237 = vpop.f32.mrb[0].mxu0
    %6238 = vdwg.mxu0
    %6239 = vrot.lane.b32.xlu0 %v1539, 64
    %v6240 = vpop.permute.xlu0 %6239
    %6241 = vrot.lane.b32.xlu0 %v1555, 64
    %v6242 = vpop.permute.xlu0 %6241
    %v6244 = vsel %vm272, %v6240, 0
    %v6247 = vsel %vm272, %v6242, 0
    %6249 = vmatprep.subr.bf16.mxu0 0
    %6250 = vmatpush1.bf16.xpose.msra.mxu0 %v6247
    %6251 = vmatprep.subr.bf16.mxu0 0
    %6252 = vmatpush1.bf16.xpose.msra.mxu0 0
    %6253 = vmatprep.subr.bf16.mxu0 0
    %6254 = vmatpush1.bf16.xpose.msra.mxu0 0
    %6255 = vmatprep.subr.bf16.mxu0 0
    %6256 = vmatpush1.bf16.xpose.msra.mxu0 0
    %6257 = vmatprep.subr.bf16.mxu0 0
    %6258 = vmatpush1.bf16.xpose.msra.mxu0 0
    %6259 = vmatprep.subr.bf16.mxu0 0
    %6260 = vmatpush1.bf16.xpose.msra.mxu0 0
    %6261 = vmatprep.subr.bf16.mxu0 0
    %6262 = vmatpush1.bf16.xpose.msra.mxu0 0
    %6263 = vmatprep.subr.bf16.mxu0 0
    %6264 = vmatpush1.bf16.xpose.msra.mxu0 0
    %6265 = vmatprep.subr.bf16.mxu0 0
    %6266 = vmatpush1.bf16.xpose.msra.mxu0 0
    %6267 = vmatprep.subr.bf16.mxu0 0
    %6268 = vmatpush1.bf16.xpose.msra.mxu0 0
    %6269 = vmatprep.subr.bf16.mxu0 0
    %6270 = vmatpush1.bf16.xpose.msra.mxu0 0
    %6271 = vmatprep.subr.bf16.mxu0 0
    %6272 = vmatpush1.bf16.xpose.msra.mxu0 0
    %6273 = vmatprep.subr.bf16.mxu0 0
    %6274 = vmatpush1.bf16.xpose.msra.mxu0 0
    %6275 = vmatprep.subr.bf16.mxu0 0
    %6276 = vmatpush1.bf16.xpose.msra.mxu0 0
    %6277 = vmatprep.subr.bf16.mxu0 0
    %6278 = vmatpush1.bf16.xpose.msra.mxu0 0
    %6279 = vmatprep.subr.bf16.mxu0 0
    %6280 = vmatpush1.bf16.xpose.msra.mxu0 0
    %6281 = vmatprep.mubr.bf16.mxu0 0
    %6282 = vmatmul.mubr.bf16.gmra.mrb[0].mxu0 %v6244
    %v6283 = vpop.f32.mrb[0].mxu0
    %v6284 = vadd.f32 0.0, %v6283
    %v6285 = vpop.f32.mrb[0].mxu0
    %v6286 = vpop.f32.mrb[0].mxu0
    %v6287 = vadd.f32 0.0, %v6286
    %v6288 = vpop.f32.mrb[0].mxu0
    %6289 = vdwg.mxu0
    %6290 = vrot.lane.b32.xlu0 %v1540, 64
    %v6291 = vpop.permute.xlu0 %6290
    %6292 = vrot.lane.b32.xlu0 %v1556, 64
    %v6293 = vpop.permute.xlu0 %6292
    %v6295 = vsel %vm272, %v6291, 0
    %v6298 = vsel %vm272, %v6293, 0
    %6300 = vmatprep.subr.bf16.mxu0 0
    %6301 = vmatpush1.bf16.xpose.msra.mxu0 %v6298
    %6302 = vmatprep.subr.bf16.mxu0 0
    %6303 = vmatpush1.bf16.xpose.msra.mxu0 0
    %6304 = vmatprep.subr.bf16.mxu0 0
    %6305 = vmatpush1.bf16.xpose.msra.mxu0 0
    %6306 = vmatprep.subr.bf16.mxu0 0
    %6307 = vmatpush1.bf16.xpose.msra.mxu0 0
    %6308 = vmatprep.subr.bf16.mxu0 0
    %6309 = vmatpush1.bf16.xpose.msra.mxu0 0
    %6310 = vmatprep.subr.bf16.mxu0 0
    %6311 = vmatpush1.bf16.xpose.msra.mxu0 0
    %6312 = vmatprep.subr.bf16.mxu0 0
    %6313 = vmatpush1.bf16.xpose.msra.mxu0 0
    %6314 = vmatprep.subr.bf16.mxu0 0
    %6315 = vmatpush1.bf16.xpose.msra.mxu0 0
    %6316 = vmatprep.subr.bf16.mxu0 0
    %6317 = vmatpush1.bf16.xpose.msra.mxu0 0
    %6318 = vmatprep.subr.bf16.mxu0 0
    %6319 = vmatpush1.bf16.xpose.msra.mxu0 0
    %6320 = vmatprep.subr.bf16.mxu0 0
    %6321 = vmatpush1.bf16.xpose.msra.mxu0 0
    %6322 = vmatprep.subr.bf16.mxu0 0
    %6323 = vmatpush1.bf16.xpose.msra.mxu0 0
    %6324 = vmatprep.subr.bf16.mxu0 0
    %6325 = vmatpush1.bf16.xpose.msra.mxu0 0
    %6326 = vmatprep.subr.bf16.mxu0 0
    %6327 = vmatpush1.bf16.xpose.msra.mxu0 0
    %6328 = vmatprep.subr.bf16.mxu0 0
    %6329 = vmatpush1.bf16.xpose.msra.mxu0 0
    %6330 = vmatprep.subr.bf16.mxu0 0
    %6331 = vmatpush1.bf16.xpose.msra.mxu0 0
    %6332 = vmatprep.mubr.bf16.mxu0 0
    %6333 = vmatmul.mubr.bf16.gmra.mrb[0].mxu0 %v6295
    %v6334 = vpop.f32.mrb[0].mxu0
    %v6335 = vadd.f32 0.0, %v6334
    %v6336 = vpop.f32.mrb[0].mxu0
    %v6337 = vpop.f32.mrb[0].mxu0
    %v6338 = vadd.f32 0.0, %v6337
    %v6339 = vpop.f32.mrb[0].mxu0
    %6340 = vdwg.mxu0
    %6341 = vrot.lane.b32.xlu0 %v1541, 64
    %v6342 = vpop.permute.xlu0 %6341
    %6343 = vrot.lane.b32.xlu0 %v1557, 64
    %v6344 = vpop.permute.xlu0 %6343
    %v6346 = vsel %vm272, %v6342, 0
    %v6349 = vsel %vm272, %v6344, 0
    %6351 = vmatprep.subr.bf16.mxu0 0
    %6352 = vmatpush1.bf16.xpose.msra.mxu0 %v6349
    %6353 = vmatprep.subr.bf16.mxu0 0
    %6354 = vmatpush1.bf16.xpose.msra.mxu0 0
    %6355 = vmatprep.subr.bf16.mxu0 0
    %6356 = vmatpush1.bf16.xpose.msra.mxu0 0
    %6357 = vmatprep.subr.bf16.mxu0 0
    %6358 = vmatpush1.bf16.xpose.msra.mxu0 0
    %6359 = vmatprep.subr.bf16.mxu0 0
    %6360 = vmatpush1.bf16.xpose.msra.mxu0 0
    %6361 = vmatprep.subr.bf16.mxu0 0
    %6362 = vmatpush1.bf16.xpose.msra.mxu0 0
    %6363 = vmatprep.subr.bf16.mxu0 0
    %6364 = vmatpush1.bf16.xpose.msra.mxu0 0
    %6365 = vmatprep.subr.bf16.mxu0 0
    %6366 = vmatpush1.bf16.xpose.msra.mxu0 0
    %6367 = vmatprep.subr.bf16.mxu0 0
    %6368 = vmatpush1.bf16.xpose.msra.mxu0 0
    %6369 = vmatprep.subr.bf16.mxu0 0
    %6370 = vmatpush1.bf16.xpose.msra.mxu0 0
    %6371 = vmatprep.subr.bf16.mxu0 0
    %6372 = vmatpush1.bf16.xpose.msra.mxu0 0
    %6373 = vmatprep.subr.bf16.mxu0 0
    %6374 = vmatpush1.bf16.xpose.msra.mxu0 0
    %6375 = vmatprep.subr.bf16.mxu0 0
    %6376 = vmatpush1.bf16.xpose.msra.mxu0 0
    %6377 = vmatprep.subr.bf16.mxu0 0
    %6378 = vmatpush1.bf16.xpose.msra.mxu0 0
    %6379 = vmatprep.subr.bf16.mxu0 0
    %6380 = vmatpush1.bf16.xpose.msra.mxu0 0
    %6381 = vmatprep.subr.bf16.mxu0 0
    %6382 = vmatpush1.bf16.xpose.msra.mxu0 0
    %6383 = vmatprep.mubr.bf16.mxu0 0
    %6384 = vmatmul.mubr.bf16.gmra.mrb[0].mxu0 %v6346
    %v6385 = vpop.f32.mrb[0].mxu0
    %v6386 = vadd.f32 0.0, %v6385
    %v6387 = vpop.f32.mrb[0].mxu0
    %v6388 = vpop.f32.mrb[0].mxu0
    %v6389 = vadd.f32 0.0, %v6388
    %v6390 = vpop.f32.mrb[0].mxu0
    %6391 = vdwg.mxu0
    %v6392 = vsel %vm2326, %v5621, -inf
    %6393 = vmax.xlane.f32.xlu0 %v6392
    %v6394 = vpop.xlane.xlu0 %6393
    %v6395 = vsel %vm2326, %v5624, -inf
    %6396 = vmax.xlane.f32.xlu0 %v6395
    %v6397 = vpop.xlane.xlu0 %6396
    %v6398 = vsel %vm2326, %v5672, -inf
    %6399 = vmax.xlane.f32.xlu0 %v6398
    %v6400 = vpop.xlane.xlu0 %6399
    %v6401 = vsel %vm2326, %v5675, -inf
    %6402 = vmax.xlane.f32.xlu0 %v6401
    %v6403 = vpop.xlane.xlu0 %6402
    %v6404 = vsel %vm2326, %v5723, -inf
    %6405 = vmax.xlane.f32.xlu0 %v6404
    %v6406 = vpop.xlane.xlu0 %6405
    %v6407 = vsel %vm2326, %v5726, -inf
    %6408 = vmax.xlane.f32.xlu0 %v6407
    %v6409 = vpop.xlane.xlu0 %6408
    %v6410 = vsel %vm2326, %v5774, -inf
    %6411 = vmax.xlane.f32.xlu0 %v6410
    %v6412 = vpop.xlane.xlu0 %6411
    %v6413 = vsel %vm2326, %v5777, -inf
    %6414 = vmax.xlane.f32.xlu0 %v6413
    %v6415 = vpop.xlane.xlu0 %6414
    %v6416 = vsel %vm2326, %v5825, -inf
    %6417 = vmax.xlane.f32.xlu0 %v6416
    %v6418 = vpop.xlane.xlu0 %6417
    %v6419 = vsel %vm2326, %v5828, -inf
    %6420 = vmax.xlane.f32.xlu0 %v6419
    %v6421 = vpop.xlane.xlu0 %6420
    %v6422 = vsel %vm2326, %v5876, -inf
    %6423 = vmax.xlane.f32.xlu0 %v6422
    %v6424 = vpop.xlane.xlu0 %6423
    %v6425 = vsel %vm2326, %v5879, -inf
    %6426 = vmax.xlane.f32.xlu0 %v6425
    %v6427 = vpop.xlane.xlu0 %6426
    %v6428 = vsel %vm2326, %v5927, -inf
    %6429 = vmax.xlane.f32.xlu0 %v6428
    %v6430 = vpop.xlane.xlu0 %6429
    %v6431 = vsel %vm2326, %v5930, -inf
    %6432 = vmax.xlane.f32.xlu0 %v6431
    %v6433 = vpop.xlane.xlu0 %6432
    %v6434 = vsel %vm2326, %v5978, -inf
    %6435 = vmax.xlane.f32.xlu0 %v6434
    %v6436 = vpop.xlane.xlu0 %6435
    %v6437 = vsel %vm2326, %v5981, -inf
    %6438 = vmax.xlane.f32.xlu0 %v6437
    %v6439 = vpop.xlane.xlu0 %6438
    %v6440 = vsel %vm2326, %v6029, -inf
    %6441 = vmax.xlane.f32.xlu0 %v6440
    %v6442 = vpop.xlane.xlu0 %6441
    %v6443 = vsel %vm2326, %v6032, -inf
    %6444 = vmax.xlane.f32.xlu0 %v6443
    %v6445 = vpop.xlane.xlu0 %6444
    %v6446 = vsel %vm2326, %v6080, -inf
    %6447 = vmax.xlane.f32.xlu0 %v6446
    %v6448 = vpop.xlane.xlu0 %6447
    %v6449 = vsel %vm2326, %v6083, -inf
    %6450 = vmax.xlane.f32.xlu0 %v6449
    %v6451 = vpop.xlane.xlu0 %6450
    %v6452 = vsel %vm2326, %v6131, -inf
    %6453 = vmax.xlane.f32.xlu0 %v6452
    %v6454 = vpop.xlane.xlu0 %6453
    %v6455 = vsel %vm2326, %v6134, -inf
    %6456 = vmax.xlane.f32.xlu0 %v6455
    %v6457 = vpop.xlane.xlu0 %6456
    %v6458 = vsel %vm2326, %v6182, -inf
    %6459 = vmax.xlane.f32.xlu0 %v6458
    %v6460 = vpop.xlane.xlu0 %6459
    %v6461 = vsel %vm2326, %v6185, -inf
    %6462 = vmax.xlane.f32.xlu0 %v6461
    %v6463 = vpop.xlane.xlu0 %6462
    %v6464 = vsel %vm2326, %v6233, -inf
    %6465 = vmax.xlane.f32.xlu0 %v6464
    %v6466 = vpop.xlane.xlu0 %6465
    %v6467 = vsel %vm2326, %v6236, -inf
    %6468 = vmax.xlane.f32.xlu0 %v6467
    %v6469 = vpop.xlane.xlu0 %6468
    %v6470 = vsel %vm2326, %v6284, -inf
    %6471 = vmax.xlane.f32.xlu0 %v6470
    %v6472 = vpop.xlane.xlu0 %6471
    %v6473 = vsel %vm2326, %v6287, -inf
    %6474 = vmax.xlane.f32.xlu0 %v6473
    %v6475 = vpop.xlane.xlu0 %6474
    %v6476 = vsel %vm2326, %v6335, -inf
    %6477 = vmax.xlane.f32.xlu0 %v6476
    %v6478 = vpop.xlane.xlu0 %6477
    %v6479 = vsel %vm2326, %v6338, -inf
    %6480 = vmax.xlane.f32.xlu0 %v6479
    %v6481 = vpop.xlane.xlu0 %6480
    %v6482 = vsel %vm2326, %v6386, -inf
    %6483 = vmax.xlane.f32.xlu0 %v6482
    %v6484 = vpop.xlane.xlu0 %6483
    %v6485 = vsel %vm2326, %v6389, -inf
    %6486 = vmax.xlane.f32.xlu0 %v6485
    %v6487 = vpop.xlane.xlu0 %6486
    %v6488 = vsub.f32 %v5621, %v6394
    %v6489 = vsub.f32 %v5624, %v6397
    %v6490 = vsub.f32 %v5672, %v6400
    %v6491 = vsub.f32 %v5675, %v6403
    %v6492 = vsub.f32 %v5723, %v6406
    %v6493 = vsub.f32 %v5726, %v6409
    %v6494 = vsub.f32 %v5774, %v6412
    %v6495 = vsub.f32 %v5777, %v6415
    %v6496 = vsub.f32 %v5825, %v6418
    %v6497 = vsub.f32 %v5828, %v6421
    %v6498 = vsub.f32 %v5876, %v6424
    %v6499 = vsub.f32 %v5879, %v6427
    %v6500 = vsub.f32 %v5927, %v6430
    %v6501 = vsub.f32 %v5930, %v6433
    %v6502 = vsub.f32 %v5978, %v6436
    %v6503 = vsub.f32 %v5981, %v6439
    %v6504 = vsub.f32 %v6029, %v6442
    %v6505 = vsub.f32 %v6032, %v6445
    %v6506 = vsub.f32 %v6080, %v6448
    %v6507 = vsub.f32 %v6083, %v6451
    %v6508 = vsub.f32 %v6131, %v6454
    %v6509 = vsub.f32 %v6134, %v6457
    %v6510 = vsub.f32 %v6182, %v6460
    %v6511 = vsub.f32 %v6185, %v6463
    %v6512 = vsub.f32 %v6233, %v6466
    %v6513 = vsub.f32 %v6236, %v6469
    %v6514 = vsub.f32 %v6284, %v6472
    %v6515 = vsub.f32 %v6287, %v6475
    %v6516 = vsub.f32 %v6335, %v6478
    %v6517 = vsub.f32 %v6338, %v6481
    %v6518 = vsub.f32 %v6386, %v6484
    %v6519 = vsub.f32 %v6389, %v6487
    %v6520 = vmul.f32 %v6488, 1.442695
    %v6521 = vpow.pop %v6520
    %v6522 = vmul.f32 %v6489, 1.442695
    %v6523 = vpow.pop %v6522
    %v6524 = vmul.f32 %v6490, 1.442695
    %v6525 = vpow.pop %v6524
    %v6526 = vmul.f32 %v6491, 1.442695
    %v6527 = vpow.pop %v6526
    %v6528 = vmul.f32 %v6492, 1.442695
    %v6529 = vpow.pop %v6528
    %v6530 = vmul.f32 %v6493, 1.442695
    %v6531 = vpow.pop %v6530
    %v6532 = vmul.f32 %v6494, 1.442695
    %v6533 = vpow.pop %v6532
    %v6534 = vmul.f32 %v6495, 1.442695
    %v6535 = vpow.pop %v6534
    %v6536 = vmul.f32 %v6496, 1.442695
    %v6537 = vpow.pop %v6536
    %v6538 = vmul.f32 %v6497, 1.442695
    %v6539 = vpow.pop %v6538
    %v6540 = vmul.f32 %v6498, 1.442695
    %v6541 = vpow.pop %v6540
    %v6542 = vmul.f32 %v6499, 1.442695
    %v6543 = vpow.pop %v6542
    %v6544 = vmul.f32 %v6500, 1.442695
    %v6545 = vpow.pop %v6544
    %v6546 = vmul.f32 %v6501, 1.442695
    %v6547 = vpow.pop %v6546
    %v6548 = vmul.f32 %v6502, 1.442695
    %v6549 = vpow.pop %v6548
    %v6550 = vmul.f32 %v6503, 1.442695
    %v6551 = vpow.pop %v6550
    %v6552 = vmul.f32 %v6504, 1.442695
    %v6553 = vpow.pop %v6552
    %v6554 = vmul.f32 %v6505, 1.442695
    %v6555 = vpow.pop %v6554
    %v6556 = vmul.f32 %v6506, 1.442695
    %v6557 = vpow.pop %v6556
    %v6558 = vmul.f32 %v6507, 1.442695
    %v6559 = vpow.pop %v6558
    %v6560 = vmul.f32 %v6508, 1.442695
    %v6561 = vpow.pop %v6560
    %v6562 = vmul.f32 %v6509, 1.442695
    %v6563 = vpow.pop %v6562
    %v6564 = vmul.f32 %v6510, 1.442695
    %v6565 = vpow.pop %v6564
    %v6566 = vmul.f32 %v6511, 1.442695
    %v6567 = vpow.pop %v6566
    %v6568 = vmul.f32 %v6512, 1.442695
    %v6569 = vpow.pop %v6568
    %v6570 = vmul.f32 %v6513, 1.442695
    %v6571 = vpow.pop %v6570
    %v6572 = vmul.f32 %v6514, 1.442695
    %v6573 = vpow.pop %v6572
    %v6574 = vmul.f32 %v6515, 1.442695
    %v6575 = vpow.pop %v6574
    %v6576 = vmul.f32 %v6516, 1.442695
    %v6577 = vpow.pop %v6576
    %v6578 = vmul.f32 %v6517, 1.442695
    %v6579 = vpow.pop %v6578
    %v6580 = vmul.f32 %v6518, 1.442695
    %v6581 = vpow.pop %v6580
    %v6582 = vmul.f32 %v6519, 1.442695
    %v6583 = vpow.pop %v6582
    %v6584 = vsel %vm2326, %v6521, 0.0
    %6585 = vadd.xlane.f32.xlu0 %v6584
    %v6586 = vpop.xlane.xlu0 %6585
    %v6587 = vsel %vm2326, %v6523, 0.0
    %6588 = vadd.xlane.f32.xlu0 %v6587
    %v6589 = vpop.xlane.xlu0 %6588
    %v6590 = vsel %vm2326, %v6525, 0.0
    %6591 = vadd.xlane.f32.xlu0 %v6590
    %v6592 = vpop.xlane.xlu0 %6591
    %v6593 = vsel %vm2326, %v6527, 0.0
    %6594 = vadd.xlane.f32.xlu0 %v6593
    %v6595 = vpop.xlane.xlu0 %6594
    %v6596 = vsel %vm2326, %v6529, 0.0
    %6597 = vadd.xlane.f32.xlu0 %v6596
    %v6598 = vpop.xlane.xlu0 %6597
    %v6599 = vsel %vm2326, %v6531, 0.0
    %6600 = vadd.xlane.f32.xlu0 %v6599
    %v6601 = vpop.xlane.xlu0 %6600
    %v6602 = vsel %vm2326, %v6533, 0.0
    %6603 = vadd.xlane.f32.xlu0 %v6602
    %v6604 = vpop.xlane.xlu0 %6603
    %v6605 = vsel %vm2326, %v6535, 0.0
    %6606 = vadd.xlane.f32.xlu0 %v6605
    %v6607 = vpop.xlane.xlu0 %6606
    %v6608 = vsel %vm2326, %v6537, 0.0
    %6609 = vadd.xlane.f32.xlu0 %v6608
    %v6610 = vpop.xlane.xlu0 %6609
    %v6611 = vsel %vm2326, %v6539, 0.0
    %6612 = vadd.xlane.f32.xlu0 %v6611
    %v6613 = vpop.xlane.xlu0 %6612
    %v6614 = vsel %vm2326, %v6541, 0.0
    %6615 = vadd.xlane.f32.xlu0 %v6614
    %v6616 = vpop.xlane.xlu0 %6615
    %v6617 = vsel %vm2326, %v6543, 0.0
    %6618 = vadd.xlane.f32.xlu0 %v6617
    %v6619 = vpop.xlane.xlu0 %6618
    %v6620 = vsel %vm2326, %v6545, 0.0
    %6621 = vadd.xlane.f32.xlu0 %v6620
    %v6622 = vpop.xlane.xlu0 %6621
    %v6623 = vsel %vm2326, %v6547, 0.0
    %6624 = vadd.xlane.f32.xlu0 %v6623
    %v6625 = vpop.xlane.xlu0 %6624
    %v6626 = vsel %vm2326, %v6549, 0.0
    %6627 = vadd.xlane.f32.xlu0 %v6626
    %v6628 = vpop.xlane.xlu0 %6627
    %v6629 = vsel %vm2326, %v6551, 0.0
    %6630 = vadd.xlane.f32.xlu0 %v6629
    %v6631 = vpop.xlane.xlu0 %6630
    %v6632 = vsel %vm2326, %v6553, 0.0
    %6633 = vadd.xlane.f32.xlu0 %v6632
    %v6634 = vpop.xlane.xlu0 %6633
    %v6635 = vsel %vm2326, %v6555, 0.0
    %6636 = vadd.xlane.f32.xlu0 %v6635
    %v6637 = vpop.xlane.xlu0 %6636
    %v6638 = vsel %vm2326, %v6557, 0.0
    %6639 = vadd.xlane.f32.xlu0 %v6638
    %v6640 = vpop.xlane.xlu0 %6639
    %v6641 = vsel %vm2326, %v6559, 0.0
    %6642 = vadd.xlane.f32.xlu0 %v6641
    %v6643 = vpop.xlane.xlu0 %6642
    %v6644 = vsel %vm2326, %v6561, 0.0
    %6645 = vadd.xlane.f32.xlu0 %v6644
    %v6646 = vpop.xlane.xlu0 %6645
    %v6647 = vsel %vm2326, %v6563, 0.0
    %6648 = vadd.xlane.f32.xlu0 %v6647
    %v6649 = vpop.xlane.xlu0 %6648
    %v6650 = vsel %vm2326, %v6565, 0.0
    %6651 = vadd.xlane.f32.xlu0 %v6650
    %v6652 = vpop.xlane.xlu0 %6651
    %v6653 = vsel %vm2326, %v6567, 0.0
    %6654 = vadd.xlane.f32.xlu0 %v6653
    %v6655 = vpop.xlane.xlu0 %6654
    %v6656 = vsel %vm2326, %v6569, 0.0
    %6657 = vadd.xlane.f32.xlu0 %v6656
    %v6658 = vpop.xlane.xlu0 %6657
    %v6659 = vsel %vm2326, %v6571, 0.0
    %6660 = vadd.xlane.f32.xlu0 %v6659
    %v6661 = vpop.xlane.xlu0 %6660
    %v6662 = vsel %vm2326, %v6573, 0.0
    %6663 = vadd.xlane.f32.xlu0 %v6662
    %v6664 = vpop.xlane.xlu0 %6663
    %v6665 = vsel %vm2326, %v6575, 0.0
    %6666 = vadd.xlane.f32.xlu0 %v6665
    %v6667 = vpop.xlane.xlu0 %6666
    %v6668 = vsel %vm2326, %v6577, 0.0
    %6669 = vadd.xlane.f32.xlu0 %v6668
    %v6670 = vpop.xlane.xlu0 %6669
    %v6671 = vsel %vm2326, %v6579, 0.0
    %6672 = vadd.xlane.f32.xlu0 %v6671
    %v6673 = vpop.xlane.xlu0 %6672
    %v6674 = vsel %vm2326, %v6581, 0.0
    %6675 = vadd.xlane.f32.xlu0 %v6674
    %v6676 = vpop.xlane.xlu0 %6675
    %v6677 = vsel %vm2326, %v6583, 0.0
    %6678 = vadd.xlane.f32.xlu0 %v6677
    %v6679 = vpop.xlane.xlu0 %6678
    %v6680 = vrcp.pop %v6586
    %v6681 = vrcp.pop %v6589
    %v6682 = vrcp.pop %v6592
    %v6683 = vrcp.pop %v6595
    %v6684 = vrcp.pop %v6598
    %v6685 = vrcp.pop %v6601
    %v6686 = vrcp.pop %v6604
    %v6687 = vrcp.pop %v6607
    %v6688 = vrcp.pop %v6610
    %v6689 = vrcp.pop %v6613
    %v6690 = vrcp.pop %v6616
    %v6691 = vrcp.pop %v6619
    %v6692 = vrcp.pop %v6622
    %v6693 = vrcp.pop %v6625
    %v6694 = vrcp.pop %v6628
    %v6695 = vrcp.pop %v6631
    %v6696 = vrcp.pop %v6634
    %v6697 = vrcp.pop %v6637
    %v6698 = vrcp.pop %v6640
    %v6699 = vrcp.pop %v6643
    %v6700 = vrcp.pop %v6646
    %v6701 = vrcp.pop %v6649
    %v6702 = vrcp.pop %v6652
    %v6703 = vrcp.pop %v6655
    %v6704 = vrcp.pop %v6658
    %v6705 = vrcp.pop %v6661
    %v6706 = vrcp.pop %v6664
    %v6707 = vrcp.pop %v6667
    %v6708 = vrcp.pop %v6670
    %v6709 = vrcp.pop %v6673
    %v6710 = vrcp.pop %v6676
    %v6711 = vrcp.pop %v6679
    %v6712 = vmul.f32 %v6521, %v6680
    %v6713 = vmul.f32 %v6523, %v6681
    %v6714 = vmul.f32 %v6525, %v6682
    %v6715 = vmul.f32 %v6527, %v6683
    %v6716 = vmul.f32 %v6529, %v6684
    %v6717 = vmul.f32 %v6531, %v6685
    %v6718 = vmul.f32 %v6533, %v6686
    %v6719 = vmul.f32 %v6535, %v6687
    %v6720 = vmul.f32 %v6537, %v6688
    %v6721 = vmul.f32 %v6539, %v6689
    %v6722 = vmul.f32 %v6541, %v6690
    %v6723 = vmul.f32 %v6543, %v6691
    %v6724 = vmul.f32 %v6545, %v6692
    %v6725 = vmul.f32 %v6547, %v6693
    %v6726 = vmul.f32 %v6549, %v6694
    %v6727 = vmul.f32 %v6551, %v6695
    %v6728 = vmul.f32 %v6553, %v6696
    %v6729 = vmul.f32 %v6555, %v6697
    %v6730 = vmul.f32 %v6557, %v6698
    %v6731 = vmul.f32 %v6559, %v6699
    %v6732 = vmul.f32 %v6561, %v6700
    %v6733 = vmul.f32 %v6563, %v6701
    %v6734 = vmul.f32 %v6565, %v6702
    %v6735 = vmul.f32 %v6567, %v6703
    %v6736 = vmul.f32 %v6569, %v6704
    %v6737 = vmul.f32 %v6571, %v6705
    %v6738 = vmul.f32 %v6573, %v6706
    %v6739 = vmul.f32 %v6575, %v6707
    %v6740 = vmul.f32 %v6577, %v6708
    %v6741 = vmul.f32 %v6579, %v6709
    %v6742 = vmul.f32 %v6581, %v6710
    %v6743 = vmul.f32 %v6583, %v6711
    %v6744 = vpack.c.bf16 %v6713, %v6712
    %v6745 = vpack.c.bf16 %v6715, %v6714
    %v6746 = vpack.c.bf16 %v6717, %v6716
    %v6747 = vpack.c.bf16 %v6719, %v6718
    %v6748 = vpack.c.bf16 %v6721, %v6720
    %v6749 = vpack.c.bf16 %v6723, %v6722
    %v6750 = vpack.c.bf16 %v6725, %v6724
    %v6751 = vpack.c.bf16 %v6727, %v6726
    %v6752 = vpack.c.bf16 %v6729, %v6728
    %v6753 = vpack.c.bf16 %v6731, %v6730
    %v6754 = vpack.c.bf16 %v6733, %v6732
    %v6755 = vpack.c.bf16 %v6735, %v6734
    %v6756 = vpack.c.bf16 %v6737, %v6736
    %v6757 = vpack.c.bf16 %v6739, %v6738
    %v6758 = vpack.c.bf16 %v6741, %v6740
    %v6759 = vpack.c.bf16 %v6743, %v6742
    %6760 = vrot.lane.b32.xlu0 %v1558, 64
    %v6761 = vpop.permute.xlu0 %6760
    %v6764 = vsel %vm2326, %v6744, 0
    %6766 = vmatprep.subr.bf16.mxu0 0
    %6767 = vmatpush1.bf16.msra.mxu0 %v6761
    %6768 = vmatprep.subr.bf16.mxu0 0
    %6769 = vmatpush1.bf16.msra.mxu0 0
    %6770 = vmatprep.subr.bf16.mxu0 0
    %6771 = vmatpush1.bf16.msra.mxu0 0
    %6772 = vmatprep.subr.bf16.mxu0 0
    %6773 = vmatpush1.bf16.msra.mxu0 0
    %6774 = vmatprep.subr.bf16.mxu0 0
    %6775 = vmatpush1.bf16.msra.mxu0 0
    %6776 = vmatprep.subr.bf16.mxu0 0
    %6777 = vmatpush1.bf16.msra.mxu0 0
    %6778 = vmatprep.subr.bf16.mxu0 0
    %6779 = vmatpush1.bf16.msra.mxu0 0
    %6780 = vmatprep.subr.bf16.mxu0 0
    %6781 = vmatpush1.bf16.msra.mxu0 0
    %6782 = vmatprep.subr.bf16.mxu0 0
    %6783 = vmatpush1.bf16.msra.mxu0 0
    %6784 = vmatprep.subr.bf16.mxu0 0
    %6785 = vmatpush1.bf16.msra.mxu0 0
    %6786 = vmatprep.subr.bf16.mxu0 0
    %6787 = vmatpush1.bf16.msra.mxu0 0
    %6788 = vmatprep.subr.bf16.mxu0 0
    %6789 = vmatpush1.bf16.msra.mxu0 0
    %6790 = vmatprep.subr.bf16.mxu0 0
    %6791 = vmatpush1.bf16.msra.mxu0 0
    %6792 = vmatprep.subr.bf16.mxu0 0
    %6793 = vmatpush1.bf16.msra.mxu0 0
    %6794 = vmatprep.subr.bf16.mxu0 0
    %6795 = vmatpush1.bf16.msra.mxu0 0
    %6796 = vmatprep.subr.bf16.mxu0 0
    %6797 = vmatpush1.bf16.msra.mxu0 0
    %6798 = vmatprep.mubr.bf16.mxu0 0
    %6799 = vmatmul.mubr.bf16.gmra.mrb[0].mxu0 %v6764
    %v6800 = vpop.f32.mrb[0].mxu0
    %v6801 = vadd.f32 0.0, %v6800
    %v6802 = vpop.f32.mrb[0].mxu0
    %v6803 = vpop.f32.mrb[0].mxu0
    %v6804 = vadd.f32 0.0, %v6803
    %v6805 = vpop.f32.mrb[0].mxu0
    %6806 = vdwg.mxu0
    %6807 = vrot.lane.b32.xlu0 %v1559, 64
    %v6808 = vpop.permute.xlu0 %6807
    %v6811 = vsel %vm2326, %v6745, 0
    %6813 = vmatprep.subr.bf16.mxu0 0
    %6814 = vmatpush1.bf16.msra.mxu0 %v6808
    %6815 = vmatprep.subr.bf16.mxu0 0
    %6816 = vmatpush1.bf16.msra.mxu0 0
    %6817 = vmatprep.subr.bf16.mxu0 0
    %6818 = vmatpush1.bf16.msra.mxu0 0
    %6819 = vmatprep.subr.bf16.mxu0 0
    %6820 = vmatpush1.bf16.msra.mxu0 0
    %6821 = vmatprep.subr.bf16.mxu0 0
    %6822 = vmatpush1.bf16.msra.mxu0 0
    %6823 = vmatprep.subr.bf16.mxu0 0
    %6824 = vmatpush1.bf16.msra.mxu0 0
    %6825 = vmatprep.subr.bf16.mxu0 0
    %6826 = vmatpush1.bf16.msra.mxu0 0
    %6827 = vmatprep.subr.bf16.mxu0 0
    %6828 = vmatpush1.bf16.msra.mxu0 0
    %6829 = vmatprep.subr.bf16.mxu0 0
    %6830 = vmatpush1.bf16.msra.mxu0 0
    %6831 = vmatprep.subr.bf16.mxu0 0
    %6832 = vmatpush1.bf16.msra.mxu0 0
    %6833 = vmatprep.subr.bf16.mxu0 0
    %6834 = vmatpush1.bf16.msra.mxu0 0
    %6835 = vmatprep.subr.bf16.mxu0 0
    %6836 = vmatpush1.bf16.msra.mxu0 0
    %6837 = vmatprep.subr.bf16.mxu0 0
    %6838 = vmatpush1.bf16.msra.mxu0 0
    %6839 = vmatprep.subr.bf16.mxu0 0
    %6840 = vmatpush1.bf16.msra.mxu0 0
    %6841 = vmatprep.subr.bf16.mxu0 0
    %6842 = vmatpush1.bf16.msra.mxu0 0
    %6843 = vmatprep.subr.bf16.mxu0 0
    %6844 = vmatpush1.bf16.msra.mxu0 0
    %6845 = vmatprep.mubr.bf16.mxu0 0
    %6846 = vmatmul.mubr.bf16.gmra.mrb[0].mxu0 %v6811
    %v6847 = vpop.f32.mrb[0].mxu0
    %v6848 = vadd.f32 0.0, %v6847
    %v6849 = vpop.f32.mrb[0].mxu0
    %v6850 = vpop.f32.mrb[0].mxu0
    %v6851 = vadd.f32 0.0, %v6850
    %v6852 = vpop.f32.mrb[0].mxu0
    %6853 = vdwg.mxu0
    %6854 = vrot.lane.b32.xlu0 %v1560, 64
    %v6855 = vpop.permute.xlu0 %6854
    %v6858 = vsel %vm2326, %v6746, 0
    %6860 = vmatprep.subr.bf16.mxu0 0
    %6861 = vmatpush1.bf16.msra.mxu0 %v6855
    %6862 = vmatprep.subr.bf16.mxu0 0
    %6863 = vmatpush1.bf16.msra.mxu0 0
    %6864 = vmatprep.subr.bf16.mxu0 0
    %6865 = vmatpush1.bf16.msra.mxu0 0
    %6866 = vmatprep.subr.bf16.mxu0 0
    %6867 = vmatpush1.bf16.msra.mxu0 0
    %6868 = vmatprep.subr.bf16.mxu0 0
    %6869 = vmatpush1.bf16.msra.mxu0 0
    %6870 = vmatprep.subr.bf16.mxu0 0
    %6871 = vmatpush1.bf16.msra.mxu0 0
    %6872 = vmatprep.subr.bf16.mxu0 0
    %6873 = vmatpush1.bf16.msra.mxu0 0
    %6874 = vmatprep.subr.bf16.mxu0 0
    %6875 = vmatpush1.bf16.msra.mxu0 0
    %6876 = vmatprep.subr.bf16.mxu0 0
    %6877 = vmatpush1.bf16.msra.mxu0 0
    %6878 = vmatprep.subr.bf16.mxu0 0
    %6879 = vmatpush1.bf16.msra.mxu0 0
    %6880 = vmatprep.subr.bf16.mxu0 0
    %6881 = vmatpush1.bf16.msra.mxu0 0
    %6882 = vmatprep.subr.bf16.mxu0 0
    %6883 = vmatpush1.bf16.msra.mxu0 0
    %6884 = vmatprep.subr.bf16.mxu0 0
    %6885 = vmatpush1.bf16.msra.mxu0 0
    %6886 = vmatprep.subr.bf16.mxu0 0
    %6887 = vmatpush1.bf16.msra.mxu0 0
    %6888 = vmatprep.subr.bf16.mxu0 0
    %6889 = vmatpush1.bf16.msra.mxu0 0
    %6890 = vmatprep.subr.bf16.mxu0 0
    %6891 = vmatpush1.bf16.msra.mxu0 0
    %6892 = vmatprep.mubr.bf16.mxu0 0
    %6893 = vmatmul.mubr.bf16.gmra.mrb[0].mxu0 %v6858
    %v6894 = vpop.f32.mrb[0].mxu0
    %v6895 = vadd.f32 0.0, %v6894
    %v6896 = vpop.f32.mrb[0].mxu0
    %v6897 = vpop.f32.mrb[0].mxu0
    %v6898 = vadd.f32 0.0, %v6897
    %v6899 = vpop.f32.mrb[0].mxu0
    %6900 = vdwg.mxu0
    %6901 = vrot.lane.b32.xlu0 %v1561, 64
    %v6902 = vpop.permute.xlu0 %6901
    %v6905 = vsel %vm2326, %v6747, 0
    %6907 = vmatprep.subr.bf16.mxu0 0
    %6908 = vmatpush1.bf16.msra.mxu0 %v6902
    %6909 = vmatprep.subr.bf16.mxu0 0
    %6910 = vmatpush1.bf16.msra.mxu0 0
    %6911 = vmatprep.subr.bf16.mxu0 0
    %6912 = vmatpush1.bf16.msra.mxu0 0
    %6913 = vmatprep.subr.bf16.mxu0 0
    %6914 = vmatpush1.bf16.msra.mxu0 0
    %6915 = vmatprep.subr.bf16.mxu0 0
    %6916 = vmatpush1.bf16.msra.mxu0 0
    %6917 = vmatprep.subr.bf16.mxu0 0
    %6918 = vmatpush1.bf16.msra.mxu0 0
    %6919 = vmatprep.subr.bf16.mxu0 0
    %6920 = vmatpush1.bf16.msra.mxu0 0
    %6921 = vmatprep.subr.bf16.mxu0 0
    %6922 = vmatpush1.bf16.msra.mxu0 0
    %6923 = vmatprep.subr.bf16.mxu0 0
    %6924 = vmatpush1.bf16.msra.mxu0 0
    %6925 = vmatprep.subr.bf16.mxu0 0
    %6926 = vmatpush1.bf16.msra.mxu0 0
    %6927 = vmatprep.subr.bf16.mxu0 0
    %6928 = vmatpush1.bf16.msra.mxu0 0
    %6929 = vmatprep.subr.bf16.mxu0 0
    %6930 = vmatpush1.bf16.msra.mxu0 0
    %6931 = vmatprep.subr.bf16.mxu0 0
    %6932 = vmatpush1.bf16.msra.mxu0 0
    %6933 = vmatprep.subr.bf16.mxu0 0
    %6934 = vmatpush1.bf16.msra.mxu0 0
    %6935 = vmatprep.subr.bf16.mxu0 0
    %6936 = vmatpush1.bf16.msra.mxu0 0
    %6937 = vmatprep.subr.bf16.mxu0 0
    %6938 = vmatpush1.bf16.msra.mxu0 0
    %6939 = vmatprep.mubr.bf16.mxu0 0
    %6940 = vmatmul.mubr.bf16.gmra.mrb[0].mxu0 %v6905
    %v6941 = vpop.f32.mrb[0].mxu0
    %v6942 = vadd.f32 0.0, %v6941
    %v6943 = vpop.f32.mrb[0].mxu0
    %v6944 = vpop.f32.mrb[0].mxu0
    %v6945 = vadd.f32 0.0, %v6944
    %v6946 = vpop.f32.mrb[0].mxu0
    %6947 = vdwg.mxu0
    %6948 = vrot.lane.b32.xlu0 %v1562, 64
    %v6949 = vpop.permute.xlu0 %6948
    %v6952 = vsel %vm2326, %v6748, 0
    %6954 = vmatprep.subr.bf16.mxu0 0
    %6955 = vmatpush1.bf16.msra.mxu0 %v6949
    %6956 = vmatprep.subr.bf16.mxu0 0
    %6957 = vmatpush1.bf16.msra.mxu0 0
    %6958 = vmatprep.subr.bf16.mxu0 0
    %6959 = vmatpush1.bf16.msra.mxu0 0
    %6960 = vmatprep.subr.bf16.mxu0 0
    %6961 = vmatpush1.bf16.msra.mxu0 0
    %6962 = vmatprep.subr.bf16.mxu0 0
    %6963 = vmatpush1.bf16.msra.mxu0 0
    %6964 = vmatprep.subr.bf16.mxu0 0
    %6965 = vmatpush1.bf16.msra.mxu0 0
    %6966 = vmatprep.subr.bf16.mxu0 0
    %6967 = vmatpush1.bf16.msra.mxu0 0
    %6968 = vmatprep.subr.bf16.mxu0 0
    %6969 = vmatpush1.bf16.msra.mxu0 0
    %6970 = vmatprep.subr.bf16.mxu0 0
    %6971 = vmatpush1.bf16.msra.mxu0 0
    %6972 = vmatprep.subr.bf16.mxu0 0
    %6973 = vmatpush1.bf16.msra.mxu0 0
    %6974 = vmatprep.subr.bf16.mxu0 0
    %6975 = vmatpush1.bf16.msra.mxu0 0
    %6976 = vmatprep.subr.bf16.mxu0 0
    %6977 = vmatpush1.bf16.msra.mxu0 0
    %6978 = vmatprep.subr.bf16.mxu0 0
    %6979 = vmatpush1.bf16.msra.mxu0 0
    %6980 = vmatprep.subr.bf16.mxu0 0
    %6981 = vmatpush1.bf16.msra.mxu0 0
    %6982 = vmatprep.subr.bf16.mxu0 0
    %6983 = vmatpush1.bf16.msra.mxu0 0
    %6984 = vmatprep.subr.bf16.mxu0 0
    %6985 = vmatpush1.bf16.msra.mxu0 0
    %6986 = vmatprep.mubr.bf16.mxu0 0
    %6987 = vmatmul.mubr.bf16.gmra.mrb[0].mxu0 %v6952
    %v6988 = vpop.f32.mrb[0].mxu0
    %v6989 = vadd.f32 0.0, %v6988
    %v6990 = vpop.f32.mrb[0].mxu0
    %v6991 = vpop.f32.mrb[0].mxu0
    %v6992 = vadd.f32 0.0, %v6991
    %v6993 = vpop.f32.mrb[0].mxu0
    %6994 = vdwg.mxu0
    %6995 = vrot.lane.b32.xlu0 %v1563, 64
    %v6996 = vpop.permute.xlu0 %6995
    %v6999 = vsel %vm2326, %v6749, 0
    %7001 = vmatprep.subr.bf16.mxu0 0
    %7002 = vmatpush1.bf16.msra.mxu0 %v6996
    %7003 = vmatprep.subr.bf16.mxu0 0
    %7004 = vmatpush1.bf16.msra.mxu0 0
    %7005 = vmatprep.subr.bf16.mxu0 0
    %7006 = vmatpush1.bf16.msra.mxu0 0
    %7007 = vmatprep.subr.bf16.mxu0 0
    %7008 = vmatpush1.bf16.msra.mxu0 0
    %7009 = vmatprep.subr.bf16.mxu0 0
    %7010 = vmatpush1.bf16.msra.mxu0 0
    %7011 = vmatprep.subr.bf16.mxu0 0
    %7012 = vmatpush1.bf16.msra.mxu0 0
    %7013 = vmatprep.subr.bf16.mxu0 0
    %7014 = vmatpush1.bf16.msra.mxu0 0
    %7015 = vmatprep.subr.bf16.mxu0 0
    %7016 = vmatpush1.bf16.msra.mxu0 0
    %7017 = vmatprep.subr.bf16.mxu0 0
    %7018 = vmatpush1.bf16.msra.mxu0 0
    %7019 = vmatprep.subr.bf16.mxu0 0
    %7020 = vmatpush1.bf16.msra.mxu0 0
    %7021 = vmatprep.subr.bf16.mxu0 0
    %7022 = vmatpush1.bf16.msra.mxu0 0
    %7023 = vmatprep.subr.bf16.mxu0 0
    %7024 = vmatpush1.bf16.msra.mxu0 0
    %7025 = vmatprep.subr.bf16.mxu0 0
    %7026 = vmatpush1.bf16.msra.mxu0 0
    %7027 = vmatprep.subr.bf16.mxu0 0
    %7028 = vmatpush1.bf16.msra.mxu0 0
    %7029 = vmatprep.subr.bf16.mxu0 0
    %7030 = vmatpush1.bf16.msra.mxu0 0
    %7031 = vmatprep.subr.bf16.mxu0 0
    %7032 = vmatpush1.bf16.msra.mxu0 0
    %7033 = vmatprep.mubr.bf16.mxu0 0
    %7034 = vmatmul.mubr.bf16.gmra.mrb[0].mxu0 %v6999
    %v7035 = vpop.f32.mrb[0].mxu0
    %v7036 = vadd.f32 0.0, %v7035
    %v7037 = vpop.f32.mrb[0].mxu0
    %v7038 = vpop.f32.mrb[0].mxu0
    %v7039 = vadd.f32 0.0, %v7038
    %v7040 = vpop.f32.mrb[0].mxu0
    %7041 = vdwg.mxu0
    %7042 = vrot.lane.b32.xlu0 %v1564, 64
    %v7043 = vpop.permute.xlu0 %7042
    %v7046 = vsel %vm2326, %v6750, 0
    %7048 = vmatprep.subr.bf16.mxu0 0
    %7049 = vmatpush1.bf16.msra.mxu0 %v7043
    %7050 = vmatprep.subr.bf16.mxu0 0
    %7051 = vmatpush1.bf16.msra.mxu0 0
    %7052 = vmatprep.subr.bf16.mxu0 0
    %7053 = vmatpush1.bf16.msra.mxu0 0
    %7054 = vmatprep.subr.bf16.mxu0 0
    %7055 = vmatpush1.bf16.msra.mxu0 0
    %7056 = vmatprep.subr.bf16.mxu0 0
    %7057 = vmatpush1.bf16.msra.mxu0 0
    %7058 = vmatprep.subr.bf16.mxu0 0
    %7059 = vmatpush1.bf16.msra.mxu0 0
    %7060 = vmatprep.subr.bf16.mxu0 0
    %7061 = vmatpush1.bf16.msra.mxu0 0
    %7062 = vmatprep.subr.bf16.mxu0 0
    %7063 = vmatpush1.bf16.msra.mxu0 0
    %7064 = vmatprep.subr.bf16.mxu0 0
    %7065 = vmatpush1.bf16.msra.mxu0 0
    %7066 = vmatprep.subr.bf16.mxu0 0
    %7067 = vmatpush1.bf16.msra.mxu0 0
    %7068 = vmatprep.subr.bf16.mxu0 0
    %7069 = vmatpush1.bf16.msra.mxu0 0
    %7070 = vmatprep.subr.bf16.mxu0 0
    %7071 = vmatpush1.bf16.msra.mxu0 0
    %7072 = vmatprep.subr.bf16.mxu0 0
    %7073 = vmatpush1.bf16.msra.mxu0 0
    %7074 = vmatprep.subr.bf16.mxu0 0
    %7075 = vmatpush1.bf16.msra.mxu0 0
    %7076 = vmatprep.subr.bf16.mxu0 0
    %7077 = vmatpush1.bf16.msra.mxu0 0
    %7078 = vmatprep.subr.bf16.mxu0 0
    %7079 = vmatpush1.bf16.msra.mxu0 0
    %7080 = vmatprep.mubr.bf16.mxu0 0
    %7081 = vmatmul.mubr.bf16.gmra.mrb[0].mxu0 %v7046
    %v7082 = vpop.f32.mrb[0].mxu0
    %v7083 = vadd.f32 0.0, %v7082
    %v7084 = vpop.f32.mrb[0].mxu0
    %v7085 = vpop.f32.mrb[0].mxu0
    %v7086 = vadd.f32 0.0, %v7085
    %v7087 = vpop.f32.mrb[0].mxu0
    %7088 = vdwg.mxu0
    %7089 = vrot.lane.b32.xlu0 %v1565, 64
    %v7090 = vpop.permute.xlu0 %7089
    %v7093 = vsel %vm2326, %v6751, 0
    %7095 = vmatprep.subr.bf16.mxu0 0
    %7096 = vmatpush1.bf16.msra.mxu0 %v7090
    %7097 = vmatprep.subr.bf16.mxu0 0
    %7098 = vmatpush1.bf16.msra.mxu0 0
    %7099 = vmatprep.subr.bf16.mxu0 0
    %7100 = vmatpush1.bf16.msra.mxu0 0
    %7101 = vmatprep.subr.bf16.mxu0 0
    %7102 = vmatpush1.bf16.msra.mxu0 0
    %7103 = vmatprep.subr.bf16.mxu0 0
    %7104 = vmatpush1.bf16.msra.mxu0 0
    %7105 = vmatprep.subr.bf16.mxu0 0
    %7106 = vmatpush1.bf16.msra.mxu0 0
    %7107 = vmatprep.subr.bf16.mxu0 0
    %7108 = vmatpush1.bf16.msra.mxu0 0
    %7109 = vmatprep.subr.bf16.mxu0 0
    %7110 = vmatpush1.bf16.msra.mxu0 0
    %7111 = vmatprep.subr.bf16.mxu0 0
    %7112 = vmatpush1.bf16.msra.mxu0 0
    %7113 = vmatprep.subr.bf16.mxu0 0
    %7114 = vmatpush1.bf16.msra.mxu0 0
    %7115 = vmatprep.subr.bf16.mxu0 0
    %7116 = vmatpush1.bf16.msra.mxu0 0
    %7117 = vmatprep.subr.bf16.mxu0 0
    %7118 = vmatpush1.bf16.msra.mxu0 0
    %7119 = vmatprep.subr.bf16.mxu0 0
    %7120 = vmatpush1.bf16.msra.mxu0 0
    %7121 = vmatprep.subr.bf16.mxu0 0
    %7122 = vmatpush1.bf16.msra.mxu0 0
    %7123 = vmatprep.subr.bf16.mxu0 0
    %7124 = vmatpush1.bf16.msra.mxu0 0
    %7125 = vmatprep.subr.bf16.mxu0 0
    %7126 = vmatpush1.bf16.msra.mxu0 0
    %7127 = vmatprep.mubr.bf16.mxu0 0
    %7128 = vmatmul.mubr.bf16.gmra.mrb[0].mxu0 %v7093
    %v7129 = vpop.f32.mrb[0].mxu0
    %v7130 = vadd.f32 0.0, %v7129
    %v7131 = vpop.f32.mrb[0].mxu0
    %v7132 = vpop.f32.mrb[0].mxu0
    %v7133 = vadd.f32 0.0, %v7132
    %v7134 = vpop.f32.mrb[0].mxu0
    %7135 = vdwg.mxu0
    %7136 = vrot.lane.b32.xlu0 %v1566, 64
    %v7137 = vpop.permute.xlu0 %7136
    %v7140 = vsel %vm2326, %v6752, 0
    %7142 = vmatprep.subr.bf16.mxu0 0
    %7143 = vmatpush1.bf16.msra.mxu0 %v7137
    %7144 = vmatprep.subr.bf16.mxu0 0
    %7145 = vmatpush1.bf16.msra.mxu0 0
    %7146 = vmatprep.subr.bf16.mxu0 0
    %7147 = vmatpush1.bf16.msra.mxu0 0
    %7148 = vmatprep.subr.bf16.mxu0 0
    %7149 = vmatpush1.bf16.msra.mxu0 0
    %7150 = vmatprep.subr.bf16.mxu0 0
    %7151 = vmatpush1.bf16.msra.mxu0 0
    %7152 = vmatprep.subr.bf16.mxu0 0
    %7153 = vmatpush1.bf16.msra.mxu0 0
    %7154 = vmatprep.subr.bf16.mxu0 0
    %7155 = vmatpush1.bf16.msra.mxu0 0
    %7156 = vmatprep.subr.bf16.mxu0 0
    %7157 = vmatpush1.bf16.msra.mxu0 0
    %7158 = vmatprep.subr.bf16.mxu0 0
    %7159 = vmatpush1.bf16.msra.mxu0 0
    %7160 = vmatprep.subr.bf16.mxu0 0
    %7161 = vmatpush1.bf16.msra.mxu0 0
    %7162 = vmatprep.subr.bf16.mxu0 0
    %7163 = vmatpush1.bf16.msra.mxu0 0
    %7164 = vmatprep.subr.bf16.mxu0 0
    %7165 = vmatpush1.bf16.msra.mxu0 0
    %7166 = vmatprep.subr.bf16.mxu0 0
    %7167 = vmatpush1.bf16.msra.mxu0 0
    %7168 = vmatprep.subr.bf16.mxu0 0
    %7169 = vmatpush1.bf16.msra.mxu0 0
    %7170 = vmatprep.subr.bf16.mxu0 0
    %7171 = vmatpush1.bf16.msra.mxu0 0
    %7172 = vmatprep.subr.bf16.mxu0 0
    %7173 = vmatpush1.bf16.msra.mxu0 0
    %7174 = vmatprep.mubr.bf16.mxu0 0
    %7175 = vmatmul.mubr.bf16.gmra.mrb[0].mxu0 %v7140
    %v7176 = vpop.f32.mrb[0].mxu0
    %v7177 = vadd.f32 0.0, %v7176
    %v7178 = vpop.f32.mrb[0].mxu0
    %v7179 = vpop.f32.mrb[0].mxu0
    %v7180 = vadd.f32 0.0, %v7179
    %v7181 = vpop.f32.mrb[0].mxu0
    %7182 = vdwg.mxu0
    %7183 = vrot.lane.b32.xlu0 %v1567, 64
    %v7184 = vpop.permute.xlu0 %7183
    %v7187 = vsel %vm2326, %v6753, 0
    %7189 = vmatprep.subr.bf16.mxu0 0
    %7190 = vmatpush1.bf16.msra.mxu0 %v7184
    %7191 = vmatprep.subr.bf16.mxu0 0
    %7192 = vmatpush1.bf16.msra.mxu0 0
    %7193 = vmatprep.subr.bf16.mxu0 0
    %7194 = vmatpush1.bf16.msra.mxu0 0
    %7195 = vmatprep.subr.bf16.mxu0 0
    %7196 = vmatpush1.bf16.msra.mxu0 0
    %7197 = vmatprep.subr.bf16.mxu0 0
    %7198 = vmatpush1.bf16.msra.mxu0 0
    %7199 = vmatprep.subr.bf16.mxu0 0
    %7200 = vmatpush1.bf16.msra.mxu0 0
    %7201 = vmatprep.subr.bf16.mxu0 0
    %7202 = vmatpush1.bf16.msra.mxu0 0
    %7203 = vmatprep.subr.bf16.mxu0 0
    %7204 = vmatpush1.bf16.msra.mxu0 0
    %7205 = vmatprep.subr.bf16.mxu0 0
    %7206 = vmatpush1.bf16.msra.mxu0 0
    %7207 = vmatprep.subr.bf16.mxu0 0
    %7208 = vmatpush1.bf16.msra.mxu0 0
    %7209 = vmatprep.subr.bf16.mxu0 0
    %7210 = vmatpush1.bf16.msra.mxu0 0
    %7211 = vmatprep.subr.bf16.mxu0 0
    %7212 = vmatpush1.bf16.msra.mxu0 0
    %7213 = vmatprep.subr.bf16.mxu0 0
    %7214 = vmatpush1.bf16.msra.mxu0 0
    %7215 = vmatprep.subr.bf16.mxu0 0
    %7216 = vmatpush1.bf16.msra.mxu0 0
    %7217 = vmatprep.subr.bf16.mxu0 0
    %7218 = vmatpush1.bf16.msra.mxu0 0
    %7219 = vmatprep.subr.bf16.mxu0 0
    %7220 = vmatpush1.bf16.msra.mxu0 0
    %7221 = vmatprep.mubr.bf16.mxu0 0
    %7222 = vmatmul.mubr.bf16.gmra.mrb[0].mxu0 %v7187
    %v7223 = vpop.f32.mrb[0].mxu0
    %v7224 = vadd.f32 0.0, %v7223
    %v7225 = vpop.f32.mrb[0].mxu0
    %v7226 = vpop.f32.mrb[0].mxu0
    %v7227 = vadd.f32 0.0, %v7226
    %v7228 = vpop.f32.mrb[0].mxu0
    %7229 = vdwg.mxu0
    %7230 = vrot.lane.b32.xlu0 %v1568, 64
    %v7231 = vpop.permute.xlu0 %7230
    %v7234 = vsel %vm2326, %v6754, 0
    %7236 = vmatprep.subr.bf16.mxu0 0
    %7237 = vmatpush1.bf16.msra.mxu0 %v7231
    %7238 = vmatprep.subr.bf16.mxu0 0
    %7239 = vmatpush1.bf16.msra.mxu0 0
    %7240 = vmatprep.subr.bf16.mxu0 0
    %7241 = vmatpush1.bf16.msra.mxu0 0
    %7242 = vmatprep.subr.bf16.mxu0 0
    %7243 = vmatpush1.bf16.msra.mxu0 0
    %7244 = vmatprep.subr.bf16.mxu0 0
    %7245 = vmatpush1.bf16.msra.mxu0 0
    %7246 = vmatprep.subr.bf16.mxu0 0
    %7247 = vmatpush1.bf16.msra.mxu0 0
    %7248 = vmatprep.subr.bf16.mxu0 0
    %7249 = vmatpush1.bf16.msra.mxu0 0
    %7250 = vmatprep.subr.bf16.mxu0 0
    %7251 = vmatpush1.bf16.msra.mxu0 0
    %7252 = vmatprep.subr.bf16.mxu0 0
    %7253 = vmatpush1.bf16.msra.mxu0 0
    %7254 = vmatprep.subr.bf16.mxu0 0
    %7255 = vmatpush1.bf16.msra.mxu0 0
    %7256 = vmatprep.subr.bf16.mxu0 0
    %7257 = vmatpush1.bf16.msra.mxu0 0
    %7258 = vmatprep.subr.bf16.mxu0 0
    %7259 = vmatpush1.bf16.msra.mxu0 0
    %7260 = vmatprep.subr.bf16.mxu0 0
    %7261 = vmatpush1.bf16.msra.mxu0 0
    %7262 = vmatprep.subr.bf16.mxu0 0
    %7263 = vmatpush1.bf16.msra.mxu0 0
    %7264 = vmatprep.subr.bf16.mxu0 0
    %7265 = vmatpush1.bf16.msra.mxu0 0
    %7266 = vmatprep.subr.bf16.mxu0 0
    %7267 = vmatpush1.bf16.msra.mxu0 0
    %7268 = vmatprep.mubr.bf16.mxu0 0
    %7269 = vmatmul.mubr.bf16.gmra.mrb[0].mxu0 %v7234
    %v7270 = vpop.f32.mrb[0].mxu0
    %v7271 = vadd.f32 0.0, %v7270
    %v7272 = vpop.f32.mrb[0].mxu0
    %v7273 = vpop.f32.mrb[0].mxu0
    %v7274 = vadd.f32 0.0, %v7273
    %v7275 = vpop.f32.mrb[0].mxu0
    %7276 = vdwg.mxu0
    %7277 = vrot.lane.b32.xlu0 %v1569, 64
    %v7278 = vpop.permute.xlu0 %7277
    %v7281 = vsel %vm2326, %v6755, 0
    %7283 = vmatprep.subr.bf16.mxu0 0
    %7284 = vmatpush1.bf16.msra.mxu0 %v7278
    %7285 = vmatprep.subr.bf16.mxu0 0
    %7286 = vmatpush1.bf16.msra.mxu0 0
    %7287 = vmatprep.subr.bf16.mxu0 0
    %7288 = vmatpush1.bf16.msra.mxu0 0
    %7289 = vmatprep.subr.bf16.mxu0 0
    %7290 = vmatpush1.bf16.msra.mxu0 0
    %7291 = vmatprep.subr.bf16.mxu0 0
    %7292 = vmatpush1.bf16.msra.mxu0 0
    %7293 = vmatprep.subr.bf16.mxu0 0
    %7294 = vmatpush1.bf16.msra.mxu0 0
    %7295 = vmatprep.subr.bf16.mxu0 0
    %7296 = vmatpush1.bf16.msra.mxu0 0
    %7297 = vmatprep.subr.bf16.mxu0 0
    %7298 = vmatpush1.bf16.msra.mxu0 0
    %7299 = vmatprep.subr.bf16.mxu0 0
    %7300 = vmatpush1.bf16.msra.mxu0 0
    %7301 = vmatprep.subr.bf16.mxu0 0
    %7302 = vmatpush1.bf16.msra.mxu0 0
    %7303 = vmatprep.subr.bf16.mxu0 0
    %7304 = vmatpush1.bf16.msra.mxu0 0
    %7305 = vmatprep.subr.bf16.mxu0 0
    %7306 = vmatpush1.bf16.msra.mxu0 0
    %7307 = vmatprep.subr.bf16.mxu0 0
    %7308 = vmatpush1.bf16.msra.mxu0 0
    %7309 = vmatprep.subr.bf16.mxu0 0
    %7310 = vmatpush1.bf16.msra.mxu0 0
    %7311 = vmatprep.subr.bf16.mxu0 0
    %7312 = vmatpush1.bf16.msra.mxu0 0
    %7313 = vmatprep.subr.bf16.mxu0 0
    %7314 = vmatpush1.bf16.msra.mxu0 0
    %7315 = vmatprep.mubr.bf16.mxu0 0
    %7316 = vmatmul.mubr.bf16.gmra.mrb[0].mxu0 %v7281
    %v7317 = vpop.f32.mrb[0].mxu0
    %v7318 = vadd.f32 0.0, %v7317
    %v7319 = vpop.f32.mrb[0].mxu0
    %v7320 = vpop.f32.mrb[0].mxu0
    %v7321 = vadd.f32 0.0, %v7320
    %v7322 = vpop.f32.mrb[0].mxu0
    %7323 = vdwg.mxu0
    %7324 = vrot.lane.b32.xlu0 %v1570, 64
    %v7325 = vpop.permute.xlu0 %7324
    %v7328 = vsel %vm2326, %v6756, 0
    %7330 = vmatprep.subr.bf16.mxu0 0
    %7331 = vmatpush1.bf16.msra.mxu0 %v7325
    %7332 = vmatprep.subr.bf16.mxu0 0
    %7333 = vmatpush1.bf16.msra.mxu0 0
    %7334 = vmatprep.subr.bf16.mxu0 0
    %7335 = vmatpush1.bf16.msra.mxu0 0
    %7336 = vmatprep.subr.bf16.mxu0 0
    %7337 = vmatpush1.bf16.msra.mxu0 0
    %7338 = vmatprep.subr.bf16.mxu0 0
    %7339 = vmatpush1.bf16.msra.mxu0 0
    %7340 = vmatprep.subr.bf16.mxu0 0
    %7341 = vmatpush1.bf16.msra.mxu0 0
    %7342 = vmatprep.subr.bf16.mxu0 0
    %7343 = vmatpush1.bf16.msra.mxu0 0
    %7344 = vmatprep.subr.bf16.mxu0 0
    %7345 = vmatpush1.bf16.msra.mxu0 0
    %7346 = vmatprep.subr.bf16.mxu0 0
    %7347 = vmatpush1.bf16.msra.mxu0 0
    %7348 = vmatprep.subr.bf16.mxu0 0
    %7349 = vmatpush1.bf16.msra.mxu0 0
    %7350 = vmatprep.subr.bf16.mxu0 0
    %7351 = vmatpush1.bf16.msra.mxu0 0
    %7352 = vmatprep.subr.bf16.mxu0 0
    %7353 = vmatpush1.bf16.msra.mxu0 0
    %7354 = vmatprep.subr.bf16.mxu0 0
    %7355 = vmatpush1.bf16.msra.mxu0 0
    %7356 = vmatprep.subr.bf16.mxu0 0
    %7357 = vmatpush1.bf16.msra.mxu0 0
    %7358 = vmatprep.subr.bf16.mxu0 0
    %7359 = vmatpush1.bf16.msra.mxu0 0
    %7360 = vmatprep.subr.bf16.mxu0 0
    %7361 = vmatpush1.bf16.msra.mxu0 0
    %7362 = vmatprep.mubr.bf16.mxu0 0
    %7363 = vmatmul.mubr.bf16.gmra.mrb[0].mxu0 %v7328
    %v7364 = vpop.f32.mrb[0].mxu0
    %v7365 = vadd.f32 0.0, %v7364
    %v7366 = vpop.f32.mrb[0].mxu0
    %v7367 = vpop.f32.mrb[0].mxu0
    %v7368 = vadd.f32 0.0, %v7367
    %v7369 = vpop.f32.mrb[0].mxu0
    %7370 = vdwg.mxu0
    %7371 = vrot.lane.b32.xlu0 %v1571, 64
    %v7372 = vpop.permute.xlu0 %7371
    %v7375 = vsel %vm2326, %v6757, 0
    %7377 = vmatprep.subr.bf16.mxu0 0
    %7378 = vmatpush1.bf16.msra.mxu0 %v7372
    %7379 = vmatprep.subr.bf16.mxu0 0
    %7380 = vmatpush1.bf16.msra.mxu0 0
    %7381 = vmatprep.subr.bf16.mxu0 0
    %7382 = vmatpush1.bf16.msra.mxu0 0
    %7383 = vmatprep.subr.bf16.mxu0 0
    %7384 = vmatpush1.bf16.msra.mxu0 0
    %7385 = vmatprep.subr.bf16.mxu0 0
    %7386 = vmatpush1.bf16.msra.mxu0 0
    %7387 = vmatprep.subr.bf16.mxu0 0
    %7388 = vmatpush1.bf16.msra.mxu0 0
    %7389 = vmatprep.subr.bf16.mxu0 0
    %7390 = vmatpush1.bf16.msra.mxu0 0
    %7391 = vmatprep.subr.bf16.mxu0 0
    %7392 = vmatpush1.bf16.msra.mxu0 0
    %7393 = vmatprep.subr.bf16.mxu0 0
    %7394 = vmatpush1.bf16.msra.mxu0 0
    %7395 = vmatprep.subr.bf16.mxu0 0
    %7396 = vmatpush1.bf16.msra.mxu0 0
    %7397 = vmatprep.subr.bf16.mxu0 0
    %7398 = vmatpush1.bf16.msra.mxu0 0
    %7399 = vmatprep.subr.bf16.mxu0 0
    %7400 = vmatpush1.bf16.msra.mxu0 0
    %7401 = vmatprep.subr.bf16.mxu0 0
    %7402 = vmatpush1.bf16.msra.mxu0 0
    %7403 = vmatprep.subr.bf16.mxu0 0
    %7404 = vmatpush1.bf16.msra.mxu0 0
    %7405 = vmatprep.subr.bf16.mxu0 0
    %7406 = vmatpush1.bf16.msra.mxu0 0
    %7407 = vmatprep.subr.bf16.mxu0 0
    %7408 = vmatpush1.bf16.msra.mxu0 0
    %7409 = vmatprep.mubr.bf16.mxu0 0
    %7410 = vmatmul.mubr.bf16.gmra.mrb[0].mxu0 %v7375
    %v7411 = vpop.f32.mrb[0].mxu0
    %v7412 = vadd.f32 0.0, %v7411
    %v7413 = vpop.f32.mrb[0].mxu0
    %v7414 = vpop.f32.mrb[0].mxu0
    %v7415 = vadd.f32 0.0, %v7414
    %v7416 = vpop.f32.mrb[0].mxu0
    %7417 = vdwg.mxu0
    %7418 = vrot.lane.b32.xlu0 %v1572, 64
    %v7419 = vpop.permute.xlu0 %7418
    %v7422 = vsel %vm2326, %v6758, 0
    %7424 = vmatprep.subr.bf16.mxu0 0
    %7425 = vmatpush1.bf16.msra.mxu0 %v7419
    %7426 = vmatprep.subr.bf16.mxu0 0
    %7427 = vmatpush1.bf16.msra.mxu0 0
    %7428 = vmatprep.subr.bf16.mxu0 0
    %7429 = vmatpush1.bf16.msra.mxu0 0
    %7430 = vmatprep.subr.bf16.mxu0 0
    %7431 = vmatpush1.bf16.msra.mxu0 0
    %7432 = vmatprep.subr.bf16.mxu0 0
    %7433 = vmatpush1.bf16.msra.mxu0 0
    %7434 = vmatprep.subr.bf16.mxu0 0
    %7435 = vmatpush1.bf16.msra.mxu0 0
    %7436 = vmatprep.subr.bf16.mxu0 0
    %7437 = vmatpush1.bf16.msra.mxu0 0
    %7438 = vmatprep.subr.bf16.mxu0 0
    %7439 = vmatpush1.bf16.msra.mxu0 0
    %7440 = vmatprep.subr.bf16.mxu0 0
    %7441 = vmatpush1.bf16.msra.mxu0 0
    %7442 = vmatprep.subr.bf16.mxu0 0
    %7443 = vmatpush1.bf16.msra.mxu0 0
    %7444 = vmatprep.subr.bf16.mxu0 0
    %7445 = vmatpush1.bf16.msra.mxu0 0
    %7446 = vmatprep.subr.bf16.mxu0 0
    %7447 = vmatpush1.bf16.msra.mxu0 0
    %7448 = vmatprep.subr.bf16.mxu0 0
    %7449 = vmatpush1.bf16.msra.mxu0 0
    %7450 = vmatprep.subr.bf16.mxu0 0
    %7451 = vmatpush1.bf16.msra.mxu0 0
    %7452 = vmatprep.subr.bf16.mxu0 0
    %7453 = vmatpush1.bf16.msra.mxu0 0
    %7454 = vmatprep.subr.bf16.mxu0 0
    %7455 = vmatpush1.bf16.msra.mxu0 0
    %7456 = vmatprep.mubr.bf16.mxu0 0
    %7457 = vmatmul.mubr.bf16.gmra.mrb[0].mxu0 %v7422
    %v7458 = vpop.f32.mrb[0].mxu0
    %v7459 = vadd.f32 0.0, %v7458
    %v7460 = vpop.f32.mrb[0].mxu0
    %v7461 = vpop.f32.mrb[0].mxu0
    %v7462 = vadd.f32 0.0, %v7461
    %v7463 = vpop.f32.mrb[0].mxu0
    %7464 = vdwg.mxu0
    %7465 = vrot.lane.b32.xlu0 %v1573, 64
    %v7466 = vpop.permute.xlu0 %7465
    %v7469 = vsel %vm2326, %v6759, 0
    %7471 = vmatprep.subr.bf16.mxu0 0
    %7472 = vmatpush1.bf16.msra.mxu0 %v7466
    %7473 = vmatprep.subr.bf16.mxu0 0
    %7474 = vmatpush1.bf16.msra.mxu0 0
    %7475 = vmatprep.subr.bf16.mxu0 0
    %7476 = vmatpush1.bf16.msra.mxu0 0
    %7477 = vmatprep.subr.bf16.mxu0 0
    %7478 = vmatpush1.bf16.msra.mxu0 0
    %7479 = vmatprep.subr.bf16.mxu0 0
    %7480 = vmatpush1.bf16.msra.mxu0 0
    %7481 = vmatprep.subr.bf16.mxu0 0
    %7482 = vmatpush1.bf16.msra.mxu0 0
    %7483 = vmatprep.subr.bf16.mxu0 0
    %7484 = vmatpush1.bf16.msra.mxu0 0
    %7485 = vmatprep.subr.bf16.mxu0 0
    %7486 = vmatpush1.bf16.msra.mxu0 0
    %7487 = vmatprep.subr.bf16.mxu0 0
    %7488 = vmatpush1.bf16.msra.mxu0 0
    %7489 = vmatprep.subr.bf16.mxu0 0
    %7490 = vmatpush1.bf16.msra.mxu0 0
    %7491 = vmatprep.subr.bf16.mxu0 0
    %7492 = vmatpush1.bf16.msra.mxu0 0
    %7493 = vmatprep.subr.bf16.mxu0 0
    %7494 = vmatpush1.bf16.msra.mxu0 0
    %7495 = vmatprep.subr.bf16.mxu0 0
    %7496 = vmatpush1.bf16.msra.mxu0 0
    %7497 = vmatprep.subr.bf16.mxu0 0
    %7498 = vmatpush1.bf16.msra.mxu0 0
    %7499 = vmatprep.subr.bf16.mxu0 0
    %7500 = vmatpush1.bf16.msra.mxu0 0
    %7501 = vmatprep.subr.bf16.mxu0 0
    %7502 = vmatpush1.bf16.msra.mxu0 0
    %7503 = vmatprep.mubr.bf16.mxu0 0
    %7504 = vmatmul.mubr.bf16.gmra.mrb[0].mxu0 %v7469
    %v7505 = vpop.f32.mrb[0].mxu0
    %v7506 = vadd.f32 0.0, %v7505
    %v7507 = vpop.f32.mrb[0].mxu0
    %v7508 = vpop.f32.mrb[0].mxu0
    %v7509 = vadd.f32 0.0, %v7508
    %v7510 = vpop.f32.mrb[0].mxu0
    %7511 = vdwg.mxu0
    %7544 = vrot.lane.b32.xlu0 %v6801, 64
    %v7545 = vpop.permute.xlu0 %7544
    %7546 = vrot.lane.b32.xlu0 %v6804, 64
    %v7547 = vpop.permute.xlu0 %7546
    %7548 = vrot.lane.b32.xlu0 %v6848, 64
    %v7549 = vpop.permute.xlu0 %7548
    %7550 = vrot.lane.b32.xlu0 %v6851, 64
    %v7551 = vpop.permute.xlu0 %7550
    %7552 = vrot.lane.b32.xlu0 %v6895, 64
    %v7553 = vpop.permute.xlu0 %7552
    %7554 = vrot.lane.b32.xlu0 %v6898, 64
    %v7555 = vpop.permute.xlu0 %7554
    %7556 = vrot.lane.b32.xlu0 %v6942, 64
    %v7557 = vpop.permute.xlu0 %7556
    %7558 = vrot.lane.b32.xlu0 %v6945, 64
    %v7559 = vpop.permute.xlu0 %7558
    %7560 = vrot.lane.b32.xlu0 %v6989, 64
    %v7561 = vpop.permute.xlu0 %7560
    %7562 = vrot.lane.b32.xlu0 %v6992, 64
    %v7563 = vpop.permute.xlu0 %7562
    %7564 = vrot.lane.b32.xlu0 %v7036, 64
    %v7565 = vpop.permute.xlu0 %7564
    %7566 = vrot.lane.b32.xlu0 %v7039, 64
    %v7567 = vpop.permute.xlu0 %7566
    %7568 = vrot.lane.b32.xlu0 %v7083, 64
    %v7569 = vpop.permute.xlu0 %7568
    %7570 = vrot.lane.b32.xlu0 %v7086, 64
    %v7571 = vpop.permute.xlu0 %7570
    %7572 = vrot.lane.b32.xlu0 %v7130, 64
    %v7573 = vpop.permute.xlu0 %7572
    %7574 = vrot.lane.b32.xlu0 %v7133, 64
    %v7575 = vpop.permute.xlu0 %7574
    %7576 = vrot.lane.b32.xlu0 %v7177, 64
    %v7577 = vpop.permute.xlu0 %7576
    %7578 = vrot.lane.b32.xlu0 %v7180, 64
    %v7579 = vpop.permute.xlu0 %7578
    %7580 = vrot.lane.b32.xlu0 %v7224, 64
    %v7581 = vpop.permute.xlu0 %7580
    %7582 = vrot.lane.b32.xlu0 %v7227, 64
    %v7583 = vpop.permute.xlu0 %7582
    %7584 = vrot.lane.b32.xlu0 %v7271, 64
    %v7585 = vpop.permute.xlu0 %7584
    %7586 = vrot.lane.b32.xlu0 %v7274, 64
    %v7587 = vpop.permute.xlu0 %7586
    %7588 = vrot.lane.b32.xlu0 %v7318, 64
    %v7589 = vpop.permute.xlu0 %7588
    %7590 = vrot.lane.b32.xlu0 %v7321, 64
    %v7591 = vpop.permute.xlu0 %7590
    %7592 = vrot.lane.b32.xlu0 %v7365, 64
    %v7593 = vpop.permute.xlu0 %7592
    %7594 = vrot.lane.b32.xlu0 %v7368, 64
    %v7595 = vpop.permute.xlu0 %7594
    %7596 = vrot.lane.b32.xlu0 %v7412, 64
    %v7597 = vpop.permute.xlu0 %7596
    %7598 = vrot.lane.b32.xlu0 %v7415, 64
    %v7599 = vpop.permute.xlu0 %7598
    %7600 = vrot.lane.b32.xlu0 %v7459, 64
    %v7601 = vpop.permute.xlu0 %7600
    %7602 = vrot.lane.b32.xlu0 %v7462, 64
    %v7603 = vpop.permute.xlu0 %7602
    %7604 = vrot.lane.b32.xlu0 %v7506, 64
    %v7605 = vpop.permute.xlu0 %7604
    %7606 = vrot.lane.b32.xlu0 %v7509, 64
    %v7607 = vpop.permute.xlu0 %7606
    %vm7640 = vcmask 785920
    %7641 = vst.msk [vmem:[#allocation2] sm:$0xff] %vm7640, %v7545
    %7642 = vst.msk [vmem:[#allocation2 + $0x8] sm:$0xff] %vm7640, %v7547
    %7643 = vst.msk [vmem:[#allocation2 + $0x10] sm:$0xff] %vm7640, %v7549
    %7644 = vst.msk [vmem:[#allocation2 + $0x18] sm:$0xff] %vm7640, %v7551
    %7645 = vst.msk [vmem:[#allocation2 + $0x20] sm:$0xff] %vm7640, %v7553
    %7646 = vst.msk [vmem:[#allocation2 + $0x28] sm:$0xff] %vm7640, %v7555
    %7647 = vst.msk [vmem:[#allocation2 + $0x30] sm:$0xff] %vm7640, %v7557
    %7648 = vst.msk [vmem:[#allocation2 + $0x38] sm:$0xff] %vm7640, %v7559
    %7649 = vst.msk [vmem:[#allocation2 + $0x40] sm:$0xff] %vm7640, %v7561
    %7650 = vst.msk [vmem:[#allocation2 + $0x48] sm:$0xff] %vm7640, %v7563
    %7651 = vst.msk [vmem:[#allocation2 + $0x50] sm:$0xff] %vm7640, %v7565
    %7652 = vst.msk [vmem:[#allocation2 + $0x58] sm:$0xff] %vm7640, %v7567
    %7653 = vst.msk [vmem:[#allocation2 + $0x60] sm:$0xff] %vm7640, %v7569
    %7654 = vst.msk [vmem:[#allocation2 + $0x68] sm:$0xff] %vm7640, %v7571
    %7655 = vst.msk [vmem:[#allocation2 + $0x70] sm:$0xff] %vm7640, %v7573
    %7656 = vst.msk [vmem:[#allocation2 + $0x78] sm:$0xff] %vm7640, %v7575
    %7657 = vst.msk [vmem:[#allocation2 + $0x80] sm:$0xff] %vm7640, %v7577
    %7658 = vst.msk [vmem:[#allocation2 + $0x88] sm:$0xff] %vm7640, %v7579
    %7659 = vst.msk [vmem:[#allocation2 + $0x90] sm:$0xff] %vm7640, %v7581
    %7660 = vst.msk [vmem:[#allocation2 + $0x98] sm:$0xff] %vm7640, %v7583
    %7661 = vst.msk [vmem:[#allocation2 + $0xa0] sm:$0xff] %vm7640, %v7585
    %7662 = vst.msk [vmem:[#allocation2 + $0xa8] sm:$0xff] %vm7640, %v7587
    %7663 = vst.msk [vmem:[#allocation2 + $0xb0] sm:$0xff] %vm7640, %v7589
    %7664 = vst.msk [vmem:[#allocation2 + $0xb8] sm:$0xff] %vm7640, %v7591
    %7665 = vst.msk [vmem:[#allocation2 + $0xc0] sm:$0xff] %vm7640, %v7593
    %7666 = vst.msk [vmem:[#allocation2 + $0xc8] sm:$0xff] %vm7640, %v7595
    %7667 = vst.msk [vmem:[#allocation2 + $0xd0] sm:$0xff] %vm7640, %v7597
    %7668 = vst.msk [vmem:[#allocation2 + $0xd8] sm:$0xff] %vm7640, %v7599
    %7669 = vst.msk [vmem:[#allocation2 + $0xe0] sm:$0xff] %vm7640, %v7601
    %7670 = vst.msk [vmem:[#allocation2 + $0xe8] sm:$0xff] %vm7640, %v7603
    %7671 = vst.msk [vmem:[#allocation2 + $0xf0] sm:$0xff] %vm7640, %v7605
    %7672 = vst.msk [vmem:[#allocation2 + $0xf8] sm:$0xff] %vm7640, %v7607
    %7673 = vrot.lane.b32.xlu0 %v1526, 32
    %v7674 = vpop.permute.xlu0 %7673
    %7675 = vrot.lane.b32.xlu0 %v1542, 32
    %v7676 = vpop.permute.xlu0 %7675
    %v7678 = vsel %vm272, %v7674, 0
    %v7681 = vsel %vm272, %v7676, 0
    %7683 = vmatprep.subr.bf16.mxu0 0
    %7684 = vmatpush1.bf16.xpose.msra.mxu0 %v7681
    %7685 = vmatprep.subr.bf16.mxu0 0
    %7686 = vmatpush1.bf16.xpose.msra.mxu0 0
    %7687 = vmatprep.subr.bf16.mxu0 0
    %7688 = vmatpush1.bf16.xpose.msra.mxu0 0
    %7689 = vmatprep.subr.bf16.mxu0 0
    %7690 = vmatpush1.bf16.xpose.msra.mxu0 0
    %7691 = vmatprep.subr.bf16.mxu0 0
    %7692 = vmatpush1.bf16.xpose.msra.mxu0 0
    %7693 = vmatprep.subr.bf16.mxu0 0
    %7694 = vmatpush1.bf16.xpose.msra.mxu0 0
    %7695 = vmatprep.subr.bf16.mxu0 0
    %7696 = vmatpush1.bf16.xpose.msra.mxu0 0
    %7697 = vmatprep.subr.bf16.mxu0 0
    %7698 = vmatpush1.bf16.xpose.msra.mxu0 0
    %7699 = vmatprep.subr.bf16.mxu0 0
    %7700 = vmatpush1.bf16.xpose.msra.mxu0 0
    %7701 = vmatprep.subr.bf16.mxu0 0
    %7702 = vmatpush1.bf16.xpose.msra.mxu0 0
    %7703 = vmatprep.subr.bf16.mxu0 0
    %7704 = vmatpush1.bf16.xpose.msra.mxu0 0
    %7705 = vmatprep.subr.bf16.mxu0 0
    %7706 = vmatpush1.bf16.xpose.msra.mxu0 0
    %7707 = vmatprep.subr.bf16.mxu0 0
    %7708 = vmatpush1.bf16.xpose.msra.mxu0 0
    %7709 = vmatprep.subr.bf16.mxu0 0
    %7710 = vmatpush1.bf16.xpose.msra.mxu0 0
    %7711 = vmatprep.subr.bf16.mxu0 0
    %7712 = vmatpush1.bf16.xpose.msra.mxu0 0
    %7713 = vmatprep.subr.bf16.mxu0 0
    %7714 = vmatpush1.bf16.xpose.msra.mxu0 0
    %7715 = vmatprep.mubr.bf16.mxu0 0
    %7716 = vmatmul.mubr.bf16.gmra.mrb[0].mxu0 %v7678
    %v7717 = vpop.f32.mrb[0].mxu0
    %v7718 = vadd.f32 0.0, %v7717
    %v7719 = vpop.f32.mrb[0].mxu0
    %v7720 = vpop.f32.mrb[0].mxu0
    %v7721 = vadd.f32 0.0, %v7720
    %v7722 = vpop.f32.mrb[0].mxu0
    %7723 = vdwg.mxu0
    %7724 = vrot.lane.b32.xlu0 %v1527, 32
    %v7725 = vpop.permute.xlu0 %7724
    %7726 = vrot.lane.b32.xlu0 %v1543, 32
    %v7727 = vpop.permute.xlu0 %7726
    %v7729 = vsel %vm272, %v7725, 0
    %v7732 = vsel %vm272, %v7727, 0
    %7734 = vmatprep.subr.bf16.mxu0 0
    %7735 = vmatpush1.bf16.xpose.msra.mxu0 %v7732
    %7736 = vmatprep.subr.bf16.mxu0 0
    %7737 = vmatpush1.bf16.xpose.msra.mxu0 0
    %7738 = vmatprep.subr.bf16.mxu0 0
    %7739 = vmatpush1.bf16.xpose.msra.mxu0 0
    %7740 = vmatprep.subr.bf16.mxu0 0
    %7741 = vmatpush1.bf16.xpose.msra.mxu0 0
    %7742 = vmatprep.subr.bf16.mxu0 0
    %7743 = vmatpush1.bf16.xpose.msra.mxu0 0
    %7744 = vmatprep.subr.bf16.mxu0 0
    %7745 = vmatpush1.bf16.xpose.msra.mxu0 0
    %7746 = vmatprep.subr.bf16.mxu0 0
    %7747 = vmatpush1.bf16.xpose.msra.mxu0 0
    %7748 = vmatprep.subr.bf16.mxu0 0
    %7749 = vmatpush1.bf16.xpose.msra.mxu0 0
    %7750 = vmatprep.subr.bf16.mxu0 0
    %7751 = vmatpush1.bf16.xpose.msra.mxu0 0
    %7752 = vmatprep.subr.bf16.mxu0 0
    %7753 = vmatpush1.bf16.xpose.msra.mxu0 0
    %7754 = vmatprep.subr.bf16.mxu0 0
    %7755 = vmatpush1.bf16.xpose.msra.mxu0 0
    %7756 = vmatprep.subr.bf16.mxu0 0
    %7757 = vmatpush1.bf16.xpose.msra.mxu0 0
    %7758 = vmatprep.subr.bf16.mxu0 0
    %7759 = vmatpush1.bf16.xpose.msra.mxu0 0
    %7760 = vmatprep.subr.bf16.mxu0 0
    %7761 = vmatpush1.bf16.xpose.msra.mxu0 0
    %7762 = vmatprep.subr.bf16.mxu0 0
    %7763 = vmatpush1.bf16.xpose.msra.mxu0 0
    %7764 = vmatprep.subr.bf16.mxu0 0
    %7765 = vmatpush1.bf16.xpose.msra.mxu0 0
    %7766 = vmatprep.mubr.bf16.mxu0 0
    %7767 = vmatmul.mubr.bf16.gmra.mrb[0].mxu0 %v7729
    %v7768 = vpop.f32.mrb[0].mxu0
    %v7769 = vadd.f32 0.0, %v7768
    %v7770 = vpop.f32.mrb[0].mxu0
    %v7771 = vpop.f32.mrb[0].mxu0
    %v7772 = vadd.f32 0.0, %v7771
    %v7773 = vpop.f32.mrb[0].mxu0
    %7774 = vdwg.mxu0
    %7775 = vrot.lane.b32.xlu0 %v1528, 32
    %v7776 = vpop.permute.xlu0 %7775
    %7777 = vrot.lane.b32.xlu0 %v1544, 32
    %v7778 = vpop.permute.xlu0 %7777
    %v7780 = vsel %vm272, %v7776, 0
    %v7783 = vsel %vm272, %v7778, 0
    %7785 = vmatprep.subr.bf16.mxu0 0
    %7786 = vmatpush1.bf16.xpose.msra.mxu0 %v7783
    %7787 = vmatprep.subr.bf16.mxu0 0
    %7788 = vmatpush1.bf16.xpose.msra.mxu0 0
    %7789 = vmatprep.subr.bf16.mxu0 0
    %7790 = vmatpush1.bf16.xpose.msra.mxu0 0
    %7791 = vmatprep.subr.bf16.mxu0 0
    %7792 = vmatpush1.bf16.xpose.msra.mxu0 0
    %7793 = vmatprep.subr.bf16.mxu0 0
    %7794 = vmatpush1.bf16.xpose.msra.mxu0 0
    %7795 = vmatprep.subr.bf16.mxu0 0
    %7796 = vmatpush1.bf16.xpose.msra.mxu0 0
    %7797 = vmatprep.subr.bf16.mxu0 0
    %7798 = vmatpush1.bf16.xpose.msra.mxu0 0
    %7799 = vmatprep.subr.bf16.mxu0 0
    %7800 = vmatpush1.bf16.xpose.msra.mxu0 0
    %7801 = vmatprep.subr.bf16.mxu0 0
    %7802 = vmatpush1.bf16.xpose.msra.mxu0 0
    %7803 = vmatprep.subr.bf16.mxu0 0
    %7804 = vmatpush1.bf16.xpose.msra.mxu0 0
    %7805 = vmatprep.subr.bf16.mxu0 0
    %7806 = vmatpush1.bf16.xpose.msra.mxu0 0
    %7807 = vmatprep.subr.bf16.mxu0 0
    %7808 = vmatpush1.bf16.xpose.msra.mxu0 0
    %7809 = vmatprep.subr.bf16.mxu0 0
    %7810 = vmatpush1.bf16.xpose.msra.mxu0 0
    %7811 = vmatprep.subr.bf16.mxu0 0
    %7812 = vmatpush1.bf16.xpose.msra.mxu0 0
    %7813 = vmatprep.subr.bf16.mxu0 0
    %7814 = vmatpush1.bf16.xpose.msra.mxu0 0
    %7815 = vmatprep.subr.bf16.mxu0 0
    %7816 = vmatpush1.bf16.xpose.msra.mxu0 0
    %7817 = vmatprep.mubr.bf16.mxu0 0
    %7818 = vmatmul.mubr.bf16.gmra.mrb[0].mxu0 %v7780
    %v7819 = vpop.f32.mrb[0].mxu0
    %v7820 = vadd.f32 0.0, %v7819
    %v7821 = vpop.f32.mrb[0].mxu0
    %v7822 = vpop.f32.mrb[0].mxu0
    %v7823 = vadd.f32 0.0, %v7822
    %v7824 = vpop.f32.mrb[0].mxu0
    %7825 = vdwg.mxu0
    %7826 = vrot.lane.b32.xlu0 %v1529, 32
    %v7827 = vpop.permute.xlu0 %7826
    %7828 = vrot.lane.b32.xlu0 %v1545, 32
    %v7829 = vpop.permute.xlu0 %7828
    %v7831 = vsel %vm272, %v7827, 0
    %v7834 = vsel %vm272, %v7829, 0
    %7836 = vmatprep.subr.bf16.mxu0 0
    %7837 = vmatpush1.bf16.xpose.msra.mxu0 %v7834
    %7838 = vmatprep.subr.bf16.mxu0 0
    %7839 = vmatpush1.bf16.xpose.msra.mxu0 0
    %7840 = vmatprep.subr.bf16.mxu0 0
    %7841 = vmatpush1.bf16.xpose.msra.mxu0 0
    %7842 = vmatprep.subr.bf16.mxu0 0
    %7843 = vmatpush1.bf16.xpose.msra.mxu0 0
    %7844 = vmatprep.subr.bf16.mxu0 0
    %7845 = vmatpush1.bf16.xpose.msra.mxu0 0
    %7846 = vmatprep.subr.bf16.mxu0 0
    %7847 = vmatpush1.bf16.xpose.msra.mxu0 0
    %7848 = vmatprep.subr.bf16.mxu0 0
    %7849 = vmatpush1.bf16.xpose.msra.mxu0 0
    %7850 = vmatprep.subr.bf16.mxu0 0
    %7851 = vmatpush1.bf16.xpose.msra.mxu0 0
    %7852 = vmatprep.subr.bf16.mxu0 0
    %7853 = vmatpush1.bf16.xpose.msra.mxu0 0
    %7854 = vmatprep.subr.bf16.mxu0 0
    %7855 = vmatpush1.bf16.xpose.msra.mxu0 0
    %7856 = vmatprep.subr.bf16.mxu0 0
    %7857 = vmatpush1.bf16.xpose.msra.mxu0 0
    %7858 = vmatprep.subr.bf16.mxu0 0
    %7859 = vmatpush1.bf16.xpose.msra.mxu0 0
    %7860 = vmatprep.subr.bf16.mxu0 0
    %7861 = vmatpush1.bf16.xpose.msra.mxu0 0
    %7862 = vmatprep.subr.bf16.mxu0 0
    %7863 = vmatpush1.bf16.xpose.msra.mxu0 0
    %7864 = vmatprep.subr.bf16.mxu0 0
    %7865 = vmatpush1.bf16.xpose.msra.mxu0 0
    %7866 = vmatprep.subr.bf16.mxu0 0
    %7867 = vmatpush1.bf16.xpose.msra.mxu0 0
    %7868 = vmatprep.mubr.bf16.mxu0 0
    %7869 = vmatmul.mubr.bf16.gmra.mrb[0].mxu0 %v7831
    %v7870 = vpop.f32.mrb[0].mxu0
    %v7871 = vadd.f32 0.0, %v7870
    %v7872 = vpop.f32.mrb[0].mxu0
    %v7873 = vpop.f32.mrb[0].mxu0
    %v7874 = vadd.f32 0.0, %v7873
    %v7875 = vpop.f32.mrb[0].mxu0
    %7876 = vdwg.mxu0
    %7877 = vrot.lane.b32.xlu0 %v1530, 32
    %v7878 = vpop.permute.xlu0 %7877
    %7879 = vrot.lane.b32.xlu0 %v1546, 32
    %v7880 = vpop.permute.xlu0 %7879
    %v7882 = vsel %vm272, %v7878, 0
    %v7885 = vsel %vm272, %v7880, 0
    %7887 = vmatprep.subr.bf16.mxu0 0
    %7888 = vmatpush1.bf16.xpose.msra.mxu0 %v7885
    %7889 = vmatprep.subr.bf16.mxu0 0
    %7890 = vmatpush1.bf16.xpose.msra.mxu0 0
    %7891 = vmatprep.subr.bf16.mxu0 0
    %7892 = vmatpush1.bf16.xpose.msra.mxu0 0
    %7893 = vmatprep.subr.bf16.mxu0 0
    %7894 = vmatpush1.bf16.xpose.msra.mxu0 0
    %7895 = vmatprep.subr.bf16.mxu0 0
    %7896 = vmatpush1.bf16.xpose.msra.mxu0 0
    %7897 = vmatprep.subr.bf16.mxu0 0
    %7898 = vmatpush1.bf16.xpose.msra.mxu0 0
    %7899 = vmatprep.subr.bf16.mxu0 0
    %7900 = vmatpush1.bf16.xpose.msra.mxu0 0
    %7901 = vmatprep.subr.bf16.mxu0 0
    %7902 = vmatpush1.bf16.xpose.msra.mxu0 0
    %7903 = vmatprep.subr.bf16.mxu0 0
    %7904 = vmatpush1.bf16.xpose.msra.mxu0 0
    %7905 = vmatprep.subr.bf16.mxu0 0
    %7906 = vmatpush1.bf16.xpose.msra.mxu0 0
    %7907 = vmatprep.subr.bf16.mxu0 0
    %7908 = vmatpush1.bf16.xpose.msra.mxu0 0
    %7909 = vmatprep.subr.bf16.mxu0 0
    %7910 = vmatpush1.bf16.xpose.msra.mxu0 0
    %7911 = vmatprep.subr.bf16.mxu0 0
    %7912 = vmatpush1.bf16.xpose.msra.mxu0 0
    %7913 = vmatprep.subr.bf16.mxu0 0
    %7914 = vmatpush1.bf16.xpose.msra.mxu0 0
    %7915 = vmatprep.subr.bf16.mxu0 0
    %7916 = vmatpush1.bf16.xpose.msra.mxu0 0
    %7917 = vmatprep.subr.bf16.mxu0 0
    %7918 = vmatpush1.bf16.xpose.msra.mxu0 0
    %7919 = vmatprep.mubr.bf16.mxu0 0
    %7920 = vmatmul.mubr.bf16.gmra.mrb[0].mxu0 %v7882
    %v7921 = vpop.f32.mrb[0].mxu0
    %v7922 = vadd.f32 0.0, %v7921
    %v7923 = vpop.f32.mrb[0].mxu0
    %v7924 = vpop.f32.mrb[0].mxu0
    %v7925 = vadd.f32 0.0, %v7924
    %v7926 = vpop.f32.mrb[0].mxu0
    %7927 = vdwg.mxu0
    %7928 = vrot.lane.b32.xlu0 %v1531, 32
    %v7929 = vpop.permute.xlu0 %7928
    %7930 = vrot.lane.b32.xlu0 %v1547, 32
    %v7931 = vpop.permute.xlu0 %7930
    %v7933 = vsel %vm272, %v7929, 0
    %v7936 = vsel %vm272, %v7931, 0
    %7938 = vmatprep.subr.bf16.mxu0 0
    %7939 = vmatpush1.bf16.xpose.msra.mxu0 %v7936
    %7940 = vmatprep.subr.bf16.mxu0 0
    %7941 = vmatpush1.bf16.xpose.msra.mxu0 0
    %7942 = vmatprep.subr.bf16.mxu0 0
    %7943 = vmatpush1.bf16.xpose.msra.mxu0 0
    %7944 = vmatprep.subr.bf16.mxu0 0
    %7945 = vmatpush1.bf16.xpose.msra.mxu0 0
    %7946 = vmatprep.subr.bf16.mxu0 0
    %7947 = vmatpush1.bf16.xpose.msra.mxu0 0
    %7948 = vmatprep.subr.bf16.mxu0 0
    %7949 = vmatpush1.bf16.xpose.msra.mxu0 0
    %7950 = vmatprep.subr.bf16.mxu0 0
    %7951 = vmatpush1.bf16.xpose.msra.mxu0 0
    %7952 = vmatprep.subr.bf16.mxu0 0
    %7953 = vmatpush1.bf16.xpose.msra.mxu0 0
    %7954 = vmatprep.subr.bf16.mxu0 0
    %7955 = vmatpush1.bf16.xpose.msra.mxu0 0
    %7956 = vmatprep.subr.bf16.mxu0 0
    %7957 = vmatpush1.bf16.xpose.msra.mxu0 0
    %7958 = vmatprep.subr.bf16.mxu0 0
    %7959 = vmatpush1.bf16.xpose.msra.mxu0 0
    %7960 = vmatprep.subr.bf16.mxu0 0
    %7961 = vmatpush1.bf16.xpose.msra.mxu0 0
    %7962 = vmatprep.subr.bf16.mxu0 0
    %7963 = vmatpush1.bf16.xpose.msra.mxu0 0
    %7964 = vmatprep.subr.bf16.mxu0 0
    %7965 = vmatpush1.bf16.xpose.msra.mxu0 0
    %7966 = vmatprep.subr.bf16.mxu0 0
    %7967 = vmatpush1.bf16.xpose.msra.mxu0 0
    %7968 = vmatprep.subr.bf16.mxu0 0
    %7969 = vmatpush1.bf16.xpose.msra.mxu0 0
    %7970 = vmatprep.mubr.bf16.mxu0 0
    %7971 = vmatmul.mubr.bf16.gmra.mrb[0].mxu0 %v7933
    %v7972 = vpop.f32.mrb[0].mxu0
    %v7973 = vadd.f32 0.0, %v7972
    %v7974 = vpop.f32.mrb[0].mxu0
    %v7975 = vpop.f32.mrb[0].mxu0
    %v7976 = vadd.f32 0.0, %v7975
    %v7977 = vpop.f32.mrb[0].mxu0
    %7978 = vdwg.mxu0
    %7979 = vrot.lane.b32.xlu0 %v1532, 32
    %v7980 = vpop.permute.xlu0 %7979
    %7981 = vrot.lane.b32.xlu0 %v1548, 32
    %v7982 = vpop.permute.xlu0 %7981
    %v7984 = vsel %vm272, %v7980, 0
    %v7987 = vsel %vm272, %v7982, 0
    %7989 = vmatprep.subr.bf16.mxu0 0
    %7990 = vmatpush1.bf16.xpose.msra.mxu0 %v7987
    %7991 = vmatprep.subr.bf16.mxu0 0
    %7992 = vmatpush1.bf16.xpose.msra.mxu0 0
    %7993 = vmatprep.subr.bf16.mxu0 0
    %7994 = vmatpush1.bf16.xpose.msra.mxu0 0
    %7995 = vmatprep.subr.bf16.mxu0 0
    %7996 = vmatpush1.bf16.xpose.msra.mxu0 0
    %7997 = vmatprep.subr.bf16.mxu0 0
    %7998 = vmatpush1.bf16.xpose.msra.mxu0 0
    %7999 = vmatprep.subr.bf16.mxu0 0
    %8000 = vmatpush1.bf16.xpose.msra.mxu0 0
    %8001 = vmatprep.subr.bf16.mxu0 0
    %8002 = vmatpush1.bf16.xpose.msra.mxu0 0
    %8003 = vmatprep.subr.bf16.mxu0 0
    %8004 = vmatpush1.bf16.xpose.msra.mxu0 0
    %8005 = vmatprep.subr.bf16.mxu0 0
    %8006 = vmatpush1.bf16.xpose.msra.mxu0 0
    %8007 = vmatprep.subr.bf16.mxu0 0
    %8008 = vmatpush1.bf16.xpose.msra.mxu0 0
    %8009 = vmatprep.subr.bf16.mxu0 0
    %8010 = vmatpush1.bf16.xpose.msra.mxu0 0
    %8011 = vmatprep.subr.bf16.mxu0 0
    %8012 = vmatpush1.bf16.xpose.msra.mxu0 0
    %8013 = vmatprep.subr.bf16.mxu0 0
    %8014 = vmatpush1.bf16.xpose.msra.mxu0 0
    %8015 = vmatprep.subr.bf16.mxu0 0
    %8016 = vmatpush1.bf16.xpose.msra.mxu0 0
    %8017 = vmatprep.subr.bf16.mxu0 0
    %8018 = vmatpush1.bf16.xpose.msra.mxu0 0
    %8019 = vmatprep.subr.bf16.mxu0 0
    %8020 = vmatpush1.bf16.xpose.msra.mxu0 0
    %8021 = vmatprep.mubr.bf16.mxu0 0
    %8022 = vmatmul.mubr.bf16.gmra.mrb[0].mxu0 %v7984
    %v8023 = vpop.f32.mrb[0].mxu0
    %v8024 = vadd.f32 0.0, %v8023
    %v8025 = vpop.f32.mrb[0].mxu0
    %v8026 = vpop.f32.mrb[0].mxu0
    %v8027 = vadd.f32 0.0, %v8026
    %v8028 = vpop.f32.mrb[0].mxu0
    %8029 = vdwg.mxu0
    %8030 = vrot.lane.b32.xlu0 %v1533, 32
    %v8031 = vpop.permute.xlu0 %8030
    %8032 = vrot.lane.b32.xlu0 %v1549, 32
    %v8033 = vpop.permute.xlu0 %8032
    %v8035 = vsel %vm272, %v8031, 0
    %v8038 = vsel %vm272, %v8033, 0
    %8040 = vmatprep.subr.bf16.mxu0 0
    %8041 = vmatpush1.bf16.xpose.msra.mxu0 %v8038
    %8042 = vmatprep.subr.bf16.mxu0 0
    %8043 = vmatpush1.bf16.xpose.msra.mxu0 0
    %8044 = vmatprep.subr.bf16.mxu0 0
    %8045 = vmatpush1.bf16.xpose.msra.mxu0 0
    %8046 = vmatprep.subr.bf16.mxu0 0
    %8047 = vmatpush1.bf16.xpose.msra.mxu0 0
    %8048 = vmatprep.subr.bf16.mxu0 0
    %8049 = vmatpush1.bf16.xpose.msra.mxu0 0
    %8050 = vmatprep.subr.bf16.mxu0 0
    %8051 = vmatpush1.bf16.xpose.msra.mxu0 0
    %8052 = vmatprep.subr.bf16.mxu0 0
    %8053 = vmatpush1.bf16.xpose.msra.mxu0 0
    %8054 = vmatprep.subr.bf16.mxu0 0
    %8055 = vmatpush1.bf16.xpose.msra.mxu0 0
    %8056 = vmatprep.subr.bf16.mxu0 0
    %8057 = vmatpush1.bf16.xpose.msra.mxu0 0
    %8058 = vmatprep.subr.bf16.mxu0 0
    %8059 = vmatpush1.bf16.xpose.msra.mxu0 0
    %8060 = vmatprep.subr.bf16.mxu0 0
    %8061 = vmatpush1.bf16.xpose.msra.mxu0 0
    %8062 = vmatprep.subr.bf16.mxu0 0
    %8063 = vmatpush1.bf16.xpose.msra.mxu0 0
    %8064 = vmatprep.subr.bf16.mxu0 0
    %8065 = vmatpush1.bf16.xpose.msra.mxu0 0
    %8066 = vmatprep.subr.bf16.mxu0 0
    %8067 = vmatpush1.bf16.xpose.msra.mxu0 0
    %8068 = vmatprep.subr.bf16.mxu0 0
    %8069 = vmatpush1.bf16.xpose.msra.mxu0 0
    %8070 = vmatprep.subr.bf16.mxu0 0
    %8071 = vmatpush1.bf16.xpose.msra.mxu0 0
    %8072 = vmatprep.mubr.bf16.mxu0 0
    %8073 = vmatmul.mubr.bf16.gmra.mrb[0].mxu0 %v8035
    %v8074 = vpop.f32.mrb[0].mxu0
    %v8075 = vadd.f32 0.0, %v8074
    %v8076 = vpop.f32.mrb[0].mxu0
    %v8077 = vpop.f32.mrb[0].mxu0
    %v8078 = vadd.f32 0.0, %v8077
    %v8079 = vpop.f32.mrb[0].mxu0
    %8080 = vdwg.mxu0
    %8081 = vrot.lane.b32.xlu0 %v1534, 32
    %v8082 = vpop.permute.xlu0 %8081
    %8083 = vrot.lane.b32.xlu0 %v1550, 32
    %v8084 = vpop.permute.xlu0 %8083
    %v8086 = vsel %vm272, %v8082, 0
    %v8089 = vsel %vm272, %v8084, 0
    %8091 = vmatprep.subr.bf16.mxu0 0
    %8092 = vmatpush1.bf16.xpose.msra.mxu0 %v8089
    %8093 = vmatprep.subr.bf16.mxu0 0
    %8094 = vmatpush1.bf16.xpose.msra.mxu0 0
    %8095 = vmatprep.subr.bf16.mxu0 0
    %8096 = vmatpush1.bf16.xpose.msra.mxu0 0
    %8097 = vmatprep.subr.bf16.mxu0 0
    %8098 = vmatpush1.bf16.xpose.msra.mxu0 0
    %8099 = vmatprep.subr.bf16.mxu0 0
    %8100 = vmatpush1.bf16.xpose.msra.mxu0 0
    %8101 = vmatprep.subr.bf16.mxu0 0
    %8102 = vmatpush1.bf16.xpose.msra.mxu0 0
    %8103 = vmatprep.subr.bf16.mxu0 0
    %8104 = vmatpush1.bf16.xpose.msra.mxu0 0
    %8105 = vmatprep.subr.bf16.mxu0 0
    %8106 = vmatpush1.bf16.xpose.msra.mxu0 0
    %8107 = vmatprep.subr.bf16.mxu0 0
    %8108 = vmatpush1.bf16.xpose.msra.mxu0 0
    %8109 = vmatprep.subr.bf16.mxu0 0
    %8110 = vmatpush1.bf16.xpose.msra.mxu0 0
    %8111 = vmatprep.subr.bf16.mxu0 0
    %8112 = vmatpush1.bf16.xpose.msra.mxu0 0
    %8113 = vmatprep.subr.bf16.mxu0 0
    %8114 = vmatpush1.bf16.xpose.msra.mxu0 0
    %8115 = vmatprep.subr.bf16.mxu0 0
    %8116 = vmatpush1.bf16.xpose.msra.mxu0 0
    %8117 = vmatprep.subr.bf16.mxu0 0
    %8118 = vmatpush1.bf16.xpose.msra.mxu0 0
    %8119 = vmatprep.subr.bf16.mxu0 0
    %8120 = vmatpush1.bf16.xpose.msra.mxu0 0
    %8121 = vmatprep.subr.bf16.mxu0 0
    %8122 = vmatpush1.bf16.xpose.msra.mxu0 0
    %8123 = vmatprep.mubr.bf16.mxu0 0
    %8124 = vmatmul.mubr.bf16.gmra.mrb[0].mxu0 %v8086
    %v8125 = vpop.f32.mrb[0].mxu0
    %v8126 = vadd.f32 0.0, %v8125
    %v8127 = vpop.f32.mrb[0].mxu0
    %v8128 = vpop.f32.mrb[0].mxu0
    %v8129 = vadd.f32 0.0, %v8128
    %v8130 = vpop.f32.mrb[0].mxu0
    %8131 = vdwg.mxu0
    %8132 = vrot.lane.b32.xlu0 %v1535, 32
    %v8133 = vpop.permute.xlu0 %8132
    %8134 = vrot.lane.b32.xlu0 %v1551, 32
    %v8135 = vpop.permute.xlu0 %8134
    %v8137 = vsel %vm272, %v8133, 0
    %v8140 = vsel %vm272, %v8135, 0
    %8142 = vmatprep.subr.bf16.mxu0 0
    %8143 = vmatpush1.bf16.xpose.msra.mxu0 %v8140
    %8144 = vmatprep.subr.bf16.mxu0 0
    %8145 = vmatpush1.bf16.xpose.msra.mxu0 0
    %8146 = vmatprep.subr.bf16.mxu0 0
    %8147 = vmatpush1.bf16.xpose.msra.mxu0 0
    %8148 = vmatprep.subr.bf16.mxu0 0
    %8149 = vmatpush1.bf16.xpose.msra.mxu0 0
    %8150 = vmatprep.subr.bf16.mxu0 0
    %8151 = vmatpush1.bf16.xpose.msra.mxu0 0
    %8152 = vmatprep.subr.bf16.mxu0 0
    %8153 = vmatpush1.bf16.xpose.msra.mxu0 0
    %8154 = vmatprep.subr.bf16.mxu0 0
    %8155 = vmatpush1.bf16.xpose.msra.mxu0 0
    %8156 = vmatprep.subr.bf16.mxu0 0
    %8157 = vmatpush1.bf16.xpose.msra.mxu0 0
    %8158 = vmatprep.subr.bf16.mxu0 0
    %8159 = vmatpush1.bf16.xpose.msra.mxu0 0
    %8160 = vmatprep.subr.bf16.mxu0 0
    %8161 = vmatpush1.bf16.xpose.msra.mxu0 0
    %8162 = vmatprep.subr.bf16.mxu0 0
    %8163 = vmatpush1.bf16.xpose.msra.mxu0 0
    %8164 = vmatprep.subr.bf16.mxu0 0
    %8165 = vmatpush1.bf16.xpose.msra.mxu0 0
    %8166 = vmatprep.subr.bf16.mxu0 0
    %8167 = vmatpush1.bf16.xpose.msra.mxu0 0
    %8168 = vmatprep.subr.bf16.mxu0 0
    %8169 = vmatpush1.bf16.xpose.msra.mxu0 0
    %8170 = vmatprep.subr.bf16.mxu0 0
    %8171 = vmatpush1.bf16.xpose.msra.mxu0 0
    %8172 = vmatprep.subr.bf16.mxu0 0
    %8173 = vmatpush1.bf16.xpose.msra.mxu0 0
    %8174 = vmatprep.mubr.bf16.mxu0 0
    %8175 = vmatmul.mubr.bf16.gmra.mrb[0].mxu0 %v8137
    %v8176 = vpop.f32.mrb[0].mxu0
    %v8177 = vadd.f32 0.0, %v8176
    %v8178 = vpop.f32.mrb[0].mxu0
    %v8179 = vpop.f32.mrb[0].mxu0
    %v8180 = vadd.f32 0.0, %v8179
    %v8181 = vpop.f32.mrb[0].mxu0
    %8182 = vdwg.mxu0
    %8183 = vrot.lane.b32.xlu0 %v1536, 32
    %v8184 = vpop.permute.xlu0 %8183
    %8185 = vrot.lane.b32.xlu0 %v1552, 32
    %v8186 = vpop.permute.xlu0 %8185
    %v8188 = vsel %vm272, %v8184, 0
    %v8191 = vsel %vm272, %v8186, 0
    %8193 = vmatprep.subr.bf16.mxu0 0
    %8194 = vmatpush1.bf16.xpose.msra.mxu0 %v8191
    %8195 = vmatprep.subr.bf16.mxu0 0
    %8196 = vmatpush1.bf16.xpose.msra.mxu0 0
    %8197 = vmatprep.subr.bf16.mxu0 0
    %8198 = vmatpush1.bf16.xpose.msra.mxu0 0
    %8199 = vmatprep.subr.bf16.mxu0 0
    %8200 = vmatpush1.bf16.xpose.msra.mxu0 0
    %8201 = vmatprep.subr.bf16.mxu0 0
    %8202 = vmatpush1.bf16.xpose.msra.mxu0 0
    %8203 = vmatprep.subr.bf16.mxu0 0
    %8204 = vmatpush1.bf16.xpose.msra.mxu0 0
    %8205 = vmatprep.subr.bf16.mxu0 0
    %8206 = vmatpush1.bf16.xpose.msra.mxu0 0
    %8207 = vmatprep.subr.bf16.mxu0 0
    %8208 = vmatpush1.bf16.xpose.msra.mxu0 0
    %8209 = vmatprep.subr.bf16.mxu0 0
    %8210 = vmatpush1.bf16.xpose.msra.mxu0 0
    %8211 = vmatprep.subr.bf16.mxu0 0
    %8212 = vmatpush1.bf16.xpose.msra.mxu0 0
    %8213 = vmatprep.subr.bf16.mxu0 0
    %8214 = vmatpush1.bf16.xpose.msra.mxu0 0
    %8215 = vmatprep.subr.bf16.mxu0 0
    %8216 = vmatpush1.bf16.xpose.msra.mxu0 0
    %8217 = vmatprep.subr.bf16.mxu0 0
    %8218 = vmatpush1.bf16.xpose.msra.mxu0 0
    %8219 = vmatprep.subr.bf16.mxu0 0
    %8220 = vmatpush1.bf16.xpose.msra.mxu0 0
    %8221 = vmatprep.subr.bf16.mxu0 0
    %8222 = vmatpush1.bf16.xpose.msra.mxu0 0
    %8223 = vmatprep.subr.bf16.mxu0 0
    %8224 = vmatpush1.bf16.xpose.msra.mxu0 0
    %8225 = vmatprep.mubr.bf16.mxu0 0
    %8226 = vmatmul.mubr.bf16.gmra.mrb[0].mxu0 %v8188
    %v8227 = vpop.f32.mrb[0].mxu0
    %v8228 = vadd.f32 0.0, %v8227
    %v8229 = vpop.f32.mrb[0].mxu0
    %v8230 = vpop.f32.mrb[0].mxu0
    %v8231 = vadd.f32 0.0, %v8230
    %v8232 = vpop.f32.mrb[0].mxu0
    %8233 = vdwg.mxu0
    %8234 = vrot.lane.b32.xlu0 %v1537, 32
    %v8235 = vpop.permute.xlu0 %8234
    %8236 = vrot.lane.b32.xlu0 %v1553, 32
    %v8237 = vpop.permute.xlu0 %8236
    %v8239 = vsel %vm272, %v8235, 0
    %v8242 = vsel %vm272, %v8237, 0
    %8244 = vmatprep.subr.bf16.mxu0 0
    %8245 = vmatpush1.bf16.xpose.msra.mxu0 %v8242
    %8246 = vmatprep.subr.bf16.mxu0 0
    %8247 = vmatpush1.bf16.xpose.msra.mxu0 0
    %8248 = vmatprep.subr.bf16.mxu0 0
    %8249 = vmatpush1.bf16.xpose.msra.mxu0 0
    %8250 = vmatprep.subr.bf16.mxu0 0
    %8251 = vmatpush1.bf16.xpose.msra.mxu0 0
    %8252 = vmatprep.subr.bf16.mxu0 0
    %8253 = vmatpush1.bf16.xpose.msra.mxu0 0
    %8254 = vmatprep.subr.bf16.mxu0 0
    %8255 = vmatpush1.bf16.xpose.msra.mxu0 0
    %8256 = vmatprep.subr.bf16.mxu0 0
    %8257 = vmatpush1.bf16.xpose.msra.mxu0 0
    %8258 = vmatprep.subr.bf16.mxu0 0
    %8259 = vmatpush1.bf16.xpose.msra.mxu0 0
    %8260 = vmatprep.subr.bf16.mxu0 0
    %8261 = vmatpush1.bf16.xpose.msra.mxu0 0
    %8262 = vmatprep.subr.bf16.mxu0 0
    %8263 = vmatpush1.bf16.xpose.msra.mxu0 0
    %8264 = vmatprep.subr.bf16.mxu0 0
    %8265 = vmatpush1.bf16.xpose.msra.mxu0 0
    %8266 = vmatprep.subr.bf16.mxu0 0
    %8267 = vmatpush1.bf16.xpose.msra.mxu0 0
    %8268 = vmatprep.subr.bf16.mxu0 0
    %8269 = vmatpush1.bf16.xpose.msra.mxu0 0
    %8270 = vmatprep.subr.bf16.mxu0 0
    %8271 = vmatpush1.bf16.xpose.msra.mxu0 0
    %8272 = vmatprep.subr.bf16.mxu0 0
    %8273 = vmatpush1.bf16.xpose.msra.mxu0 0
    %8274 = vmatprep.subr.bf16.mxu0 0
    %8275 = vmatpush1.bf16.xpose.msra.mxu0 0
    %8276 = vmatprep.mubr.bf16.mxu0 0
    %8277 = vmatmul.mubr.bf16.gmra.mrb[0].mxu0 %v8239
    %v8278 = vpop.f32.mrb[0].mxu0
    %v8279 = vadd.f32 0.0, %v8278
    %v8280 = vpop.f32.mrb[0].mxu0
    %v8281 = vpop.f32.mrb[0].mxu0
    %v8282 = vadd.f32 0.0, %v8281
    %v8283 = vpop.f32.mrb[0].mxu0
    %8284 = vdwg.mxu0
    %8285 = vrot.lane.b32.xlu0 %v1538, 32
    %v8286 = vpop.permute.xlu0 %8285
    %8287 = vrot.lane.b32.xlu0 %v1554, 32
    %v8288 = vpop.permute.xlu0 %8287
    %v8290 = vsel %vm272, %v8286, 0
    %v8293 = vsel %vm272, %v8288, 0
    %8295 = vmatprep.subr.bf16.mxu0 0
    %8296 = vmatpush1.bf16.xpose.msra.mxu0 %v8293
    %8297 = vmatprep.subr.bf16.mxu0 0
    %8298 = vmatpush1.bf16.xpose.msra.mxu0 0
    %8299 = vmatprep.subr.bf16.mxu0 0
    %8300 = vmatpush1.bf16.xpose.msra.mxu0 0
    %8301 = vmatprep.subr.bf16.mxu0 0
    %8302 = vmatpush1.bf16.xpose.msra.mxu0 0
    %8303 = vmatprep.subr.bf16.mxu0 0
    %8304 = vmatpush1.bf16.xpose.msra.mxu0 0
    %8305 = vmatprep.subr.bf16.mxu0 0
    %8306 = vmatpush1.bf16.xpose.msra.mxu0 0
    %8307 = vmatprep.subr.bf16.mxu0 0
    %8308 = vmatpush1.bf16.xpose.msra.mxu0 0
    %8309 = vmatprep.subr.bf16.mxu0 0
    %8310 = vmatpush1.bf16.xpose.msra.mxu0 0
    %8311 = vmatprep.subr.bf16.mxu0 0
    %8312 = vmatpush1.bf16.xpose.msra.mxu0 0
    %8313 = vmatprep.subr.bf16.mxu0 0
    %8314 = vmatpush1.bf16.xpose.msra.mxu0 0
    %8315 = vmatprep.subr.bf16.mxu0 0
    %8316 = vmatpush1.bf16.xpose.msra.mxu0 0
    %8317 = vmatprep.subr.bf16.mxu0 0
    %8318 = vmatpush1.bf16.xpose.msra.mxu0 0
    %8319 = vmatprep.subr.bf16.mxu0 0
    %8320 = vmatpush1.bf16.xpose.msra.mxu0 0
    %8321 = vmatprep.subr.bf16.mxu0 0
    %8322 = vmatpush1.bf16.xpose.msra.mxu0 0
    %8323 = vmatprep.subr.bf16.mxu0 0
    %8324 = vmatpush1.bf16.xpose.msra.mxu0 0
    %8325 = vmatprep.subr.bf16.mxu0 0
    %8326 = vmatpush1.bf16.xpose.msra.mxu0 0
    %8327 = vmatprep.mubr.bf16.mxu0 0
    %8328 = vmatmul.mubr.bf16.gmra.mrb[0].mxu0 %v8290
    %v8329 = vpop.f32.mrb[0].mxu0
    %v8330 = vadd.f32 0.0, %v8329
    %v8331 = vpop.f32.mrb[0].mxu0
    %v8332 = vpop.f32.mrb[0].mxu0
    %v8333 = vadd.f32 0.0, %v8332
    %v8334 = vpop.f32.mrb[0].mxu0
    %8335 = vdwg.mxu0
    %8336 = vrot.lane.b32.xlu0 %v1539, 32
    %v8337 = vpop.permute.xlu0 %8336
    %8338 = vrot.lane.b32.xlu0 %v1555, 32
    %v8339 = vpop.permute.xlu0 %8338
    %v8341 = vsel %vm272, %v8337, 0
    %v8344 = vsel %vm272, %v8339, 0
    %8346 = vmatprep.subr.bf16.mxu0 0
    %8347 = vmatpush1.bf16.xpose.msra.mxu0 %v8344
    %8348 = vmatprep.subr.bf16.mxu0 0
    %8349 = vmatpush1.bf16.xpose.msra.mxu0 0
    %8350 = vmatprep.subr.bf16.mxu0 0
    %8351 = vmatpush1.bf16.xpose.msra.mxu0 0
    %8352 = vmatprep.subr.bf16.mxu0 0
    %8353 = vmatpush1.bf16.xpose.msra.mxu0 0
    %8354 = vmatprep.subr.bf16.mxu0 0
    %8355 = vmatpush1.bf16.xpose.msra.mxu0 0
    %8356 = vmatprep.subr.bf16.mxu0 0
    %8357 = vmatpush1.bf16.xpose.msra.mxu0 0
    %8358 = vmatprep.subr.bf16.mxu0 0
    %8359 = vmatpush1.bf16.xpose.msra.mxu0 0
    %8360 = vmatprep.subr.bf16.mxu0 0
    %8361 = vmatpush1.bf16.xpose.msra.mxu0 0
    %8362 = vmatprep.subr.bf16.mxu0 0
    %8363 = vmatpush1.bf16.xpose.msra.mxu0 0
    %8364 = vmatprep.subr.bf16.mxu0 0
    %8365 = vmatpush1.bf16.xpose.msra.mxu0 0
    %8366 = vmatprep.subr.bf16.mxu0 0
    %8367 = vmatpush1.bf16.xpose.msra.mxu0 0
    %8368 = vmatprep.subr.bf16.mxu0 0
    %8369 = vmatpush1.bf16.xpose.msra.mxu0 0
    %8370 = vmatprep.subr.bf16.mxu0 0
    %8371 = vmatpush1.bf16.xpose.msra.mxu0 0
    %8372 = vmatprep.subr.bf16.mxu0 0
    %8373 = vmatpush1.bf16.xpose.msra.mxu0 0
    %8374 = vmatprep.subr.bf16.mxu0 0
    %8375 = vmatpush1.bf16.xpose.msra.mxu0 0
    %8376 = vmatprep.subr.bf16.mxu0 0
    %8377 = vmatpush1.bf16.xpose.msra.mxu0 0
    %8378 = vmatprep.mubr.bf16.mxu0 0
    %8379 = vmatmul.mubr.bf16.gmra.mrb[0].mxu0 %v8341
    %v8380 = vpop.f32.mrb[0].mxu0
    %v8381 = vadd.f32 0.0, %v8380
    %v8382 = vpop.f32.mrb[0].mxu0
    %v8383 = vpop.f32.mrb[0].mxu0
    %v8384 = vadd.f32 0.0, %v8383
    %v8385 = vpop.f32.mrb[0].mxu0
    %8386 = vdwg.mxu0
    %8387 = vrot.lane.b32.xlu0 %v1540, 32
    %v8388 = vpop.permute.xlu0 %8387
    %8389 = vrot.lane.b32.xlu0 %v1556, 32
    %v8390 = vpop.permute.xlu0 %8389
    %v8392 = vsel %vm272, %v8388, 0
    %v8395 = vsel %vm272, %v8390, 0
    %8397 = vmatprep.subr.bf16.mxu0 0
    %8398 = vmatpush1.bf16.xpose.msra.mxu0 %v8395
    %8399 = vmatprep.subr.bf16.mxu0 0
    %8400 = vmatpush1.bf16.xpose.msra.mxu0 0
    %8401 = vmatprep.subr.bf16.mxu0 0
    %8402 = vmatpush1.bf16.xpose.msra.mxu0 0
    %8403 = vmatprep.subr.bf16.mxu0 0
    %8404 = vmatpush1.bf16.xpose.msra.mxu0 0
    %8405 = vmatprep.subr.bf16.mxu0 0
    %8406 = vmatpush1.bf16.xpose.msra.mxu0 0
    %8407 = vmatprep.subr.bf16.mxu0 0
    %8408 = vmatpush1.bf16.xpose.msra.mxu0 0
    %8409 = vmatprep.subr.bf16.mxu0 0
    %8410 = vmatpush1.bf16.xpose.msra.mxu0 0
    %8411 = vmatprep.subr.bf16.mxu0 0
    %8412 = vmatpush1.bf16.xpose.msra.mxu0 0
    %8413 = vmatprep.subr.bf16.mxu0 0
    %8414 = vmatpush1.bf16.xpose.msra.mxu0 0
    %8415 = vmatprep.subr.bf16.mxu0 0
    %8416 = vmatpush1.bf16.xpose.msra.mxu0 0
    %8417 = vmatprep.subr.bf16.mxu0 0
    %8418 = vmatpush1.bf16.xpose.msra.mxu0 0
    %8419 = vmatprep.subr.bf16.mxu0 0
    %8420 = vmatpush1.bf16.xpose.msra.mxu0 0
    %8421 = vmatprep.subr.bf16.mxu0 0
    %8422 = vmatpush1.bf16.xpose.msra.mxu0 0
    %8423 = vmatprep.subr.bf16.mxu0 0
    %8424 = vmatpush1.bf16.xpose.msra.mxu0 0
    %8425 = vmatprep.subr.bf16.mxu0 0
    %8426 = vmatpush1.bf16.xpose.msra.mxu0 0
    %8427 = vmatprep.subr.bf16.mxu0 0
    %8428 = vmatpush1.bf16.xpose.msra.mxu0 0
    %8429 = vmatprep.mubr.bf16.mxu0 0
    %8430 = vmatmul.mubr.bf16.gmra.mrb[0].mxu0 %v8392
    %v8431 = vpop.f32.mrb[0].mxu0
    %v8432 = vadd.f32 0.0, %v8431
    %v8433 = vpop.f32.mrb[0].mxu0
    %v8434 = vpop.f32.mrb[0].mxu0
    %v8435 = vadd.f32 0.0, %v8434
    %v8436 = vpop.f32.mrb[0].mxu0
    %8437 = vdwg.mxu0
    %8438 = vrot.lane.b32.xlu0 %v1541, 32
    %v8439 = vpop.permute.xlu0 %8438
    %8440 = vrot.lane.b32.xlu0 %v1557, 32
    %v8441 = vpop.permute.xlu0 %8440
    %v8443 = vsel %vm272, %v8439, 0
    %v8446 = vsel %vm272, %v8441, 0
    %8448 = vmatprep.subr.bf16.mxu0 0
    %8449 = vmatpush1.bf16.xpose.msra.mxu0 %v8446
    %8450 = vmatprep.subr.bf16.mxu0 0
    %8451 = vmatpush1.bf16.xpose.msra.mxu0 0
    %8452 = vmatprep.subr.bf16.mxu0 0
    %8453 = vmatpush1.bf16.xpose.msra.mxu0 0
    %8454 = vmatprep.subr.bf16.mxu0 0
    %8455 = vmatpush1.bf16.xpose.msra.mxu0 0
    %8456 = vmatprep.subr.bf16.mxu0 0
    %8457 = vmatpush1.bf16.xpose.msra.mxu0 0
    %8458 = vmatprep.subr.bf16.mxu0 0
    %8459 = vmatpush1.bf16.xpose.msra.mxu0 0
    %8460 = vmatprep.subr.bf16.mxu0 0
    %8461 = vmatpush1.bf16.xpose.msra.mxu0 0
    %8462 = vmatprep.subr.bf16.mxu0 0
    %8463 = vmatpush1.bf16.xpose.msra.mxu0 0
    %8464 = vmatprep.subr.bf16.mxu0 0
    %8465 = vmatpush1.bf16.xpose.msra.mxu0 0
    %8466 = vmatprep.subr.bf16.mxu0 0
    %8467 = vmatpush1.bf16.xpose.msra.mxu0 0
    %8468 = vmatprep.subr.bf16.mxu0 0
    %8469 = vmatpush1.bf16.xpose.msra.mxu0 0
    %8470 = vmatprep.subr.bf16.mxu0 0
    %8471 = vmatpush1.bf16.xpose.msra.mxu0 0
    %8472 = vmatprep.subr.bf16.mxu0 0
    %8473 = vmatpush1.bf16.xpose.msra.mxu0 0
    %8474 = vmatprep.subr.bf16.mxu0 0
    %8475 = vmatpush1.bf16.xpose.msra.mxu0 0
    %8476 = vmatprep.subr.bf16.mxu0 0
    %8477 = vmatpush1.bf16.xpose.msra.mxu0 0
    %8478 = vmatprep.subr.bf16.mxu0 0
    %8479 = vmatpush1.bf16.xpose.msra.mxu0 0
    %8480 = vmatprep.mubr.bf16.mxu0 0
    %8481 = vmatmul.mubr.bf16.gmra.mrb[0].mxu0 %v8443
    %v8482 = vpop.f32.mrb[0].mxu0
    %v8483 = vadd.f32 0.0, %v8482
    %v8484 = vpop.f32.mrb[0].mxu0
    %v8485 = vpop.f32.mrb[0].mxu0
    %v8486 = vadd.f32 0.0, %v8485
    %v8487 = vpop.f32.mrb[0].mxu0
    %8488 = vdwg.mxu0
    %v8489 = vsel %vm2326, %v7718, -inf
    %8490 = vmax.xlane.f32.xlu0 %v8489
    %v8491 = vpop.xlane.xlu0 %8490
    %v8492 = vsel %vm2326, %v7721, -inf
    %8493 = vmax.xlane.f32.xlu0 %v8492
    %v8494 = vpop.xlane.xlu0 %8493
    %v8495 = vsel %vm2326, %v7769, -inf
    %8496 = vmax.xlane.f32.xlu0 %v8495
    %v8497 = vpop.xlane.xlu0 %8496
    %v8498 = vsel %vm2326, %v7772, -inf
    %8499 = vmax.xlane.f32.xlu0 %v8498
    %v8500 = vpop.xlane.xlu0 %8499
    %v8501 = vsel %vm2326, %v7820, -inf
    %8502 = vmax.xlane.f32.xlu0 %v8501
    %v8503 = vpop.xlane.xlu0 %8502
    %v8504 = vsel %vm2326, %v7823, -inf
    %8505 = vmax.xlane.f32.xlu0 %v8504
    %v8506 = vpop.xlane.xlu0 %8505
    %v8507 = vsel %vm2326, %v7871, -inf
    %8508 = vmax.xlane.f32.xlu0 %v8507
    %v8509 = vpop.xlane.xlu0 %8508
    %v8510 = vsel %vm2326, %v7874, -inf
    %8511 = vmax.xlane.f32.xlu0 %v8510
    %v8512 = vpop.xlane.xlu0 %8511
    %v8513 = vsel %vm2326, %v7922, -inf
    %8514 = vmax.xlane.f32.xlu0 %v8513
    %v8515 = vpop.xlane.xlu0 %8514
    %v8516 = vsel %vm2326, %v7925, -inf
    %8517 = vmax.xlane.f32.xlu0 %v8516
    %v8518 = vpop.xlane.xlu0 %8517
    %v8519 = vsel %vm2326, %v7973, -inf
    %8520 = vmax.xlane.f32.xlu0 %v8519
    %v8521 = vpop.xlane.xlu0 %8520
    %v8522 = vsel %vm2326, %v7976, -inf
    %8523 = vmax.xlane.f32.xlu0 %v8522
    %v8524 = vpop.xlane.xlu0 %8523
    %v8525 = vsel %vm2326, %v8024, -inf
    %8526 = vmax.xlane.f32.xlu0 %v8525
    %v8527 = vpop.xlane.xlu0 %8526
    %v8528 = vsel %vm2326, %v8027, -inf
    %8529 = vmax.xlane.f32.xlu0 %v8528
    %v8530 = vpop.xlane.xlu0 %8529
    %v8531 = vsel %vm2326, %v8075, -inf
    %8532 = vmax.xlane.f32.xlu0 %v8531
    %v8533 = vpop.xlane.xlu0 %8532
    %v8534 = vsel %vm2326, %v8078, -inf
    %8535 = vmax.xlane.f32.xlu0 %v8534
    %v8536 = vpop.xlane.xlu0 %8535
    %v8537 = vsel %vm2326, %v8126, -inf
    %8538 = vmax.xlane.f32.xlu0 %v8537
    %v8539 = vpop.xlane.xlu0 %8538
    %v8540 = vsel %vm2326, %v8129, -inf
    %8541 = vmax.xlane.f32.xlu0 %v8540
    %v8542 = vpop.xlane.xlu0 %8541
    %v8543 = vsel %vm2326, %v8177, -inf
    %8544 = vmax.xlane.f32.xlu0 %v8543
    %v8545 = vpop.xlane.xlu0 %8544
    %v8546 = vsel %vm2326, %v8180, -inf
    %8547 = vmax.xlane.f32.xlu0 %v8546
    %v8548 = vpop.xlane.xlu0 %8547
    %v8549 = vsel %vm2326, %v8228, -inf
    %8550 = vmax.xlane.f32.xlu0 %v8549
    %v8551 = vpop.xlane.xlu0 %8550
    %v8552 = vsel %vm2326, %v8231, -inf
    %8553 = vmax.xlane.f32.xlu0 %v8552
    %v8554 = vpop.xlane.xlu0 %8553
    %v8555 = vsel %vm2326, %v8279, -inf
    %8556 = vmax.xlane.f32.xlu0 %v8555
    %v8557 = vpop.xlane.xlu0 %8556
    %v8558 = vsel %vm2326, %v8282, -inf
    %8559 = vmax.xlane.f32.xlu0 %v8558
    %v8560 = vpop.xlane.xlu0 %8559
    %v8561 = vsel %vm2326, %v8330, -inf
    %8562 = vmax.xlane.f32.xlu0 %v8561
    %v8563 = vpop.xlane.xlu0 %8562
    %v8564 = vsel %vm2326, %v8333, -inf
    %8565 = vmax.xlane.f32.xlu0 %v8564
    %v8566 = vpop.xlane.xlu0 %8565
    %v8567 = vsel %vm2326, %v8381, -inf
    %8568 = vmax.xlane.f32.xlu0 %v8567
    %v8569 = vpop.xlane.xlu0 %8568
    %v8570 = vsel %vm2326, %v8384, -inf
    %8571 = vmax.xlane.f32.xlu0 %v8570
    %v8572 = vpop.xlane.xlu0 %8571
    %v8573 = vsel %vm2326, %v8432, -inf
    %8574 = vmax.xlane.f32.xlu0 %v8573
    %v8575 = vpop.xlane.xlu0 %8574
    %v8576 = vsel %vm2326, %v8435, -inf
    %8577 = vmax.xlane.f32.xlu0 %v8576
    %v8578 = vpop.xlane.xlu0 %8577
    %v8579 = vsel %vm2326, %v8483, -inf
    %8580 = vmax.xlane.f32.xlu0 %v8579
    %v8581 = vpop.xlane.xlu0 %8580
    %v8582 = vsel %vm2326, %v8486, -inf
    %8583 = vmax.xlane.f32.xlu0 %v8582
    %v8584 = vpop.xlane.xlu0 %8583
    %v8585 = vsub.f32 %v7718, %v8491
    %v8586 = vsub.f32 %v7721, %v8494
    %v8587 = vsub.f32 %v7769, %v8497
    %v8588 = vsub.f32 %v7772, %v8500
    %v8589 = vsub.f32 %v7820, %v8503
    %v8590 = vsub.f32 %v7823, %v8506
    %v8591 = vsub.f32 %v7871, %v8509
    %v8592 = vsub.f32 %v7874, %v8512
    %v8593 = vsub.f32 %v7922, %v8515
    %v8594 = vsub.f32 %v7925, %v8518
    %v8595 = vsub.f32 %v7973, %v8521
    %v8596 = vsub.f32 %v7976, %v8524
    %v8597 = vsub.f32 %v8024, %v8527
    %v8598 = vsub.f32 %v8027, %v8530
    %v8599 = vsub.f32 %v8075, %v8533
    %v8600 = vsub.f32 %v8078, %v8536
    %v8601 = vsub.f32 %v8126, %v8539
    %v8602 = vsub.f32 %v8129, %v8542
    %v8603 = vsub.f32 %v8177, %v8545
    %v8604 = vsub.f32 %v8180, %v8548
    %v8605 = vsub.f32 %v8228, %v8551
    %v8606 = vsub.f32 %v8231, %v8554
    %v8607 = vsub.f32 %v8279, %v8557
    %v8608 = vsub.f32 %v8282, %v8560
    %v8609 = vsub.f32 %v8330, %v8563
    %v8610 = vsub.f32 %v8333, %v8566
    %v8611 = vsub.f32 %v8381, %v8569
    %v8612 = vsub.f32 %v8384, %v8572
    %v8613 = vsub.f32 %v8432, %v8575
    %v8614 = vsub.f32 %v8435, %v8578
    %v8615 = vsub.f32 %v8483, %v8581
    %v8616 = vsub.f32 %v8486, %v8584
    %v8617 = vmul.f32 %v8585, 1.442695
    %v8618 = vpow.pop %v8617
    %v8619 = vmul.f32 %v8586, 1.442695
    %v8620 = vpow.pop %v8619
    %v8621 = vmul.f32 %v8587, 1.442695
    %v8622 = vpow.pop %v8621
    %v8623 = vmul.f32 %v8588, 1.442695
    %v8624 = vpow.pop %v8623
    %v8625 = vmul.f32 %v8589, 1.442695
    %v8626 = vpow.pop %v8625
    %v8627 = vmul.f32 %v8590, 1.442695
    %v8628 = vpow.pop %v8627
    %v8629 = vmul.f32 %v8591, 1.442695
    %v8630 = vpow.pop %v8629
    %v8631 = vmul.f32 %v8592, 1.442695
    %v8632 = vpow.pop %v8631
    %v8633 = vmul.f32 %v8593, 1.442695
    %v8634 = vpow.pop %v8633
    %v8635 = vmul.f32 %v8594, 1.442695
    %v8636 = vpow.pop %v8635
    %v8637 = vmul.f32 %v8595, 1.442695
    %v8638 = vpow.pop %v8637
    %v8639 = vmul.f32 %v8596, 1.442695
    %v8640 = vpow.pop %v8639
    %v8641 = vmul.f32 %v8597, 1.442695
    %v8642 = vpow.pop %v8641
    %v8643 = vmul.f32 %v8598, 1.442695
    %v8644 = vpow.pop %v8643
    %v8645 = vmul.f32 %v8599, 1.442695
    %v8646 = vpow.pop %v8645
    %v8647 = vmul.f32 %v8600, 1.442695
    %v8648 = vpow.pop %v8647
    %v8649 = vmul.f32 %v8601, 1.442695
    %v8650 = vpow.pop %v8649
    %v8651 = vmul.f32 %v8602, 1.442695
    %v8652 = vpow.pop %v8651
    %v8653 = vmul.f32 %v8603, 1.442695
    %v8654 = vpow.pop %v8653
    %v8655 = vmul.f32 %v8604, 1.442695
    %v8656 = vpow.pop %v8655
    %v8657 = vmul.f32 %v8605, 1.442695
    %v8658 = vpow.pop %v8657
    %v8659 = vmul.f32 %v8606, 1.442695
    %v8660 = vpow.pop %v8659
    %v8661 = vmul.f32 %v8607, 1.442695
    %v8662 = vpow.pop %v8661
    %v8663 = vmul.f32 %v8608, 1.442695
    %v8664 = vpow.pop %v8663
    %v8665 = vmul.f32 %v8609, 1.442695
    %v8666 = vpow.pop %v8665
    %v8667 = vmul.f32 %v8610, 1.442695
    %v8668 = vpow.pop %v8667
    %v8669 = vmul.f32 %v8611, 1.442695
    %v8670 = vpow.pop %v8669
    %v8671 = vmul.f32 %v8612, 1.442695
    %v8672 = vpow.pop %v8671
    %v8673 = vmul.f32 %v8613, 1.442695
    %v8674 = vpow.pop %v8673
    %v8675 = vmul.f32 %v8614, 1.442695
    %v8676 = vpow.pop %v8675
    %v8677 = vmul.f32 %v8615, 1.442695
    %v8678 = vpow.pop %v8677
    %v8679 = vmul.f32 %v8616, 1.442695
    %v8680 = vpow.pop %v8679
    %v8681 = vsel %vm2326, %v8618, 0.0
    %8682 = vadd.xlane.f32.xlu0 %v8681
    %v8683 = vpop.xlane.xlu0 %8682
    %v8684 = vsel %vm2326, %v8620, 0.0
    %8685 = vadd.xlane.f32.xlu0 %v8684
    %v8686 = vpop.xlane.xlu0 %8685
    %v8687 = vsel %vm2326, %v8622, 0.0
    %8688 = vadd.xlane.f32.xlu0 %v8687
    %v8689 = vpop.xlane.xlu0 %8688
    %v8690 = vsel %vm2326, %v8624, 0.0
    %8691 = vadd.xlane.f32.xlu0 %v8690
    %v8692 = vpop.xlane.xlu0 %8691
    %v8693 = vsel %vm2326, %v8626, 0.0
    %8694 = vadd.xlane.f32.xlu0 %v8693
    %v8695 = vpop.xlane.xlu0 %8694
    %v8696 = vsel %vm2326, %v8628, 0.0
    %8697 = vadd.xlane.f32.xlu0 %v8696
    %v8698 = vpop.xlane.xlu0 %8697
    %v8699 = vsel %vm2326, %v8630, 0.0
    %8700 = vadd.xlane.f32.xlu0 %v8699
    %v8701 = vpop.xlane.xlu0 %8700
    %v8702 = vsel %vm2326, %v8632, 0.0
    %8703 = vadd.xlane.f32.xlu0 %v8702
    %v8704 = vpop.xlane.xlu0 %8703
    %v8705 = vsel %vm2326, %v8634, 0.0
    %8706 = vadd.xlane.f32.xlu0 %v8705
    %v8707 = vpop.xlane.xlu0 %8706
    %v8708 = vsel %vm2326, %v8636, 0.0
    %8709 = vadd.xlane.f32.xlu0 %v8708
    %v8710 = vpop.xlane.xlu0 %8709
    %v8711 = vsel %vm2326, %v8638, 0.0
    %8712 = vadd.xlane.f32.xlu0 %v8711
    %v8713 = vpop.xlane.xlu0 %8712
    %v8714 = vsel %vm2326, %v8640, 0.0
    %8715 = vadd.xlane.f32.xlu0 %v8714
    %v8716 = vpop.xlane.xlu0 %8715
    %v8717 = vsel %vm2326, %v8642, 0.0
    %8718 = vadd.xlane.f32.xlu0 %v8717
    %v8719 = vpop.xlane.xlu0 %8718
    %v8720 = vsel %vm2326, %v8644, 0.0
    %8721 = vadd.xlane.f32.xlu0 %v8720
    %v8722 = vpop.xlane.xlu0 %8721
    %v8723 = vsel %vm2326, %v8646, 0.0
    %8724 = vadd.xlane.f32.xlu0 %v8723
    %v8725 = vpop.xlane.xlu0 %8724
    %v8726 = vsel %vm2326, %v8648, 0.0
    %8727 = vadd.xlane.f32.xlu0 %v8726
    %v8728 = vpop.xlane.xlu0 %8727
    %v8729 = vsel %vm2326, %v8650, 0.0
    %8730 = vadd.xlane.f32.xlu0 %v8729
    %v8731 = vpop.xlane.xlu0 %8730
    %v8732 = vsel %vm2326, %v8652, 0.0
    %8733 = vadd.xlane.f32.xlu0 %v8732
    %v8734 = vpop.xlane.xlu0 %8733
    %v8735 = vsel %vm2326, %v8654, 0.0
    %8736 = vadd.xlane.f32.xlu0 %v8735
    %v8737 = vpop.xlane.xlu0 %8736
    %v8738 = vsel %vm2326, %v8656, 0.0
    %8739 = vadd.xlane.f32.xlu0 %v8738
    %v8740 = vpop.xlane.xlu0 %8739
    %v8741 = vsel %vm2326, %v8658, 0.0
    %8742 = vadd.xlane.f32.xlu0 %v8741
    %v8743 = vpop.xlane.xlu0 %8742
    %v8744 = vsel %vm2326, %v8660, 0.0
    %8745 = vadd.xlane.f32.xlu0 %v8744
    %v8746 = vpop.xlane.xlu0 %8745
    %v8747 = vsel %vm2326, %v8662, 0.0
    %8748 = vadd.xlane.f32.xlu0 %v8747
    %v8749 = vpop.xlane.xlu0 %8748
    %v8750 = vsel %vm2326, %v8664, 0.0
    %8751 = vadd.xlane.f32.xlu0 %v8750
    %v8752 = vpop.xlane.xlu0 %8751
    %v8753 = vsel %vm2326, %v8666, 0.0
    %8754 = vadd.xlane.f32.xlu0 %v8753
    %v8755 = vpop.xlane.xlu0 %8754
    %v8756 = vsel %vm2326, %v8668, 0.0
    %8757 = vadd.xlane.f32.xlu0 %v8756
    %v8758 = vpop.xlane.xlu0 %8757
    %v8759 = vsel %vm2326, %v8670, 0.0
    %8760 = vadd.xlane.f32.xlu0 %v8759
    %v8761 = vpop.xlane.xlu0 %8760
    %v8762 = vsel %vm2326, %v8672, 0.0
    %8763 = vadd.xlane.f32.xlu0 %v8762
    %v8764 = vpop.xlane.xlu0 %8763
    %v8765 = vsel %vm2326, %v8674, 0.0
    %8766 = vadd.xlane.f32.xlu0 %v8765
    %v8767 = vpop.xlane.xlu0 %8766
    %v8768 = vsel %vm2326, %v8676, 0.0
    %8769 = vadd.xlane.f32.xlu0 %v8768
    %v8770 = vpop.xlane.xlu0 %8769
    %v8771 = vsel %vm2326, %v8678, 0.0
    %8772 = vadd.xlane.f32.xlu0 %v8771
    %v8773 = vpop.xlane.xlu0 %8772
    %v8774 = vsel %vm2326, %v8680, 0.0
    %8775 = vadd.xlane.f32.xlu0 %v8774
    %v8776 = vpop.xlane.xlu0 %8775
    %v8777 = vrcp.pop %v8683
    %v8778 = vrcp.pop %v8686
    %v8779 = vrcp.pop %v8689
    %v8780 = vrcp.pop %v8692
    %v8781 = vrcp.pop %v8695
    %v8782 = vrcp.pop %v8698
    %v8783 = vrcp.pop %v8701
    %v8784 = vrcp.pop %v8704
    %v8785 = vrcp.pop %v8707
    %v8786 = vrcp.pop %v8710
    %v8787 = vrcp.pop %v8713
    %v8788 = vrcp.pop %v8716
    %v8789 = vrcp.pop %v8719
    %v8790 = vrcp.pop %v8722
    %v8791 = vrcp.pop %v8725
    %v8792 = vrcp.pop %v8728
    %v8793 = vrcp.pop %v8731
    %v8794 = vrcp.pop %v8734
    %v8795 = vrcp.pop %v8737
    %v8796 = vrcp.pop %v8740
    %v8797 = vrcp.pop %v8743
    %v8798 = vrcp.pop %v8746
    %v8799 = vrcp.pop %v8749
    %v8800 = vrcp.pop %v8752
    %v8801 = vrcp.pop %v8755
    %v8802 = vrcp.pop %v8758
    %v8803 = vrcp.pop %v8761
    %v8804 = vrcp.pop %v8764
    %v8805 = vrcp.pop %v8767
    %v8806 = vrcp.pop %v8770
    %v8807 = vrcp.pop %v8773
    %v8808 = vrcp.pop %v8776
    %v8809 = vmul.f32 %v8618, %v8777
    %v8810 = vmul.f32 %v8620, %v8778
    %v8811 = vmul.f32 %v8622, %v8779
    %v8812 = vmul.f32 %v8624, %v8780
    %v8813 = vmul.f32 %v8626, %v8781
    %v8814 = vmul.f32 %v8628, %v8782
    %v8815 = vmul.f32 %v8630, %v8783
    %v8816 = vmul.f32 %v8632, %v8784
    %v8817 = vmul.f32 %v8634, %v8785
    %v8818 = vmul.f32 %v8636, %v8786
    %v8819 = vmul.f32 %v8638, %v8787
    %v8820 = vmul.f32 %v8640, %v8788
    %v8821 = vmul.f32 %v8642, %v8789
    %v8822 = vmul.f32 %v8644, %v8790
    %v8823 = vmul.f32 %v8646, %v8791
    %v8824 = vmul.f32 %v8648, %v8792
    %v8825 = vmul.f32 %v8650, %v8793
    %v8826 = vmul.f32 %v8652, %v8794
    %v8827 = vmul.f32 %v8654, %v8795
    %v8828 = vmul.f32 %v8656, %v8796
    %v8829 = vmul.f32 %v8658, %v8797
    %v8830 = vmul.f32 %v8660, %v8798
    %v8831 = vmul.f32 %v8662, %v8799
    %v8832 = vmul.f32 %v8664, %v8800
    %v8833 = vmul.f32 %v8666, %v8801
    %v8834 = vmul.f32 %v8668, %v8802
    %v8835 = vmul.f32 %v8670, %v8803
    %v8836 = vmul.f32 %v8672, %v8804
    %v8837 = vmul.f32 %v8674, %v8805
    %v8838 = vmul.f32 %v8676, %v8806
    %v8839 = vmul.f32 %v8678, %v8807
    %v8840 = vmul.f32 %v8680, %v8808
    %v8841 = vpack.c.bf16 %v8810, %v8809
    %v8842 = vpack.c.bf16 %v8812, %v8811
    %v8843 = vpack.c.bf16 %v8814, %v8813
    %v8844 = vpack.c.bf16 %v8816, %v8815
    %v8845 = vpack.c.bf16 %v8818, %v8817
    %v8846 = vpack.c.bf16 %v8820, %v8819
    %v8847 = vpack.c.bf16 %v8822, %v8821
    %v8848 = vpack.c.bf16 %v8824, %v8823
    %v8849 = vpack.c.bf16 %v8826, %v8825
    %v8850 = vpack.c.bf16 %v8828, %v8827
    %v8851 = vpack.c.bf16 %v8830, %v8829
    %v8852 = vpack.c.bf16 %v8832, %v8831
    %v8853 = vpack.c.bf16 %v8834, %v8833
    %v8854 = vpack.c.bf16 %v8836, %v8835
    %v8855 = vpack.c.bf16 %v8838, %v8837
    %v8856 = vpack.c.bf16 %v8840, %v8839
    %8857 = vrot.lane.b32.xlu0 %v1558, 32
    %v8858 = vpop.permute.xlu0 %8857
    %v8861 = vsel %vm2326, %v8841, 0
    %8863 = vmatprep.subr.bf16.mxu0 0
    %8864 = vmatpush1.bf16.msra.mxu0 %v8858
    %8865 = vmatprep.subr.bf16.mxu0 0
    %8866 = vmatpush1.bf16.msra.mxu0 0
    %8867 = vmatprep.subr.bf16.mxu0 0
    %8868 = vmatpush1.bf16.msra.mxu0 0
    %8869 = vmatprep.subr.bf16.mxu0 0
    %8870 = vmatpush1.bf16.msra.mxu0 0
    %8871 = vmatprep.subr.bf16.mxu0 0
    %8872 = vmatpush1.bf16.msra.mxu0 0
    %8873 = vmatprep.subr.bf16.mxu0 0
    %8874 = vmatpush1.bf16.msra.mxu0 0
    %8875 = vmatprep.subr.bf16.mxu0 0
    %8876 = vmatpush1.bf16.msra.mxu0 0
    %8877 = vmatprep.subr.bf16.mxu0 0
    %8878 = vmatpush1.bf16.msra.mxu0 0
    %8879 = vmatprep.subr.bf16.mxu0 0
    %8880 = vmatpush1.bf16.msra.mxu0 0
    %8881 = vmatprep.subr.bf16.mxu0 0
    %8882 = vmatpush1.bf16.msra.mxu0 0
    %8883 = vmatprep.subr.bf16.mxu0 0
    %8884 = vmatpush1.bf16.msra.mxu0 0
    %8885 = vmatprep.subr.bf16.mxu0 0
    %8886 = vmatpush1.bf16.msra.mxu0 0
    %8887 = vmatprep.subr.bf16.mxu0 0
    %8888 = vmatpush1.bf16.msra.mxu0 0
    %8889 = vmatprep.subr.bf16.mxu0 0
    %8890 = vmatpush1.bf16.msra.mxu0 0
    %8891 = vmatprep.subr.bf16.mxu0 0
    %8892 = vmatpush1.bf16.msra.mxu0 0
    %8893 = vmatprep.subr.bf16.mxu0 0
    %8894 = vmatpush1.bf16.msra.mxu0 0
    %8895 = vmatprep.mubr.bf16.mxu0 0
    %8896 = vmatmul.mubr.bf16.gmra.mrb[0].mxu0 %v8861
    %v8897 = vpop.f32.mrb[0].mxu0
    %v8898 = vadd.f32 0.0, %v8897
    %v8899 = vpop.f32.mrb[0].mxu0
    %v8900 = vpop.f32.mrb[0].mxu0
    %v8901 = vadd.f32 0.0, %v8900
    %v8902 = vpop.f32.mrb[0].mxu0
    %8903 = vdwg.mxu0
    %8904 = vrot.lane.b32.xlu0 %v1559, 32
    %v8905 = vpop.permute.xlu0 %8904
    %v8908 = vsel %vm2326, %v8842, 0
    %8910 = vmatprep.subr.bf16.mxu0 0
    %8911 = vmatpush1.bf16.msra.mxu0 %v8905
    %8912 = vmatprep.subr.bf16.mxu0 0
    %8913 = vmatpush1.bf16.msra.mxu0 0
    %8914 = vmatprep.subr.bf16.mxu0 0
    %8915 = vmatpush1.bf16.msra.mxu0 0
    %8916 = vmatprep.subr.bf16.mxu0 0
    %8917 = vmatpush1.bf16.msra.mxu0 0
    %8918 = vmatprep.subr.bf16.mxu0 0
    %8919 = vmatpush1.bf16.msra.mxu0 0
    %8920 = vmatprep.subr.bf16.mxu0 0
    %8921 = vmatpush1.bf16.msra.mxu0 0
    %8922 = vmatprep.subr.bf16.mxu0 0
    %8923 = vmatpush1.bf16.msra.mxu0 0
    %8924 = vmatprep.subr.bf16.mxu0 0
    %8925 = vmatpush1.bf16.msra.mxu0 0
    %8926 = vmatprep.subr.bf16.mxu0 0
    %8927 = vmatpush1.bf16.msra.mxu0 0
    %8928 = vmatprep.subr.bf16.mxu0 0
    %8929 = vmatpush1.bf16.msra.mxu0 0
    %8930 = vmatprep.subr.bf16.mxu0 0
    %8931 = vmatpush1.bf16.msra.mxu0 0
    %8932 = vmatprep.subr.bf16.mxu0 0
    %8933 = vmatpush1.bf16.msra.mxu0 0
    %8934 = vmatprep.subr.bf16.mxu0 0
    %8935 = vmatpush1.bf16.msra.mxu0 0
    %8936 = vmatprep.subr.bf16.mxu0 0
    %8937 = vmatpush1.bf16.msra.mxu0 0
    %8938 = vmatprep.subr.bf16.mxu0 0
    %8939 = vmatpush1.bf16.msra.mxu0 0
    %8940 = vmatprep.subr.bf16.mxu0 0
    %8941 = vmatpush1.bf16.msra.mxu0 0
    %8942 = vmatprep.mubr.bf16.mxu0 0
    %8943 = vmatmul.mubr.bf16.gmra.mrb[0].mxu0 %v8908
    %v8944 = vpop.f32.mrb[0].mxu0
    %v8945 = vadd.f32 0.0, %v8944
    %v8946 = vpop.f32.mrb[0].mxu0
    %v8947 = vpop.f32.mrb[0].mxu0
    %v8948 = vadd.f32 0.0, %v8947
    %v8949 = vpop.f32.mrb[0].mxu0
    %8950 = vdwg.mxu0
    %8951 = vrot.lane.b32.xlu0 %v1560, 32
    %v8952 = vpop.permute.xlu0 %8951
    %v8955 = vsel %vm2326, %v8843, 0
    %8957 = vmatprep.subr.bf16.mxu0 0
    %8958 = vmatpush1.bf16.msra.mxu0 %v8952
    %8959 = vmatprep.subr.bf16.mxu0 0
    %8960 = vmatpush1.bf16.msra.mxu0 0
    %8961 = vmatprep.subr.bf16.mxu0 0
    %8962 = vmatpush1.bf16.msra.mxu0 0
    %8963 = vmatprep.subr.bf16.mxu0 0
    %8964 = vmatpush1.bf16.msra.mxu0 0
    %8965 = vmatprep.subr.bf16.mxu0 0
    %8966 = vmatpush1.bf16.msra.mxu0 0
    %8967 = vmatprep.subr.bf16.mxu0 0
    %8968 = vmatpush1.bf16.msra.mxu0 0
    %8969 = vmatprep.subr.bf16.mxu0 0
    %8970 = vmatpush1.bf16.msra.mxu0 0
    %8971 = vmatprep.subr.bf16.mxu0 0
    %8972 = vmatpush1.bf16.msra.mxu0 0
    %8973 = vmatprep.subr.bf16.mxu0 0
    %8974 = vmatpush1.bf16.msra.mxu0 0
    %8975 = vmatprep.subr.bf16.mxu0 0
    %8976 = vmatpush1.bf16.msra.mxu0 0
    %8977 = vmatprep.subr.bf16.mxu0 0
    %8978 = vmatpush1.bf16.msra.mxu0 0
    %8979 = vmatprep.subr.bf16.mxu0 0
    %8980 = vmatpush1.bf16.msra.mxu0 0
    %8981 = vmatprep.subr.bf16.mxu0 0
    %8982 = vmatpush1.bf16.msra.mxu0 0
    %8983 = vmatprep.subr.bf16.mxu0 0
    %8984 = vmatpush1.bf16.msra.mxu0 0
    %8985 = vmatprep.subr.bf16.mxu0 0
    %8986 = vmatpush1.bf16.msra.mxu0 0
    %8987 = vmatprep.subr.bf16.mxu0 0
    %8988 = vmatpush1.bf16.msra.mxu0 0
    %8989 = vmatprep.mubr.bf16.mxu0 0
    %8990 = vmatmul.mubr.bf16.gmra.mrb[0].mxu0 %v8955
    %v8991 = vpop.f32.mrb[0].mxu0
    %v8992 = vadd.f32 0.0, %v8991
    %v8993 = vpop.f32.mrb[0].mxu0
    %v8994 = vpop.f32.mrb[0].mxu0
    %v8995 = vadd.f32 0.0, %v8994
    %v8996 = vpop.f32.mrb[0].mxu0
    %8997 = vdwg.mxu0
    %8998 = vrot.lane.b32.xlu0 %v1561, 32
    %v8999 = vpop.permute.xlu0 %8998
    %v9002 = vsel %vm2326, %v8844, 0
    %9004 = vmatprep.subr.bf16.mxu0 0
    %9005 = vmatpush1.bf16.msra.mxu0 %v8999
    %9006 = vmatprep.subr.bf16.mxu0 0
    %9007 = vmatpush1.bf16.msra.mxu0 0
    %9008 = vmatprep.subr.bf16.mxu0 0
    %9009 = vmatpush1.bf16.msra.mxu0 0
    %9010 = vmatprep.subr.bf16.mxu0 0
    %9011 = vmatpush1.bf16.msra.mxu0 0
    %9012 = vmatprep.subr.bf16.mxu0 0
    %9013 = vmatpush1.bf16.msra.mxu0 0
    %9014 = vmatprep.subr.bf16.mxu0 0
    %9015 = vmatpush1.bf16.msra.mxu0 0
    %9016 = vmatprep.subr.bf16.mxu0 0
    %9017 = vmatpush1.bf16.msra.mxu0 0
    %9018 = vmatprep.subr.bf16.mxu0 0
    %9019 = vmatpush1.bf16.msra.mxu0 0
    %9020 = vmatprep.subr.bf16.mxu0 0
    %9021 = vmatpush1.bf16.msra.mxu0 0
    %9022 = vmatprep.subr.bf16.mxu0 0
    %9023 = vmatpush1.bf16.msra.mxu0 0
    %9024 = vmatprep.subr.bf16.mxu0 0
    %9025 = vmatpush1.bf16.msra.mxu0 0
    %9026 = vmatprep.subr.bf16.mxu0 0
    %9027 = vmatpush1.bf16.msra.mxu0 0
    %9028 = vmatprep.subr.bf16.mxu0 0
    %9029 = vmatpush1.bf16.msra.mxu0 0
    %9030 = vmatprep.subr.bf16.mxu0 0
    %9031 = vmatpush1.bf16.msra.mxu0 0
    %9032 = vmatprep.subr.bf16.mxu0 0
    %9033 = vmatpush1.bf16.msra.mxu0 0
    %9034 = vmatprep.subr.bf16.mxu0 0
    %9035 = vmatpush1.bf16.msra.mxu0 0
    %9036 = vmatprep.mubr.bf16.mxu0 0
    %9037 = vmatmul.mubr.bf16.gmra.mrb[0].mxu0 %v9002
    %v9038 = vpop.f32.mrb[0].mxu0
    %v9039 = vadd.f32 0.0, %v9038
    %v9040 = vpop.f32.mrb[0].mxu0
    %v9041 = vpop.f32.mrb[0].mxu0
    %v9042 = vadd.f32 0.0, %v9041
    %v9043 = vpop.f32.mrb[0].mxu0
    %9044 = vdwg.mxu0
    %9045 = vrot.lane.b32.xlu0 %v1562, 32
    %v9046 = vpop.permute.xlu0 %9045
    %v9049 = vsel %vm2326, %v8845, 0
    %9051 = vmatprep.subr.bf16.mxu0 0
    %9052 = vmatpush1.bf16.msra.mxu0 %v9046
    %9053 = vmatprep.subr.bf16.mxu0 0
    %9054 = vmatpush1.bf16.msra.mxu0 0
    %9055 = vmatprep.subr.bf16.mxu0 0
    %9056 = vmatpush1.bf16.msra.mxu0 0
    %9057 = vmatprep.subr.bf16.mxu0 0
    %9058 = vmatpush1.bf16.msra.mxu0 0
    %9059 = vmatprep.subr.bf16.mxu0 0
    %9060 = vmatpush1.bf16.msra.mxu0 0
    %9061 = vmatprep.subr.bf16.mxu0 0
    %9062 = vmatpush1.bf16.msra.mxu0 0
    %9063 = vmatprep.subr.bf16.mxu0 0
    %9064 = vmatpush1.bf16.msra.mxu0 0
    %9065 = vmatprep.subr.bf16.mxu0 0
    %9066 = vmatpush1.bf16.msra.mxu0 0
    %9067 = vmatprep.subr.bf16.mxu0 0
    %9068 = vmatpush1.bf16.msra.mxu0 0
    %9069 = vmatprep.subr.bf16.mxu0 0
    %9070 = vmatpush1.bf16.msra.mxu0 0
    %9071 = vmatprep.subr.bf16.mxu0 0
    %9072 = vmatpush1.bf16.msra.mxu0 0
    %9073 = vmatprep.subr.bf16.mxu0 0
    %9074 = vmatpush1.bf16.msra.mxu0 0
    %9075 = vmatprep.subr.bf16.mxu0 0
    %9076 = vmatpush1.bf16.msra.mxu0 0
    %9077 = vmatprep.subr.bf16.mxu0 0
    %9078 = vmatpush1.bf16.msra.mxu0 0
    %9079 = vmatprep.subr.bf16.mxu0 0
    %9080 = vmatpush1.bf16.msra.mxu0 0
    %9081 = vmatprep.subr.bf16.mxu0 0
    %9082 = vmatpush1.bf16.msra.mxu0 0
    %9083 = vmatprep.mubr.bf16.mxu0 0
    %9084 = vmatmul.mubr.bf16.gmra.mrb[0].mxu0 %v9049
    %v9085 = vpop.f32.mrb[0].mxu0
    %v9086 = vadd.f32 0.0, %v9085
    %v9087 = vpop.f32.mrb[0].mxu0
    %v9088 = vpop.f32.mrb[0].mxu0
    %v9089 = vadd.f32 0.0, %v9088
    %v9090 = vpop.f32.mrb[0].mxu0
    %9091 = vdwg.mxu0
    %9092 = vrot.lane.b32.xlu0 %v1563, 32
    %v9093 = vpop.permute.xlu0 %9092
    %v9096 = vsel %vm2326, %v8846, 0
    %9098 = vmatprep.subr.bf16.mxu0 0
    %9099 = vmatpush1.bf16.msra.mxu0 %v9093
    %9100 = vmatprep.subr.bf16.mxu0 0
    %9101 = vmatpush1.bf16.msra.mxu0 0
    %9102 = vmatprep.subr.bf16.mxu0 0
    %9103 = vmatpush1.bf16.msra.mxu0 0
    %9104 = vmatprep.subr.bf16.mxu0 0
    %9105 = vmatpush1.bf16.msra.mxu0 0
    %9106 = vmatprep.subr.bf16.mxu0 0
    %9107 = vmatpush1.bf16.msra.mxu0 0
    %9108 = vmatprep.subr.bf16.mxu0 0
    %9109 = vmatpush1.bf16.msra.mxu0 0
    %9110 = vmatprep.subr.bf16.mxu0 0
    %9111 = vmatpush1.bf16.msra.mxu0 0
    %9112 = vmatprep.subr.bf16.mxu0 0
    %9113 = vmatpush1.bf16.msra.mxu0 0
    %9114 = vmatprep.subr.bf16.mxu0 0
    %9115 = vmatpush1.bf16.msra.mxu0 0
    %9116 = vmatprep.subr.bf16.mxu0 0
    %9117 = vmatpush1.bf16.msra.mxu0 0
    %9118 = vmatprep.subr.bf16.mxu0 0
    %9119 = vmatpush1.bf16.msra.mxu0 0
    %9120 = vmatprep.subr.bf16.mxu0 0
    %9121 = vmatpush1.bf16.msra.mxu0 0
    %9122 = vmatprep.subr.bf16.mxu0 0
    %9123 = vmatpush1.bf16.msra.mxu0 0
    %9124 = vmatprep.subr.bf16.mxu0 0
    %9125 = vmatpush1.bf16.msra.mxu0 0
    %9126 = vmatprep.subr.bf16.mxu0 0
    %9127 = vmatpush1.bf16.msra.mxu0 0
    %9128 = vmatprep.subr.bf16.mxu0 0
    %9129 = vmatpush1.bf16.msra.mxu0 0
    %9130 = vmatprep.mubr.bf16.mxu0 0
    %9131 = vmatmul.mubr.bf16.gmra.mrb[0].mxu0 %v9096
    %v9132 = vpop.f32.mrb[0].mxu0
    %v9133 = vadd.f32 0.0, %v9132
    %v9134 = vpop.f32.mrb[0].mxu0
    %v9135 = vpop.f32.mrb[0].mxu0
    %v9136 = vadd.f32 0.0, %v9135
    %v9137 = vpop.f32.mrb[0].mxu0
    %9138 = vdwg.mxu0
    %9139 = vrot.lane.b32.xlu0 %v1564, 32
    %v9140 = vpop.permute.xlu0 %9139
    %v9143 = vsel %vm2326, %v8847, 0
    %9145 = vmatprep.subr.bf16.mxu0 0
    %9146 = vmatpush1.bf16.msra.mxu0 %v9140
    %9147 = vmatprep.subr.bf16.mxu0 0
    %9148 = vmatpush1.bf16.msra.mxu0 0
    %9149 = vmatprep.subr.bf16.mxu0 0
    %9150 = vmatpush1.bf16.msra.mxu0 0
    %9151 = vmatprep.subr.bf16.mxu0 0
    %9152 = vmatpush1.bf16.msra.mxu0 0
    %9153 = vmatprep.subr.bf16.mxu0 0
    %9154 = vmatpush1.bf16.msra.mxu0 0
    %9155 = vmatprep.subr.bf16.mxu0 0
    %9156 = vmatpush1.bf16.msra.mxu0 0
    %9157 = vmatprep.subr.bf16.mxu0 0
    %9158 = vmatpush1.bf16.msra.mxu0 0
    %9159 = vmatprep.subr.bf16.mxu0 0
    %9160 = vmatpush1.bf16.msra.mxu0 0
    %9161 = vmatprep.subr.bf16.mxu0 0
    %9162 = vmatpush1.bf16.msra.mxu0 0
    %9163 = vmatprep.subr.bf16.mxu0 0
    %9164 = vmatpush1.bf16.msra.mxu0 0
    %9165 = vmatprep.subr.bf16.mxu0 0
    %9166 = vmatpush1.bf16.msra.mxu0 0
    %9167 = vmatprep.subr.bf16.mxu0 0
    %9168 = vmatpush1.bf16.msra.mxu0 0
    %9169 = vmatprep.subr.bf16.mxu0 0
    %9170 = vmatpush1.bf16.msra.mxu0 0
    %9171 = vmatprep.subr.bf16.mxu0 0
    %9172 = vmatpush1.bf16.msra.mxu0 0
    %9173 = vmatprep.subr.bf16.mxu0 0
    %9174 = vmatpush1.bf16.msra.mxu0 0
    %9175 = vmatprep.subr.bf16.mxu0 0
    %9176 = vmatpush1.bf16.msra.mxu0 0
    %9177 = vmatprep.mubr.bf16.mxu0 0
    %9178 = vmatmul.mubr.bf16.gmra.mrb[0].mxu0 %v9143
    %v9179 = vpop.f32.mrb[0].mxu0
    %v9180 = vadd.f32 0.0, %v9179
    %v9181 = vpop.f32.mrb[0].mxu0
    %v9182 = vpop.f32.mrb[0].mxu0
    %v9183 = vadd.f32 0.0, %v9182
    %v9184 = vpop.f32.mrb[0].mxu0
    %9185 = vdwg.mxu0
    %9186 = vrot.lane.b32.xlu0 %v1565, 32
    %v9187 = vpop.permute.xlu0 %9186
    %v9190 = vsel %vm2326, %v8848, 0
    %9192 = vmatprep.subr.bf16.mxu0 0
    %9193 = vmatpush1.bf16.msra.mxu0 %v9187
    %9194 = vmatprep.subr.bf16.mxu0 0
    %9195 = vmatpush1.bf16.msra.mxu0 0
    %9196 = vmatprep.subr.bf16.mxu0 0
    %9197 = vmatpush1.bf16.msra.mxu0 0
    %9198 = vmatprep.subr.bf16.mxu0 0
    %9199 = vmatpush1.bf16.msra.mxu0 0
    %9200 = vmatprep.subr.bf16.mxu0 0
    %9201 = vmatpush1.bf16.msra.mxu0 0
    %9202 = vmatprep.subr.bf16.mxu0 0
    %9203 = vmatpush1.bf16.msra.mxu0 0
    %9204 = vmatprep.subr.bf16.mxu0 0
    %9205 = vmatpush1.bf16.msra.mxu0 0
    %9206 = vmatprep.subr.bf16.mxu0 0
    %9207 = vmatpush1.bf16.msra.mxu0 0
    %9208 = vmatprep.subr.bf16.mxu0 0
    %9209 = vmatpush1.bf16.msra.mxu0 0
    %9210 = vmatprep.subr.bf16.mxu0 0
    %9211 = vmatpush1.bf16.msra.mxu0 0
    %9212 = vmatprep.subr.bf16.mxu0 0
    %9213 = vmatpush1.bf16.msra.mxu0 0
    %9214 = vmatprep.subr.bf16.mxu0 0
    %9215 = vmatpush1.bf16.msra.mxu0 0
    %9216 = vmatprep.subr.bf16.mxu0 0
    %9217 = vmatpush1.bf16.msra.mxu0 0
    %9218 = vmatprep.subr.bf16.mxu0 0
    %9219 = vmatpush1.bf16.msra.mxu0 0
    %9220 = vmatprep.subr.bf16.mxu0 0
    %9221 = vmatpush1.bf16.msra.mxu0 0
    %9222 = vmatprep.subr.bf16.mxu0 0
    %9223 = vmatpush1.bf16.msra.mxu0 0
    %9224 = vmatprep.mubr.bf16.mxu0 0
    %9225 = vmatmul.mubr.bf16.gmra.mrb[0].mxu0 %v9190
    %v9226 = vpop.f32.mrb[0].mxu0
    %v9227 = vadd.f32 0.0, %v9226
    %v9228 = vpop.f32.mrb[0].mxu0
    %v9229 = vpop.f32.mrb[0].mxu0
    %v9230 = vadd.f32 0.0, %v9229
    %v9231 = vpop.f32.mrb[0].mxu0
    %9232 = vdwg.mxu0
    %9233 = vrot.lane.b32.xlu0 %v1566, 32
    %v9234 = vpop.permute.xlu0 %9233
    %v9237 = vsel %vm2326, %v8849, 0
    %9239 = vmatprep.subr.bf16.mxu0 0
    %9240 = vmatpush1.bf16.msra.mxu0 %v9234
    %9241 = vmatprep.subr.bf16.mxu0 0
    %9242 = vmatpush1.bf16.msra.mxu0 0
    %9243 = vmatprep.subr.bf16.mxu0 0
    %9244 = vmatpush1.bf16.msra.mxu0 0
    %9245 = vmatprep.subr.bf16.mxu0 0
    %9246 = vmatpush1.bf16.msra.mxu0 0
    %9247 = vmatprep.subr.bf16.mxu0 0
    %9248 = vmatpush1.bf16.msra.mxu0 0
    %9249 = vmatprep.subr.bf16.mxu0 0
    %9250 = vmatpush1.bf16.msra.mxu0 0
    %9251 = vmatprep.subr.bf16.mxu0 0
    %9252 = vmatpush1.bf16.msra.mxu0 0
    %9253 = vmatprep.subr.bf16.mxu0 0
    %9254 = vmatpush1.bf16.msra.mxu0 0
    %9255 = vmatprep.subr.bf16.mxu0 0
    %9256 = vmatpush1.bf16.msra.mxu0 0
    %9257 = vmatprep.subr.bf16.mxu0 0
    %9258 = vmatpush1.bf16.msra.mxu0 0
    %9259 = vmatprep.subr.bf16.mxu0 0
    %9260 = vmatpush1.bf16.msra.mxu0 0
    %9261 = vmatprep.subr.bf16.mxu0 0
    %9262 = vmatpush1.bf16.msra.mxu0 0
    %9263 = vmatprep.subr.bf16.mxu0 0
    %9264 = vmatpush1.bf16.msra.mxu0 0
    %9265 = vmatprep.subr.bf16.mxu0 0
    %9266 = vmatpush1.bf16.msra.mxu0 0
    %9267 = vmatprep.subr.bf16.mxu0 0
    %9268 = vmatpush1.bf16.msra.mxu0 0
    %9269 = vmatprep.subr.bf16.mxu0 0
    %9270 = vmatpush1.bf16.msra.mxu0 0
    %9271 = vmatprep.mubr.bf16.mxu0 0
    %9272 = vmatmul.mubr.bf16.gmra.mrb[0].mxu0 %v9237
    %v9273 = vpop.f32.mrb[0].mxu0
    %v9274 = vadd.f32 0.0, %v9273
    %v9275 = vpop.f32.mrb[0].mxu0
    %v9276 = vpop.f32.mrb[0].mxu0
    %v9277 = vadd.f32 0.0, %v9276
    %v9278 = vpop.f32.mrb[0].mxu0
    %9279 = vdwg.mxu0
    %9280 = vrot.lane.b32.xlu0 %v1567, 32
    %v9281 = vpop.permute.xlu0 %9280
    %v9284 = vsel %vm2326, %v8850, 0
    %9286 = vmatprep.subr.bf16.mxu0 0
    %9287 = vmatpush1.bf16.msra.mxu0 %v9281
    %9288 = vmatprep.subr.bf16.mxu0 0
    %9289 = vmatpush1.bf16.msra.mxu0 0
    %9290 = vmatprep.subr.bf16.mxu0 0
    %9291 = vmatpush1.bf16.msra.mxu0 0
    %9292 = vmatprep.subr.bf16.mxu0 0
    %9293 = vmatpush1.bf16.msra.mxu0 0
    %9294 = vmatprep.subr.bf16.mxu0 0
    %9295 = vmatpush1.bf16.msra.mxu0 0
    %9296 = vmatprep.subr.bf16.mxu0 0
    %9297 = vmatpush1.bf16.msra.mxu0 0
    %9298 = vmatprep.subr.bf16.mxu0 0
    %9299 = vmatpush1.bf16.msra.mxu0 0
    %9300 = vmatprep.subr.bf16.mxu0 0
    %9301 = vmatpush1.bf16.msra.mxu0 0
    %9302 = vmatprep.subr.bf16.mxu0 0
    %9303 = vmatpush1.bf16.msra.mxu0 0
    %9304 = vmatprep.subr.bf16.mxu0 0
    %9305 = vmatpush1.bf16.msra.mxu0 0
    %9306 = vmatprep.subr.bf16.mxu0 0
    %9307 = vmatpush1.bf16.msra.mxu0 0
    %9308 = vmatprep.subr.bf16.mxu0 0
    %9309 = vmatpush1.bf16.msra.mxu0 0
    %9310 = vmatprep.subr.bf16.mxu0 0
    %9311 = vmatpush1.bf16.msra.mxu0 0
    %9312 = vmatprep.subr.bf16.mxu0 0
    %9313 = vmatpush1.bf16.msra.mxu0 0
    %9314 = vmatprep.subr.bf16.mxu0 0
    %9315 = vmatpush1.bf16.msra.mxu0 0
    %9316 = vmatprep.subr.bf16.mxu0 0
    %9317 = vmatpush1.bf16.msra.mxu0 0
    %9318 = vmatprep.mubr.bf16.mxu0 0
    %9319 = vmatmul.mubr.bf16.gmra.mrb[0].mxu0 %v9284
    %v9320 = vpop.f32.mrb[0].mxu0
    %v9321 = vadd.f32 0.0, %v9320
    %v9322 = vpop.f32.mrb[0].mxu0
    %v9323 = vpop.f32.mrb[0].mxu0
    %v9324 = vadd.f32 0.0, %v9323
    %v9325 = vpop.f32.mrb[0].mxu0
    %9326 = vdwg.mxu0
    %9327 = vrot.lane.b32.xlu0 %v1568, 32
    %v9328 = vpop.permute.xlu0 %9327
    %v9331 = vsel %vm2326, %v8851, 0
    %9333 = vmatprep.subr.bf16.mxu0 0
    %9334 = vmatpush1.bf16.msra.mxu0 %v9328
    %9335 = vmatprep.subr.bf16.mxu0 0
    %9336 = vmatpush1.bf16.msra.mxu0 0
    %9337 = vmatprep.subr.bf16.mxu0 0
    %9338 = vmatpush1.bf16.msra.mxu0 0
    %9339 = vmatprep.subr.bf16.mxu0 0
    %9340 = vmatpush1.bf16.msra.mxu0 0
    %9341 = vmatprep.subr.bf16.mxu0 0
    %9342 = vmatpush1.bf16.msra.mxu0 0
    %9343 = vmatprep.subr.bf16.mxu0 0
    %9344 = vmatpush1.bf16.msra.mxu0 0
    %9345 = vmatprep.subr.bf16.mxu0 0
    %9346 = vmatpush1.bf16.msra.mxu0 0
    %9347 = vmatprep.subr.bf16.mxu0 0
    %9348 = vmatpush1.bf16.msra.mxu0 0
    %9349 = vmatprep.subr.bf16.mxu0 0
    %9350 = vmatpush1.bf16.msra.mxu0 0
    %9351 = vmatprep.subr.bf16.mxu0 0
    %9352 = vmatpush1.bf16.msra.mxu0 0
    %9353 = vmatprep.subr.bf16.mxu0 0
    %9354 = vmatpush1.bf16.msra.mxu0 0
    %9355 = vmatprep.subr.bf16.mxu0 0
    %9356 = vmatpush1.bf16.msra.mxu0 0
    %9357 = vmatprep.subr.bf16.mxu0 0
    %9358 = vmatpush1.bf16.msra.mxu0 0
    %9359 = vmatprep.subr.bf16.mxu0 0
    %9360 = vmatpush1.bf16.msra.mxu0 0
    %9361 = vmatprep.subr.bf16.mxu0 0
    %9362 = vmatpush1.bf16.msra.mxu0 0
    %9363 = vmatprep.subr.bf16.mxu0 0
    %9364 = vmatpush1.bf16.msra.mxu0 0
    %9365 = vmatprep.mubr.bf16.mxu0 0
    %9366 = vmatmul.mubr.bf16.gmra.mrb[0].mxu0 %v9331
    %v9367 = vpop.f32.mrb[0].mxu0
    %v9368 = vadd.f32 0.0, %v9367
    %v9369 = vpop.f32.mrb[0].mxu0
    %v9370 = vpop.f32.mrb[0].mxu0
    %v9371 = vadd.f32 0.0, %v9370
    %v9372 = vpop.f32.mrb[0].mxu0
    %9373 = vdwg.mxu0
    %9374 = vrot.lane.b32.xlu0 %v1569, 32
    %v9375 = vpop.permute.xlu0 %9374
    %v9378 = vsel %vm2326, %v8852, 0
    %9380 = vmatprep.subr.bf16.mxu0 0
    %9381 = vmatpush1.bf16.msra.mxu0 %v9375
    %9382 = vmatprep.subr.bf16.mxu0 0
    %9383 = vmatpush1.bf16.msra.mxu0 0
    %9384 = vmatprep.subr.bf16.mxu0 0
    %9385 = vmatpush1.bf16.msra.mxu0 0
    %9386 = vmatprep.subr.bf16.mxu0 0
    %9387 = vmatpush1.bf16.msra.mxu0 0
    %9388 = vmatprep.subr.bf16.mxu0 0
    %9389 = vmatpush1.bf16.msra.mxu0 0
    %9390 = vmatprep.subr.bf16.mxu0 0
    %9391 = vmatpush1.bf16.msra.mxu0 0
    %9392 = vmatprep.subr.bf16.mxu0 0
    %9393 = vmatpush1.bf16.msra.mxu0 0
    %9394 = vmatprep.subr.bf16.mxu0 0
    %9395 = vmatpush1.bf16.msra.mxu0 0
    %9396 = vmatprep.subr.bf16.mxu0 0
    %9397 = vmatpush1.bf16.msra.mxu0 0
    %9398 = vmatprep.subr.bf16.mxu0 0
    %9399 = vmatpush1.bf16.msra.mxu0 0
    %9400 = vmatprep.subr.bf16.mxu0 0
    %9401 = vmatpush1.bf16.msra.mxu0 0
    %9402 = vmatprep.subr.bf16.mxu0 0
    %9403 = vmatpush1.bf16.msra.mxu0 0
    %9404 = vmatprep.subr.bf16.mxu0 0
    %9405 = vmatpush1.bf16.msra.mxu0 0
    %9406 = vmatprep.subr.bf16.mxu0 0
    %9407 = vmatpush1.bf16.msra.mxu0 0
    %9408 = vmatprep.subr.bf16.mxu0 0
    %9409 = vmatpush1.bf16.msra.mxu0 0
    %9410 = vmatprep.subr.bf16.mxu0 0
    %9411 = vmatpush1.bf16.msra.mxu0 0
    %9412 = vmatprep.mubr.bf16.mxu0 0
    %9413 = vmatmul.mubr.bf16.gmra.mrb[0].mxu0 %v9378
    %v9414 = vpop.f32.mrb[0].mxu0
    %v9415 = vadd.f32 0.0, %v9414
    %v9416 = vpop.f32.mrb[0].mxu0
    %v9417 = vpop.f32.mrb[0].mxu0
    %v9418 = vadd.f32 0.0, %v9417
    %v9419 = vpop.f32.mrb[0].mxu0
    %9420 = vdwg.mxu0
    %9421 = vrot.lane.b32.xlu0 %v1570, 32
    %v9422 = vpop.permute.xlu0 %9421
    %v9425 = vsel %vm2326, %v8853, 0
    %9427 = vmatprep.subr.bf16.mxu0 0
    %9428 = vmatpush1.bf16.msra.mxu0 %v9422
    %9429 = vmatprep.subr.bf16.mxu0 0
    %9430 = vmatpush1.bf16.msra.mxu0 0
    %9431 = vmatprep.subr.bf16.mxu0 0
    %9432 = vmatpush1.bf16.msra.mxu0 0
    %9433 = vmatprep.subr.bf16.mxu0 0
    %9434 = vmatpush1.bf16.msra.mxu0 0
    %9435 = vmatprep.subr.bf16.mxu0 0
    %9436 = vmatpush1.bf16.msra.mxu0 0
    %9437 = vmatprep.subr.bf16.mxu0 0
    %9438 = vmatpush1.bf16.msra.mxu0 0
    %9439 = vmatprep.subr.bf16.mxu0 0
    %9440 = vmatpush1.bf16.msra.mxu0 0
    %9441 = vmatprep.subr.bf16.mxu0 0
    %9442 = vmatpush1.bf16.msra.mxu0 0
    %9443 = vmatprep.subr.bf16.mxu0 0
    %9444 = vmatpush1.bf16.msra.mxu0 0
    %9445 = vmatprep.subr.bf16.mxu0 0
    %9446 = vmatpush1.bf16.msra.mxu0 0
    %9447 = vmatprep.subr.bf16.mxu0 0
    %9448 = vmatpush1.bf16.msra.mxu0 0
    %9449 = vmatprep.subr.bf16.mxu0 0
    %9450 = vmatpush1.bf16.msra.mxu0 0
    %9451 = vmatprep.subr.bf16.mxu0 0
    %9452 = vmatpush1.bf16.msra.mxu0 0
    %9453 = vmatprep.subr.bf16.mxu0 0
    %9454 = vmatpush1.bf16.msra.mxu0 0
    %9455 = vmatprep.subr.bf16.mxu0 0
    %9456 = vmatpush1.bf16.msra.mxu0 0
    %9457 = vmatprep.subr.bf16.mxu0 0
    %9458 = vmatpush1.bf16.msra.mxu0 0
    %9459 = vmatprep.mubr.bf16.mxu0 0
    %9460 = vmatmul.mubr.bf16.gmra.mrb[0].mxu0 %v9425
    %v9461 = vpop.f32.mrb[0].mxu0
    %v9462 = vadd.f32 0.0, %v9461
    %v9463 = vpop.f32.mrb[0].mxu0
    %v9464 = vpop.f32.mrb[0].mxu0
    %v9465 = vadd.f32 0.0, %v9464
    %v9466 = vpop.f32.mrb[0].mxu0
    %9467 = vdwg.mxu0
    %9468 = vrot.lane.b32.xlu0 %v1571, 32
    %v9469 = vpop.permute.xlu0 %9468
    %v9472 = vsel %vm2326, %v8854, 0
    %9474 = vmatprep.subr.bf16.mxu0 0
    %9475 = vmatpush1.bf16.msra.mxu0 %v9469
    %9476 = vmatprep.subr.bf16.mxu0 0
    %9477 = vmatpush1.bf16.msra.mxu0 0
    %9478 = vmatprep.subr.bf16.mxu0 0
    %9479 = vmatpush1.bf16.msra.mxu0 0
    %9480 = vmatprep.subr.bf16.mxu0 0
    %9481 = vmatpush1.bf16.msra.mxu0 0
    %9482 = vmatprep.subr.bf16.mxu0 0
    %9483 = vmatpush1.bf16.msra.mxu0 0
    %9484 = vmatprep.subr.bf16.mxu0 0
    %9485 = vmatpush1.bf16.msra.mxu0 0
    %9486 = vmatprep.subr.bf16.mxu0 0
    %9487 = vmatpush1.bf16.msra.mxu0 0
    %9488 = vmatprep.subr.bf16.mxu0 0
    %9489 = vmatpush1.bf16.msra.mxu0 0
    %9490 = vmatprep.subr.bf16.mxu0 0
    %9491 = vmatpush1.bf16.msra.mxu0 0
    %9492 = vmatprep.subr.bf16.mxu0 0
    %9493 = vmatpush1.bf16.msra.mxu0 0
    %9494 = vmatprep.subr.bf16.mxu0 0
    %9495 = vmatpush1.bf16.msra.mxu0 0
    %9496 = vmatprep.subr.bf16.mxu0 0
    %9497 = vmatpush1.bf16.msra.mxu0 0
    %9498 = vmatprep.subr.bf16.mxu0 0
    %9499 = vmatpush1.bf16.msra.mxu0 0
    %9500 = vmatprep.subr.bf16.mxu0 0
    %9501 = vmatpush1.bf16.msra.mxu0 0
    %9502 = vmatprep.subr.bf16.mxu0 0
    %9503 = vmatpush1.bf16.msra.mxu0 0
    %9504 = vmatprep.subr.bf16.mxu0 0
    %9505 = vmatpush1.bf16.msra.mxu0 0
    %9506 = vmatprep.mubr.bf16.mxu0 0
    %9507 = vmatmul.mubr.bf16.gmra.mrb[0].mxu0 %v9472
    %v9508 = vpop.f32.mrb[0].mxu0
    %v9509 = vadd.f32 0.0, %v9508
    %v9510 = vpop.f32.mrb[0].mxu0
    %v9511 = vpop.f32.mrb[0].mxu0
    %v9512 = vadd.f32 0.0, %v9511
    %v9513 = vpop.f32.mrb[0].mxu0
    %9514 = vdwg.mxu0
    %9515 = vrot.lane.b32.xlu0 %v1572, 32
    %v9516 = vpop.permute.xlu0 %9515
    %v9519 = vsel %vm2326, %v8855, 0
    %9521 = vmatprep.subr.bf16.mxu0 0
    %9522 = vmatpush1.bf16.msra.mxu0 %v9516
    %9523 = vmatprep.subr.bf16.mxu0 0
    %9524 = vmatpush1.bf16.msra.mxu0 0
    %9525 = vmatprep.subr.bf16.mxu0 0
    %9526 = vmatpush1.bf16.msra.mxu0 0
    %9527 = vmatprep.subr.bf16.mxu0 0
    %9528 = vmatpush1.bf16.msra.mxu0 0
    %9529 = vmatprep.subr.bf16.mxu0 0
    %9530 = vmatpush1.bf16.msra.mxu0 0
    %9531 = vmatprep.subr.bf16.mxu0 0
    %9532 = vmatpush1.bf16.msra.mxu0 0
    %9533 = vmatprep.subr.bf16.mxu0 0
    %9534 = vmatpush1.bf16.msra.mxu0 0
    %9535 = vmatprep.subr.bf16.mxu0 0
    %9536 = vmatpush1.bf16.msra.mxu0 0
    %9537 = vmatprep.subr.bf16.mxu0 0
    %9538 = vmatpush1.bf16.msra.mxu0 0
    %9539 = vmatprep.subr.bf16.mxu0 0
    %9540 = vmatpush1.bf16.msra.mxu0 0
    %9541 = vmatprep.subr.bf16.mxu0 0
    %9542 = vmatpush1.bf16.msra.mxu0 0
    %9543 = vmatprep.subr.bf16.mxu0 0
    %9544 = vmatpush1.bf16.msra.mxu0 0
    %9545 = vmatprep.subr.bf16.mxu0 0
    %9546 = vmatpush1.bf16.msra.mxu0 0
    %9547 = vmatprep.subr.bf16.mxu0 0
    %9548 = vmatpush1.bf16.msra.mxu0 0
    %9549 = vmatprep.subr.bf16.mxu0 0
    %9550 = vmatpush1.bf16.msra.mxu0 0
    %9551 = vmatprep.subr.bf16.mxu0 0
    %9552 = vmatpush1.bf16.msra.mxu0 0
    %9553 = vmatprep.mubr.bf16.mxu0 0
    %9554 = vmatmul.mubr.bf16.gmra.mrb[0].mxu0 %v9519
    %v9555 = vpop.f32.mrb[0].mxu0
    %v9556 = vadd.f32 0.0, %v9555
    %v9557 = vpop.f32.mrb[0].mxu0
    %v9558 = vpop.f32.mrb[0].mxu0
    %v9559 = vadd.f32 0.0, %v9558
    %v9560 = vpop.f32.mrb[0].mxu0
    %9561 = vdwg.mxu0
    %9562 = vrot.lane.b32.xlu0 %v1573, 32
    %v9563 = vpop.permute.xlu0 %9562
    %v9566 = vsel %vm2326, %v8856, 0
    %9568 = vmatprep.subr.bf16.mxu0 0
    %9569 = vmatpush1.bf16.msra.mxu0 %v9563
    %9570 = vmatprep.subr.bf16.mxu0 0
    %9571 = vmatpush1.bf16.msra.mxu0 0
    %9572 = vmatprep.subr.bf16.mxu0 0
    %9573 = vmatpush1.bf16.msra.mxu0 0
    %9574 = vmatprep.subr.bf16.mxu0 0
    %9575 = vmatpush1.bf16.msra.mxu0 0
    %9576 = vmatprep.subr.bf16.mxu0 0
    %9577 = vmatpush1.bf16.msra.mxu0 0
    %9578 = vmatprep.subr.bf16.mxu0 0
    %9579 = vmatpush1.bf16.msra.mxu0 0
    %9580 = vmatprep.subr.bf16.mxu0 0
    %9581 = vmatpush1.bf16.msra.mxu0 0
    %9582 = vmatprep.subr.bf16.mxu0 0
    %9583 = vmatpush1.bf16.msra.mxu0 0
    %9584 = vmatprep.subr.bf16.mxu0 0
    %9585 = vmatpush1.bf16.msra.mxu0 0
    %9586 = vmatprep.subr.bf16.mxu0 0
    %9587 = vmatpush1.bf16.msra.mxu0 0
    %9588 = vmatprep.subr.bf16.mxu0 0
    %9589 = vmatpush1.bf16.msra.mxu0 0
    %9590 = vmatprep.subr.bf16.mxu0 0
    %9591 = vmatpush1.bf16.msra.mxu0 0
    %9592 = vmatprep.subr.bf16.mxu0 0
    %9593 = vmatpush1.bf16.msra.mxu0 0
    %9594 = vmatprep.subr.bf16.mxu0 0
    %9595 = vmatpush1.bf16.msra.mxu0 0
    %9596 = vmatprep.subr.bf16.mxu0 0
    %9597 = vmatpush1.bf16.msra.mxu0 0
    %9598 = vmatprep.subr.bf16.mxu0 0
    %9599 = vmatpush1.bf16.msra.mxu0 0
    %9600 = vmatprep.mubr.bf16.mxu0 0
    %9601 = vmatmul.mubr.bf16.gmra.mrb[0].mxu0 %v9566
    %v9602 = vpop.f32.mrb[0].mxu0
    %v9603 = vadd.f32 0.0, %v9602
    %v9604 = vpop.f32.mrb[0].mxu0
    %v9605 = vpop.f32.mrb[0].mxu0
    %v9606 = vadd.f32 0.0, %v9605
    %v9607 = vpop.f32.mrb[0].mxu0
    %9608 = vdwg.mxu0
    %9641 = vrot.lane.b32.xlu0 %v8898, 96
    %v9642 = vpop.permute.xlu0 %9641
    %9643 = vrot.lane.b32.xlu0 %v8901, 96
    %v9644 = vpop.permute.xlu0 %9643
    %9645 = vrot.lane.b32.xlu0 %v8945, 96
    %v9646 = vpop.permute.xlu0 %9645
    %9647 = vrot.lane.b32.xlu0 %v8948, 96
    %v9648 = vpop.permute.xlu0 %9647
    %9649 = vrot.lane.b32.xlu0 %v8992, 96
    %v9650 = vpop.permute.xlu0 %9649
    %9651 = vrot.lane.b32.xlu0 %v8995, 96
    %v9652 = vpop.permute.xlu0 %9651
    %9653 = vrot.lane.b32.xlu0 %v9039, 96
    %v9654 = vpop.permute.xlu0 %9653
    %9655 = vrot.lane.b32.xlu0 %v9042, 96
    %v9656 = vpop.permute.xlu0 %9655
    %9657 = vrot.lane.b32.xlu0 %v9086, 96
    %v9658 = vpop.permute.xlu0 %9657
    %9659 = vrot.lane.b32.xlu0 %v9089, 96
    %v9660 = vpop.permute.xlu0 %9659
    %9661 = vrot.lane.b32.xlu0 %v9133, 96
    %v9662 = vpop.permute.xlu0 %9661
    %9663 = vrot.lane.b32.xlu0 %v9136, 96
    %v9664 = vpop.permute.xlu0 %9663
    %9665 = vrot.lane.b32.xlu0 %v9180, 96
    %v9666 = vpop.permute.xlu0 %9665
    %9667 = vrot.lane.b32.xlu0 %v9183, 96
    %v9668 = vpop.permute.xlu0 %9667
    %9669 = vrot.lane.b32.xlu0 %v9227, 96
    %v9670 = vpop.permute.xlu0 %9669
    %9671 = vrot.lane.b32.xlu0 %v9230, 96
    %v9672 = vpop.permute.xlu0 %9671
    %9673 = vrot.lane.b32.xlu0 %v9274, 96
    %v9674 = vpop.permute.xlu0 %9673
    %9675 = vrot.lane.b32.xlu0 %v9277, 96
    %v9676 = vpop.permute.xlu0 %9675
    %9677 = vrot.lane.b32.xlu0 %v9321, 96
    %v9678 = vpop.permute.xlu0 %9677
    %9679 = vrot.lane.b32.xlu0 %v9324, 96
    %v9680 = vpop.permute.xlu0 %9679
    %9681 = vrot.lane.b32.xlu0 %v9368, 96
    %v9682 = vpop.permute.xlu0 %9681
    %9683 = vrot.lane.b32.xlu0 %v9371, 96
    %v9684 = vpop.permute.xlu0 %9683
    %9685 = vrot.lane.b32.xlu0 %v9415, 96
    %v9686 = vpop.permute.xlu0 %9685
    %9687 = vrot.lane.b32.xlu0 %v9418, 96
    %v9688 = vpop.permute.xlu0 %9687
    %9689 = vrot.lane.b32.xlu0 %v9462, 96
    %v9690 = vpop.permute.xlu0 %9689
    %9691 = vrot.lane.b32.xlu0 %v9465, 96
    %v9692 = vpop.permute.xlu0 %9691
    %9693 = vrot.lane.b32.xlu0 %v9509, 96
    %v9694 = vpop.permute.xlu0 %9693
    %9695 = vrot.lane.b32.xlu0 %v9512, 96
    %v9696 = vpop.permute.xlu0 %9695
    %9697 = vrot.lane.b32.xlu0 %v9556, 96
    %v9698 = vpop.permute.xlu0 %9697
    %9699 = vrot.lane.b32.xlu0 %v9559, 96
    %v9700 = vpop.permute.xlu0 %9699
    %9701 = vrot.lane.b32.xlu0 %v9603, 96
    %v9702 = vpop.permute.xlu0 %9701
    %9703 = vrot.lane.b32.xlu0 %v9606, 96
    %v9704 = vpop.permute.xlu0 %9703
    %vm9737 = vcmask 1048320
    %9738 = vst.msk [vmem:[#allocation2] sm:$0xff] %vm9737, %v9642
    %9739 = vst.msk [vmem:[#allocation2 + $0x8] sm:$0xff] %vm9737, %v9644
    %9740 = vst.msk [vmem:[#allocation2 + $0x10] sm:$0xff] %vm9737, %v9646
    %9741 = vst.msk [vmem:[#allocation2 + $0x18] sm:$0xff] %vm9737, %v9648
    %9742 = vst.msk [vmem:[#allocation2 + $0x20] sm:$0xff] %vm9737, %v9650
    %9743 = vst.msk [vmem:[#allocation2 + $0x28] sm:$0xff] %vm9737, %v9652
    %9744 = vst.msk [vmem:[#allocation2 + $0x30] sm:$0xff] %vm9737, %v9654
    %9745 = vst.msk [vmem:[#allocation2 + $0x38] sm:$0xff] %vm9737, %v9656
    %9746 = vst.msk [vmem:[#allocation2 + $0x40] sm:$0xff] %vm9737, %v9658
    %9747 = vst.msk [vmem:[#allocation2 + $0x48] sm:$0xff] %vm9737, %v9660
    %9748 = vst.msk [vmem:[#allocation2 + $0x50] sm:$0xff] %vm9737, %v9662
    %9749 = vst.msk [vmem:[#allocation2 + $0x58] sm:$0xff] %vm9737, %v9664
    %9750 = vst.msk [vmem:[#allocation2 + $0x60] sm:$0xff] %vm9737, %v9666
    %9751 = vst.msk [vmem:[#allocation2 + $0x68] sm:$0xff] %vm9737, %v9668
    %9752 = vst.msk [vmem:[#allocation2 + $0x70] sm:$0xff] %vm9737, %v9670
    %9753 = vst.msk [vmem:[#allocation2 + $0x78] sm:$0xff] %vm9737, %v9672
    %9754 = vst.msk [vmem:[#allocation2 + $0x80] sm:$0xff] %vm9737, %v9674
    %9755 = vst.msk [vmem:[#allocation2 + $0x88] sm:$0xff] %vm9737, %v9676
    %9756 = vst.msk [vmem:[#allocation2 + $0x90] sm:$0xff] %vm9737, %v9678
    %9757 = vst.msk [vmem:[#allocation2 + $0x98] sm:$0xff] %vm9737, %v9680
    %9758 = vst.msk [vmem:[#allocation2 + $0xa0] sm:$0xff] %vm9737, %v9682
    %9759 = vst.msk [vmem:[#allocation2 + $0xa8] sm:$0xff] %vm9737, %v9684
    %9760 = vst.msk [vmem:[#allocation2 + $0xb0] sm:$0xff] %vm9737, %v9686
    %9761 = vst.msk [vmem:[#allocation2 + $0xb8] sm:$0xff] %vm9737, %v9688
    %9762 = vst.msk [vmem:[#allocation2 + $0xc0] sm:$0xff] %vm9737, %v9690
    %9763 = vst.msk [vmem:[#allocation2 + $0xc8] sm:$0xff] %vm9737, %v9692
    %9764 = vst.msk [vmem:[#allocation2 + $0xd0] sm:$0xff] %vm9737, %v9694
    %9765 = vst.msk [vmem:[#allocation2 + $0xd8] sm:$0xff] %vm9737, %v9696
    %9766 = vst.msk [vmem:[#allocation2 + $0xe0] sm:$0xff] %vm9737, %v9698
    %9767 = vst.msk [vmem:[#allocation2 + $0xe8] sm:$0xff] %vm9737, %v9700
    %9768 = vst.msk [vmem:[#allocation2 + $0xf0] sm:$0xff] %vm9737, %v9702
    %9769 = vst.msk [vmem:[#allocation2 + $0xf8] sm:$0xff] %vm9737, %v9704
    %v9770 = vld [vmem:[#allocation2] sm:$0xff]
    %v9771 = vld [vmem:[#allocation2 + $0x8] sm:$0xff]
    %v9772 = vld [vmem:[#allocation2 + $0x10] sm:$0xff]
    %v9773 = vld [vmem:[#allocation2 + $0x18] sm:$0xff]
    %v9774 = vld [vmem:[#allocation2 + $0x20] sm:$0xff]
    %v9775 = vld [vmem:[#allocation2 + $0x28] sm:$0xff]
    %v9776 = vld [vmem:[#allocation2 + $0x30] sm:$0xff]
    %v9777 = vld [vmem:[#allocation2 + $0x38] sm:$0xff]
    %v9778 = vld [vmem:[#allocation2 + $0x40] sm:$0xff]
    %v9779 = vld [vmem:[#allocation2 + $0x48] sm:$0xff]
    %v9780 = vld [vmem:[#allocation2 + $0x50] sm:$0xff]
    %v9781 = vld [vmem:[#allocation2 + $0x58] sm:$0xff]
    %v9782 = vld [vmem:[#allocation2 + $0x60] sm:$0xff]
    %v9783 = vld [vmem:[#allocation2 + $0x68] sm:$0xff]
    %v9784 = vld [vmem:[#allocation2 + $0x70] sm:$0xff]
    %v9785 = vld [vmem:[#allocation2 + $0x78] sm:$0xff]
    %v9786 = vld [vmem:[#allocation2 + $0x80] sm:$0xff]
    %v9787 = vld [vmem:[#allocation2 + $0x88] sm:$0xff]
    %v9788 = vld [vmem:[#allocation2 + $0x90] sm:$0xff]
    %v9789 = vld [vmem:[#allocation2 + $0x98] sm:$0xff]
    %v9790 = vld [vmem:[#allocation2 + $0xa0] sm:$0xff]
    %v9791 = vld [vmem:[#allocation2 + $0xa8] sm:$0xff]
    %v9792 = vld [vmem:[#allocation2 + $0xb0] sm:$0xff]
    %v9793 = vld [vmem:[#allocation2 + $0xb8] sm:$0xff]
    %v9794 = vld [vmem:[#allocation2 + $0xc0] sm:$0xff]
    %v9795 = vld [vmem:[#allocation2 + $0xc8] sm:$0xff]
    %v9796 = vld [vmem:[#allocation2 + $0xd0] sm:$0xff]
    %v9797 = vld [vmem:[#allocation2 + $0xd8] sm:$0xff]
    %v9798 = vld [vmem:[#allocation2 + $0xe0] sm:$0xff]
    %v9799 = vld [vmem:[#allocation2 + $0xe8] sm:$0xff]
    %v9800 = vld [vmem:[#allocation2 + $0xf0] sm:$0xff]
    %v9801 = vld [vmem:[#allocation2 + $0xf8] sm:$0xff]
    %v9802 = vadd.f32 %v9770, %v915
    %v9803 = vadd.f32 %v9771, %v916
    %v9804 = vadd.f32 %v9772, %v917
    %v9805 = vadd.f32 %v9773, %v918
    %v9806 = vadd.f32 %v9774, %v919
    %v9807 = vadd.f32 %v9775, %v920
    %v9808 = vadd.f32 %v9776, %v921
    %v9809 = vadd.f32 %v9777, %v922
    %v9810 = vadd.f32 %v9778, %v923
    %v9811 = vadd.f32 %v9779, %v924
    %v9812 = vadd.f32 %v9780, %v925
    %v9813 = vadd.f32 %v9781, %v926
    %v9814 = vadd.f32 %v9782, %v927
    %v9815 = vadd.f32 %v9783, %v928
    %v9816 = vadd.f32 %v9784, %v929
    %v9817 = vadd.f32 %v9785, %v930
    %v9818 = vadd.f32 %v9786, %v931
    %v9819 = vadd.f32 %v9787, %v932
    %v9820 = vadd.f32 %v9788, %v933
    %v9821 = vadd.f32 %v9789, %v934
    %v9822 = vadd.f32 %v9790, %v935
    %v9823 = vadd.f32 %v9791, %v936
    %v9824 = vadd.f32 %v9792, %v937
    %v9825 = vadd.f32 %v9793, %v938
    %v9826 = vadd.f32 %v9794, %v939
    %v9827 = vadd.f32 %v9795, %v940
    %v9828 = vadd.f32 %v9796, %v941
    %v9829 = vadd.f32 %v9797, %v942
    %v9830 = vadd.f32 %v9798, %v943
    %v9831 = vadd.f32 %v9799, %v944
    %v9832 = vadd.f32 %v9800, %v945
    %v9833 = vadd.f32 %v9801, %v946
    %v9834 = vld [vmem:[%s8] sm:$0x1]
    %v9835 = vld [vmem:[%s9] sm:$0x1]
    %9836 = vadd.xlane.f32.xlu0 %v9802
    %v9837 = vpop.xlane.xlu0 %9836
    %9838 = vadd.xlane.f32.xlu0 %v9803
    %v9839 = vpop.xlane.xlu0 %9838
    %9840 = vadd.xlane.f32.xlu0 %v9804
    %v9841 = vpop.xlane.xlu0 %9840
    %9842 = vadd.xlane.f32.xlu0 %v9805
    %v9843 = vpop.xlane.xlu0 %9842
    %9844 = vadd.xlane.f32.xlu0 %v9806
    %v9845 = vpop.xlane.xlu0 %9844
    %9846 = vadd.xlane.f32.xlu0 %v9807
    %v9847 = vpop.xlane.xlu0 %9846
    %9848 = vadd.xlane.f32.xlu0 %v9808
    %v9849 = vpop.xlane.xlu0 %9848
    %9850 = vadd.xlane.f32.xlu0 %v9809
    %v9851 = vpop.xlane.xlu0 %9850
    %9852 = vadd.xlane.f32.xlu0 %v9810
    %v9853 = vpop.xlane.xlu0 %9852
    %9854 = vadd.xlane.f32.xlu0 %v9811
    %v9855 = vpop.xlane.xlu0 %9854
    %9856 = vadd.xlane.f32.xlu0 %v9812
    %v9857 = vpop.xlane.xlu0 %9856
    %9858 = vadd.xlane.f32.xlu0 %v9813
    %v9859 = vpop.xlane.xlu0 %9858
    %9860 = vadd.xlane.f32.xlu0 %v9814
    %v9861 = vpop.xlane.xlu0 %9860
    %9862 = vadd.xlane.f32.xlu0 %v9815
    %v9863 = vpop.xlane.xlu0 %9862
    %9864 = vadd.xlane.f32.xlu0 %v9816
    %v9865 = vpop.xlane.xlu0 %9864
    %9866 = vadd.xlane.f32.xlu0 %v9817
    %v9867 = vpop.xlane.xlu0 %9866
    %9868 = vadd.xlane.f32.xlu0 %v9818
    %v9869 = vpop.xlane.xlu0 %9868
    %9870 = vadd.xlane.f32.xlu0 %v9819
    %v9871 = vpop.xlane.xlu0 %9870
    %9872 = vadd.xlane.f32.xlu0 %v9820
    %v9873 = vpop.xlane.xlu0 %9872
    %9874 = vadd.xlane.f32.xlu0 %v9821
    %v9875 = vpop.xlane.xlu0 %9874
    %9876 = vadd.xlane.f32.xlu0 %v9822
    %v9877 = vpop.xlane.xlu0 %9876
    %9878 = vadd.xlane.f32.xlu0 %v9823
    %v9879 = vpop.xlane.xlu0 %9878
    %9880 = vadd.xlane.f32.xlu0 %v9824
    %v9881 = vpop.xlane.xlu0 %9880
    %9882 = vadd.xlane.f32.xlu0 %v9825
    %v9883 = vpop.xlane.xlu0 %9882
    %9884 = vadd.xlane.f32.xlu0 %v9826
    %v9885 = vpop.xlane.xlu0 %9884
    %9886 = vadd.xlane.f32.xlu0 %v9827
    %v9887 = vpop.xlane.xlu0 %9886
    %9888 = vadd.xlane.f32.xlu0 %v9828
    %v9889 = vpop.xlane.xlu0 %9888
    %9890 = vadd.xlane.f32.xlu0 %v9829
    %v9891 = vpop.xlane.xlu0 %9890
    %9892 = vadd.xlane.f32.xlu0 %v9830
    %v9893 = vpop.xlane.xlu0 %9892
    %9894 = vadd.xlane.f32.xlu0 %v9831
    %v9895 = vpop.xlane.xlu0 %9894
    %9896 = vadd.xlane.f32.xlu0 %v9832
    %v9897 = vpop.xlane.xlu0 %9896
    %9898 = vadd.xlane.f32.xlu0 %v9833
    %v9899 = vpop.xlane.xlu0 %9898
    %v9900 = vmul.f32 %v9837, %v582
    %v9901 = vmul.f32 %v9839, %v582
    %v9902 = vmul.f32 %v9841, %v582
    %v9903 = vmul.f32 %v9843, %v582
    %v9904 = vmul.f32 %v9845, %v582
    %v9905 = vmul.f32 %v9847, %v582
    %v9906 = vmul.f32 %v9849, %v582
    %v9907 = vmul.f32 %v9851, %v582
    %v9908 = vmul.f32 %v9853, %v582
    %v9909 = vmul.f32 %v9855, %v582
    %v9910 = vmul.f32 %v9857, %v582
    %v9911 = vmul.f32 %v9859, %v582
    %v9912 = vmul.f32 %v9861, %v582
    %v9913 = vmul.f32 %v9863, %v582
    %v9914 = vmul.f32 %v9865, %v582
    %v9915 = vmul.f32 %v9867, %v582
    %v9916 = vmul.f32 %v9869, %v582
    %v9917 = vmul.f32 %v9871, %v582
    %v9918 = vmul.f32 %v9873, %v582
    %v9919 = vmul.f32 %v9875, %v582
    %v9920 = vmul.f32 %v9877, %v582
    %v9921 = vmul.f32 %v9879, %v582
    %v9922 = vmul.f32 %v9881, %v582
    %v9923 = vmul.f32 %v9883, %v582
    %v9924 = vmul.f32 %v9885, %v582
    %v9925 = vmul.f32 %v9887, %v582
    %v9926 = vmul.f32 %v9889, %v582
    %v9927 = vmul.f32 %v9891, %v582
    %v9928 = vmul.f32 %v9893, %v582
    %v9929 = vmul.f32 %v9895, %v582
    %v9930 = vmul.f32 %v9897, %v582
    %v9931 = vmul.f32 %v9899, %v582
    %v9932 = vsub.f32 %v9802, %v9900
    %v9933 = vsub.f32 %v9803, %v9901
    %v9934 = vsub.f32 %v9804, %v9902
    %v9935 = vsub.f32 %v9805, %v9903
    %v9936 = vsub.f32 %v9806, %v9904
    %v9937 = vsub.f32 %v9807, %v9905
    %v9938 = vsub.f32 %v9808, %v9906
    %v9939 = vsub.f32 %v9809, %v9907
    %v9940 = vsub.f32 %v9810, %v9908
    %v9941 = vsub.f32 %v9811, %v9909
    %v9942 = vsub.f32 %v9812, %v9910
    %v9943 = vsub.f32 %v9813, %v9911
    %v9944 = vsub.f32 %v9814, %v9912
    %v9945 = vsub.f32 %v9815, %v9913
    %v9946 = vsub.f32 %v9816, %v9914
    %v9947 = vsub.f32 %v9817, %v9915
    %v9948 = vsub.f32 %v9818, %v9916
    %v9949 = vsub.f32 %v9819, %v9917
    %v9950 = vsub.f32 %v9820, %v9918
    %v9951 = vsub.f32 %v9821, %v9919
    %v9952 = vsub.f32 %v9822, %v9920
    %v9953 = vsub.f32 %v9823, %v9921
    %v9954 = vsub.f32 %v9824, %v9922
    %v9955 = vsub.f32 %v9825, %v9923
    %v9956 = vsub.f32 %v9826, %v9924
    %v9957 = vsub.f32 %v9827, %v9925
    %v9958 = vsub.f32 %v9828, %v9926
    %v9959 = vsub.f32 %v9829, %v9927
    %v9960 = vsub.f32 %v9830, %v9928
    %v9961 = vsub.f32 %v9831, %v9929
    %v9962 = vsub.f32 %v9832, %v9930
    %v9963 = vsub.f32 %v9833, %v9931
    %v9964 = vmul.f32 %v9932, %v9932
    %v9965 = vmul.f32 %v9933, %v9933
    %v9966 = vmul.f32 %v9934, %v9934
    %v9967 = vmul.f32 %v9935, %v9935
    %v9968 = vmul.f32 %v9936, %v9936
    %v9969 = vmul.f32 %v9937, %v9937
    %v9970 = vmul.f32 %v9938, %v9938
    %v9971 = vmul.f32 %v9939, %v9939
    %v9972 = vmul.f32 %v9940, %v9940
    %v9973 = vmul.f32 %v9941, %v9941
    %v9974 = vmul.f32 %v9942, %v9942
    %v9975 = vmul.f32 %v9943, %v9943
    %v9976 = vmul.f32 %v9944, %v9944
    %v9977 = vmul.f32 %v9945, %v9945
    %v9978 = vmul.f32 %v9946, %v9946
    %v9979 = vmul.f32 %v9947, %v9947
    %v9980 = vmul.f32 %v9948, %v9948
    %v9981 = vmul.f32 %v9949, %v9949
    %v9982 = vmul.f32 %v9950, %v9950
    %v9983 = vmul.f32 %v9951, %v9951
    %v9984 = vmul.f32 %v9952, %v9952
    %v9985 = vmul.f32 %v9953, %v9953
    %v9986 = vmul.f32 %v9954, %v9954
    %v9987 = vmul.f32 %v9955, %v9955
    %v9988 = vmul.f32 %v9956, %v9956
    %v9989 = vmul.f32 %v9957, %v9957
    %v9990 = vmul.f32 %v9958, %v9958
    %v9991 = vmul.f32 %v9959, %v9959
    %v9992 = vmul.f32 %v9960, %v9960
    %v9993 = vmul.f32 %v9961, %v9961
    %v9994 = vmul.f32 %v9962, %v9962
    %v9995 = vmul.f32 %v9963, %v9963
    %9996 = vadd.xlane.f32.xlu0 %v9964
    %v9997 = vpop.xlane.xlu0 %9996
    %9998 = vadd.xlane.f32.xlu0 %v9965
    %v9999 = vpop.xlane.xlu0 %9998
    %10000 = vadd.xlane.f32.xlu0 %v9966
    %v10001 = vpop.xlane.xlu0 %10000
    %10002 = vadd.xlane.f32.xlu0 %v9967
    %v10003 = vpop.xlane.xlu0 %10002
    %10004 = vadd.xlane.f32.xlu0 %v9968
    %v10005 = vpop.xlane.xlu0 %10004
    %10006 = vadd.xlane.f32.xlu0 %v9969
    %v10007 = vpop.xlane.xlu0 %10006
    %10008 = vadd.xlane.f32.xlu0 %v9970
    %v10009 = vpop.xlane.xlu0 %10008
    %10010 = vadd.xlane.f32.xlu0 %v9971
    %v10011 = vpop.xlane.xlu0 %10010
    %10012 = vadd.xlane.f32.xlu0 %v9972
    %v10013 = vpop.xlane.xlu0 %10012
    %10014 = vadd.xlane.f32.xlu0 %v9973
    %v10015 = vpop.xlane.xlu0 %10014
    %10016 = vadd.xlane.f32.xlu0 %v9974
    %v10017 = vpop.xlane.xlu0 %10016
    %10018 = vadd.xlane.f32.xlu0 %v9975
    %v10019 = vpop.xlane.xlu0 %10018
    %10020 = vadd.xlane.f32.xlu0 %v9976
    %v10021 = vpop.xlane.xlu0 %10020
    %10022 = vadd.xlane.f32.xlu0 %v9977
    %v10023 = vpop.xlane.xlu0 %10022
    %10024 = vadd.xlane.f32.xlu0 %v9978
    %v10025 = vpop.xlane.xlu0 %10024
    %10026 = vadd.xlane.f32.xlu0 %v9979
    %v10027 = vpop.xlane.xlu0 %10026
    %10028 = vadd.xlane.f32.xlu0 %v9980
    %v10029 = vpop.xlane.xlu0 %10028
    %10030 = vadd.xlane.f32.xlu0 %v9981
    %v10031 = vpop.xlane.xlu0 %10030
    %10032 = vadd.xlane.f32.xlu0 %v9982
    %v10033 = vpop.xlane.xlu0 %10032
    %10034 = vadd.xlane.f32.xlu0 %v9983
    %v10035 = vpop.xlane.xlu0 %10034
    %10036 = vadd.xlane.f32.xlu0 %v9984
    %v10037 = vpop.xlane.xlu0 %10036
    %10038 = vadd.xlane.f32.xlu0 %v9985
    %v10039 = vpop.xlane.xlu0 %10038
    %10040 = vadd.xlane.f32.xlu0 %v9986
    %v10041 = vpop.xlane.xlu0 %10040
    %10042 = vadd.xlane.f32.xlu0 %v9987
    %v10043 = vpop.xlane.xlu0 %10042
    %10044 = vadd.xlane.f32.xlu0 %v9988
    %v10045 = vpop.xlane.xlu0 %10044
    %10046 = vadd.xlane.f32.xlu0 %v9989
    %v10047 = vpop.xlane.xlu0 %10046
    %10048 = vadd.xlane.f32.xlu0 %v9990
    %v10049 = vpop.xlane.xlu0 %10048
    %10050 = vadd.xlane.f32.xlu0 %v9991
    %v10051 = vpop.xlane.xlu0 %10050
    %10052 = vadd.xlane.f32.xlu0 %v9992
    %v10053 = vpop.xlane.xlu0 %10052
    %10054 = vadd.xlane.f32.xlu0 %v9993
    %v10055 = vpop.xlane.xlu0 %10054
    %10056 = vadd.xlane.f32.xlu0 %v9994
    %v10057 = vpop.xlane.xlu0 %10056
    %10058 = vadd.xlane.f32.xlu0 %v9995
    %v10059 = vpop.xlane.xlu0 %10058
    %v10060 = vmul.f32 %v9997, %v582
    %v10061 = vmul.f32 %v9999, %v582
    %v10062 = vmul.f32 %v10001, %v582
    %v10063 = vmul.f32 %v10003, %v582
    %v10064 = vmul.f32 %v10005, %v582
    %v10065 = vmul.f32 %v10007, %v582
    %v10066 = vmul.f32 %v10009, %v582
    %v10067 = vmul.f32 %v10011, %v582
    %v10068 = vmul.f32 %v10013, %v582
    %v10069 = vmul.f32 %v10015, %v582
    %v10070 = vmul.f32 %v10017, %v582
    %v10071 = vmul.f32 %v10019, %v582
    %v10072 = vmul.f32 %v10021, %v582
    %v10073 = vmul.f32 %v10023, %v582
    %v10074 = vmul.f32 %v10025, %v582
    %v10075 = vmul.f32 %v10027, %v582
    %v10076 = vmul.f32 %v10029, %v582
    %v10077 = vmul.f32 %v10031, %v582
    %v10078 = vmul.f32 %v10033, %v582
    %v10079 = vmul.f32 %v10035, %v582
    %v10080 = vmul.f32 %v10037, %v582
    %v10081 = vmul.f32 %v10039, %v582
    %v10082 = vmul.f32 %v10041, %v582
    %v10083 = vmul.f32 %v10043, %v582
    %v10084 = vmul.f32 %v10045, %v582
    %v10085 = vmul.f32 %v10047, %v582
    %v10086 = vmul.f32 %v10049, %v582
    %v10087 = vmul.f32 %v10051, %v582
    %v10088 = vmul.f32 %v10053, %v582
    %v10089 = vmul.f32 %v10055, %v582
    %v10090 = vmul.f32 %v10057, %v582
    %v10091 = vmul.f32 %v10059, %v582
    %v10092 = vadd.f32 %v10060, 1e-05
    %v10093 = vadd.f32 %v10061, 1e-05
    %v10094 = vadd.f32 %v10062, 1e-05
    %v10095 = vadd.f32 %v10063, 1e-05
    %v10096 = vadd.f32 %v10064, 1e-05
    %v10097 = vadd.f32 %v10065, 1e-05
    %v10098 = vadd.f32 %v10066, 1e-05
    %v10099 = vadd.f32 %v10067, 1e-05
    %v10100 = vadd.f32 %v10068, 1e-05
    %v10101 = vadd.f32 %v10069, 1e-05
    %v10102 = vadd.f32 %v10070, 1e-05
    %v10103 = vadd.f32 %v10071, 1e-05
    %v10104 = vadd.f32 %v10072, 1e-05
    %v10105 = vadd.f32 %v10073, 1e-05
    %v10106 = vadd.f32 %v10074, 1e-05
    %v10107 = vadd.f32 %v10075, 1e-05
    %v10108 = vadd.f32 %v10076, 1e-05
    %v10109 = vadd.f32 %v10077, 1e-05
    %v10110 = vadd.f32 %v10078, 1e-05
    %v10111 = vadd.f32 %v10079, 1e-05
    %v10112 = vadd.f32 %v10080, 1e-05
    %v10113 = vadd.f32 %v10081, 1e-05
    %v10114 = vadd.f32 %v10082, 1e-05
    %v10115 = vadd.f32 %v10083, 1e-05
    %v10116 = vadd.f32 %v10084, 1e-05
    %v10117 = vadd.f32 %v10085, 1e-05
    %v10118 = vadd.f32 %v10086, 1e-05
    %v10119 = vadd.f32 %v10087, 1e-05
    %v10120 = vadd.f32 %v10088, 1e-05
    %v10121 = vadd.f32 %v10089, 1e-05
    %v10122 = vadd.f32 %v10090, 1e-05
    %v10123 = vadd.f32 %v10091, 1e-05
    %v10124 = vrsqrt.pop %v10092
    %v10125 = vrsqrt.pop %v10093
    %v10126 = vrsqrt.pop %v10094
    %v10127 = vrsqrt.pop %v10095
    %v10128 = vrsqrt.pop %v10096
    %v10129 = vrsqrt.pop %v10097
    %v10130 = vrsqrt.pop %v10098
    %v10131 = vrsqrt.pop %v10099
    %v10132 = vrsqrt.pop %v10100
    %v10133 = vrsqrt.pop %v10101
    %v10134 = vrsqrt.pop %v10102
    %v10135 = vrsqrt.pop %v10103
    %v10136 = vrsqrt.pop %v10104
    %v10137 = vrsqrt.pop %v10105
    %v10138 = vrsqrt.pop %v10106
    %v10139 = vrsqrt.pop %v10107
    %v10140 = vrsqrt.pop %v10108
    %v10141 = vrsqrt.pop %v10109
    %v10142 = vrsqrt.pop %v10110
    %v10143 = vrsqrt.pop %v10111
    %v10144 = vrsqrt.pop %v10112
    %v10145 = vrsqrt.pop %v10113
    %v10146 = vrsqrt.pop %v10114
    %v10147 = vrsqrt.pop %v10115
    %v10148 = vrsqrt.pop %v10116
    %v10149 = vrsqrt.pop %v10117
    %v10150 = vrsqrt.pop %v10118
    %v10151 = vrsqrt.pop %v10119
    %v10152 = vrsqrt.pop %v10120
    %v10153 = vrsqrt.pop %v10121
    %v10154 = vrsqrt.pop %v10122
    %v10155 = vrsqrt.pop %v10123
    %v10156 = vmul.f32 %v9932, %v10124
    %v10157 = vmul.f32 %v9933, %v10125
    %v10158 = vmul.f32 %v9934, %v10126
    %v10159 = vmul.f32 %v9935, %v10127
    %v10160 = vmul.f32 %v9936, %v10128
    %v10161 = vmul.f32 %v9937, %v10129
    %v10162 = vmul.f32 %v9938, %v10130
    %v10163 = vmul.f32 %v9939, %v10131
    %v10164 = vmul.f32 %v9940, %v10132
    %v10165 = vmul.f32 %v9941, %v10133
    %v10166 = vmul.f32 %v9942, %v10134
    %v10167 = vmul.f32 %v9943, %v10135
    %v10168 = vmul.f32 %v9944, %v10136
    %v10169 = vmul.f32 %v9945, %v10137
    %v10170 = vmul.f32 %v9946, %v10138
    %v10171 = vmul.f32 %v9947, %v10139
    %v10172 = vmul.f32 %v9948, %v10140
    %v10173 = vmul.f32 %v9949, %v10141
    %v10174 = vmul.f32 %v9950, %v10142
    %v10175 = vmul.f32 %v9951, %v10143
    %v10176 = vmul.f32 %v9952, %v10144
    %v10177 = vmul.f32 %v9953, %v10145
    %v10178 = vmul.f32 %v9954, %v10146
    %v10179 = vmul.f32 %v9955, %v10147
    %v10180 = vmul.f32 %v9956, %v10148
    %v10181 = vmul.f32 %v9957, %v10149
    %v10182 = vmul.f32 %v9958, %v10150
    %v10183 = vmul.f32 %v9959, %v10151
    %v10184 = vmul.f32 %v9960, %v10152
    %v10185 = vmul.f32 %v9961, %v10153
    %v10186 = vmul.f32 %v9962, %v10154
    %v10187 = vmul.f32 %v9963, %v10155
    %v10189 = vlaneseq
    %v10190 = vshrl.u32 %v10189, 7
    %v10191 = vsub.s32 0, %v10190
    %v10192 = vrot.slane %v9834, %v10191
    %v10194 = vmul.f32 %v10156, %v10192
    %v10195 = vmul.f32 %v10157, %v10192
    %v10196 = vmul.f32 %v10158, %v10192
    %v10197 = vmul.f32 %v10159, %v10192
    %v10198 = vmul.f32 %v10160, %v10192
    %v10199 = vmul.f32 %v10161, %v10192
    %v10200 = vmul.f32 %v10162, %v10192
    %v10201 = vmul.f32 %v10163, %v10192
    %v10202 = vmul.f32 %v10164, %v10192
    %v10203 = vmul.f32 %v10165, %v10192
    %v10204 = vmul.f32 %v10166, %v10192
    %v10205 = vmul.f32 %v10167, %v10192
    %v10206 = vmul.f32 %v10168, %v10192
    %v10207 = vmul.f32 %v10169, %v10192
    %v10208 = vmul.f32 %v10170, %v10192
    %v10209 = vmul.f32 %v10171, %v10192
    %v10210 = vmul.f32 %v10172, %v10192
    %v10211 = vmul.f32 %v10173, %v10192
    %v10212 = vmul.f32 %v10174, %v10192
    %v10213 = vmul.f32 %v10175, %v10192
    %v10214 = vmul.f32 %v10176, %v10192
    %v10215 = vmul.f32 %v10177, %v10192
    %v10216 = vmul.f32 %v10178, %v10192
    %v10217 = vmul.f32 %v10179, %v10192
    %v10218 = vmul.f32 %v10180, %v10192
    %v10219 = vmul.f32 %v10181, %v10192
    %v10220 = vmul.f32 %v10182, %v10192
    %v10221 = vmul.f32 %v10183, %v10192
    %v10222 = vmul.f32 %v10184, %v10192
    %v10223 = vmul.f32 %v10185, %v10192
    %v10224 = vmul.f32 %v10186, %v10192
    %v10225 = vmul.f32 %v10187, %v10192
    %v10227 = vlaneseq
    %v10228 = vshrl.u32 %v10227, 7
    %v10229 = vsub.s32 0, %v10228
    %v10230 = vrot.slane %v9835, %v10229
    %v10232 = vadd.f32 %v10194, %v10230
    %v10233 = vadd.f32 %v10195, %v10230
    %v10234 = vadd.f32 %v10196, %v10230
    %v10235 = vadd.f32 %v10197, %v10230
    %v10236 = vadd.f32 %v10198, %v10230
    %v10237 = vadd.f32 %v10199, %v10230
    %v10238 = vadd.f32 %v10200, %v10230
    %v10239 = vadd.f32 %v10201, %v10230
    %v10240 = vadd.f32 %v10202, %v10230
    %v10241 = vadd.f32 %v10203, %v10230
    %v10242 = vadd.f32 %v10204, %v10230
    %v10243 = vadd.f32 %v10205, %v10230
    %v10244 = vadd.f32 %v10206, %v10230
    %v10245 = vadd.f32 %v10207, %v10230
    %v10246 = vadd.f32 %v10208, %v10230
    %v10247 = vadd.f32 %v10209, %v10230
    %v10248 = vadd.f32 %v10210, %v10230
    %v10249 = vadd.f32 %v10211, %v10230
    %v10250 = vadd.f32 %v10212, %v10230
    %v10251 = vadd.f32 %v10213, %v10230
    %v10252 = vadd.f32 %v10214, %v10230
    %v10253 = vadd.f32 %v10215, %v10230
    %v10254 = vadd.f32 %v10216, %v10230
    %v10255 = vadd.f32 %v10217, %v10230
    %v10256 = vadd.f32 %v10218, %v10230
    %v10257 = vadd.f32 %v10219, %v10230
    %v10258 = vadd.f32 %v10220, %v10230
    %v10259 = vadd.f32 %v10221, %v10230
    %v10260 = vadd.f32 %v10222, %v10230
    %v10261 = vadd.f32 %v10223, %v10230
    %v10262 = vadd.f32 %v10224, %v10230
    %v10263 = vadd.f32 %v10225, %v10230
    %v10264 = vpack.c.bf16 %v10233, %v10232
    %v10265 = vpack.c.bf16 %v10235, %v10234
    %v10266 = vpack.c.bf16 %v10237, %v10236
    %v10267 = vpack.c.bf16 %v10239, %v10238
    %v10268 = vpack.c.bf16 %v10241, %v10240
    %v10269 = vpack.c.bf16 %v10243, %v10242
    %v10270 = vpack.c.bf16 %v10245, %v10244
    %v10271 = vpack.c.bf16 %v10247, %v10246
    %v10272 = vpack.c.bf16 %v10249, %v10248
    %v10273 = vpack.c.bf16 %v10251, %v10250
    %v10274 = vpack.c.bf16 %v10253, %v10252
    %v10275 = vpack.c.bf16 %v10255, %v10254
    %v10276 = vpack.c.bf16 %v10257, %v10256
    %v10277 = vpack.c.bf16 %v10259, %v10258
    %v10278 = vpack.c.bf16 %v10261, %v10260
    %v10279 = vpack.c.bf16 %v10263, %v10262
    %v10280 = vld [vmem:[#allocation11] sm:$0xff]
    %v10281 = vld [vmem:[#allocation11 + $0x8] sm:$0xff]
    %v10282 = vld [vmem:[#allocation11 + $0x10] sm:$0xff]
    %v10283 = vld [vmem:[#allocation11 + $0x18] sm:$0xff]
    %v10284 = vld [vmem:[#allocation11 + $0x20] sm:$0xff]
    %v10285 = vld [vmem:[#allocation11 + $0x28] sm:$0xff]
    %v10286 = vld [vmem:[#allocation11 + $0x30] sm:$0xff]
    %v10287 = vld [vmem:[#allocation11 + $0x38] sm:$0xff]
    %v10288 = vld [vmem:[#allocation11 + $0x40] sm:$0xff]
    %v10289 = vld [vmem:[#allocation11 + $0x48] sm:$0xff]
    %v10290 = vld [vmem:[#allocation11 + $0x50] sm:$0xff]
    %v10291 = vld [vmem:[#allocation11 + $0x58] sm:$0xff]
    %v10292 = vld [vmem:[#allocation11 + $0x60] sm:$0xff]
    %v10293 = vld [vmem:[#allocation11 + $0x68] sm:$0xff]
    %v10294 = vld [vmem:[#allocation11 + $0x70] sm:$0xff]
    %v10295 = vld [vmem:[#allocation11 + $0x78] sm:$0xff]
    %v10296 = vld [vmem:[#allocation11 + $0x80] sm:$0xff]
    %v10297 = vld [vmem:[#allocation11 + $0x88] sm:$0xff]
    %v10298 = vld [vmem:[#allocation11 + $0x90] sm:$0xff]
    %v10299 = vld [vmem:[#allocation11 + $0x98] sm:$0xff]
    %v10300 = vld [vmem:[#allocation11 + $0xa0] sm:$0xff]
    %v10301 = vld [vmem:[#allocation11 + $0xa8] sm:$0xff]
    %v10302 = vld [vmem:[#allocation11 + $0xb0] sm:$0xff]
    %v10303 = vld [vmem:[#allocation11 + $0xb8] sm:$0xff]
    %v10304 = vld [vmem:[#allocation11 + $0xc0] sm:$0xff]
    %v10305 = vld [vmem:[#allocation11 + $0xc8] sm:$0xff]
    %v10306 = vld [vmem:[#allocation11 + $0xd0] sm:$0xff]
    %v10307 = vld [vmem:[#allocation11 + $0xd8] sm:$0xff]
    %v10308 = vld [vmem:[#allocation11 + $0xe0] sm:$0xff]
    %v10309 = vld [vmem:[#allocation11 + $0xe8] sm:$0xff]
    %v10310 = vld [vmem:[#allocation11 + $0xf0] sm:$0xff]
    %v10311 = vld [vmem:[#allocation11 + $0xf8] sm:$0xff]
    %v10312 = vld [vmem:[%s11] sm:$0xf]
    %v10314 = vlaneseq
    %v10315 = vshrl.u32 %v10314, 7
    %v10316 = vsub.s32 0, %v10315
    %v10317 = vrot.slane %v10312, %v10316
    %v10318 = vlaneseq
    %v10319 = vshrl.u32 %v10318, 7
    %v10320 = vsub.s32 1, %v10319
    %v10321 = vrot.slane %v10312, %v10320
    %v10322 = vlaneseq
    %v10323 = vshrl.u32 %v10322, 7
    %v10324 = vsub.s32 2, %v10323
    %v10325 = vrot.slane %v10312, %v10324
    %v10326 = vlaneseq
    %v10327 = vshrl.u32 %v10326, 7
    %v10328 = vsub.s32 3, %v10327
    %v10329 = vrot.slane %v10312, %v10328
    %v10366 = vunpack.c.l.b16 %v10280
    %v10367 = vunpack.c.h.b16 %v10280
    %v10368 = vunpack.c.l.b16 %v10281
    %v10369 = vunpack.c.h.b16 %v10281
    %v10370 = vunpack.c.l.b16 %v10282
    %v10371 = vunpack.c.h.b16 %v10282
    %v10372 = vunpack.c.l.b16 %v10283
    %v10373 = vunpack.c.h.b16 %v10283
    %v10374 = vunpack.c.l.b16 %v10284
    %v10375 = vunpack.c.h.b16 %v10284
    %v10376 = vunpack.c.l.b16 %v10285
    %v10377 = vunpack.c.h.b16 %v10285
    %v10378 = vunpack.c.l.b16 %v10286
    %v10379 = vunpack.c.h.b16 %v10286
    %v10380 = vunpack.c.l.b16 %v10287
    %v10381 = vunpack.c.h.b16 %v10287
    %v10382 = vunpack.c.l.b16 %v10288
    %v10383 = vunpack.c.h.b16 %v10288
    %v10384 = vunpack.c.l.b16 %v10289
    %v10385 = vunpack.c.h.b16 %v10289
    %v10386 = vunpack.c.l.b16 %v10290
    %v10387 = vunpack.c.h.b16 %v10290
    %v10388 = vunpack.c.l.b16 %v10291
    %v10389 = vunpack.c.h.b16 %v10291
    %v10390 = vunpack.c.l.b16 %v10292
    %v10391 = vunpack.c.h.b16 %v10292
    %v10392 = vunpack.c.l.b16 %v10293
    %v10393 = vunpack.c.h.b16 %v10293
    %v10394 = vunpack.c.l.b16 %v10294
    %v10395 = vunpack.c.h.b16 %v10294
    %v10396 = vunpack.c.l.b16 %v10295
    %v10397 = vunpack.c.h.b16 %v10295
    %v10398 = vunpack.c.l.b16 %v10296
    %v10399 = vunpack.c.h.b16 %v10296
    %v10400 = vunpack.c.l.b16 %v10297
    %v10401 = vunpack.c.h.b16 %v10297
    %v10402 = vunpack.c.l.b16 %v10298
    %v10403 = vunpack.c.h.b16 %v10298
    %v10404 = vunpack.c.l.b16 %v10299
    %v10405 = vunpack.c.h.b16 %v10299
    %v10406 = vunpack.c.l.b16 %v10300
    %v10407 = vunpack.c.h.b16 %v10300
    %v10408 = vunpack.c.l.b16 %v10301
    %v10409 = vunpack.c.h.b16 %v10301
    %v10410 = vunpack.c.l.b16 %v10302
    %v10411 = vunpack.c.h.b16 %v10302
    %v10412 = vunpack.c.l.b16 %v10303
    %v10413 = vunpack.c.h.b16 %v10303
    %v10414 = vunpack.c.l.b16 %v10304
    %v10415 = vunpack.c.h.b16 %v10304
    %v10416 = vunpack.c.l.b16 %v10305
    %v10417 = vunpack.c.h.b16 %v10305
    %v10418 = vunpack.c.l.b16 %v10306
    %v10419 = vunpack.c.h.b16 %v10306
    %v10420 = vunpack.c.l.b16 %v10307
    %v10421 = vunpack.c.h.b16 %v10307
    %v10422 = vunpack.c.l.b16 %v10308
    %v10423 = vunpack.c.h.b16 %v10308
    %v10424 = vunpack.c.l.b16 %v10309
    %v10425 = vunpack.c.h.b16 %v10309
    %v10426 = vunpack.c.l.b16 %v10310
    %v10427 = vunpack.c.h.b16 %v10310
    %v10428 = vunpack.c.l.b16 %v10311
    %v10429 = vunpack.c.h.b16 %v10311
    %v10430 = vpack.c.b16 %v10370, %v10366
    %v10431 = vpack.c.b16 %v10371, %v10367
    %v10432 = vpack.c.b16 %v10372, %v10368
    %v10433 = vpack.c.b16 %v10373, %v10369
    %v10434 = vpack.c.b16 %v10378, %v10374
    %v10435 = vpack.c.b16 %v10379, %v10375
    %v10436 = vpack.c.b16 %v10380, %v10376
    %v10437 = vpack.c.b16 %v10381, %v10377
    %v10438 = vpack.c.b16 %v10386, %v10382
    %v10439 = vpack.c.b16 %v10387, %v10383
    %v10440 = vpack.c.b16 %v10388, %v10384
    %v10441 = vpack.c.b16 %v10389, %v10385
    %v10442 = vpack.c.b16 %v10394, %v10390
    %v10443 = vpack.c.b16 %v10395, %v10391
    %v10444 = vpack.c.b16 %v10396, %v10392
    %v10445 = vpack.c.b16 %v10397, %v10393
    %v10446 = vpack.c.b16 %v10402, %v10398
    %v10447 = vpack.c.b16 %v10403, %v10399
    %v10448 = vpack.c.b16 %v10404, %v10400
    %v10449 = vpack.c.b16 %v10405, %v10401
    %v10450 = vpack.c.b16 %v10410, %v10406
    %v10451 = vpack.c.b16 %v10411, %v10407
    %v10452 = vpack.c.b16 %v10412, %v10408
    %v10453 = vpack.c.b16 %v10413, %v10409
    %v10454 = vpack.c.b16 %v10418, %v10414
    %v10455 = vpack.c.b16 %v10419, %v10415
    %v10456 = vpack.c.b16 %v10420, %v10416
    %v10457 = vpack.c.b16 %v10421, %v10417
    %v10458 = vpack.c.b16 %v10426, %v10422
    %v10459 = vpack.c.b16 %v10427, %v10423
    %v10460 = vpack.c.b16 %v10428, %v10424
    %v10461 = vpack.c.b16 %v10429, %v10425
    %10494 = vmatprep.subr.bf16.mxu0 %v10431
    %10495 = vmatpush1.bf16.msra.mxu0 %v10430
    %10496 = vmatprep.subr.bf16.mxu0 %v10435
    %10497 = vmatpush1.bf16.msra.mxu0 %v10434
    %10498 = vmatprep.subr.bf16.mxu0 %v10439
    %10499 = vmatpush1.bf16.msra.mxu0 %v10438
    %10500 = vmatprep.subr.bf16.mxu0 %v10443
    %10501 = vmatpush1.bf16.msra.mxu0 %v10442
    %10502 = vmatprep.subr.bf16.mxu0 %v10447
    %10503 = vmatpush1.bf16.msra.mxu0 %v10446
    %10504 = vmatprep.subr.bf16.mxu0 %v10451
    %10505 = vmatpush1.bf16.msra.mxu0 %v10450
    %10506 = vmatprep.subr.bf16.mxu0 %v10455
    %10507 = vmatpush1.bf16.msra.mxu0 %v10454
    %10508 = vmatprep.subr.bf16.mxu0 %v10459
    %10509 = vmatpush1.bf16.msra.mxu0 %v10458
    %10510 = vmatprep.subr.bf16.mxu0 0
    %10511 = vmatpush1.bf16.msra.mxu0 0
    %10512 = vmatprep.subr.bf16.mxu0 0
    %10513 = vmatpush1.bf16.msra.mxu0 0
    %10514 = vmatprep.subr.bf16.mxu0 0
    %10515 = vmatpush1.bf16.msra.mxu0 0
    %10516 = vmatprep.subr.bf16.mxu0 0
    %10517 = vmatpush1.bf16.msra.mxu0 0
    %10518 = vmatprep.subr.bf16.mxu0 0
    %10519 = vmatpush1.bf16.msra.mxu0 0
    %10520 = vmatprep.subr.bf16.mxu0 0
    %10521 = vmatpush1.bf16.msra.mxu0 0
    %10522 = vmatprep.subr.bf16.mxu0 0
    %10523 = vmatpush1.bf16.msra.mxu0 0
    %10524 = vmatprep.subr.bf16.mxu0 0
    %10525 = vmatpush1.bf16.msra.mxu0 0
    %10526 = vmatprep.mubr.bf16.mxu0 0
    %10527 = vmatmul.mubr.bf16.gmra.mrb[0].mxu0 %v10264
    %v10528 = vpop.f32.mrb[0].mxu0
    %v10529 = vadd.f32 %v10317, %v10528
    %v10530 = vpop.f32.mrb[0].mxu0
    %v10531 = vadd.f32 %v10321, %v10530
    %v10532 = vpop.f32.mrb[0].mxu0
    %v10533 = vadd.f32 %v10317, %v10532
    %v10534 = vpop.f32.mrb[0].mxu0
    %v10535 = vadd.f32 %v10321, %v10534
    %10536 = vmatprep.mubr.bf16.mxu0 0
    %10537 = vmatmul.mubr.bf16.gmra.mrb[0].mxu0 %v10265
    %v10538 = vpop.f32.mrb[0].mxu0
    %v10539 = vadd.f32 %v10317, %v10538
    %v10540 = vpop.f32.mrb[0].mxu0
    %v10541 = vadd.f32 %v10321, %v10540
    %v10542 = vpop.f32.mrb[0].mxu0
    %v10543 = vadd.f32 %v10317, %v10542
    %v10544 = vpop.f32.mrb[0].mxu0
    %v10545 = vadd.f32 %v10321, %v10544
    %10546 = vmatprep.mubr.bf16.mxu0 0
    %10547 = vmatmul.mubr.bf16.gmra.mrb[0].mxu0 %v10266
    %v10548 = vpop.f32.mrb[0].mxu0
    %v10549 = vadd.f32 %v10317, %v10548
    %v10550 = vpop.f32.mrb[0].mxu0
    %v10551 = vadd.f32 %v10321, %v10550
    %v10552 = vpop.f32.mrb[0].mxu0
    %v10553 = vadd.f32 %v10317, %v10552
    %v10554 = vpop.f32.mrb[0].mxu0
    %v10555 = vadd.f32 %v10321, %v10554
    %10556 = vmatprep.mubr.bf16.mxu0 0
    %10557 = vmatmul.mubr.bf16.gmra.mrb[0].mxu0 %v10267
    %v10558 = vpop.f32.mrb[0].mxu0
    %v10559 = vadd.f32 %v10317, %v10558
    %v10560 = vpop.f32.mrb[0].mxu0
    %v10561 = vadd.f32 %v10321, %v10560
    %v10562 = vpop.f32.mrb[0].mxu0
    %v10563 = vadd.f32 %v10317, %v10562
    %v10564 = vpop.f32.mrb[0].mxu0
    %v10565 = vadd.f32 %v10321, %v10564
    %10566 = vmatprep.mubr.bf16.mxu0 0
    %10567 = vmatmul.mubr.bf16.gmra.mrb[0].mxu0 %v10268
    %v10568 = vpop.f32.mrb[0].mxu0
    %v10569 = vadd.f32 %v10317, %v10568
    %v10570 = vpop.f32.mrb[0].mxu0
    %v10571 = vadd.f32 %v10321, %v10570
    %v10572 = vpop.f32.mrb[0].mxu0
    %v10573 = vadd.f32 %v10317, %v10572
    %v10574 = vpop.f32.mrb[0].mxu0
    %v10575 = vadd.f32 %v10321, %v10574
    %10576 = vmatprep.mubr.bf16.mxu0 0
    %10577 = vmatmul.mubr.bf16.gmra.mrb[0].mxu0 %v10269
    %v10578 = vpop.f32.mrb[0].mxu0
    %v10579 = vadd.f32 %v10317, %v10578
    %v10580 = vpop.f32.mrb[0].mxu0
    %v10581 = vadd.f32 %v10321, %v10580
    %v10582 = vpop.f32.mrb[0].mxu0
    %v10583 = vadd.f32 %v10317, %v10582
    %v10584 = vpop.f32.mrb[0].mxu0
    %v10585 = vadd.f32 %v10321, %v10584
    %10586 = vmatprep.mubr.bf16.mxu0 0
    %10587 = vmatmul.mubr.bf16.gmra.mrb[0].mxu0 %v10270
    %v10588 = vpop.f32.mrb[0].mxu0
    %v10589 = vadd.f32 %v10317, %v10588
    %v10590 = vpop.f32.mrb[0].mxu0
    %v10591 = vadd.f32 %v10321, %v10590
    %v10592 = vpop.f32.mrb[0].mxu0
    %v10593 = vadd.f32 %v10317, %v10592
    %v10594 = vpop.f32.mrb[0].mxu0
    %v10595 = vadd.f32 %v10321, %v10594
    %10596 = vmatprep.mubr.bf16.mxu0 0
    %10597 = vmatmul.mubr.bf16.gmra.mrb[0].mxu0 %v10271
    %v10598 = vpop.f32.mrb[0].mxu0
    %v10599 = vadd.f32 %v10317, %v10598
    %v10600 = vpop.f32.mrb[0].mxu0
    %v10601 = vadd.f32 %v10321, %v10600
    %v10602 = vpop.f32.mrb[0].mxu0
    %v10603 = vadd.f32 %v10317, %v10602
    %v10604 = vpop.f32.mrb[0].mxu0
    %v10605 = vadd.f32 %v10321, %v10604
    %10606 = vmatprep.mubr.bf16.mxu0 0
    %10607 = vmatmul.mubr.bf16.gmra.mrb[0].mxu0 %v10272
    %v10608 = vpop.f32.mrb[0].mxu0
    %v10609 = vadd.f32 %v10317, %v10608
    %v10610 = vpop.f32.mrb[0].mxu0
    %v10611 = vadd.f32 %v10321, %v10610
    %v10612 = vpop.f32.mrb[0].mxu0
    %v10613 = vadd.f32 %v10317, %v10612
    %v10614 = vpop.f32.mrb[0].mxu0
    %v10615 = vadd.f32 %v10321, %v10614
    %10616 = vmatprep.mubr.bf16.mxu0 0
    %10617 = vmatmul.mubr.bf16.gmra.mrb[0].mxu0 %v10273
    %v10618 = vpop.f32.mrb[0].mxu0
    %v10619 = vadd.f32 %v10317, %v10618
    %v10620 = vpop.f32.mrb[0].mxu0
    %v10621 = vadd.f32 %v10321, %v10620
    %v10622 = vpop.f32.mrb[0].mxu0
    %v10623 = vadd.f32 %v10317, %v10622
    %v10624 = vpop.f32.mrb[0].mxu0
    %v10625 = vadd.f32 %v10321, %v10624
    %10626 = vmatprep.mubr.bf16.mxu0 0
    %10627 = vmatmul.mubr.bf16.gmra.mrb[0].mxu0 %v10274
    %v10628 = vpop.f32.mrb[0].mxu0
    %v10629 = vadd.f32 %v10317, %v10628
    %v10630 = vpop.f32.mrb[0].mxu0
    %v10631 = vadd.f32 %v10321, %v10630
    %v10632 = vpop.f32.mrb[0].mxu0
    %v10633 = vadd.f32 %v10317, %v10632
    %v10634 = vpop.f32.mrb[0].mxu0
    %v10635 = vadd.f32 %v10321, %v10634
    %10636 = vmatprep.mubr.bf16.mxu0 0
    %10637 = vmatmul.mubr.bf16.gmra.mrb[0].mxu0 %v10275
    %v10638 = vpop.f32.mrb[0].mxu0
    %v10639 = vadd.f32 %v10317, %v10638
    %v10640 = vpop.f32.mrb[0].mxu0
    %v10641 = vadd.f32 %v10321, %v10640
    %v10642 = vpop.f32.mrb[0].mxu0
    %v10643 = vadd.f32 %v10317, %v10642
    %v10644 = vpop.f32.mrb[0].mxu0
    %v10645 = vadd.f32 %v10321, %v10644
    %10646 = vmatprep.mubr.bf16.mxu0 0
    %10647 = vmatmul.mubr.bf16.gmra.mrb[0].mxu0 %v10276
    %v10648 = vpop.f32.mrb[0].mxu0
    %v10649 = vadd.f32 %v10317, %v10648
    %v10650 = vpop.f32.mrb[0].mxu0
    %v10651 = vadd.f32 %v10321, %v10650
    %v10652 = vpop.f32.mrb[0].mxu0
    %v10653 = vadd.f32 %v10317, %v10652
    %v10654 = vpop.f32.mrb[0].mxu0
    %v10655 = vadd.f32 %v10321, %v10654
    %10656 = vmatprep.mubr.bf16.mxu0 0
    %10657 = vmatmul.mubr.bf16.gmra.mrb[0].mxu0 %v10277
    %v10658 = vpop.f32.mrb[0].mxu0
    %v10659 = vadd.f32 %v10317, %v10658
    %v10660 = vpop.f32.mrb[0].mxu0
    %v10661 = vadd.f32 %v10321, %v10660
    %v10662 = vpop.f32.mrb[0].mxu0
    %v10663 = vadd.f32 %v10317, %v10662
    %v10664 = vpop.f32.mrb[0].mxu0
    %v10665 = vadd.f32 %v10321, %v10664
    %10666 = vmatprep.mubr.bf16.mxu0 0
    %10667 = vmatmul.mubr.bf16.gmra.mrb[0].mxu0 %v10278
    %v10668 = vpop.f32.mrb[0].mxu0
    %v10669 = vadd.f32 %v10317, %v10668
    %v10670 = vpop.f32.mrb[0].mxu0
    %v10671 = vadd.f32 %v10321, %v10670
    %v10672 = vpop.f32.mrb[0].mxu0
    %v10673 = vadd.f32 %v10317, %v10672
    %v10674 = vpop.f32.mrb[0].mxu0
    %v10675 = vadd.f32 %v10321, %v10674
    %10676 = vmatprep.mubr.bf16.mxu0 0
    %10677 = vmatmul.mubr.bf16.gmra.mrb[0].mxu0 %v10279
    %v10678 = vpop.f32.mrb[0].mxu0
    %v10679 = vadd.f32 %v10317, %v10678
    %v10680 = vpop.f32.mrb[0].mxu0
    %v10681 = vadd.f32 %v10321, %v10680
    %v10682 = vpop.f32.mrb[0].mxu0
    %v10683 = vadd.f32 %v10317, %v10682
    %v10684 = vpop.f32.mrb[0].mxu0
    %v10685 = vadd.f32 %v10321, %v10684
    %10686 = vdwg.mxu0
    %10687 = vmatprep.subr.bf16.mxu0 %v10433
    %10688 = vmatpush1.bf16.msra.mxu0 %v10432
    %10689 = vmatprep.subr.bf16.mxu0 %v10437
    %10690 = vmatpush1.bf16.msra.mxu0 %v10436
    %10691 = vmatprep.subr.bf16.mxu0 %v10441
    %10692 = vmatpush1.bf16.msra.mxu0 %v10440
    %10693 = vmatprep.subr.bf16.mxu0 %v10445
    %10694 = vmatpush1.bf16.msra.mxu0 %v10444
    %10695 = vmatprep.subr.bf16.mxu0 %v10449
    %10696 = vmatpush1.bf16.msra.mxu0 %v10448
    %10697 = vmatprep.subr.bf16.mxu0 %v10453
    %10698 = vmatpush1.bf16.msra.mxu0 %v10452
    %10699 = vmatprep.subr.bf16.mxu0 %v10457
    %10700 = vmatpush1.bf16.msra.mxu0 %v10456
    %10701 = vmatprep.subr.bf16.mxu0 %v10461
    %10702 = vmatpush1.bf16.msra.mxu0 %v10460
    %10703 = vmatprep.subr.bf16.mxu0 0
    %10704 = vmatpush1.bf16.msra.mxu0 0
    %10705 = vmatprep.subr.bf16.mxu0 0
    %10706 = vmatpush1.bf16.msra.mxu0 0
    %10707 = vmatprep.subr.bf16.mxu0 0
    %10708 = vmatpush1.bf16.msra.mxu0 0
    %10709 = vmatprep.subr.bf16.mxu0 0
    %10710 = vmatpush1.bf16.msra.mxu0 0
    %10711 = vmatprep.subr.bf16.mxu0 0
    %10712 = vmatpush1.bf16.msra.mxu0 0
    %10713 = vmatprep.subr.bf16.mxu0 0
    %10714 = vmatpush1.bf16.msra.mxu0 0
    %10715 = vmatprep.subr.bf16.mxu0 0
    %10716 = vmatpush1.bf16.msra.mxu0 0
    %10717 = vmatprep.subr.bf16.mxu0 0
    %10718 = vmatpush1.bf16.msra.mxu0 0
    %10719 = vmatprep.mubr.bf16.mxu0 0
    %10720 = vmatmul.mubr.bf16.gmra.mrb[0].mxu0 %v10264
    %v10721 = vpop.f32.mrb[0].mxu0
    %v10722 = vadd.f32 %v10325, %v10721
    %v10723 = vpop.f32.mrb[0].mxu0
    %v10724 = vadd.f32 %v10329, %v10723
    %v10725 = vpop.f32.mrb[0].mxu0
    %v10726 = vadd.f32 %v10325, %v10725
    %v10727 = vpop.f32.mrb[0].mxu0
    %v10728 = vadd.f32 %v10329, %v10727
    %10729 = vmatprep.mubr.bf16.mxu0 0
    %10730 = vmatmul.mubr.bf16.gmra.mrb[0].mxu0 %v10265
    %v10731 = vpop.f32.mrb[0].mxu0
    %v10732 = vadd.f32 %v10325, %v10731
    %v10733 = vpop.f32.mrb[0].mxu0
    %v10734 = vadd.f32 %v10329, %v10733
    %v10735 = vpop.f32.mrb[0].mxu0
    %v10736 = vadd.f32 %v10325, %v10735
    %v10737 = vpop.f32.mrb[0].mxu0
    %v10738 = vadd.f32 %v10329, %v10737
    %10739 = vmatprep.mubr.bf16.mxu0 0
    %10740 = vmatmul.mubr.bf16.gmra.mrb[0].mxu0 %v10266
    %v10741 = vpop.f32.mrb[0].mxu0
    %v10742 = vadd.f32 %v10325, %v10741
    %v10743 = vpop.f32.mrb[0].mxu0
    %v10744 = vadd.f32 %v10329, %v10743
    %v10745 = vpop.f32.mrb[0].mxu0
    %v10746 = vadd.f32 %v10325, %v10745
    %v10747 = vpop.f32.mrb[0].mxu0
    %v10748 = vadd.f32 %v10329, %v10747
    %10749 = vmatprep.mubr.bf16.mxu0 0
    %10750 = vmatmul.mubr.bf16.gmra.mrb[0].mxu0 %v10267
    %v10751 = vpop.f32.mrb[0].mxu0
    %v10752 = vadd.f32 %v10325, %v10751
    %v10753 = vpop.f32.mrb[0].mxu0
    %v10754 = vadd.f32 %v10329, %v10753
    %v10755 = vpop.f32.mrb[0].mxu0
    %v10756 = vadd.f32 %v10325, %v10755
    %v10757 = vpop.f32.mrb[0].mxu0
    %v10758 = vadd.f32 %v10329, %v10757
    %10759 = vmatprep.mubr.bf16.mxu0 0
    %10760 = vmatmul.mubr.bf16.gmra.mrb[0].mxu0 %v10268
    %v10761 = vpop.f32.mrb[0].mxu0
    %v10762 = vadd.f32 %v10325, %v10761
    %v10763 = vpop.f32.mrb[0].mxu0
    %v10764 = vadd.f32 %v10329, %v10763
    %v10765 = vpop.f32.mrb[0].mxu0
    %v10766 = vadd.f32 %v10325, %v10765
    %v10767 = vpop.f32.mrb[0].mxu0
    %v10768 = vadd.f32 %v10329, %v10767
    %10769 = vmatprep.mubr.bf16.mxu0 0
    %10770 = vmatmul.mubr.bf16.gmra.mrb[0].mxu0 %v10269
    %v10771 = vpop.f32.mrb[0].mxu0
    %v10772 = vadd.f32 %v10325, %v10771
    %v10773 = vpop.f32.mrb[0].mxu0
    %v10774 = vadd.f32 %v10329, %v10773
    %v10775 = vpop.f32.mrb[0].mxu0
    %v10776 = vadd.f32 %v10325, %v10775
    %v10777 = vpop.f32.mrb[0].mxu0
    %v10778 = vadd.f32 %v10329, %v10777
    %10779 = vmatprep.mubr.bf16.mxu0 0
    %10780 = vmatmul.mubr.bf16.gmra.mrb[0].mxu0 %v10270
    %v10781 = vpop.f32.mrb[0].mxu0
    %v10782 = vadd.f32 %v10325, %v10781
    %v10783 = vpop.f32.mrb[0].mxu0
    %v10784 = vadd.f32 %v10329, %v10783
    %v10785 = vpop.f32.mrb[0].mxu0
    %v10786 = vadd.f32 %v10325, %v10785
    %v10787 = vpop.f32.mrb[0].mxu0
    %v10788 = vadd.f32 %v10329, %v10787
    %10789 = vmatprep.mubr.bf16.mxu0 0
    %10790 = vmatmul.mubr.bf16.gmra.mrb[0].mxu0 %v10271
    %v10791 = vpop.f32.mrb[0].mxu0
    %v10792 = vadd.f32 %v10325, %v10791
    %v10793 = vpop.f32.mrb[0].mxu0
    %v10794 = vadd.f32 %v10329, %v10793
    %v10795 = vpop.f32.mrb[0].mxu0
    %v10796 = vadd.f32 %v10325, %v10795
    %v10797 = vpop.f32.mrb[0].mxu0
    %v10798 = vadd.f32 %v10329, %v10797
    %10799 = vmatprep.mubr.bf16.mxu0 0
    %10800 = vmatmul.mubr.bf16.gmra.mrb[0].mxu0 %v10272
    %v10801 = vpop.f32.mrb[0].mxu0
    %v10802 = vadd.f32 %v10325, %v10801
    %v10803 = vpop.f32.mrb[0].mxu0
    %v10804 = vadd.f32 %v10329, %v10803
    %v10805 = vpop.f32.mrb[0].mxu0
    %v10806 = vadd.f32 %v10325, %v10805
    %v10807 = vpop.f32.mrb[0].mxu0
    %v10808 = vadd.f32 %v10329, %v10807
    %10809 = vmatprep.mubr.bf16.mxu0 0
    %10810 = vmatmul.mubr.bf16.gmra.mrb[0].mxu0 %v10273
    %v10811 = vpop.f32.mrb[0].mxu0
    %v10812 = vadd.f32 %v10325, %v10811
    %v10813 = vpop.f32.mrb[0].mxu0
    %v10814 = vadd.f32 %v10329, %v10813
    %v10815 = vpop.f32.mrb[0].mxu0
    %v10816 = vadd.f32 %v10325, %v10815
    %v10817 = vpop.f32.mrb[0].mxu0
    %v10818 = vadd.f32 %v10329, %v10817
    %10819 = vmatprep.mubr.bf16.mxu0 0
    %10820 = vmatmul.mubr.bf16.gmra.mrb[0].mxu0 %v10274
    %v10821 = vpop.f32.mrb[0].mxu0
    %v10822 = vadd.f32 %v10325, %v10821
    %v10823 = vpop.f32.mrb[0].mxu0
    %v10824 = vadd.f32 %v10329, %v10823
    %v10825 = vpop.f32.mrb[0].mxu0
    %v10826 = vadd.f32 %v10325, %v10825
    %v10827 = vpop.f32.mrb[0].mxu0
    %v10828 = vadd.f32 %v10329, %v10827
    %10829 = vmatprep.mubr.bf16.mxu0 0
    %10830 = vmatmul.mubr.bf16.gmra.mrb[0].mxu0 %v10275
    %v10831 = vpop.f32.mrb[0].mxu0
    %v10832 = vadd.f32 %v10325, %v10831
    %v10833 = vpop.f32.mrb[0].mxu0
    %v10834 = vadd.f32 %v10329, %v10833
    %v10835 = vpop.f32.mrb[0].mxu0
    %v10836 = vadd.f32 %v10325, %v10835
    %v10837 = vpop.f32.mrb[0].mxu0
    %v10838 = vadd.f32 %v10329, %v10837
    %10839 = vmatprep.mubr.bf16.mxu0 0
    %10840 = vmatmul.mubr.bf16.gmra.mrb[0].mxu0 %v10276
    %v10841 = vpop.f32.mrb[0].mxu0
    %v10842 = vadd.f32 %v10325, %v10841
    %v10843 = vpop.f32.mrb[0].mxu0
    %v10844 = vadd.f32 %v10329, %v10843
    %v10845 = vpop.f32.mrb[0].mxu0
    %v10846 = vadd.f32 %v10325, %v10845
    %v10847 = vpop.f32.mrb[0].mxu0
    %v10848 = vadd.f32 %v10329, %v10847
    %10849 = vmatprep.mubr.bf16.mxu0 0
    %10850 = vmatmul.mubr.bf16.gmra.mrb[0].mxu0 %v10277
    %v10851 = vpop.f32.mrb[0].mxu0
    %v10852 = vadd.f32 %v10325, %v10851
    %v10853 = vpop.f32.mrb[0].mxu0
    %v10854 = vadd.f32 %v10329, %v10853
    %v10855 = vpop.f32.mrb[0].mxu0
    %v10856 = vadd.f32 %v10325, %v10855
    %v10857 = vpop.f32.mrb[0].mxu0
    %v10858 = vadd.f32 %v10329, %v10857
    %10859 = vmatprep.mubr.bf16.mxu0 0
    %10860 = vmatmul.mubr.bf16.gmra.mrb[0].mxu0 %v10278
    %v10861 = vpop.f32.mrb[0].mxu0
    %v10862 = vadd.f32 %v10325, %v10861
    %v10863 = vpop.f32.mrb[0].mxu0
    %v10864 = vadd.f32 %v10329, %v10863
    %v10865 = vpop.f32.mrb[0].mxu0
    %v10866 = vadd.f32 %v10325, %v10865
    %v10867 = vpop.f32.mrb[0].mxu0
    %v10868 = vadd.f32 %v10329, %v10867
    %10869 = vmatprep.mubr.bf16.mxu0 0
    %10870 = vmatmul.mubr.bf16.gmra.mrb[0].mxu0 %v10279
    %v10871 = vpop.f32.mrb[0].mxu0
    %v10872 = vadd.f32 %v10325, %v10871
    %v10873 = vpop.f32.mrb[0].mxu0
    %v10874 = vadd.f32 %v10329, %v10873
    %v10875 = vpop.f32.mrb[0].mxu0
    %v10876 = vadd.f32 %v10325, %v10875
    %v10877 = vpop.f32.mrb[0].mxu0
    %v10878 = vadd.f32 %v10329, %v10877
    %10879 = vdwg.mxu0
    %v10880 = vmax.f32 %v10529, 0.0
    %v10881 = vmax.f32 %v10531, 0.0
    %v10882 = vmax.f32 %v10722, 0.0
    %v10883 = vmax.f32 %v10724, 0.0
    %v10884 = vmax.f32 %v10533, 0.0
    %v10885 = vmax.f32 %v10535, 0.0
    %v10886 = vmax.f32 %v10726, 0.0
    %v10887 = vmax.f32 %v10728, 0.0
    %v10888 = vmax.f32 %v10539, 0.0
    %v10889 = vmax.f32 %v10541, 0.0
    %v10890 = vmax.f32 %v10732, 0.0
    %v10891 = vmax.f32 %v10734, 0.0
    %v10892 = vmax.f32 %v10543, 0.0
    %v10893 = vmax.f32 %v10545, 0.0
    %v10894 = vmax.f32 %v10736, 0.0
    %v10895 = vmax.f32 %v10738, 0.0
    %v10896 = vmax.f32 %v10549, 0.0
    %v10897 = vmax.f32 %v10551, 0.0
    %v10898 = vmax.f32 %v10742, 0.0
    %v10899 = vmax.f32 %v10744, 0.0
    %v10900 = vmax.f32 %v10553, 0.0
    %v10901 = vmax.f32 %v10555, 0.0
    %v10902 = vmax.f32 %v10746, 0.0
    %v10903 = vmax.f32 %v10748, 0.0
    %v10904 = vmax.f32 %v10559, 0.0
    %v10905 = vmax.f32 %v10561, 0.0
    %v10906 = vmax.f32 %v10752, 0.0
    %v10907 = vmax.f32 %v10754, 0.0
    %v10908 = vmax.f32 %v10563, 0.0
    %v10909 = vmax.f32 %v10565, 0.0
    %v10910 = vmax.f32 %v10756, 0.0
    %v10911 = vmax.f32 %v10758, 0.0
    %v10912 = vmax.f32 %v10569, 0.0
    %v10913 = vmax.f32 %v10571, 0.0
    %v10914 = vmax.f32 %v10762, 0.0
    %v10915 = vmax.f32 %v10764, 0.0
    %v10916 = vmax.f32 %v10573, 0.0
    %v10917 = vmax.f32 %v10575, 0.0
    %v10918 = vmax.f32 %v10766, 0.0
    %v10919 = vmax.f32 %v10768, 0.0
    %v10920 = vmax.f32 %v10579, 0.0
    %v10921 = vmax.f32 %v10581, 0.0
    %v10922 = vmax.f32 %v10772, 0.0
    %v10923 = vmax.f32 %v10774, 0.0
    %v10924 = vmax.f32 %v10583, 0.0
    %v10925 = vmax.f32 %v10585, 0.0
    %v10926 = vmax.f32 %v10776, 0.0
    %v10927 = vmax.f32 %v10778, 0.0
    %v10928 = vmax.f32 %v10589, 0.0
    %v10929 = vmax.f32 %v10591, 0.0
    %v10930 = vmax.f32 %v10782, 0.0
    %v10931 = vmax.f32 %v10784, 0.0
    %v10932 = vmax.f32 %v10593, 0.0
    %v10933 = vmax.f32 %v10595, 0.0
    %v10934 = vmax.f32 %v10786, 0.0
    %v10935 = vmax.f32 %v10788, 0.0
    %v10936 = vmax.f32 %v10599, 0.0
    %v10937 = vmax.f32 %v10601, 0.0
    %v10938 = vmax.f32 %v10792, 0.0
    %v10939 = vmax.f32 %v10794, 0.0
    %v10940 = vmax.f32 %v10603, 0.0
    %v10941 = vmax.f32 %v10605, 0.0
    %v10942 = vmax.f32 %v10796, 0.0
    %v10943 = vmax.f32 %v10798, 0.0
    %v10944 = vmax.f32 %v10609, 0.0
    %v10945 = vmax.f32 %v10611, 0.0
    %v10946 = vmax.f32 %v10802, 0.0
    %v10947 = vmax.f32 %v10804, 0.0
    %v10948 = vmax.f32 %v10613, 0.0
    %v10949 = vmax.f32 %v10615, 0.0
    %v10950 = vmax.f32 %v10806, 0.0
    %v10951 = vmax.f32 %v10808, 0.0
    %v10952 = vmax.f32 %v10619, 0.0
    %v10953 = vmax.f32 %v10621, 0.0
    %v10954 = vmax.f32 %v10812, 0.0
    %v10955 = vmax.f32 %v10814, 0.0
    %v10956 = vmax.f32 %v10623, 0.0
    %v10957 = vmax.f32 %v10625, 0.0
    %v10958 = vmax.f32 %v10816, 0.0
    %v10959 = vmax.f32 %v10818, 0.0
    %v10960 = vmax.f32 %v10629, 0.0
    %v10961 = vmax.f32 %v10631, 0.0
    %v10962 = vmax.f32 %v10822, 0.0
    %v10963 = vmax.f32 %v10824, 0.0
    %v10964 = vmax.f32 %v10633, 0.0
    %v10965 = vmax.f32 %v10635, 0.0
    %v10966 = vmax.f32 %v10826, 0.0
    %v10967 = vmax.f32 %v10828, 0.0
    %v10968 = vmax.f32 %v10639, 0.0
    %v10969 = vmax.f32 %v10641, 0.0
    %v10970 = vmax.f32 %v10832, 0.0
    %v10971 = vmax.f32 %v10834, 0.0
    %v10972 = vmax.f32 %v10643, 0.0
    %v10973 = vmax.f32 %v10645, 0.0
    %v10974 = vmax.f32 %v10836, 0.0
    %v10975 = vmax.f32 %v10838, 0.0
    %v10976 = vmax.f32 %v10649, 0.0
    %v10977 = vmax.f32 %v10651, 0.0
    %v10978 = vmax.f32 %v10842, 0.0
    %v10979 = vmax.f32 %v10844, 0.0
    %v10980 = vmax.f32 %v10653, 0.0
    %v10981 = vmax.f32 %v10655, 0.0
    %v10982 = vmax.f32 %v10846, 0.0
    %v10983 = vmax.f32 %v10848, 0.0
    %v10984 = vmax.f32 %v10659, 0.0
    %v10985 = vmax.f32 %v10661, 0.0
    %v10986 = vmax.f32 %v10852, 0.0
    %v10987 = vmax.f32 %v10854, 0.0
    %v10988 = vmax.f32 %v10663, 0.0
    %v10989 = vmax.f32 %v10665, 0.0
    %v10990 = vmax.f32 %v10856, 0.0
    %v10991 = vmax.f32 %v10858, 0.0
    %v10992 = vmax.f32 %v10669, 0.0
    %v10993 = vmax.f32 %v10671, 0.0
    %v10994 = vmax.f32 %v10862, 0.0
    %v10995 = vmax.f32 %v10864, 0.0
    %v10996 = vmax.f32 %v10673, 0.0
    %v10997 = vmax.f32 %v10675, 0.0
    %v10998 = vmax.f32 %v10866, 0.0
    %v10999 = vmax.f32 %v10868, 0.0
    %v11000 = vmax.f32 %v10679, 0.0
    %v11001 = vmax.f32 %v10681, 0.0
    %v11002 = vmax.f32 %v10872, 0.0
    %v11003 = vmax.f32 %v10874, 0.0
    %v11004 = vmax.f32 %v10683, 0.0
    %v11005 = vmax.f32 %v10685, 0.0
    %v11006 = vmax.f32 %v10876, 0.0
    %v11007 = vmax.f32 %v10878, 0.0
    %v11008 = vpack.c.bf16 %v10884, %v10880
    %v11009 = vpack.c.bf16 %v10885, %v10881
    %v11010 = vpack.c.bf16 %v10886, %v10882
    %v11011 = vpack.c.bf16 %v10887, %v10883
    %v11012 = vpack.c.bf16 %v10892, %v10888
    %v11013 = vpack.c.bf16 %v10893, %v10889
    %v11014 = vpack.c.bf16 %v10894, %v10890
    %v11015 = vpack.c.bf16 %v10895, %v10891
    %v11016 = vpack.c.bf16 %v10900, %v10896
    %v11017 = vpack.c.bf16 %v10901, %v10897
    %v11018 = vpack.c.bf16 %v10902, %v10898
    %v11019 = vpack.c.bf16 %v10903, %v10899
    %v11020 = vpack.c.bf16 %v10908, %v10904
    %v11021 = vpack.c.bf16 %v10909, %v10905
    %v11022 = vpack.c.bf16 %v10910, %v10906
    %v11023 = vpack.c.bf16 %v10911, %v10907
    %v11024 = vpack.c.bf16 %v10916, %v10912
    %v11025 = vpack.c.bf16 %v10917, %v10913
    %v11026 = vpack.c.bf16 %v10918, %v10914
    %v11027 = vpack.c.bf16 %v10919, %v10915
    %v11028 = vpack.c.bf16 %v10924, %v10920
    %v11029 = vpack.c.bf16 %v10925, %v10921
    %v11030 = vpack.c.bf16 %v10926, %v10922
    %v11031 = vpack.c.bf16 %v10927, %v10923
    %v11032 = vpack.c.bf16 %v10932, %v10928
    %v11033 = vpack.c.bf16 %v10933, %v10929
    %v11034 = vpack.c.bf16 %v10934, %v10930
    %v11035 = vpack.c.bf16 %v10935, %v10931
    %v11036 = vpack.c.bf16 %v10940, %v10936
    %v11037 = vpack.c.bf16 %v10941, %v10937
    %v11038 = vpack.c.bf16 %v10942, %v10938
    %v11039 = vpack.c.bf16 %v10943, %v10939
    %v11040 = vpack.c.bf16 %v10948, %v10944
    %v11041 = vpack.c.bf16 %v10949, %v10945
    %v11042 = vpack.c.bf16 %v10950, %v10946
    %v11043 = vpack.c.bf16 %v10951, %v10947
    %v11044 = vpack.c.bf16 %v10956, %v10952
    %v11045 = vpack.c.bf16 %v10957, %v10953
    %v11046 = vpack.c.bf16 %v10958, %v10954
    %v11047 = vpack.c.bf16 %v10959, %v10955
    %v11048 = vpack.c.bf16 %v10964, %v10960
    %v11049 = vpack.c.bf16 %v10965, %v10961
    %v11050 = vpack.c.bf16 %v10966, %v10962
    %v11051 = vpack.c.bf16 %v10967, %v10963
    %v11052 = vpack.c.bf16 %v10972, %v10968
    %v11053 = vpack.c.bf16 %v10973, %v10969
    %v11054 = vpack.c.bf16 %v10974, %v10970
    %v11055 = vpack.c.bf16 %v10975, %v10971
    %v11056 = vpack.c.bf16 %v10980, %v10976
    %v11057 = vpack.c.bf16 %v10981, %v10977
    %v11058 = vpack.c.bf16 %v10982, %v10978
    %v11059 = vpack.c.bf16 %v10983, %v10979
    %v11060 = vpack.c.bf16 %v10988, %v10984
    %v11061 = vpack.c.bf16 %v10989, %v10985
    %v11062 = vpack.c.bf16 %v10990, %v10986
    %v11063 = vpack.c.bf16 %v10991, %v10987
    %v11064 = vpack.c.bf16 %v10996, %v10992
    %v11065 = vpack.c.bf16 %v10997, %v10993
    %v11066 = vpack.c.bf16 %v10998, %v10994
    %v11067 = vpack.c.bf16 %v10999, %v10995
    %v11068 = vpack.c.bf16 %v11004, %v11000
    %v11069 = vpack.c.bf16 %v11005, %v11001
    %v11070 = vpack.c.bf16 %v11006, %v11002
    %v11071 = vpack.c.bf16 %v11007, %v11003
    %v11072 = vld [vmem:[#allocation12] sm:$0xf]
    %v11073 = vld [vmem:[#allocation12 + $0x4] sm:$0xf]
    %v11074 = vld [vmem:[#allocation12 + $0x8] sm:$0xf]
    %v11075 = vld [vmem:[#allocation12 + $0xc] sm:$0xf]
    %v11076 = vld [vmem:[#allocation12 + $0x10] sm:$0xf]
    %v11077 = vld [vmem:[#allocation12 + $0x14] sm:$0xf]
    %v11078 = vld [vmem:[#allocation12 + $0x18] sm:$0xf]
    %v11079 = vld [vmem:[#allocation12 + $0x1c] sm:$0xf]
    %v11080 = vld [vmem:[#allocation12 + $0x20] sm:$0xf]
    %v11081 = vld [vmem:[#allocation12 + $0x24] sm:$0xf]
    %v11082 = vld [vmem:[#allocation12 + $0x28] sm:$0xf]
    %v11083 = vld [vmem:[#allocation12 + $0x2c] sm:$0xf]
    %v11084 = vld [vmem:[#allocation12 + $0x30] sm:$0xf]
    %v11085 = vld [vmem:[#allocation12 + $0x34] sm:$0xf]
    %v11086 = vld [vmem:[#allocation12 + $0x38] sm:$0xf]
    %v11087 = vld [vmem:[#allocation12 + $0x3c] sm:$0xf]
    %v11088 = vld [vmem:[#allocation12 + $0x40] sm:$0xf]
    %v11089 = vld [vmem:[#allocation12 + $0x44] sm:$0xf]
    %v11090 = vld [vmem:[#allocation12 + $0x48] sm:$0xf]
    %v11091 = vld [vmem:[#allocation12 + $0x4c] sm:$0xf]
    %v11092 = vld [vmem:[#allocation12 + $0x50] sm:$0xf]
    %v11093 = vld [vmem:[#allocation12 + $0x54] sm:$0xf]
    %v11094 = vld [vmem:[#allocation12 + $0x58] sm:$0xf]
    %v11095 = vld [vmem:[#allocation12 + $0x5c] sm:$0xf]
    %v11096 = vld [vmem:[#allocation12 + $0x60] sm:$0xf]
    %v11097 = vld [vmem:[#allocation12 + $0x64] sm:$0xf]
    %v11098 = vld [vmem:[#allocation12 + $0x68] sm:$0xf]
    %v11099 = vld [vmem:[#allocation12 + $0x6c] sm:$0xf]
    %v11100 = vld [vmem:[#allocation12 + $0x70] sm:$0xf]
    %v11101 = vld [vmem:[#allocation12 + $0x74] sm:$0xf]
    %v11102 = vld [vmem:[#allocation12 + $0x78] sm:$0xf]
    %v11103 = vld [vmem:[#allocation12 + $0x7c] sm:$0xf]
    %v11104 = vld [vmem:[#allocation12 + $0x80] sm:$0xf]
    %v11105 = vld [vmem:[#allocation12 + $0x84] sm:$0xf]
    %v11106 = vld [vmem:[#allocation12 + $0x88] sm:$0xf]
    %v11107 = vld [vmem:[#allocation12 + $0x8c] sm:$0xf]
    %v11108 = vld [vmem:[#allocation12 + $0x90] sm:$0xf]
    %v11109 = vld [vmem:[#allocation12 + $0x94] sm:$0xf]
    %v11110 = vld [vmem:[#allocation12 + $0x98] sm:$0xf]
    %v11111 = vld [vmem:[#allocation12 + $0x9c] sm:$0xf]
    %v11112 = vld [vmem:[#allocation12 + $0xa0] sm:$0xf]
    %v11113 = vld [vmem:[#allocation12 + $0xa4] sm:$0xf]
    %v11114 = vld [vmem:[#allocation12 + $0xa8] sm:$0xf]
    %v11115 = vld [vmem:[#allocation12 + $0xac] sm:$0xf]
    %v11116 = vld [vmem:[#allocation12 + $0xb0] sm:$0xf]
    %v11117 = vld [vmem:[#allocation12 + $0xb4] sm:$0xf]
    %v11118 = vld [vmem:[#allocation12 + $0xb8] sm:$0xf]
    %v11119 = vld [vmem:[#allocation12 + $0xbc] sm:$0xf]
    %v11120 = vld [vmem:[#allocation12 + $0xc0] sm:$0xf]
    %v11121 = vld [vmem:[#allocation12 + $0xc4] sm:$0xf]
    %v11122 = vld [vmem:[#allocation12 + $0xc8] sm:$0xf]
    %v11123 = vld [vmem:[#allocation12 + $0xcc] sm:$0xf]
    %v11124 = vld [vmem:[#allocation12 + $0xd0] sm:$0xf]
    %v11125 = vld [vmem:[#allocation12 + $0xd4] sm:$0xf]
    %v11126 = vld [vmem:[#allocation12 + $0xd8] sm:$0xf]
    %v11127 = vld [vmem:[#allocation12 + $0xdc] sm:$0xf]
    %v11128 = vld [vmem:[#allocation12 + $0xe0] sm:$0xf]
    %v11129 = vld [vmem:[#allocation12 + $0xe4] sm:$0xf]
    %v11130 = vld [vmem:[#allocation12 + $0xe8] sm:$0xf]
    %v11131 = vld [vmem:[#allocation12 + $0xec] sm:$0xf]
    %v11132 = vld [vmem:[#allocation12 + $0xf0] sm:$0xf]
    %v11133 = vld [vmem:[#allocation12 + $0xf4] sm:$0xf]
    %v11134 = vld [vmem:[#allocation12 + $0xf8] sm:$0xf]
    %v11135 = vld [vmem:[#allocation12 + $0xfc] sm:$0xf]
    %v11136 = vld [vmem:[%s13] sm:$0x1]
    %v11138 = vlaneseq
    %v11139 = vshrl.u32 %v11138, 7
    %v11140 = vsub.s32 0, %v11139
    %v11141 = vrot.slane %v11136, %v11140
    %v11207 = vunpack.c.l.b16 %v11072
    %v11208 = vunpack.c.l.b16 %v11073
    %v11209 = vunpack.c.l.b16 %v11074
    %v11210 = vunpack.c.l.b16 %v11075
    %v11211 = vunpack.c.l.b16 %v11076
    %v11212 = vunpack.c.l.b16 %v11077
    %v11213 = vunpack.c.l.b16 %v11078
    %v11214 = vunpack.c.l.b16 %v11079
    %v11215 = vunpack.c.l.b16 %v11080
    %v11216 = vunpack.c.l.b16 %v11081
    %v11217 = vunpack.c.l.b16 %v11082
    %v11218 = vunpack.c.l.b16 %v11083
    %v11219 = vunpack.c.l.b16 %v11084
    %v11220 = vunpack.c.l.b16 %v11085
    %v11221 = vunpack.c.l.b16 %v11086
    %v11222 = vunpack.c.l.b16 %v11087
    %v11223 = vunpack.c.l.b16 %v11088
    %v11224 = vunpack.c.l.b16 %v11089
    %v11225 = vunpack.c.l.b16 %v11090
    %v11226 = vunpack.c.l.b16 %v11091
    %v11227 = vunpack.c.l.b16 %v11092
    %v11228 = vunpack.c.l.b16 %v11093
    %v11229 = vunpack.c.l.b16 %v11094
    %v11230 = vunpack.c.l.b16 %v11095
    %v11231 = vunpack.c.l.b16 %v11096
    %v11232 = vunpack.c.l.b16 %v11097
    %v11233 = vunpack.c.l.b16 %v11098
    %v11234 = vunpack.c.l.b16 %v11099
    %v11235 = vunpack.c.l.b16 %v11100
    %v11236 = vunpack.c.l.b16 %v11101
    %v11237 = vunpack.c.l.b16 %v11102
    %v11238 = vunpack.c.l.b16 %v11103
    %v11239 = vunpack.c.l.b16 %v11104
    %v11240 = vunpack.c.l.b16 %v11105
    %v11241 = vunpack.c.l.b16 %v11106
    %v11242 = vunpack.c.l.b16 %v11107
    %v11243 = vunpack.c.l.b16 %v11108
    %v11244 = vunpack.c.l.b16 %v11109
    %v11245 = vunpack.c.l.b16 %v11110
    %v11246 = vunpack.c.l.b16 %v11111
    %v11247 = vunpack.c.l.b16 %v11112
    %v11248 = vunpack.c.l.b16 %v11113
    %v11249 = vunpack.c.l.b16 %v11114
    %v11250 = vunpack.c.l.b16 %v11115
    %v11251 = vunpack.c.l.b16 %v11116
    %v11252 = vunpack.c.l.b16 %v11117
    %v11253 = vunpack.c.l.b16 %v11118
    %v11254 = vunpack.c.l.b16 %v11119
    %v11255 = vunpack.c.l.b16 %v11120
    %v11256 = vunpack.c.l.b16 %v11121
    %v11257 = vunpack.c.l.b16 %v11122
    %v11258 = vunpack.c.l.b16 %v11123
    %v11259 = vunpack.c.l.b16 %v11124
    %v11260 = vunpack.c.l.b16 %v11125
    %v11261 = vunpack.c.l.b16 %v11126
    %v11262 = vunpack.c.l.b16 %v11127
    %v11263 = vunpack.c.l.b16 %v11128
    %v11264 = vunpack.c.l.b16 %v11129
    %v11265 = vunpack.c.l.b16 %v11130
    %v11266 = vunpack.c.l.b16 %v11131
    %v11267 = vunpack.c.l.b16 %v11132
    %v11268 = vunpack.c.l.b16 %v11133
    %v11269 = vunpack.c.l.b16 %v11134
    %v11270 = vunpack.c.l.b16 %v11135
    %v11271 = vpack.c.b16 %v11208, %v11207
    %v11272 = vpack.c.b16 %v11210, %v11209
    %v11273 = vpack.c.b16 %v11212, %v11211
    %v11274 = vpack.c.b16 %v11214, %v11213
    %v11275 = vpack.c.b16 %v11216, %v11215
    %v11276 = vpack.c.b16 %v11218, %v11217
    %v11277 = vpack.c.b16 %v11220, %v11219
    %v11278 = vpack.c.b16 %v11222, %v11221
    %v11279 = vpack.c.b16 %v11224, %v11223
    %v11280 = vpack.c.b16 %v11226, %v11225
    %v11281 = vpack.c.b16 %v11228, %v11227
    %v11282 = vpack.c.b16 %v11230, %v11229
    %v11283 = vpack.c.b16 %v11232, %v11231
    %v11284 = vpack.c.b16 %v11234, %v11233
    %v11285 = vpack.c.b16 %v11236, %v11235
    %v11286 = vpack.c.b16 %v11238, %v11237
    %v11287 = vpack.c.b16 %v11240, %v11239
    %v11288 = vpack.c.b16 %v11242, %v11241
    %v11289 = vpack.c.b16 %v11244, %v11243
    %v11290 = vpack.c.b16 %v11246, %v11245
    %v11291 = vpack.c.b16 %v11248, %v11247
    %v11292 = vpack.c.b16 %v11250, %v11249
    %v11293 = vpack.c.b16 %v11252, %v11251
    %v11294 = vpack.c.b16 %v11254, %v11253
    %v11295 = vpack.c.b16 %v11256, %v11255
    %v11296 = vpack.c.b16 %v11258, %v11257
    %v11297 = vpack.c.b16 %v11260, %v11259
    %v11298 = vpack.c.b16 %v11262, %v11261
    %v11299 = vpack.c.b16 %v11264, %v11263
    %v11300 = vpack.c.b16 %v11266, %v11265
    %v11301 = vpack.c.b16 %v11268, %v11267
    %v11302 = vpack.c.b16 %v11270, %v11269
    %11335 = vmatprep.subr.bf16.mxu0 0
    %11336 = vmatpush1.bf16.msra.mxu0 %v11271
    %11337 = vmatprep.subr.bf16.mxu0 0
    %11338 = vmatpush1.bf16.msra.mxu0 %v11272
    %11339 = vmatprep.subr.bf16.mxu0 0
    %11340 = vmatpush1.bf16.msra.mxu0 %v11273
    %11341 = vmatprep.subr.bf16.mxu0 0
    %11342 = vmatpush1.bf16.msra.mxu0 %v11274
    %11343 = vmatprep.subr.bf16.mxu0 0
    %11344 = vmatpush1.bf16.msra.mxu0 %v11275
    %11345 = vmatprep.subr.bf16.mxu0 0
    %11346 = vmatpush1.bf16.msra.mxu0 %v11276
    %11347 = vmatprep.subr.bf16.mxu0 0
    %11348 = vmatpush1.bf16.msra.mxu0 %v11277
    %11349 = vmatprep.subr.bf16.mxu0 0
    %11350 = vmatpush1.bf16.msra.mxu0 %v11278
    %11351 = vmatprep.subr.bf16.mxu0 0
    %11352 = vmatpush1.bf16.msra.mxu0 %v11279
    %11353 = vmatprep.subr.bf16.mxu0 0
    %11354 = vmatpush1.bf16.msra.mxu0 %v11280
    %11355 = vmatprep.subr.bf16.mxu0 0
    %11356 = vmatpush1.bf16.msra.mxu0 %v11281
    %11357 = vmatprep.subr.bf16.mxu0 0
    %11358 = vmatpush1.bf16.msra.mxu0 %v11282
    %11359 = vmatprep.subr.bf16.mxu0 0
    %11360 = vmatpush1.bf16.msra.mxu0 %v11283
    %11361 = vmatprep.subr.bf16.mxu0 0
    %11362 = vmatpush1.bf16.msra.mxu0 %v11284
    %11363 = vmatprep.subr.bf16.mxu0 0
    %11364 = vmatpush1.bf16.msra.mxu0 %v11285
    %11365 = vmatprep.subr.bf16.mxu0 0
    %11366 = vmatpush1.bf16.msra.mxu0 %v11286
    %11367 = vmatprep.mubr.bf16.mxu0 %v11009
    %11368 = vmatmul.mubr.bf16.gmra.mrb[0].mxu0 %v11008
    %v11369 = vpop.f32.mrb[0].mxu0
    %v11370 = vadd.f32 %v11141, %v11369
    %v11371 = vpop.f32.mrb[0].mxu0
    %v11372 = vpop.f32.mrb[0].mxu0
    %v11373 = vadd.f32 %v11141, %v11372
    %v11374 = vpop.f32.mrb[0].mxu0
    %11375 = vmatprep.mubr.bf16.mxu0 %v11013
    %11376 = vmatmul.mubr.bf16.gmra.mrb[0].mxu0 %v11012
    %v11377 = vpop.f32.mrb[0].mxu0
    %v11378 = vadd.f32 %v11141, %v11377
    %v11379 = vpop.f32.mrb[0].mxu0
    %v11380 = vpop.f32.mrb[0].mxu0
    %v11381 = vadd.f32 %v11141, %v11380
    %v11382 = vpop.f32.mrb[0].mxu0
    %11383 = vmatprep.mubr.bf16.mxu0 %v11017
    %11384 = vmatmul.mubr.bf16.gmra.mrb[0].mxu0 %v11016
    %v11385 = vpop.f32.mrb[0].mxu0
    %v11386 = vadd.f32 %v11141, %v11385
    %v11387 = vpop.f32.mrb[0].mxu0
    %v11388 = vpop.f32.mrb[0].mxu0
    %v11389 = vadd.f32 %v11141, %v11388
    %v11390 = vpop.f32.mrb[0].mxu0
    %11391 = vmatprep.mubr.bf16.mxu0 %v11021
    %11392 = vmatmul.mubr.bf16.gmra.mrb[0].mxu0 %v11020
    %v11393 = vpop.f32.mrb[0].mxu0
    %v11394 = vadd.f32 %v11141, %v11393
    %v11395 = vpop.f32.mrb[0].mxu0
    %v11396 = vpop.f32.mrb[0].mxu0
    %v11397 = vadd.f32 %v11141, %v11396
    %v11398 = vpop.f32.mrb[0].mxu0
    %11399 = vmatprep.mubr.bf16.mxu0 %v11025
    %11400 = vmatmul.mubr.bf16.gmra.mrb[0].mxu0 %v11024
    %v11401 = vpop.f32.mrb[0].mxu0
    %v11402 = vadd.f32 %v11141, %v11401
    %v11403 = vpop.f32.mrb[0].mxu0
    %v11404 = vpop.f32.mrb[0].mxu0
    %v11405 = vadd.f32 %v11141, %v11404
    %v11406 = vpop.f32.mrb[0].mxu0
    %11407 = vmatprep.mubr.bf16.mxu0 %v11029
    %11408 = vmatmul.mubr.bf16.gmra.mrb[0].mxu0 %v11028
    %v11409 = vpop.f32.mrb[0].mxu0
    %v11410 = vadd.f32 %v11141, %v11409
    %v11411 = vpop.f32.mrb[0].mxu0
    %v11412 = vpop.f32.mrb[0].mxu0
    %v11413 = vadd.f32 %v11141, %v11412
    %v11414 = vpop.f32.mrb[0].mxu0
    %11415 = vmatprep.mubr.bf16.mxu0 %v11033
    %11416 = vmatmul.mubr.bf16.gmra.mrb[0].mxu0 %v11032
    %v11417 = vpop.f32.mrb[0].mxu0
    %v11418 = vadd.f32 %v11141, %v11417
    %v11419 = vpop.f32.mrb[0].mxu0
    %v11420 = vpop.f32.mrb[0].mxu0
    %v11421 = vadd.f32 %v11141, %v11420
    %v11422 = vpop.f32.mrb[0].mxu0
    %11423 = vmatprep.mubr.bf16.mxu0 %v11037
    %11424 = vmatmul.mubr.bf16.gmra.mrb[0].mxu0 %v11036
    %v11425 = vpop.f32.mrb[0].mxu0
    %v11426 = vadd.f32 %v11141, %v11425
    %v11427 = vpop.f32.mrb[0].mxu0
    %v11428 = vpop.f32.mrb[0].mxu0
    %v11429 = vadd.f32 %v11141, %v11428
    %v11430 = vpop.f32.mrb[0].mxu0
    %11431 = vmatprep.mubr.bf16.mxu0 %v11041
    %11432 = vmatmul.mubr.bf16.gmra.mrb[0].mxu0 %v11040
    %v11433 = vpop.f32.mrb[0].mxu0
    %v11434 = vadd.f32 %v11141, %v11433
    %v11435 = vpop.f32.mrb[0].mxu0
    %v11436 = vpop.f32.mrb[0].mxu0
    %v11437 = vadd.f32 %v11141, %v11436
    %v11438 = vpop.f32.mrb[0].mxu0
    %11439 = vmatprep.mubr.bf16.mxu0 %v11045
    %11440 = vmatmul.mubr.bf16.gmra.mrb[0].mxu0 %v11044
    %v11441 = vpop.f32.mrb[0].mxu0
    %v11442 = vadd.f32 %v11141, %v11441
    %v11443 = vpop.f32.mrb[0].mxu0
    %v11444 = vpop.f32.mrb[0].mxu0
    %v11445 = vadd.f32 %v11141, %v11444
    %v11446 = vpop.f32.mrb[0].mxu0
    %11447 = vmatprep.mubr.bf16.mxu0 %v11049
    %11448 = vmatmul.mubr.bf16.gmra.mrb[0].mxu0 %v11048
    %v11449 = vpop.f32.mrb[0].mxu0
    %v11450 = vadd.f32 %v11141, %v11449
    %v11451 = vpop.f32.mrb[0].mxu0
    %v11452 = vpop.f32.mrb[0].mxu0
    %v11453 = vadd.f32 %v11141, %v11452
    %v11454 = vpop.f32.mrb[0].mxu0
    %11455 = vmatprep.mubr.bf16.mxu0 %v11053
    %11456 = vmatmul.mubr.bf16.gmra.mrb[0].mxu0 %v11052
    %v11457 = vpop.f32.mrb[0].mxu0
    %v11458 = vadd.f32 %v11141, %v11457
    %v11459 = vpop.f32.mrb[0].mxu0
    %v11460 = vpop.f32.mrb[0].mxu0
    %v11461 = vadd.f32 %v11141, %v11460
    %v11462 = vpop.f32.mrb[0].mxu0
    %11463 = vmatprep.mubr.bf16.mxu0 %v11057
    %11464 = vmatmul.mubr.bf16.gmra.mrb[0].mxu0 %v11056
    %v11465 = vpop.f32.mrb[0].mxu0
    %v11466 = vadd.f32 %v11141, %v11465
    %v11467 = vpop.f32.mrb[0].mxu0
    %v11468 = vpop.f32.mrb[0].mxu0
    %v11469 = vadd.f32 %v11141, %v11468
    %v11470 = vpop.f32.mrb[0].mxu0
    %11471 = vmatprep.mubr.bf16.mxu0 %v11061
    %11472 = vmatmul.mubr.bf16.gmra.mrb[0].mxu0 %v11060
    %v11473 = vpop.f32.mrb[0].mxu0
    %v11474 = vadd.f32 %v11141, %v11473
    %v11475 = vpop.f32.mrb[0].mxu0
    %v11476 = vpop.f32.mrb[0].mxu0
    %v11477 = vadd.f32 %v11141, %v11476
    %v11478 = vpop.f32.mrb[0].mxu0
    %11479 = vmatprep.mubr.bf16.mxu0 %v11065
    %11480 = vmatmul.mubr.bf16.gmra.mrb[0].mxu0 %v11064
    %v11481 = vpop.f32.mrb[0].mxu0
    %v11482 = vadd.f32 %v11141, %v11481
    %v11483 = vpop.f32.mrb[0].mxu0
    %v11484 = vpop.f32.mrb[0].mxu0
    %v11485 = vadd.f32 %v11141, %v11484
    %v11486 = vpop.f32.mrb[0].mxu0
    %11487 = vmatprep.mubr.bf16.mxu0 %v11069
    %11488 = vmatmul.mubr.bf16.gmra.mrb[0].mxu0 %v11068
    %v11489 = vpop.f32.mrb[0].mxu0
    %v11490 = vadd.f32 %v11141, %v11489
    %v11491 = vpop.f32.mrb[0].mxu0
    %v11492 = vpop.f32.mrb[0].mxu0
    %v11493 = vadd.f32 %v11141, %v11492
    %v11494 = vpop.f32.mrb[0].mxu0
    %11495 = vdwg.mxu0
    %11496 = vmatprep.subr.bf16.mxu0 0
    %11497 = vmatpush1.bf16.msra.mxu0 %v11287
    %11498 = vmatprep.subr.bf16.mxu0 0
    %11499 = vmatpush1.bf16.msra.mxu0 %v11288
    %11500 = vmatprep.subr.bf16.mxu0 0
    %11501 = vmatpush1.bf16.msra.mxu0 %v11289
    %11502 = vmatprep.subr.bf16.mxu0 0
    %11503 = vmatpush1.bf16.msra.mxu0 %v11290
    %11504 = vmatprep.subr.bf16.mxu0 0
    %11505 = vmatpush1.bf16.msra.mxu0 %v11291
    %11506 = vmatprep.subr.bf16.mxu0 0
    %11507 = vmatpush1.bf16.msra.mxu0 %v11292
    %11508 = vmatprep.subr.bf16.mxu0 0
    %11509 = vmatpush1.bf16.msra.mxu0 %v11293
    %11510 = vmatprep.subr.bf16.mxu0 0
    %11511 = vmatpush1.bf16.msra.mxu0 %v11294
    %11512 = vmatprep.subr.bf16.mxu0 0
    %11513 = vmatpush1.bf16.msra.mxu0 %v11295
    %11514 = vmatprep.subr.bf16.mxu0 0
    %11515 = vmatpush1.bf16.msra.mxu0 %v11296
    %11516 = vmatprep.subr.bf16.mxu0 0
    %11517 = vmatpush1.bf16.msra.mxu0 %v11297
    %11518 = vmatprep.subr.bf16.mxu0 0
    %11519 = vmatpush1.bf16.msra.mxu0 %v11298
    %11520 = vmatprep.subr.bf16.mxu0 0
    %11521 = vmatpush1.bf16.msra.mxu0 %v11299
    %11522 = vmatprep.subr.bf16.mxu0 0
    %11523 = vmatpush1.bf16.msra.mxu0 %v11300
    %11524 = vmatprep.subr.bf16.mxu0 0
    %11525 = vmatpush1.bf16.msra.mxu0 %v11301
    %11526 = vmatprep.subr.bf16.mxu0 0
    %11527 = vmatpush1.bf16.msra.mxu0 %v11302
    %11528 = vmatprep.mubr.bf16.mxu0 %v11011
    %11529 = vmatmul.mubr.bf16.gmra.mrb[0].mxu0 %v11010
    %v11530 = vpop.f32.mrb[0].mxu0
    %v11531 = vadd.f32 %v11370, %v11530
    %v11532 = vpop.f32.mrb[0].mxu0
    %v11533 = vpop.f32.mrb[0].mxu0
    %v11534 = vadd.f32 %v11373, %v11533
    %v11535 = vpop.f32.mrb[0].mxu0
    %11536 = vmatprep.mubr.bf16.mxu0 %v11015
    %11537 = vmatmul.mubr.bf16.gmra.mrb[0].mxu0 %v11014
    %v11538 = vpop.f32.mrb[0].mxu0
    %v11539 = vadd.f32 %v11378, %v11538
    %v11540 = vpop.f32.mrb[0].mxu0
    %v11541 = vpop.f32.mrb[0].mxu0
    %v11542 = vadd.f32 %v11381, %v11541
    %v11543 = vpop.f32.mrb[0].mxu0
    %11544 = vmatprep.mubr.bf16.mxu0 %v11019
    %11545 = vmatmul.mubr.bf16.gmra.mrb[0].mxu0 %v11018
    %v11546 = vpop.f32.mrb[0].mxu0
    %v11547 = vadd.f32 %v11386, %v11546
    %v11548 = vpop.f32.mrb[0].mxu0
    %v11549 = vpop.f32.mrb[0].mxu0
    %v11550 = vadd.f32 %v11389, %v11549
    %v11551 = vpop.f32.mrb[0].mxu0
    %11552 = vmatprep.mubr.bf16.mxu0 %v11023
    %11553 = vmatmul.mubr.bf16.gmra.mrb[0].mxu0 %v11022
    %v11554 = vpop.f32.mrb[0].mxu0
    %v11555 = vadd.f32 %v11394, %v11554
    %v11556 = vpop.f32.mrb[0].mxu0
    %v11557 = vpop.f32.mrb[0].mxu0
    %v11558 = vadd.f32 %v11397, %v11557
    %v11559 = vpop.f32.mrb[0].mxu0
    %11560 = vmatprep.mubr.bf16.mxu0 %v11027
    %11561 = vmatmul.mubr.bf16.gmra.mrb[0].mxu0 %v11026
    %v11562 = vpop.f32.mrb[0].mxu0
    %v11563 = vadd.f32 %v11402, %v11562
    %v11564 = vpop.f32.mrb[0].mxu0
    %v11565 = vpop.f32.mrb[0].mxu0
    %v11566 = vadd.f32 %v11405, %v11565
    %v11567 = vpop.f32.mrb[0].mxu0
    %11568 = vmatprep.mubr.bf16.mxu0 %v11031
    %11569 = vmatmul.mubr.bf16.gmra.mrb[0].mxu0 %v11030
    %v11570 = vpop.f32.mrb[0].mxu0
    %v11571 = vadd.f32 %v11410, %v11570
    %v11572 = vpop.f32.mrb[0].mxu0
    %v11573 = vpop.f32.mrb[0].mxu0
    %v11574 = vadd.f32 %v11413, %v11573
    %v11575 = vpop.f32.mrb[0].mxu0
    %11576 = vmatprep.mubr.bf16.mxu0 %v11035
    %11577 = vmatmul.mubr.bf16.gmra.mrb[0].mxu0 %v11034
    %v11578 = vpop.f32.mrb[0].mxu0
    %v11579 = vadd.f32 %v11418, %v11578
    %v11580 = vpop.f32.mrb[0].mxu0
    %v11581 = vpop.f32.mrb[0].mxu0
    %v11582 = vadd.f32 %v11421, %v11581
    %v11583 = vpop.f32.mrb[0].mxu0
    %11584 = vmatprep.mubr.bf16.mxu0 %v11039
    %11585 = vmatmul.mubr.bf16.gmra.mrb[0].mxu0 %v11038
    %v11586 = vpop.f32.mrb[0].mxu0
    %v11587 = vadd.f32 %v11426, %v11586
    %v11588 = vpop.f32.mrb[0].mxu0
    %v11589 = vpop.f32.mrb[0].mxu0
    %v11590 = vadd.f32 %v11429, %v11589
    %v11591 = vpop.f32.mrb[0].mxu0
    %11592 = vmatprep.mubr.bf16.mxu0 %v11043
    %11593 = vmatmul.mubr.bf16.gmra.mrb[0].mxu0 %v11042
    %v11594 = vpop.f32.mrb[0].mxu0
    %v11595 = vadd.f32 %v11434, %v11594
    %v11596 = vpop.f32.mrb[0].mxu0
    %v11597 = vpop.f32.mrb[0].mxu0
    %v11598 = vadd.f32 %v11437, %v11597
    %v11599 = vpop.f32.mrb[0].mxu0
    %11600 = vmatprep.mubr.bf16.mxu0 %v11047
    %11601 = vmatmul.mubr.bf16.gmra.mrb[0].mxu0 %v11046
    %v11602 = vpop.f32.mrb[0].mxu0
    %v11603 = vadd.f32 %v11442, %v11602
    %v11604 = vpop.f32.mrb[0].mxu0
    %v11605 = vpop.f32.mrb[0].mxu0
    %v11606 = vadd.f32 %v11445, %v11605
    %v11607 = vpop.f32.mrb[0].mxu0
    %11608 = vmatprep.mubr.bf16.mxu0 %v11051
    %11609 = vmatmul.mubr.bf16.gmra.mrb[0].mxu0 %v11050
    %v11610 = vpop.f32.mrb[0].mxu0
    %v11611 = vadd.f32 %v11450, %v11610
    %v11612 = vpop.f32.mrb[0].mxu0
    %v11613 = vpop.f32.mrb[0].mxu0
    %v11614 = vadd.f32 %v11453, %v11613
    %v11615 = vpop.f32.mrb[0].mxu0
    %11616 = vmatprep.mubr.bf16.mxu0 %v11055
    %11617 = vmatmul.mubr.bf16.gmra.mrb[0].mxu0 %v11054
    %v11618 = vpop.f32.mrb[0].mxu0
    %v11619 = vadd.f32 %v11458, %v11618
    %v11620 = vpop.f32.mrb[0].mxu0
    %v11621 = vpop.f32.mrb[0].mxu0
    %v11622 = vadd.f32 %v11461, %v11621
    %v11623 = vpop.f32.mrb[0].mxu0
    %11624 = vmatprep.mubr.bf16.mxu0 %v11059
    %11625 = vmatmul.mubr.bf16.gmra.mrb[0].mxu0 %v11058
    %v11626 = vpop.f32.mrb[0].mxu0
    %v11627 = vadd.f32 %v11466, %v11626
    %v11628 = vpop.f32.mrb[0].mxu0
    %v11629 = vpop.f32.mrb[0].mxu0
    %v11630 = vadd.f32 %v11469, %v11629
    %v11631 = vpop.f32.mrb[0].mxu0
    %11632 = vmatprep.mubr.bf16.mxu0 %v11063
    %11633 = vmatmul.mubr.bf16.gmra.mrb[0].mxu0 %v11062
    %v11634 = vpop.f32.mrb[0].mxu0
    %v11635 = vadd.f32 %v11474, %v11634
    %v11636 = vpop.f32.mrb[0].mxu0
    %v11637 = vpop.f32.mrb[0].mxu0
    %v11638 = vadd.f32 %v11477, %v11637
    %v11639 = vpop.f32.mrb[0].mxu0
    %11640 = vmatprep.mubr.bf16.mxu0 %v11067
    %11641 = vmatmul.mubr.bf16.gmra.mrb[0].mxu0 %v11066
    %v11642 = vpop.f32.mrb[0].mxu0
    %v11643 = vadd.f32 %v11482, %v11642
    %v11644 = vpop.f32.mrb[0].mxu0
    %v11645 = vpop.f32.mrb[0].mxu0
    %v11646 = vadd.f32 %v11485, %v11645
    %v11647 = vpop.f32.mrb[0].mxu0
    %11648 = vmatprep.mubr.bf16.mxu0 %v11071
    %11649 = vmatmul.mubr.bf16.gmra.mrb[0].mxu0 %v11070
    %v11650 = vpop.f32.mrb[0].mxu0
    %v11651 = vadd.f32 %v11490, %v11650
    %v11652 = vpop.f32.mrb[0].mxu0
    %v11653 = vpop.f32.mrb[0].mxu0
    %v11654 = vadd.f32 %v11493, %v11653
    %v11655 = vpop.f32.mrb[0].mxu0
    %11656 = vdwg.mxu0
    %v11657 = vadd.f32 %v11531, %v10232
    %v11658 = vadd.f32 %v11534, %v10233
    %v11659 = vadd.f32 %v11539, %v10234
    %v11660 = vadd.f32 %v11542, %v10235
    %v11661 = vadd.f32 %v11547, %v10236
    %v11662 = vadd.f32 %v11550, %v10237
    %v11663 = vadd.f32 %v11555, %v10238
    %v11664 = vadd.f32 %v11558, %v10239
    %v11665 = vadd.f32 %v11563, %v10240
    %v11666 = vadd.f32 %v11566, %v10241
    %v11667 = vadd.f32 %v11571, %v10242
    %v11668 = vadd.f32 %v11574, %v10243
    %v11669 = vadd.f32 %v11579, %v10244
    %v11670 = vadd.f32 %v11582, %v10245
    %v11671 = vadd.f32 %v11587, %v10246
    %v11672 = vadd.f32 %v11590, %v10247
    %v11673 = vadd.f32 %v11595, %v10248
    %v11674 = vadd.f32 %v11598, %v10249
    %v11675 = vadd.f32 %v11603, %v10250
    %v11676 = vadd.f32 %v11606, %v10251
    %v11677 = vadd.f32 %v11611, %v10252
    %v11678 = vadd.f32 %v11614, %v10253
    %v11679 = vadd.f32 %v11619, %v10254
    %v11680 = vadd.f32 %v11622, %v10255
    %v11681 = vadd.f32 %v11627, %v10256
    %v11682 = vadd.f32 %v11630, %v10257
    %v11683 = vadd.f32 %v11635, %v10258
    %v11684 = vadd.f32 %v11638, %v10259
    %v11685 = vadd.f32 %v11643, %v10260
    %v11686 = vadd.f32 %v11646, %v10261
    %v11687 = vadd.f32 %v11651, %v10262
    %v11688 = vadd.f32 %v11654, %v10263
    %v11689 = vld [vmem:[%s14] sm:$0x1]
    %v11690 = vld [vmem:[%s15] sm:$0x1]
    %11691 = vadd.xlane.f32.xlu0 %v11657
    %v11692 = vpop.xlane.xlu0 %11691
    %11693 = vadd.xlane.f32.xlu0 %v11658
    %v11694 = vpop.xlane.xlu0 %11693
    %11695 = vadd.xlane.f32.xlu0 %v11659
    %v11696 = vpop.xlane.xlu0 %11695
    %11697 = vadd.xlane.f32.xlu0 %v11660
    %v11698 = vpop.xlane.xlu0 %11697
    %11699 = vadd.xlane.f32.xlu0 %v11661
    %v11700 = vpop.xlane.xlu0 %11699
    %11701 = vadd.xlane.f32.xlu0 %v11662
    %v11702 = vpop.xlane.xlu0 %11701
    %11703 = vadd.xlane.f32.xlu0 %v11663
    %v11704 = vpop.xlane.xlu0 %11703
    %11705 = vadd.xlane.f32.xlu0 %v11664
    %v11706 = vpop.xlane.xlu0 %11705
    %11707 = vadd.xlane.f32.xlu0 %v11665
    %v11708 = vpop.xlane.xlu0 %11707
    %11709 = vadd.xlane.f32.xlu0 %v11666
    %v11710 = vpop.xlane.xlu0 %11709
    %11711 = vadd.xlane.f32.xlu0 %v11667
    %v11712 = vpop.xlane.xlu0 %11711
    %11713 = vadd.xlane.f32.xlu0 %v11668
    %v11714 = vpop.xlane.xlu0 %11713
    %11715 = vadd.xlane.f32.xlu0 %v11669
    %v11716 = vpop.xlane.xlu0 %11715
    %11717 = vadd.xlane.f32.xlu0 %v11670
    %v11718 = vpop.xlane.xlu0 %11717
    %11719 = vadd.xlane.f32.xlu0 %v11671
    %v11720 = vpop.xlane.xlu0 %11719
    %11721 = vadd.xlane.f32.xlu0 %v11672
    %v11722 = vpop.xlane.xlu0 %11721
    %11723 = vadd.xlane.f32.xlu0 %v11673
    %v11724 = vpop.xlane.xlu0 %11723
    %11725 = vadd.xlane.f32.xlu0 %v11674
    %v11726 = vpop.xlane.xlu0 %11725
    %11727 = vadd.xlane.f32.xlu0 %v11675
    %v11728 = vpop.xlane.xlu0 %11727
    %11729 = vadd.xlane.f32.xlu0 %v11676
    %v11730 = vpop.xlane.xlu0 %11729
    %11731 = vadd.xlane.f32.xlu0 %v11677
    %v11732 = vpop.xlane.xlu0 %11731
    %11733 = vadd.xlane.f32.xlu0 %v11678
    %v11734 = vpop.xlane.xlu0 %11733
    %11735 = vadd.xlane.f32.xlu0 %v11679
    %v11736 = vpop.xlane.xlu0 %11735
    %11737 = vadd.xlane.f32.xlu0 %v11680
    %v11738 = vpop.xlane.xlu0 %11737
    %11739 = vadd.xlane.f32.xlu0 %v11681
    %v11740 = vpop.xlane.xlu0 %11739
    %11741 = vadd.xlane.f32.xlu0 %v11682
    %v11742 = vpop.xlane.xlu0 %11741
    %11743 = vadd.xlane.f32.xlu0 %v11683
    %v11744 = vpop.xlane.xlu0 %11743
    %11745 = vadd.xlane.f32.xlu0 %v11684
    %v11746 = vpop.xlane.xlu0 %11745
    %11747 = vadd.xlane.f32.xlu0 %v11685
    %v11748 = vpop.xlane.xlu0 %11747
    %11749 = vadd.xlane.f32.xlu0 %v11686
    %v11750 = vpop.xlane.xlu0 %11749
    %11751 = vadd.xlane.f32.xlu0 %v11687
    %v11752 = vpop.xlane.xlu0 %11751
    %11753 = vadd.xlane.f32.xlu0 %v11688
    %v11754 = vpop.xlane.xlu0 %11753
    %v11755 = vmul.f32 %v11692, %v582
    %v11756 = vmul.f32 %v11694, %v582
    %v11757 = vmul.f32 %v11696, %v582
    %v11758 = vmul.f32 %v11698, %v582
    %v11759 = vmul.f32 %v11700, %v582
    %v11760 = vmul.f32 %v11702, %v582
    %v11761 = vmul.f32 %v11704, %v582
    %v11762 = vmul.f32 %v11706, %v582
    %v11763 = vmul.f32 %v11708, %v582
    %v11764 = vmul.f32 %v11710, %v582
    %v11765 = vmul.f32 %v11712, %v582
    %v11766 = vmul.f32 %v11714, %v582
    %v11767 = vmul.f32 %v11716, %v582
    %v11768 = vmul.f32 %v11718, %v582
    %v11769 = vmul.f32 %v11720, %v582
    %v11770 = vmul.f32 %v11722, %v582
    %v11771 = vmul.f32 %v11724, %v582
    %v11772 = vmul.f32 %v11726, %v582
    %v11773 = vmul.f32 %v11728, %v582
    %v11774 = vmul.f32 %v11730, %v582
    %v11775 = vmul.f32 %v11732, %v582
    %v11776 = vmul.f32 %v11734, %v582
    %v11777 = vmul.f32 %v11736, %v582
    %v11778 = vmul.f32 %v11738, %v582
    %v11779 = vmul.f32 %v11740, %v582
    %v11780 = vmul.f32 %v11742, %v582
    %v11781 = vmul.f32 %v11744, %v582
    %v11782 = vmul.f32 %v11746, %v582
    %v11783 = vmul.f32 %v11748, %v582
    %v11784 = vmul.f32 %v11750, %v582
    %v11785 = vmul.f32 %v11752, %v582
    %v11786 = vmul.f32 %v11754, %v582
    %v11787 = vsub.f32 %v11657, %v11755
    %v11788 = vsub.f32 %v11658, %v11756
    %v11789 = vsub.f32 %v11659, %v11757
    %v11790 = vsub.f32 %v11660, %v11758
    %v11791 = vsub.f32 %v11661, %v11759
    %v11792 = vsub.f32 %v11662, %v11760
    %v11793 = vsub.f32 %v11663, %v11761
    %v11794 = vsub.f32 %v11664, %v11762
    %v11795 = vsub.f32 %v11665, %v11763
    %v11796 = vsub.f32 %v11666, %v11764
    %v11797 = vsub.f32 %v11667, %v11765
    %v11798 = vsub.f32 %v11668, %v11766
    %v11799 = vsub.f32 %v11669, %v11767
    %v11800 = vsub.f32 %v11670, %v11768
    %v11801 = vsub.f32 %v11671, %v11769
    %v11802 = vsub.f32 %v11672, %v11770
    %v11803 = vsub.f32 %v11673, %v11771
    %v11804 = vsub.f32 %v11674, %v11772
    %v11805 = vsub.f32 %v11675, %v11773
    %v11806 = vsub.f32 %v11676, %v11774
    %v11807 = vsub.f32 %v11677, %v11775
    %v11808 = vsub.f32 %v11678, %v11776
    %v11809 = vsub.f32 %v11679, %v11777
    %v11810 = vsub.f32 %v11680, %v11778
    %v11811 = vsub.f32 %v11681, %v11779
    %v11812 = vsub.f32 %v11682, %v11780
    %v11813 = vsub.f32 %v11683, %v11781
    %v11814 = vsub.f32 %v11684, %v11782
    %v11815 = vsub.f32 %v11685, %v11783
    %v11816 = vsub.f32 %v11686, %v11784
    %v11817 = vsub.f32 %v11687, %v11785
    %v11818 = vsub.f32 %v11688, %v11786
    %v11819 = vmul.f32 %v11787, %v11787
    %v11820 = vmul.f32 %v11788, %v11788
    %v11821 = vmul.f32 %v11789, %v11789
    %v11822 = vmul.f32 %v11790, %v11790
    %v11823 = vmul.f32 %v11791, %v11791
    %v11824 = vmul.f32 %v11792, %v11792
    %v11825 = vmul.f32 %v11793, %v11793
    %v11826 = vmul.f32 %v11794, %v11794
    %v11827 = vmul.f32 %v11795, %v11795
    %v11828 = vmul.f32 %v11796, %v11796
    %v11829 = vmul.f32 %v11797, %v11797
    %v11830 = vmul.f32 %v11798, %v11798
    %v11831 = vmul.f32 %v11799, %v11799
    %v11832 = vmul.f32 %v11800, %v11800
    %v11833 = vmul.f32 %v11801, %v11801
    %v11834 = vmul.f32 %v11802, %v11802
    %v11835 = vmul.f32 %v11803, %v11803
    %v11836 = vmul.f32 %v11804, %v11804
    %v11837 = vmul.f32 %v11805, %v11805
    %v11838 = vmul.f32 %v11806, %v11806
    %v11839 = vmul.f32 %v11807, %v11807
    %v11840 = vmul.f32 %v11808, %v11808
    %v11841 = vmul.f32 %v11809, %v11809
    %v11842 = vmul.f32 %v11810, %v11810
    %v11843 = vmul.f32 %v11811, %v11811
    %v11844 = vmul.f32 %v11812, %v11812
    %v11845 = vmul.f32 %v11813, %v11813
    %v11846 = vmul.f32 %v11814, %v11814
    %v11847 = vmul.f32 %v11815, %v11815
    %v11848 = vmul.f32 %v11816, %v11816
    %v11849 = vmul.f32 %v11817, %v11817
    %v11850 = vmul.f32 %v11818, %v11818
    %11851 = vadd.xlane.f32.xlu0 %v11819
    %v11852 = vpop.xlane.xlu0 %11851
    %11853 = vadd.xlane.f32.xlu0 %v11820
    %v11854 = vpop.xlane.xlu0 %11853
    %11855 = vadd.xlane.f32.xlu0 %v11821
    %v11856 = vpop.xlane.xlu0 %11855
    %11857 = vadd.xlane.f32.xlu0 %v11822
    %v11858 = vpop.xlane.xlu0 %11857
    %11859 = vadd.xlane.f32.xlu0 %v11823
    %v11860 = vpop.xlane.xlu0 %11859
    %11861 = vadd.xlane.f32.xlu0 %v11824
    %v11862 = vpop.xlane.xlu0 %11861
    %11863 = vadd.xlane.f32.xlu0 %v11825
    %v11864 = vpop.xlane.xlu0 %11863
    %11865 = vadd.xlane.f32.xlu0 %v11826
    %v11866 = vpop.xlane.xlu0 %11865
    %11867 = vadd.xlane.f32.xlu0 %v11827
    %v11868 = vpop.xlane.xlu0 %11867
    %11869 = vadd.xlane.f32.xlu0 %v11828
    %v11870 = vpop.xlane.xlu0 %11869
    %11871 = vadd.xlane.f32.xlu0 %v11829
    %v11872 = vpop.xlane.xlu0 %11871
    %11873 = vadd.xlane.f32.xlu0 %v11830
    %v11874 = vpop.xlane.xlu0 %11873
    %11875 = vadd.xlane.f32.xlu0 %v11831
    %v11876 = vpop.xlane.xlu0 %11875
    %11877 = vadd.xlane.f32.xlu0 %v11832
    %v11878 = vpop.xlane.xlu0 %11877
    %11879 = vadd.xlane.f32.xlu0 %v11833
    %v11880 = vpop.xlane.xlu0 %11879
    %11881 = vadd.xlane.f32.xlu0 %v11834
    %v11882 = vpop.xlane.xlu0 %11881
    %11883 = vadd.xlane.f32.xlu0 %v11835
    %v11884 = vpop.xlane.xlu0 %11883
    %11885 = vadd.xlane.f32.xlu0 %v11836
    %v11886 = vpop.xlane.xlu0 %11885
    %11887 = vadd.xlane.f32.xlu0 %v11837
    %v11888 = vpop.xlane.xlu0 %11887
    %11889 = vadd.xlane.f32.xlu0 %v11838
    %v11890 = vpop.xlane.xlu0 %11889
    %11891 = vadd.xlane.f32.xlu0 %v11839
    %v11892 = vpop.xlane.xlu0 %11891
    %11893 = vadd.xlane.f32.xlu0 %v11840
    %v11894 = vpop.xlane.xlu0 %11893
    %11895 = vadd.xlane.f32.xlu0 %v11841
    %v11896 = vpop.xlane.xlu0 %11895
    %11897 = vadd.xlane.f32.xlu0 %v11842
    %v11898 = vpop.xlane.xlu0 %11897
    %11899 = vadd.xlane.f32.xlu0 %v11843
    %v11900 = vpop.xlane.xlu0 %11899
    %11901 = vadd.xlane.f32.xlu0 %v11844
    %v11902 = vpop.xlane.xlu0 %11901
    %11903 = vadd.xlane.f32.xlu0 %v11845
    %v11904 = vpop.xlane.xlu0 %11903
    %11905 = vadd.xlane.f32.xlu0 %v11846
    %v11906 = vpop.xlane.xlu0 %11905
    %11907 = vadd.xlane.f32.xlu0 %v11847
    %v11908 = vpop.xlane.xlu0 %11907
    %11909 = vadd.xlane.f32.xlu0 %v11848
    %v11910 = vpop.xlane.xlu0 %11909
    %11911 = vadd.xlane.f32.xlu0 %v11849
    %v11912 = vpop.xlane.xlu0 %11911
    %11913 = vadd.xlane.f32.xlu0 %v11850
    %v11914 = vpop.xlane.xlu0 %11913
    %v11915 = vmul.f32 %v11852, %v582
    %v11916 = vmul.f32 %v11854, %v582
    %v11917 = vmul.f32 %v11856, %v582
    %v11918 = vmul.f32 %v11858, %v582
    %v11919 = vmul.f32 %v11860, %v582
    %v11920 = vmul.f32 %v11862, %v582
    %v11921 = vmul.f32 %v11864, %v582
    %v11922 = vmul.f32 %v11866, %v582
    %v11923 = vmul.f32 %v11868, %v582
    %v11924 = vmul.f32 %v11870, %v582
    %v11925 = vmul.f32 %v11872, %v582
    %v11926 = vmul.f32 %v11874, %v582
    %v11927 = vmul.f32 %v11876, %v582
    %v11928 = vmul.f32 %v11878, %v582
    %v11929 = vmul.f32 %v11880, %v582
    %v11930 = vmul.f32 %v11882, %v582
    %v11931 = vmul.f32 %v11884, %v582
    %v11932 = vmul.f32 %v11886, %v582
    %v11933 = vmul.f32 %v11888, %v582
    %v11934 = vmul.f32 %v11890, %v582
    %v11935 = vmul.f32 %v11892, %v582
    %v11936 = vmul.f32 %v11894, %v582
    %v11937 = vmul.f32 %v11896, %v582
    %v11938 = vmul.f32 %v11898, %v582
    %v11939 = vmul.f32 %v11900, %v582
    %v11940 = vmul.f32 %v11902, %v582
    %v11941 = vmul.f32 %v11904, %v582
    %v11942 = vmul.f32 %v11906, %v582
    %v11943 = vmul.f32 %v11908, %v582
    %v11944 = vmul.f32 %v11910, %v582
    %v11945 = vmul.f32 %v11912, %v582
    %v11946 = vmul.f32 %v11914, %v582
    %v11947 = vadd.f32 %v11915, 1e-05
    %v11948 = vadd.f32 %v11916, 1e-05
    %v11949 = vadd.f32 %v11917, 1e-05
    %v11950 = vadd.f32 %v11918, 1e-05
    %v11951 = vadd.f32 %v11919, 1e-05
    %v11952 = vadd.f32 %v11920, 1e-05
    %v11953 = vadd.f32 %v11921, 1e-05
    %v11954 = vadd.f32 %v11922, 1e-05
    %v11955 = vadd.f32 %v11923, 1e-05
    %v11956 = vadd.f32 %v11924, 1e-05
    %v11957 = vadd.f32 %v11925, 1e-05
    %v11958 = vadd.f32 %v11926, 1e-05
    %v11959 = vadd.f32 %v11927, 1e-05
    %v11960 = vadd.f32 %v11928, 1e-05
    %v11961 = vadd.f32 %v11929, 1e-05
    %v11962 = vadd.f32 %v11930, 1e-05
    %v11963 = vadd.f32 %v11931, 1e-05
    %v11964 = vadd.f32 %v11932, 1e-05
    %v11965 = vadd.f32 %v11933, 1e-05
    %v11966 = vadd.f32 %v11934, 1e-05
    %v11967 = vadd.f32 %v11935, 1e-05
    %v11968 = vadd.f32 %v11936, 1e-05
    %v11969 = vadd.f32 %v11937, 1e-05
    %v11970 = vadd.f32 %v11938, 1e-05
    %v11971 = vadd.f32 %v11939, 1e-05
    %v11972 = vadd.f32 %v11940, 1e-05
    %v11973 = vadd.f32 %v11941, 1e-05
    %v11974 = vadd.f32 %v11942, 1e-05
    %v11975 = vadd.f32 %v11943, 1e-05
    %v11976 = vadd.f32 %v11944, 1e-05
    %v11977 = vadd.f32 %v11945, 1e-05
    %v11978 = vadd.f32 %v11946, 1e-05
    %v11979 = vrsqrt.pop %v11947
    %v11980 = vrsqrt.pop %v11948
    %v11981 = vrsqrt.pop %v11949
    %v11982 = vrsqrt.pop %v11950
    %v11983 = vrsqrt.pop %v11951
    %v11984 = vrsqrt.pop %v11952
    %v11985 = vrsqrt.pop %v11953
    %v11986 = vrsqrt.pop %v11954
    %v11987 = vrsqrt.pop %v11955
    %v11988 = vrsqrt.pop %v11956
    %v11989 = vrsqrt.pop %v11957
    %v11990 = vrsqrt.pop %v11958
    %v11991 = vrsqrt.pop %v11959
    %v11992 = vrsqrt.pop %v11960
    %v11993 = vrsqrt.pop %v11961
    %v11994 = vrsqrt.pop %v11962
    %v11995 = vrsqrt.pop %v11963
    %v11996 = vrsqrt.pop %v11964
    %v11997 = vrsqrt.pop %v11965
    %v11998 = vrsqrt.pop %v11966
    %v11999 = vrsqrt.pop %v11967
    %v12000 = vrsqrt.pop %v11968
    %v12001 = vrsqrt.pop %v11969
    %v12002 = vrsqrt.pop %v11970
    %v12003 = vrsqrt.pop %v11971
    %v12004 = vrsqrt.pop %v11972
    %v12005 = vrsqrt.pop %v11973
    %v12006 = vrsqrt.pop %v11974
    %v12007 = vrsqrt.pop %v11975
    %v12008 = vrsqrt.pop %v11976
    %v12009 = vrsqrt.pop %v11977
    %v12010 = vrsqrt.pop %v11978
    %v12011 = vmul.f32 %v11787, %v11979
    %v12012 = vmul.f32 %v11788, %v11980
    %v12013 = vmul.f32 %v11789, %v11981
    %v12014 = vmul.f32 %v11790, %v11982
    %v12015 = vmul.f32 %v11791, %v11983
    %v12016 = vmul.f32 %v11792, %v11984
    %v12017 = vmul.f32 %v11793, %v11985
    %v12018 = vmul.f32 %v11794, %v11986
    %v12019 = vmul.f32 %v11795, %v11987
    %v12020 = vmul.f32 %v11796, %v11988
    %v12021 = vmul.f32 %v11797, %v11989
    %v12022 = vmul.f32 %v11798, %v11990
    %v12023 = vmul.f32 %v11799, %v11991
    %v12024 = vmul.f32 %v11800, %v11992
    %v12025 = vmul.f32 %v11801, %v11993
    %v12026 = vmul.f32 %v11802, %v11994
    %v12027 = vmul.f32 %v11803, %v11995
    %v12028 = vmul.f32 %v11804, %v11996
    %v12029 = vmul.f32 %v11805, %v11997
    %v12030 = vmul.f32 %v11806, %v11998
    %v12031 = vmul.f32 %v11807, %v11999
    %v12032 = vmul.f32 %v11808, %v12000
    %v12033 = vmul.f32 %v11809, %v12001
    %v12034 = vmul.f32 %v11810, %v12002
    %v12035 = vmul.f32 %v11811, %v12003
    %v12036 = vmul.f32 %v11812, %v12004
    %v12037 = vmul.f32 %v11813, %v12005
    %v12038 = vmul.f32 %v11814, %v12006
    %v12039 = vmul.f32 %v11815, %v12007
    %v12040 = vmul.f32 %v11816, %v12008
    %v12041 = vmul.f32 %v11817, %v12009
    %v12042 = vmul.f32 %v11818, %v12010
    %v12044 = vlaneseq
    %v12045 = vshrl.u32 %v12044, 7
    %v12046 = vsub.s32 0, %v12045
    %v12047 = vrot.slane %v11689, %v12046
    %v12049 = vmul.f32 %v12011, %v12047
    %v12050 = vmul.f32 %v12012, %v12047
    %v12051 = vmul.f32 %v12013, %v12047
    %v12052 = vmul.f32 %v12014, %v12047
    %v12053 = vmul.f32 %v12015, %v12047
    %v12054 = vmul.f32 %v12016, %v12047
    %v12055 = vmul.f32 %v12017, %v12047
    %v12056 = vmul.f32 %v12018, %v12047
    %v12057 = vmul.f32 %v12019, %v12047
    %v12058 = vmul.f32 %v12020, %v12047
    %v12059 = vmul.f32 %v12021, %v12047
    %v12060 = vmul.f32 %v12022, %v12047
    %v12061 = vmul.f32 %v12023, %v12047
    %v12062 = vmul.f32 %v12024, %v12047
    %v12063 = vmul.f32 %v12025, %v12047
    %v12064 = vmul.f32 %v12026, %v12047
    %v12065 = vmul.f32 %v12027, %v12047
    %v12066 = vmul.f32 %v12028, %v12047
    %v12067 = vmul.f32 %v12029, %v12047
    %v12068 = vmul.f32 %v12030, %v12047
    %v12069 = vmul.f32 %v12031, %v12047
    %v12070 = vmul.f32 %v12032, %v12047
    %v12071 = vmul.f32 %v12033, %v12047
    %v12072 = vmul.f32 %v12034, %v12047
    %v12073 = vmul.f32 %v12035, %v12047
    %v12074 = vmul.f32 %v12036, %v12047
    %v12075 = vmul.f32 %v12037, %v12047
    %v12076 = vmul.f32 %v12038, %v12047
    %v12077 = vmul.f32 %v12039, %v12047
    %v12078 = vmul.f32 %v12040, %v12047
    %v12079 = vmul.f32 %v12041, %v12047
    %v12080 = vmul.f32 %v12042, %v12047
    %v12082 = vlaneseq
    %v12083 = vshrl.u32 %v12082, 7
    %v12084 = vsub.s32 0, %v12083
    %v12085 = vrot.slane %v11690, %v12084
    %v12087 = vadd.f32 %v12049, %v12085
    %v12088 = vadd.f32 %v12050, %v12085
    %v12089 = vadd.f32 %v12051, %v12085
    %v12090 = vadd.f32 %v12052, %v12085
    %v12091 = vadd.f32 %v12053, %v12085
    %v12092 = vadd.f32 %v12054, %v12085
    %v12093 = vadd.f32 %v12055, %v12085
    %v12094 = vadd.f32 %v12056, %v12085
    %v12095 = vadd.f32 %v12057, %v12085
    %v12096 = vadd.f32 %v12058, %v12085
    %v12097 = vadd.f32 %v12059, %v12085
    %v12098 = vadd.f32 %v12060, %v12085
    %v12099 = vadd.f32 %v12061, %v12085
    %v12100 = vadd.f32 %v12062, %v12085
    %v12101 = vadd.f32 %v12063, %v12085
    %v12102 = vadd.f32 %v12064, %v12085
    %v12103 = vadd.f32 %v12065, %v12085
    %v12104 = vadd.f32 %v12066, %v12085
    %v12105 = vadd.f32 %v12067, %v12085
    %v12106 = vadd.f32 %v12068, %v12085
    %v12107 = vadd.f32 %v12069, %v12085
    %v12108 = vadd.f32 %v12070, %v12085
    %v12109 = vadd.f32 %v12071, %v12085
    %v12110 = vadd.f32 %v12072, %v12085
    %v12111 = vadd.f32 %v12073, %v12085
    %v12112 = vadd.f32 %v12074, %v12085
    %v12113 = vadd.f32 %v12075, %v12085
    %v12114 = vadd.f32 %v12076, %v12085
    %v12115 = vadd.f32 %v12077, %v12085
    %v12116 = vadd.f32 %v12078, %v12085
    %v12117 = vadd.f32 %v12079, %v12085
    %v12118 = vadd.f32 %v12080, %v12085
    %12119 = vst [vmem:[#allocation14] sm:$0xff] %v12087
    %12120 = vst [vmem:[#allocation14 + $0x8] sm:$0xff] %v12088
    %12121 = vst [vmem:[#allocation14 + $0x10] sm:$0xff] %v12089
    %12122 = vst [vmem:[#allocation14 + $0x18] sm:$0xff] %v12090
    %12123 = vst [vmem:[#allocation14 + $0x20] sm:$0xff] %v12091
    %12124 = vst [vmem:[#allocation14 + $0x28] sm:$0xff] %v12092
    %12125 = vst [vmem:[#allocation14 + $0x30] sm:$0xff] %v12093
    %12126 = vst [vmem:[#allocation14 + $0x38] sm:$0xff] %v12094
    %12127 = vst [vmem:[#allocation14 + $0x40] sm:$0xff] %v12095
    %12128 = vst [vmem:[#allocation14 + $0x48] sm:$0xff] %v12096
    %12129 = vst [vmem:[#allocation14 + $0x50] sm:$0xff] %v12097
    %12130 = vst [vmem:[#allocation14 + $0x58] sm:$0xff] %v12098
    %12131 = vst [vmem:[#allocation14 + $0x60] sm:$0xff] %v12099
    %12132 = vst [vmem:[#allocation14 + $0x68] sm:$0xff] %v12100
    %12133 = vst [vmem:[#allocation14 + $0x70] sm:$0xff] %v12101
    %12134 = vst [vmem:[#allocation14 + $0x78] sm:$0xff] %v12102
    %12135 = vst [vmem:[#allocation14 + $0x80] sm:$0xff] %v12103
    %12136 = vst [vmem:[#allocation14 + $0x88] sm:$0xff] %v12104
    %12137 = vst [vmem:[#allocation14 + $0x90] sm:$0xff] %v12105
    %12138 = vst [vmem:[#allocation14 + $0x98] sm:$0xff] %v12106
    %12139 = vst [vmem:[#allocation14 + $0xa0] sm:$0xff] %v12107
    %12140 = vst [vmem:[#allocation14 + $0xa8] sm:$0xff] %v12108
    %12141 = vst [vmem:[#allocation14 + $0xb0] sm:$0xff] %v12109
    %12142 = vst [vmem:[#allocation14 + $0xb8] sm:$0xff] %v12110
    %12143 = vst [vmem:[#allocation14 + $0xc0] sm:$0xff] %v12111
    %12144 = vst [vmem:[#allocation14 + $0xc8] sm:$0xff] %v12112
    %12145 = vst [vmem:[#allocation14 + $0xd0] sm:$0xff] %v12113
    %12146 = vst [vmem:[#allocation14 + $0xd8] sm:$0xff] %v12114
    %12147 = vst [vmem:[#allocation14 + $0xe0] sm:$0xff] %v12115
    %12148 = vst [vmem:[#allocation14 + $0xe8] sm:$0xff] %v12116
    %12149 = vst [vmem:[#allocation14 + $0xf0] sm:$0xff] %v12117
    %12150 = vst [vmem:[#allocation14 + $0xf8] sm:$0xff] %v12118
    // Predicated region
    $region90: #{tpu_custom_call.1} parent=1 // pred_check
      _
    $region91: #{tpu_custom_call.1} parent=1 // pred_check_branch
      %12152 = sbr.rel (0) target = $region93
    $region92: #{tpu_custom_call.1} parent=1 // pred_region
      %s12154 = ssub.s32 4096, 4096
      %12155 = vsyncadd [#allocation5], %s12154
      %s12156 = sshll.u32 [#allocation14], 4
      %s12157 = int_to_ptr.vmem [resolvable:$true] %s12156
      %12162 = dma.vmem_to_hbm [thread:$0]  %s12157, 4096, %s16, [#allocation5], 128, 128, 8
    $region93: #{tpu_custom_call.1} parent=1 // pred_fallthru
      _
    // Predicated region
    $region94: #{tpu_custom_call.1} parent=1 // pred_check
      _
    $region95: #{tpu_custom_call.1} parent=1 // pred_check_branch
      %12164 = sbr.rel (0) target = $region97
    $region96: #{tpu_custom_call.1} parent=1 // pred_region
      %12165 = dma.done [#allocation5], 4096
    $region97: #{tpu_custom_call.1} parent=1 // pred_fallthru
      _
    %12166 = vsyncpa [#allocation4], 1
    %12167 = vsyncpa [#allocation7], 1
    %12168 = vsyncpa [#allocation10], 1
    %12169 = vsyncpa [#allocation13], 1
    %12170 = vsyncpa [#allocation5], 1

</llo_original>
